<compile_context>
chip_gen: v7x
topology: tpu7x:2x2x1
jax: 0.10.0
libtpu: 0.0.40
codegen_flags: <defaults>
</compile_context>

<pallas_src>
import functools

import jax
import jax.numpy as jnp
from jax import lax
from jax.experimental import pallas as pl
from jax.experimental.pallas import tpu as pltpu


def _basic_block_kernel(x_ref, top_ref, bot_ref, w1_ref, b1_ref, w2_ref,
                        b2_ref, out_ref, *, tile_h, W, Cin, Cout, cdt):
    """One (batch, row-tile) step of the fused BasicBlock (stride=1) forward.

    x_ref   : (1, tile_h, W, Cin) f32   interior rows (also the residual)
    top_ref : (1, 2, W, Cin)      f32   2 rows above the tile (clamped block)
    bot_ref : (1, 2, W, Cin)      f32   2 rows below the tile (clamped block)
    w1_ref  : (3, 3*Cin, Cout)    cdt   conv1; dx folded into K, BN1 scale folded
    b1_ref  : (1, Cout)           f32   folded BN1 bias
    w2_ref  : (3, 3*Cout, Cout)   cdt   conv2; dx folded into K, BN2 scale folded
    b2_ref  : (1, Cout)           f32   folded BN2 bias
    out_ref : (1, tile_h, W, Cout)
    """
    t = pl.program_id(1)
    num_t = pl.num_programs(1)
    HY = tile_h + 2          # conv1 rows computed (1-row halo for conv2)
    HP = tile_h + 4          # x rows feeding conv1 (2-row halo)

    # Halo rows that fall outside the image act as conv zero-padding.
    top_keep = jnp.where(t > 0, 1.0, 0.0).astype(cdt)
    bot_keep = jnp.where(t < num_t - 1, 1.0, 0.0).astype(cdt)

    x_res = x_ref[0]                                      # (tile_h, W, Cin) f32
    x_tile = x_res.astype(cdt)
    top = top_ref[0].astype(cdt) * top_keep
    bot = bot_ref[0].astype(cdt) * bot_keep
    x_ext = jnp.concatenate([top, x_tile, bot], axis=0)   # (HP, W, Cin) cdt

    def dx_fold(src, rows, c):
        """Concat the 3 dx-shifted views along channels -> (rows, W, 3*c).

        Channel block dx holds src column j + dx - 1 (zero at the W edges),
        matching the weight layout K-index = dx*c + channel.
        """
        zcol = jnp.zeros((rows, 1, c), cdt)
        left = jnp.concatenate([zcol, src[:, :W - 1, :]], axis=1)   # x[j-1]
        right = jnp.concatenate([src[:, 1:, :], zcol], axis=1)      # x[j+1]
        return jnp.concatenate([left, src, right], axis=2)

    def conv_dy(cat, w_ref, rows, kdim):
        """sum over dy of (rows*W, kdim) @ (kdim, Cout), f32 accumulation."""
        acc = None
        for dy in range(3):
            win = cat[dy:dy + rows].reshape(rows * W, kdim)
            d = jnp.dot(win, w_ref[dy], preferred_element_type=jnp.float32)
            acc = d if acc is None else acc + d
        return acc

    # ---- conv1 (BN1 scale folded) + bias + relu over tile_h + 2 rows -------
    xcat = dx_fold(x_ext, HP, Cin)                        # (HP, W, 3*Cin) cdt
    acc1 = conv_dy(xcat, w1_ref, HY, 3 * Cin)             # (HY*W, Cout) f32
    y1 = jnp.maximum(acc1 + b1_ref[...], 0.0).astype(cdt).reshape(HY, W, Cout)

    # y1 halo rows outside the image are conv2's zero padding.
    rows_idx = lax.broadcasted_iota(jnp.int32, (HY, 1, 1), 0)
    keep = jnp.logical_and(jnp.logical_or(rows_idx > 0, t > 0),
                           jnp.logical_or(rows_idx < HY - 1, t < num_t - 1))
    y1 = jnp.where(keep, y1, jnp.zeros_like(y1))

    # ---- conv2 (BN2 scale folded) + bias + residual add + relu -------------
    ycat = dx_fold(y1, HY, Cout)                          # (HY, W, 3*Cout) cdt
    acc2 = conv_dy(ycat, w2_ref, tile_h, 3 * Cout)        # (tile_h*W, Cout) f32
    y2 = acc2 + b2_ref[...]
    out = jnp.maximum(x_res.reshape(tile_h * W, Cout) + y2, 0.0)
    out_ref[0] = out.reshape(tile_h, W, Cout).astype(out_ref.dtype)


def _vmem_bytes(tile_h, W, Cin, Cout, cbytes):
    """Rough per-step VMEM usage: double-buffered blocks + live intermediates."""
    HP, HY = tile_h + 4, tile_h + 2
    blocks = (tile_h * W * Cin * 4            # x block
              + 2 * 2 * W * Cin * 4           # two 2-row halo blocks
              + 3 * 3 * Cin * Cout * cbytes   # w1 folded
              + 3 * 3 * Cout * Cout * cbytes  # w2 folded
              + 2 * Cout * 4                  # biases
              + tile_h * W * Cout * 4)        # out block
    interm = (HP * W * 4 * Cin * cbytes       # x_ext + xcat
              + HY * W * 4 * Cout * cbytes    # y1 + ycat
              + HY * W * Cout * 4             # acc1
              + tile_h * W * Cout * 4 * 2)    # acc2 / out
    return 2 * blocks + interm


def _pick_tile_h(N, H, W, Cin, Cout, requested, cbytes):
    """Largest even divisor of H whose per-step slabs fit a small VMEM budget."""
    assert H % 2 == 0, "H must be even (2-row halo blocks); ragged H is a TODO"
    divisors = [d for d in range(2, H + 1, 2) if H % d == 0]
    if requested is not None:
        th = min(requested, H)
        assert th % 2 == 0 and H % th == 0, "tile_h must be an even divisor of H"
        return th
    budget = 6 * 1024 * 1024
    fits = [d for d in divisors if _vmem_bytes(d, W, Cin, Cout, cbytes) <= budget]
    th = max(fits) if fits else divisors[0]
    if N == 1 and th == H and len(divisors) > 1:
        # Keep >= 2 grid steps on a parallel axis so both v7x TCs get work.
        th = max(d for d in divisors if d < H)
    return th


def basic_block_forward(x_nchw, params, stride=1, *, tile_h=None,
                        compute_dtype=jnp.bfloat16):
    """Fused BasicBlock (stride=1, eval-mode BN) forward as a Pallas TPU kernel.

    x_nchw: (N, Cin, H, W) float32 (PyTorch layout).  Returns (N, Cout, H, W).
    """
    assert stride == 1, "stride>1 (downsample) path not implemented"
    N, Cin, H, W = x_nchw.shape
    assert W % 8 == 0, "W must be a multiple of 8 (sublane tiling)"
    eps = 1e-5

    # Eval-mode BN folded to per-output-channel scale/bias; the scale is folded
    # straight into the conv weights (in f32, before the bf16 cast).
    s1 = params["bn1_gamma"] * lax.rsqrt(params["bn1_var"] + eps)
    b1 = params["bn1_beta"] - params["bn1_mean"] * s1
    s2 = params["bn2_gamma"] * lax.rsqrt(params["bn2_var"] + eps)
    b2 = params["bn2_beta"] - params["bn2_mean"] * s2

    # OIHW -> (dy, dx, cin, cout); fold dx into the contraction dim so each
    # conv is 3 MXU matmuls with K = 3*C instead of 9 matmuls with K = C.
    w1 = jnp.transpose(params["conv1_w"], (2, 3, 1, 0)) * s1
    Cout = w1.shape[-1]
    assert Cin == Cout, "identity residual requires in_planes == planes"
    w2 = jnp.transpose(params["conv2_w"], (2, 3, 1, 0)) * s2
    w1f = w1.reshape(3, 3 * Cin, Cout).astype(compute_dtype)
    w2f = w2.reshape(3, 3 * Cout, Cout).astype(compute_dtype)

    cbytes = jnp.dtype(compute_dtype).itemsize
    tile_h = _pick_tile_h(N, H, W, Cin, Cout, tile_h, cbytes)
    num_t = H // tile_h
    h2 = tile_h // 2

    x_nhwc = jnp.transpose(x_nchw, (0, 2, 3, 1))                  # NCHW -> NHWC

    kernel = functools.partial(_basic_block_kernel, tile_h=tile_h, W=W,
                               Cin=Cin, Cout=Cout, cdt=compute_dtype)

    # Usage-derived scoped-VMEM limit; keep well under v7x's 64 MiB/TC.
    vmem_limit = int(min(max(2 * _vmem_bytes(tile_h, W, Cin, Cout, cbytes),
                             24 * 1024 * 1024), 48 * 1024 * 1024))

    out_nhwc = pl.pallas_call(
        kernel,
        out_shape=jax.ShapeDtypeStruct((N, H, W, Cout), x_nchw.dtype),
        grid_spec=pltpu.PrefetchScalarGridSpec(
            num_scalar_prefetch=0,
            grid=(N, num_t),
            in_specs=[
                # Interior rows of the tile (also used as the residual).
                pl.BlockSpec((1, tile_h, W, Cin), lambda n, t: (n, t, 0, 0)),
                # 2-row halo above (clamped to a valid block; zeroed in-kernel
                # when t == 0).
                pl.BlockSpec((1, 2, W, Cin),
                             lambda n, t: (n, jnp.maximum(t * h2 - 1, 0), 0, 0)),
                # 2-row halo below (clamped; zeroed in-kernel when t == T-1).
                pl.BlockSpec((1, 2, W, Cin),
                             lambda n, t: (n, jnp.minimum((t + 1) * h2,
                                                          H // 2 - 1), 0, 0)),
                pl.BlockSpec((3, 3 * Cin, Cout), lambda n, t: (0, 0, 0)),
                pl.BlockSpec((1, Cout), lambda n, t: (0, 0)),
                pl.BlockSpec((3, 3 * Cout, Cout), lambda n, t: (0, 0, 0)),
                pl.BlockSpec((1, Cout), lambda n, t: (0, 0)),
            ],
            out_specs=pl.BlockSpec((1, tile_h, W, Cout),
                                   lambda n, t: (n, t, 0, 0)),
        ),
        compiler_params=pltpu.CompilerParams(
            dimension_semantics=("parallel", "parallel"),
            vmem_limit_bytes=vmem_limit,
        ),
    )(x_nhwc, x_nhwc, x_nhwc,
      w1f, b1.reshape(1, Cout), w2f, b2.reshape(1, Cout))

    return jnp.transpose(out_nhwc, (0, 3, 1, 2))                  # NHWC -> NCHW


def _reference_forward(x, params, conv_dtype=None):
    """Pure-JAX reference (same math as the PyTorch module, eval-mode BN).

    If conv_dtype is given, conv inputs/weights are rounded to that dtype
    (matching the kernel's bf16 MXU inputs with f32 accumulation) and the BN
    scales are folded into the weights exactly as the kernel does.
    """
    eps = 1e-5
    dn = ("NCHW", "OIHW", "NCHW")
    prec = lax.Precision.HIGHEST
    s1 = params["bn1_gamma"] * lax.rsqrt(params["bn1_var"] + eps)
    b1 = params["bn1_beta"] - params["bn1_mean"] * s1
    s2 = params["bn2_gamma"] * lax.rsqrt(params["bn2_var"] + eps)
    b2 = params["bn2_beta"] - params["bn2_mean"] * s2
    w1 = params["conv1_w"] * s1[:, None, None, None]
    w2 = params["conv2_w"] * s2[:, None, None, None]

    def rnd(a):
        return a if conv_dtype is None else a.astype(conv_dtype).astype(jnp.float32)

    y = lax.conv_general_dilated(rnd(x), rnd(w1), (1, 1), "SAME",
                                 dimension_numbers=dn, precision=prec)
    y = jnp.maximum(y + b1[None, :, None, None], 0.0)
    y = lax.conv_general_dilated(rnd(y), rnd(w2), (1, 1), "SAME",
                                 dimension_numbers=dn, precision=prec)
    y = y + b2[None, :, None, None]
    return jnp.maximum(x + y, 0.0)


def _make_params(key, in_planes, planes):
    ks = jax.random.split(key, 10)
    std1 = (2.0 / (9 * in_planes)) ** 0.5     # kaiming-like init (keeps O(1) acts)
    std2 = (2.0 / (9 * planes)) ** 0.5
    n = jax.random.normal
    return {
        "conv1_w": std1 * n(ks[0], (planes, in_planes, 3, 3), jnp.float32),
        "conv2_w": std2 * n(ks[1], (planes, planes, 3, 3), jnp.float32),
        "bn1_gamma": 1.0 + 0.1 * n(ks[2], (planes,), jnp.float32),
        "bn1_beta": 0.1 * n(ks[3], (planes,), jnp.float32),
        "bn1_mean": 0.1 * n(ks[4], (planes,), jnp.float32),
        "bn1_var": 0.5 + 0.5 * jnp.abs(n(ks[5], (planes,), jnp.float32)),
        "bn2_gamma": 1.0 + 0.1 * n(ks[6], (planes,), jnp.float32),
        "bn2_beta": 0.1 * n(ks[7], (planes,), jnp.float32),
        "bn2_mean": 0.1 * n(ks[8], (planes,), jnp.float32),
        "bn2_var": 0.5 + 0.5 * jnp.abs(n(ks[9], (planes,), jnp.float32)),
    }


def _normalized_max_err(a, b):
    scale = jnp.maximum(jnp.max(jnp.abs(b)), 1e-6)
    return float(jnp.max(jnp.abs(a - b)) / scale)


if __name__ == "__main__":
    key = jax.random.PRNGKey(0)

    # ---- Config A: lane-dense channels; full-H tile and forced multi-tile ----
    kx, kp, key = jax.random.split(key, 3)
    N, C, H, W = 2, 128, 32, 32
    x = jax.random.normal(kx, (N, C, H, W), jnp.float32)
    params = _make_params(kp, C, C)

    out_full = jax.block_until_ready(basic_block_forward(x, params))
    out_tiled = jax.block_until_ready(basic_block_forward(x, params, tile_h=8))

    ref_m = jax.block_until_ready(
        _reference_forward(x, params, conv_dtype=jnp.bfloat16))
    ref_f = jax.block_until_ready(_reference_forward(x, params))

    for name, out in (("full-tile", out_full), ("multi-tile", out_tiled)):
        e_m = _normalized_max_err(out, ref_m)
        e_f = _normalized_max_err(out, ref_f)
        if not (e_m < 3e-3):
            raise AssertionError(f"config A ({name}): matched-ref err {e_m}")
        if not (e_f < 2e-2):
            raise AssertionError(f"config A ({name}): f32-ref err {e_f}")
    e_t = _normalized_max_err(out_tiled, out_full)
    if not (e_t < 1e-3):
        raise AssertionError(f"config A: tiling-invariance mismatch {e_t}")

    # ---- Config B: small-channel sanity ----
    # TODO(synk): C < 128 stages should use an im2col / lane-packed layout.
    kx, kp, key = jax.random.split(key, 3)
    N, C, H, W = 2, 16, 16, 16
    x = jax.random.normal(kx, (N, C, H, W), jnp.float32)
    params = _make_params(kp, C, C)
    out = jax.block_until_ready(basic_block_forward(x, params))
    ref_m = _reference_forward(x, params, conv_dtype=jnp.bfloat16)
    ref_f = _reference_forward(x, params)
    e_m = _normalized_max_err(out, ref_m)
    e_f = _normalized_max_err(out, ref_f)
    if not (e_m < 3e-3):
        raise AssertionError(f"config B: matched-ref err {e_m}")
    if not (e_f < 2e-2):
        raise AssertionError(f"config B: f32-ref err {e_f}")

    print("KERNEL_OK")
</pallas_src>

<mosaic_0001>
module attributes {stable_mosaic.version = 11 : i64} {
  func.func @_basic_block_kernel(%arg0: i32, %arg1: i32, %arg2: memref<1x16x32x128xf32, #tpu.memory_space<vmem>>, %arg3: memref<1x2x32x128xf32, #tpu.memory_space<vmem>>, %arg4: memref<1x2x32x128xf32, #tpu.memory_space<vmem>>, %arg5: memref<3x384x128xbf16, #tpu.memory_space<vmem>>, %arg6: memref<1x128xf32, #tpu.memory_space<vmem>>, %arg7: memref<3x384x128xbf16, #tpu.memory_space<vmem>>, %arg8: memref<1x128xf32, #tpu.memory_space<vmem>>, %arg9: memref<1x16x32x128xf32, #tpu.memory_space<vmem>>) attributes {dimension_semantics = [#tpu.dimension_semantics<parallel>, #tpu.dimension_semantics<parallel>], iteration_bounds = array<i64: 2, 2>, scalar_prefetch = 0 : i64, scratch_operands = 0 : i64, tpu.core_type = #tpu.core_type<tc>, window_params = [{transform_indices = @transform_0, window_bounds = array<i64: 1, 16, 32, 128>}, {transform_indices = @transform_1, window_bounds = array<i64: 1, 2, 32, 128>}, {transform_indices = @transform_2, window_bounds = array<i64: 1, 2, 32, 128>}, {pipeline_mode = #tpu.pipeline_mode<synchronous>, transform_indices = @transform_3, window_bounds = array<i64: 3, 384, 128>}, {pipeline_mode = #tpu.pipeline_mode<synchronous>, transform_indices = @transform_4, window_bounds = array<i64: 1, 128>}, {pipeline_mode = #tpu.pipeline_mode<synchronous>, transform_indices = @transform_5, window_bounds = array<i64: 3, 384, 128>}, {pipeline_mode = #tpu.pipeline_mode<synchronous>, transform_indices = @transform_6, window_bounds = array<i64: 1, 128>}, {transform_indices = @transform_7, window_bounds = array<i64: 1, 16, 32, 128>}]} {
    %c0_i32 = arith.constant 0 : i32
    %0 = arith.cmpi sgt, %arg1, %c0_i32 : i32
    %cst = arith.constant 1.000000e+00 : f32
    %cst_0 = arith.constant 0.000000e+00 : f32
    %1 = arith.select %0, %cst, %cst_0 : f32
    %2 = arith.truncf %1 : f32 to bf16
    %c1_i32 = arith.constant 1 : i32
    %3 = arith.cmpi slt, %arg1, %c1_i32 : i32
    %cst_1 = arith.constant 1.000000e+00 : f32
    %cst_2 = arith.constant 0.000000e+00 : f32
    %4 = arith.select %3, %cst_1, %cst_2 : f32
    %5 = arith.truncf %4 : f32 to bf16
    %c0 = arith.constant 0 : index
    %c0_3 = arith.constant 0 : index
    %c0_4 = arith.constant 0 : index
    %c0_5 = arith.constant 0 : index
    %6 = vector.load %arg2[%c0, %c0_3, %c0_4, %c0_5] : memref<1x16x32x128xf32, #tpu.memory_space<vmem>>, vector<1x16x32x128xf32>
    %7 = vector.shape_cast %6 : vector<1x16x32x128xf32> to vector<16x32x128xf32>
    %8 = arith.truncf %7 : vector<16x32x128xf32> to vector<16x32x128xbf16>
    %c0_6 = arith.constant 0 : index
    %c0_7 = arith.constant 0 : index
    %c0_8 = arith.constant 0 : index
    %c0_9 = arith.constant 0 : index
    %9 = vector.load %arg3[%c0_6, %c0_7, %c0_8, %c0_9] : memref<1x2x32x128xf32, #tpu.memory_space<vmem>>, vector<1x2x32x128xf32>
    %10 = vector.shape_cast %9 : vector<1x2x32x128xf32> to vector<2x32x128xf32>
    %11 = arith.truncf %10 : vector<2x32x128xf32> to vector<2x32x128xbf16>
    %12 = vector.broadcast %2 : bf16 to vector<2x32x128xbf16>
    %13 = arith.mulf %11, %12 : vector<2x32x128xbf16>
    %c0_10 = arith.constant 0 : index
    %c0_11 = arith.constant 0 : index
    %c0_12 = arith.constant 0 : index
    %c0_13 = arith.constant 0 : index
    %14 = vector.load %arg4[%c0_10, %c0_11, %c0_12, %c0_13] : memref<1x2x32x128xf32, #tpu.memory_space<vmem>>, vector<1x2x32x128xf32>
    %15 = vector.shape_cast %14 : vector<1x2x32x128xf32> to vector<2x32x128xf32>
    %16 = arith.truncf %15 : vector<2x32x128xf32> to vector<2x32x128xbf16>
    %17 = vector.broadcast %5 : bf16 to vector<2x32x128xbf16>
    %18 = arith.mulf %16, %17 : vector<2x32x128xbf16>
    %19 = tpu.concatenate %13, %8, %18 in 0 : vector<2x32x128xbf16>, vector<16x32x128xbf16>, vector<2x32x128xbf16> -> vector<20x32x128xbf16>
    %cst_14 = arith.constant 0.000000e+00 : bf16
    %20 = vector.broadcast %cst_14 : bf16 to vector<20x1x128xbf16>
    %21 = vector.extract_strided_slice %19 {offsets = [0, 0, 0], sizes = [20, 31, 128], strides = [1, 1, 1]} : vector<20x32x128xbf16> to vector<20x31x128xbf16>
    %22 = tpu.concatenate %20, %21 in 1 : vector<20x1x128xbf16>, vector<20x31x128xbf16> -> vector<20x32x128xbf16>
    %23 = vector.extract_strided_slice %19 {offsets = [0, 1, 0], sizes = [20, 31, 128], strides = [1, 1, 1]} : vector<20x32x128xbf16> to vector<20x31x128xbf16>
    %24 = tpu.concatenate %23, %20 in 1 : vector<20x31x128xbf16>, vector<20x1x128xbf16> -> vector<20x32x128xbf16>
    %25 = tpu.concatenate %22, %19, %24 in 2 : vector<20x32x128xbf16>, vector<20x32x128xbf16>, vector<20x32x128xbf16> -> vector<20x32x384xbf16>
    %26 = vector.extract_strided_slice %25 {offsets = [0, 0, 0], sizes = [18, 32, 384], strides = [1, 1, 1]} : vector<20x32x384xbf16> to vector<18x32x384xbf16>
    %27 = vector.shape_cast %26 : vector<18x32x384xbf16> to vector<576x384xbf16>
    %c0_15 = arith.constant 0 : index
    %c0_16 = arith.constant 0 : index
    %c0_17 = arith.constant 0 : index
    %28 = vector.load %arg5[%c0_15, %c0_16, %c0_17] : memref<3x384x128xbf16, #tpu.memory_space<vmem>>, vector<1x384x128xbf16>
    %29 = vector.shape_cast %28 : vector<1x384x128xbf16> to vector<384x128xbf16>
    %cst_18 = arith.constant dense<0.000000e+00> : vector<576x128xf32>
    %30 = tpu.matmul %27, %29, %cst_18 {dimension_numbers = #tpu.dot_dimension_numbers<[1], [0], [0], [1], [0, 0, 1, 1], [], []>} : vector<576x384xbf16>, vector<384x128xbf16>, vector<576x128xf32> -> vector<576x128xf32>
    %31 = vector.extract_strided_slice %25 {offsets = [1, 0, 0], sizes = [18, 32, 384], strides = [1, 1, 1]} : vector<20x32x384xbf16> to vector<18x32x384xbf16>
    %32 = vector.shape_cast %31 : vector<18x32x384xbf16> to vector<576x384xbf16>
    %c1 = arith.constant 1 : index
    %c0_19 = arith.constant 0 : index
    %c0_20 = arith.constant 0 : index
    %33 = vector.load %arg5[%c1, %c0_19, %c0_20] : memref<3x384x128xbf16, #tpu.memory_space<vmem>>, vector<1x384x128xbf16>
    %34 = vector.shape_cast %33 : vector<1x384x128xbf16> to vector<384x128xbf16>
    %cst_21 = arith.constant dense<0.000000e+00> : vector<576x128xf32>
    %35 = tpu.matmul %32, %34, %cst_21 {dimension_numbers = #tpu.dot_dimension_numbers<[1], [0], [0], [1], [0, 0, 1, 1], [], []>} : vector<576x384xbf16>, vector<384x128xbf16>, vector<576x128xf32> -> vector<576x128xf32>
    %36 = arith.addf %30, %35 : vector<576x128xf32>
    %37 = vector.extract_strided_slice %25 {offsets = [2, 0, 0], sizes = [18, 32, 384], strides = [1, 1, 1]} : vector<20x32x384xbf16> to vector<18x32x384xbf16>
    %38 = vector.shape_cast %37 : vector<18x32x384xbf16> to vector<576x384xbf16>
    %c2 = arith.constant 2 : index
    %c0_22 = arith.constant 0 : index
    %c0_23 = arith.constant 0 : index
    %39 = vector.load %arg5[%c2, %c0_22, %c0_23] : memref<3x384x128xbf16, #tpu.memory_space<vmem>>, vector<1x384x128xbf16>
    %40 = vector.shape_cast %39 : vector<1x384x128xbf16> to vector<384x128xbf16>
    %cst_24 = arith.constant dense<0.000000e+00> : vector<576x128xf32>
    %41 = tpu.matmul %38, %40, %cst_24 {dimension_numbers = #tpu.dot_dimension_numbers<[1], [0], [0], [1], [0, 0, 1, 1], [], []>} : vector<576x384xbf16>, vector<384x128xbf16>, vector<576x128xf32> -> vector<576x128xf32>
    %42 = arith.addf %36, %41 : vector<576x128xf32>
    %c0_25 = arith.constant 0 : index
    %c0_26 = arith.constant 0 : index
    %43 = vector.load %arg6[%c0_25, %c0_26] : memref<1x128xf32, #tpu.memory_space<vmem>>, vector<1x128xf32>
    %44 = vector.broadcast %43 : vector<1x128xf32> to vector<576x128xf32>
    %45 = arith.addf %42, %44 : vector<576x128xf32>
    %cst_27 = arith.constant 0.000000e+00 : f32
    %46 = vector.broadcast %cst_27 : f32 to vector<576x128xf32>
    %47 = arith.maximumf %45, %46 : vector<576x128xf32>
    %48 = arith.truncf %47 : vector<576x128xf32> to vector<576x128xbf16>
    %49 = vector.shape_cast %48 : vector<576x128xbf16> to vector<18x32x128xbf16>
    %50 = tpu.iota {dimensions = array<i32: 0>} : vector<18x1x1xi32>
    %c0_i32_28 = arith.constant 0 : i32
    %51 = vector.broadcast %c0_i32_28 : i32 to vector<18x1x1xi32>
    %52 = arith.cmpi sgt, %50, %51 : vector<18x1x1xi32>
    %c0_i32_29 = arith.constant 0 : i32
    %53 = arith.cmpi sgt, %arg1, %c0_i32_29 : i32
    %54 = vector.broadcast %53 : i1 to vector<18x1x1xi1>
    %55 = arith.ori %52, %54 : vector<18x1x1xi1>
    %c17_i32 = arith.constant 17 : i32
    %56 = vector.broadcast %c17_i32 : i32 to vector<18x1x1xi32>
    %57 = arith.cmpi slt, %50, %56 : vector<18x1x1xi32>
    %c1_i32_30 = arith.constant 1 : i32
    %58 = arith.cmpi slt, %arg1, %c1_i32_30 : i32
    %59 = vector.broadcast %58 : i1 to vector<18x1x1xi1>
    %60 = arith.ori %57, %59 : vector<18x1x1xi1>
    %61 = arith.andi %55, %60 : vector<18x1x1xi1>
    %cst_31 = arith.constant 0.000000e+00 : bf16
    %62 = vector.broadcast %cst_31 : bf16 to vector<18x32x128xbf16>
    %63 = vector.shape_cast %61 : vector<18x1x1xi1> to vector<18x1x1xi1>
    %64 = vector.broadcast %63 : vector<18x1x1xi1> to vector<18x32x128xi1>
    %65 = arith.select %64, %49, %62 : vector<18x32x128xi1>, vector<18x32x128xbf16>
    %cst_32 = arith.constant 0.000000e+00 : bf16
    %66 = vector.broadcast %cst_32 : bf16 to vector<18x1x128xbf16>
    %67 = vector.extract_strided_slice %65 {offsets = [0, 0, 0], sizes = [18, 31, 128], strides = [1, 1, 1]} : vector<18x32x128xbf16> to vector<18x31x128xbf16>
    %68 = tpu.concatenate %66, %67 in 1 : vector<18x1x128xbf16>, vector<18x31x128xbf16> -> vector<18x32x128xbf16>
    %69 = vector.extract_strided_slice %65 {offsets = [0, 1, 0], sizes = [18, 31, 128], strides = [1, 1, 1]} : vector<18x32x128xbf16> to vector<18x31x128xbf16>
    %70 = tpu.concatenate %69, %66 in 1 : vector<18x31x128xbf16>, vector<18x1x128xbf16> -> vector<18x32x128xbf16>
    %71 = tpu.concatenate %68, %65, %70 in 2 : vector<18x32x128xbf16>, vector<18x32x128xbf16>, vector<18x32x128xbf16> -> vector<18x32x384xbf16>
    %72 = vector.extract_strided_slice %71 {offsets = [0, 0, 0], sizes = [16, 32, 384], strides = [1, 1, 1]} : vector<18x32x384xbf16> to vector<16x32x384xbf16>
    %73 = vector.shape_cast %72 : vector<16x32x384xbf16> to vector<512x384xbf16>
    %c0_33 = arith.constant 0 : index
    %c0_34 = arith.constant 0 : index
    %c0_35 = arith.constant 0 : index
    %74 = vector.load %arg7[%c0_33, %c0_34, %c0_35] : memref<3x384x128xbf16, #tpu.memory_space<vmem>>, vector<1x384x128xbf16>
    %75 = vector.shape_cast %74 : vector<1x384x128xbf16> to vector<384x128xbf16>
    %cst_36 = arith.constant dense<0.000000e+00> : vector<512x128xf32>
    %76 = tpu.matmul %73, %75, %cst_36 {dimension_numbers = #tpu.dot_dimension_numbers<[1], [0], [0], [1], [0, 0, 1, 1], [], []>} : vector<512x384xbf16>, vector<384x128xbf16>, vector<512x128xf32> -> vector<512x128xf32>
    %77 = vector.extract_strided_slice %71 {offsets = [1, 0, 0], sizes = [16, 32, 384], strides = [1, 1, 1]} : vector<18x32x384xbf16> to vector<16x32x384xbf16>
    %78 = vector.shape_cast %77 : vector<16x32x384xbf16> to vector<512x384xbf16>
    %c1_37 = arith.constant 1 : index
    %c0_38 = arith.constant 0 : index
    %c0_39 = arith.constant 0 : index
    %79 = vector.load %arg7[%c1_37, %c0_38, %c0_39] : memref<3x384x128xbf16, #tpu.memory_space<vmem>>, vector<1x384x128xbf16>
    %80 = vector.shape_cast %79 : vector<1x384x128xbf16> to vector<384x128xbf16>
    %cst_40 = arith.constant dense<0.000000e+00> : vector<512x128xf32>
    %81 = tpu.matmul %78, %80, %cst_40 {dimension_numbers = #tpu.dot_dimension_numbers<[1], [0], [0], [1], [0, 0, 1, 1], [], []>} : vector<512x384xbf16>, vector<384x128xbf16>, vector<512x128xf32> -> vector<512x128xf32>
    %82 = arith.addf %76, %81 : vector<512x128xf32>
    %83 = vector.extract_strided_slice %71 {offsets = [2, 0, 0], sizes = [16, 32, 384], strides = [1, 1, 1]} : vector<18x32x384xbf16> to vector<16x32x384xbf16>
    %84 = vector.shape_cast %83 : vector<16x32x384xbf16> to vector<512x384xbf16>
    %c2_41 = arith.constant 2 : index
    %c0_42 = arith.constant 0 : index
    %c0_43 = arith.constant 0 : index
    %85 = vector.load %arg7[%c2_41, %c0_42, %c0_43] : memref<3x384x128xbf16, #tpu.memory_space<vmem>>, vector<1x384x128xbf16>
    %86 = vector.shape_cast %85 : vector<1x384x128xbf16> to vector<384x128xbf16>
    %cst_44 = arith.constant dense<0.000000e+00> : vector<512x128xf32>
    %87 = tpu.matmul %84, %86, %cst_44 {dimension_numbers = #tpu.dot_dimension_numbers<[1], [0], [0], [1], [0, 0, 1, 1], [], []>} : vector<512x384xbf16>, vector<384x128xbf16>, vector<512x128xf32> -> vector<512x128xf32>
    %88 = arith.addf %82, %87 : vector<512x128xf32>
    %c0_45 = arith.constant 0 : index
    %c0_46 = arith.constant 0 : index
    %89 = vector.load %arg8[%c0_45, %c0_46] : memref<1x128xf32, #tpu.memory_space<vmem>>, vector<1x128xf32>
    %90 = vector.broadcast %89 : vector<1x128xf32> to vector<512x128xf32>
    %91 = arith.addf %88, %90 : vector<512x128xf32>
    %92 = vector.shape_cast %7 : vector<16x32x128xf32> to vector<512x128xf32>
    %93 = arith.addf %92, %91 : vector<512x128xf32>
    %cst_47 = arith.constant 0.000000e+00 : f32
    %94 = vector.broadcast %cst_47 : f32 to vector<512x128xf32>
    %95 = arith.maximumf %93, %94 : vector<512x128xf32>
    %96 = vector.shape_cast %95 : vector<512x128xf32> to vector<16x32x128xf32>
    %c0_48 = arith.constant 0 : index
    %c0_49 = arith.constant 0 : index
    %c0_50 = arith.constant 0 : index
    %c0_51 = arith.constant 0 : index
    %97 = vector.load %arg9[%c0_48, %c0_49, %c0_50, %c0_51] : memref<1x16x32x128xf32, #tpu.memory_space<vmem>>, vector<1x16x32x128xf32>
    %98 = vector.shape_cast %97 : vector<1x16x32x128xf32> to vector<16x32x128xf32>
    %99 = vector.shape_cast %96 : vector<16x32x128xf32> to vector<1x16x32x128xf32>
    tpu.vector_store %arg9[%c0_48, %c0_49, %c0_50, %c0_51], %99 {strides = array<i32>} : memref<1x16x32x128xf32, #tpu.memory_space<vmem>>, vector<1x16x32x128xf32>,
    return
  }
  func.func @transform_0(%arg0: i32, %arg1: i32) -> (i32, i32, i32, i32) {
    %c0_i32 = arith.constant 0 : i32
    %c0_i32_0 = arith.constant 0 : i32
    %c0_i32_1 = arith.constant 0 : i32
    return %arg0, %arg1, %c0_i32, %c0_i32_0 : i32, i32, i32, i32
  }
  func.func @transform_1(%arg0: i32, %arg1: i32) -> (i32, i32, i32, i32) {
    %c8_i32 = arith.constant 8 : i32
    %0 = arith.muli %arg1, %c8_i32 : i32
    %c1_i32 = arith.constant 1 : i32
    %1 = arith.subi %0, %c1_i32 : i32
    %c0_i32 = arith.constant 0 : i32
    %2 = arith.maxsi %1, %c0_i32 : i32
    %c0_i32_0 = arith.constant 0 : i32
    %c0_i32_1 = arith.constant 0 : i32
    %c0_i32_2 = arith.constant 0 : i32
    return %arg0, %2, %c0_i32_0, %c0_i32_1 : i32, i32, i32, i32
  }
  func.func @transform_2(%arg0: i32, %arg1: i32) -> (i32, i32, i32, i32) {
    %c1_i32 = arith.constant 1 : i32
    %0 = arith.addi %arg1, %c1_i32 : i32
    %c8_i32 = arith.constant 8 : i32
    %1 = arith.muli %0, %c8_i32 : i32
    %c15_i32 = arith.constant 15 : i32
    %2 = arith.minsi %1, %c15_i32 : i32
    %c0_i32 = arith.constant 0 : i32
    %c0_i32_0 = arith.constant 0 : i32
    %c0_i32_1 = arith.constant 0 : i32
    return %arg0, %2, %c0_i32, %c0_i32_0 : i32, i32, i32, i32
  }
  func.func @transform_3(%arg0: i32, %arg1: i32) -> (i32, i32, i32) {
    %c0_i32 = arith.constant 0 : i32
    %c0_i32_0 = arith.constant 0 : i32
    %c0_i32_1 = arith.constant 0 : i32
    %c0_i32_2 = arith.constant 0 : i32
    return %c0_i32, %c0_i32_0, %c0_i32_1 : i32, i32, i32
  }
  func.func @transform_4(%arg0: i32, %arg1: i32) -> (i32, i32) {
    %c0_i32 = arith.constant 0 : i32
    %c0_i32_0 = arith.constant 0 : i32
    %c0_i32_1 = arith.constant 0 : i32
    return %c0_i32, %c0_i32_0 : i32, i32
  }
  func.func @transform_5(%arg0: i32, %arg1: i32) -> (i32, i32, i32) {
    %c0_i32 = arith.constant 0 : i32
    %c0_i32_0 = arith.constant 0 : i32
    %c0_i32_1 = arith.constant 0 : i32
    %c0_i32_2 = arith.constant 0 : i32
    return %c0_i32, %c0_i32_0, %c0_i32_1 : i32, i32, i32
  }
  func.func @transform_6(%arg0: i32, %arg1: i32) -> (i32, i32) {
    %c0_i32 = arith.constant 0 : i32
    %c0_i32_0 = arith.constant 0 : i32
    %c0_i32_1 = arith.constant 0 : i32
    return %c0_i32, %c0_i32_0 : i32, i32
  }
  func.func @transform_7(%arg0: i32, %arg1: i32) -> (i32, i32, i32, i32) {
    %c0_i32 = arith.constant 0 : i32
    %c0_i32_0 = arith.constant 0 : i32
    %c0_i32_1 = arith.constant 0 : i32
    return %arg0, %arg1, %c0_i32, %c0_i32_0 : i32, i32, i32, i32
  }
}

</mosaic_0001>

<llo_original>
// kernel: tpu_custom_call.1
$region0: #{tpu_custom_call.1}
  #allocation0 [shape = 'u32[]', space=smem, size = 0x4, offset = 0x4, fixed_abs, tag = 'smem constant byte address 0x4 - core index']
  #allocation1 [shape = 'u32[144,128]{1,0:T(1,128)}', space=vmem, size = 0x12000, scoped, tag = 'internal scratch']
  %s0 = inlined_call_operand.hbm [shape: f32[2,32,32,128], index: 0, kind: input, shape index: {}]
  %s1 = inlined_call_operand.hbm [shape: f32[2,32,32,128], index: 1, kind: input, shape index: {}]
  %s2 = inlined_call_operand.hbm [shape: f32[2,32,32,128], index: 2, kind: input, shape index: {}]
  %s3 = inlined_call_operand.hbm [shape: bf16[3,384,128], index: 3, kind: input, shape index: {}]
  %s4 = inlined_call_operand.vmem [shape: f32[1,128], index: 4, kind: input, shape index: {}]
  %s5 = inlined_call_operand.hbm [shape: bf16[3,384,128], index: 5, kind: input, shape index: {}]
  %s6 = inlined_call_operand.vmem [shape: f32[1,128], index: 6, kind: input, shape index: {}]
  %s7 = inlined_call_operand.hbm [shape: f32[2,32,32,128], index: 7, kind: output, shape index: {}]
  %s8 = sld [smem:[#allocation0]]
  $region81: #{tpu_custom_call.1} parent=0
    _
  %s10 = ssub.s32 1, %s8
  %s11 = scalar_select 0, %s10, %s8
  $region1: #{tpu_custom_call.1} parent=0
    #allocation2 [shape = 'u8[524288]{0}', space=vmem, size = 0x80000, scoped, tag = 'input window, operand 0']
    #allocation3 [shape = 's32[2]{0}', space=sflag, size = 0x8, scoped, tag = 'scoped memory for tpu_custom_call.1']
    #allocation4 [shape = 's32[2]{0}', space=sflag, size = 0x8, scoped, tag = 'scoped memory for tpu_custom_call.1']
    #allocation5 [shape = 'u8[65536]{0}', space=vmem, size = 0x10000, scoped, tag = 'input window, operand 1']
    #allocation6 [shape = 's32[2]{0}', space=sflag, size = 0x8, scoped, tag = 'scoped memory for tpu_custom_call.1']
    #allocation7 [shape = 'u8[65536]{0}', space=vmem, size = 0x10000, scoped, tag = 'input window, operand 2']
    #allocation8 [shape = 'u8[294912]{0}', space=vmem, size = 0x48000, scoped, tag = 'input window, operand 3, single buffered']
    #allocation9 [shape = 's32[1]{0}', space=sflag, size = 0x4, scoped, tag = 'scoped memory for tpu_custom_call.1']
    #allocation10 [shape = 'u8[294912]{0}', space=vmem, size = 0x48000, scoped, tag = 'input window, operand 5, single buffered']
    #allocation11 [shape = 'u8[524288]{0}', space=vmem, size = 0x80000, scoped, tag = 'output window, operand 0']
    %12 = vsyncpa [#allocation3], 0
    %s13 = scalar_lea.sflag [#allocation3], 1
    %14 = vsyncpa %s13, 0
    %15 = vsyncpa [#allocation6], 0
    %s16 = scalar_lea.sflag [#allocation6], 1
    %17 = vsyncpa %s16, 0
    %18 = vsyncpa [#allocation9], 0
    %19 = vsyncpa [#allocation4], 0
    %s20 = scalar_lea.sflag [#allocation4], 1
    %21 = vsyncpa %s20, 0
    loop: start=0, step=1, limit=6
    $region2: #{tpu_custom_call.1} parent=1 // loop_pre_header
      _
    $region3: #{tpu_custom_call.1} parent=1 // loop_header
      %s23 = sphi 0, %s27
      %p24 = scmp.ge.s32.totalorder %s23, 6
      %s30 = sphi 0, %s42
      %s31 = sphi 0, %s38
      %s32 = sphi 0, %s30
      %s33 = sphi 0, %s31
      %s34 = sphi 0, %s32
      %s35 = sphi 0, %s33
      %s47 = sphi 0, %s49
      %s50 = sphi 0, %s47
      %s51 = sphi 0, %s50
      %s67 = sphi 0, %s51
      %s83 = sphi 0, %s85
      %s86 = sphi 0, %s83
      %s87 = sphi 0, %s86
      %s103 = sphi 0, %s87
      %s119 = sphi 0, %s121
      %s122 = sphi 0, %s119
      %s123 = sphi 0, %s122
      %s139 = sphi 0, %s123
      %s143 = sphi 0, %s143
      %s145 = sphi 0, %s143
      %s146 = sphi 0, %s145
      %s160 = sphi 0, %s146
      %s164 = sphi 0, %s164
      %s166 = sphi 0, %s164
      %s167 = sphi 0, %s166
      %s181 = sphi 0, %s167
      %s185 = sphi 0, %s185
      %s187 = sphi 0, %s185
      %s188 = sphi 0, %s187
      %s202 = sphi 0, %s188
      %s206 = sphi 0, %s206
      %s208 = sphi 0, %s206
      %s209 = sphi 0, %s208
      %s223 = sphi 0, %s209
      %s231 = sphi 0, %s233
      %s234 = sphi 0, %s231
      %s235 = sphi 0, %s234
      %s251 = sphi 0, %s235
    $region4: #{tpu_custom_call.1} parent=1 // loop_header_branch
      %26 = sbr.rel (%p24) target = $region8
    $region5: #{tpu_custom_call.1} parent=1 // loop_body
      %s28 = ssub.s32 %s23, 1
      %s29 = ssub.s32 %s23, 2
      %s36 = sadd.s32 1, %s31
      %p37 = scmp.ge.s32.totalorder %s36, 2
      %s38 = scalar_select %p37, 0, %s36
      %s39 = sadd.s32 1, %s30
      %s40 = scalar_select %p37, %s39, %s30
      %p41 = scmp.ge.s32.totalorder %s40, 2
      %s42 = scalar_select %p41, 0, %s40
      %s43 = ssub.s32 %s30, %s42
      %s44 = ssub.s32 %s31, %s38
      %s45 = sor.u32 %s43, %s44
      %p46 = scmp.eq.s32.totalorder %s45, 0
      %s48 = sadd.s32 %s47, 1
      %s49 = scalar_select %p46, %s47, %s48
      %p52 = pneg %p46
      %p53 = scmp.eq.s32.totalorder %s23, 3
      %p54 = por %p52, %p53
      %p55 = scmp.ne.s32.totalorder %s47, %s50
      %p56 = scmp.eq.s32.totalorder %s23, 0
      %p57 = por %p55, %p56
      %p58 = scmp.ne.s32.totalorder %s47, %s50
      %p59 = scmp.eq.s32.totalorder %s28, 3
      %p60 = por %p58, %p59
      %p61 = scmp.ne.s32.totalorder %s50, %s51
      %p62 = scmp.eq.s32.totalorder %s28, 0
      %p63 = por %p61, %p62
      %p64 = scmp.ne.s32.totalorder %s50, %s51
      %p65 = scmp.eq.s32.totalorder %s29, 3
      %p66 = por %p64, %p65
      %p68 = scmp.ne.s32.totalorder %s51, %s67
      %p69 = scmp.eq.s32.totalorder %s29, 0
      %p70 = por %p68, %p69
      %s71 = smul.u32 %s31, 8
      %s72 = ssub.s32 %s71, 1
      %p73 = scmp.gt.s32.totalorder %s72, 0
      %s74 = scalar_select %p73, %s72, 0
      %s75 = smul.u32 %s38, 8
      %s76 = ssub.s32 %s75, 1
      %p77 = scmp.gt.s32.totalorder %s76, 0
      %s78 = scalar_select %p77, %s76, 0
      %s79 = ssub.s32 %s30, %s42
      %s80 = ssub.s32 %s74, %s78
      %s81 = sor.u32 %s79, %s80
      %p82 = scmp.eq.s32.totalorder %s81, 0
      %s84 = sadd.s32 %s83, 1
      %s85 = scalar_select %p82, %s83, %s84
      %p88 = pneg %p82
      %p89 = scmp.eq.s32.totalorder %s23, 3
      %p90 = por %p88, %p89
      %p91 = scmp.ne.s32.totalorder %s83, %s86
      %p92 = scmp.eq.s32.totalorder %s23, 0
      %p93 = por %p91, %p92
      %p94 = scmp.ne.s32.totalorder %s83, %s86
      %p95 = scmp.eq.s32.totalorder %s28, 3
      %p96 = por %p94, %p95
      %p97 = scmp.ne.s32.totalorder %s86, %s87
      %p98 = scmp.eq.s32.totalorder %s28, 0
      %p99 = por %p97, %p98
      %p100 = scmp.ne.s32.totalorder %s86, %s87
      %p101 = scmp.eq.s32.totalorder %s29, 3
      %p102 = por %p100, %p101
      %p104 = scmp.ne.s32.totalorder %s87, %s103
      %p105 = scmp.eq.s32.totalorder %s29, 0
      %p106 = por %p104, %p105
      %s107 = sadd.s32 %s31, 1
      %s108 = smul.u32 %s107, 8
      %p109 = scmp.lt.s32.totalorder %s108, 15
      %s110 = scalar_select %p109, %s108, 15
      %s111 = sadd.s32 %s38, 1
      %s112 = smul.u32 %s111, 8
      %p113 = scmp.lt.s32.totalorder %s112, 15
      %s114 = scalar_select %p113, %s112, 15
      %s115 = ssub.s32 %s30, %s42
      %s116 = ssub.s32 %s110, %s114
      %s117 = sor.u32 %s115, %s116
      %p118 = scmp.eq.s32.totalorder %s117, 0
      %s120 = sadd.s32 %s119, 1
      %s121 = scalar_select %p118, %s119, %s120
      %p124 = pneg %p118
      %p125 = scmp.eq.s32.totalorder %s23, 3
      %p126 = por %p124, %p125
      %p127 = scmp.ne.s32.totalorder %s119, %s122
      %p128 = scmp.eq.s32.totalorder %s23, 0
      %p129 = por %p127, %p128
      %p130 = scmp.ne.s32.totalorder %s119, %s122
      %p131 = scmp.eq.s32.totalorder %s28, 3
      %p132 = por %p130, %p131
      %p133 = scmp.ne.s32.totalorder %s122, %s123
      %p134 = scmp.eq.s32.totalorder %s28, 0
      %p135 = por %p133, %p134
      %p136 = scmp.ne.s32.totalorder %s122, %s123
      %p137 = scmp.eq.s32.totalorder %s29, 3
      %p138 = por %p136, %p137
      %p140 = scmp.ne.s32.totalorder %s123, %s139
      %p141 = scmp.eq.s32.totalorder %s29, 0
      %p142 = por %p140, %p141
      %s144 = sadd.s32 %s143, 1
      %p147 = scmp.eq.s32.totalorder %s23, 3
      %p148 = scmp.ne.s32.totalorder %s143, %s145
      %p149 = scmp.eq.s32.totalorder %s23, 0
      %p150 = por %p148, %p149
      %p151 = scmp.ne.s32.totalorder %s143, %s145
      %p152 = scmp.eq.s32.totalorder %s28, 3
      %p153 = por %p151, %p152
      %p154 = scmp.ne.s32.totalorder %s145, %s146
      %p155 = scmp.eq.s32.totalorder %s28, 0
      %p156 = por %p154, %p155
      %p157 = scmp.ne.s32.totalorder %s145, %s146
      %p158 = scmp.eq.s32.totalorder %s29, 3
      %p159 = por %p157, %p158
      %p161 = scmp.ne.s32.totalorder %s146, %s160
      %p162 = scmp.eq.s32.totalorder %s29, 0
      %p163 = por %p161, %p162
      %s165 = sadd.s32 %s164, 1
      %p168 = scmp.eq.s32.totalorder %s23, 3
      %p169 = scmp.ne.s32.totalorder %s164, %s166
      %p170 = scmp.eq.s32.totalorder %s23, 0
      %p171 = por %p169, %p170
      %p172 = scmp.ne.s32.totalorder %s164, %s166
      %p173 = scmp.eq.s32.totalorder %s28, 3
      %p174 = por %p172, %p173
      %p175 = scmp.ne.s32.totalorder %s166, %s167
      %p176 = scmp.eq.s32.totalorder %s28, 0
      %p177 = por %p175, %p176
      %p178 = scmp.ne.s32.totalorder %s166, %s167
      %p179 = scmp.eq.s32.totalorder %s29, 3
      %p180 = por %p178, %p179
      %p182 = scmp.ne.s32.totalorder %s167, %s181
      %p183 = scmp.eq.s32.totalorder %s29, 0
      %p184 = por %p182, %p183
      %s186 = sadd.s32 %s185, 1
      %p189 = scmp.eq.s32.totalorder %s23, 3
      %p190 = scmp.ne.s32.totalorder %s185, %s187
      %p191 = scmp.eq.s32.totalorder %s23, 0
      %p192 = por %p190, %p191
      %p193 = scmp.ne.s32.totalorder %s185, %s187
      %p194 = scmp.eq.s32.totalorder %s28, 3
      %p195 = por %p193, %p194
      %p196 = scmp.ne.s32.totalorder %s187, %s188
      %p197 = scmp.eq.s32.totalorder %s28, 0
      %p198 = por %p196, %p197
      %p199 = scmp.ne.s32.totalorder %s187, %s188
      %p200 = scmp.eq.s32.totalorder %s29, 3
      %p201 = por %p199, %p200
      %p203 = scmp.ne.s32.totalorder %s188, %s202
      %p204 = scmp.eq.s32.totalorder %s29, 0
      %p205 = por %p203, %p204
      %s207 = sadd.s32 %s206, 1
      %p210 = scmp.eq.s32.totalorder %s23, 3
      %p211 = scmp.ne.s32.totalorder %s206, %s208
      %p212 = scmp.eq.s32.totalorder %s23, 0
      %p213 = por %p211, %p212
      %p214 = scmp.ne.s32.totalorder %s206, %s208
      %p215 = scmp.eq.s32.totalorder %s28, 3
      %p216 = por %p214, %p215
      %p217 = scmp.ne.s32.totalorder %s208, %s209
      %p218 = scmp.eq.s32.totalorder %s28, 0
      %p219 = por %p217, %p218
      %p220 = scmp.ne.s32.totalorder %s208, %s209
      %p221 = scmp.eq.s32.totalorder %s29, 3
      %p222 = por %p220, %p221
      %p224 = scmp.ne.s32.totalorder %s209, %s223
      %p225 = scmp.eq.s32.totalorder %s29, 0
      %p226 = por %p224, %p225
      %s227 = ssub.s32 %s30, %s42
      %s228 = ssub.s32 %s31, %s38
      %s229 = sor.u32 %s227, %s228
      %p230 = scmp.eq.s32.totalorder %s229, 0
      %s232 = sadd.s32 %s231, 1
      %s233 = scalar_select %p230, %s231, %s232
      %p236 = pneg %p230
      %p237 = scmp.eq.s32.totalorder %s23, 3
      %p238 = por %p236, %p237
      %p239 = scmp.ne.s32.totalorder %s231, %s234
      %p240 = scmp.eq.s32.totalorder %s23, 0
      %p241 = por %p239, %p240
      %p242 = scmp.ne.s32.totalorder %s231, %s234
      %p243 = scmp.eq.s32.totalorder %s28, 3
      %p244 = por %p242, %p243
      %p245 = scmp.ne.s32.totalorder %s234, %s235
      %p246 = scmp.eq.s32.totalorder %s28, 0
      %p247 = por %p245, %p246
      %p248 = scmp.ne.s32.totalorder %s234, %s235
      %p249 = scmp.eq.s32.totalorder %s29, 3
      %p250 = por %p248, %p249
      %p252 = scmp.ne.s32.totalorder %s235, %s251
      %p253 = scmp.eq.s32.totalorder %s29, 0
      %p254 = por %p252, %p253
      %p255 = scmp.le.s32.totalorder 1, %s23
      %p256 = scmp.lt.s32.totalorder %s23, 5
      %p257 = pnand %p255, %p256
      %p258 = pneg %p257
      // Predicated region
      $region9: #{tpu_custom_call.1} parent=5 // pred_check
        _
      $region10: #{tpu_custom_call.1} parent=5 // pred_check_branch
        %260 = sbr.rel (%p257) target = $region12
      $region11: #{tpu_custom_call.1} parent=5 // pred_region
        %s261 = ssub.s32 %s23, 1
        // Predicated region
        $region13: #{tpu_custom_call.1} parent=11 // pred_check
          %p262 = pneg %p156
        $region14: #{tpu_custom_call.1} parent=11 // pred_check_branch
          %264 = sbr.rel (%p262) target = $region16
        $region15: #{tpu_custom_call.1} parent=11 // pred_region
          %s266 = ssub.s32 9216, 9216
          %267 = vsyncadd [#allocation9], %s266
          %s268 = sshll.u32 [#allocation8], 4
          %s269 = int_to_ptr.vmem [resolvable:$true] %s268
          %274 = dma.hbm_to_vmem [thread:$0]  %s3, 9216, %s269, [#allocation9], 64, 64, 4
        $region16: #{tpu_custom_call.1} parent=11 // pred_fallthru
          _
        // Predicated region
        $region17: #{tpu_custom_call.1} parent=11 // pred_check
          %p275 = pneg %p177
        $region18: #{tpu_custom_call.1} parent=11 // pred_check_branch
          %277 = sbr.rel (%p275) target = $region20
        $region19: #{tpu_custom_call.1} parent=11 // pred_region
          _
        $region20: #{tpu_custom_call.1} parent=11 // pred_fallthru
          _
        // Predicated region
        $region21: #{tpu_custom_call.1} parent=11 // pred_check
          %p278 = pneg %p198
        $region22: #{tpu_custom_call.1} parent=11 // pred_check_branch
          %280 = sbr.rel (%p278) target = $region24
        $region23: #{tpu_custom_call.1} parent=11 // pred_region
          %s282 = ssub.s32 9216, 9216
          %283 = vsyncadd [#allocation9], %s282
          %s284 = sshll.u32 [#allocation10], 4
          %s285 = int_to_ptr.vmem [resolvable:$true] %s284
          %290 = dma.hbm_to_vmem [thread:$0]  %s5, 9216, %s285, [#allocation9], 64, 64, 4
        $region24: #{tpu_custom_call.1} parent=11 // pred_fallthru
          _
        // Predicated region
        $region25: #{tpu_custom_call.1} parent=11 // pred_check
          %p291 = pneg %p219
        $region26: #{tpu_custom_call.1} parent=11 // pred_check_branch
          %293 = sbr.rel (%p291) target = $region28
        $region27: #{tpu_custom_call.1} parent=11 // pred_region
          _
        $region28: #{tpu_custom_call.1} parent=11 // pred_fallthru
          _
      $region12: #{tpu_custom_call.1} parent=5 // pred_fallthru
        _
      %p294 = scmp.lt.s32.totalorder %s23, 4
      // Predicated region
      $region29: #{tpu_custom_call.1} parent=5 // pred_check
        %p295 = pneg %p294
      $region30: #{tpu_custom_call.1} parent=5 // pred_check_branch
        %297 = sbr.rel (%p295) target = $region32
      $region31: #{tpu_custom_call.1} parent=5 // pred_region
        // Predicated region
        $region33: #{tpu_custom_call.1} parent=31 // pred_check
          %p298 = pneg %p57
        $region34: #{tpu_custom_call.1} parent=31 // pred_check_branch
          %300 = sbr.rel (%p298) target = $region36
        $region35: #{tpu_custom_call.1} parent=31 // pred_region
          %s301 = sand.u32 %s47, 1
          %s302 = scalar_lea.sflag [#allocation3], %s301
          %s303 = sand.u32 %s47, 1
          %s304 = smul.addr %s303, 512
          %s305 = scalar_lea.vmem [#allocation2], %s304
          %s306 = smul.u32 16, %s31
          %s308 = ssub.s32 8192, 8192
          %309 = vsyncadd %s302, %s308
          %s310 = smul.addr %s306, 4
          %s311 = smul.addr %s30, 128
          %s312 = sadd.s32 %s310, %s311
          %s313 = smul.addr %s312, 128
          %s314 = scalar_lea.hbm %s0, %s313
          %s315 = sshll.u32 %s305, 4
          %s316 = int_to_ptr.vmem [resolvable:$true] %s315
          %321 = dma.hbm_to_vmem [thread:$0]  %s314, 8192, %s316, %s302, 128, 128, 8
        $region36: #{tpu_custom_call.1} parent=31 // pred_fallthru
          _
        // Predicated region
        $region37: #{tpu_custom_call.1} parent=31 // pred_check
          %p322 = pneg %p93
        $region38: #{tpu_custom_call.1} parent=31 // pred_check_branch
          %324 = sbr.rel (%p322) target = $region40
        $region39: #{tpu_custom_call.1} parent=31 // pred_region
          %s325 = sand.u32 %s23, 1
          %s326 = scalar_lea.sflag [#allocation6], %s325
          %s327 = sand.u32 %s83, 1
          %s328 = smul.addr %s327, 64
          %s329 = scalar_lea.vmem [#allocation5], %s328
          %s330 = smul.u32 %s31, 8
          %s331 = ssub.s32 %s330, 1
          %p332 = scmp.gt.s32.totalorder %s331, 0
          %s333 = scalar_select %p332, %s331, 0
          %s334 = smul.u32 2, %s333
          %s336 = ssub.s32 1024, 1024
          %337 = vsyncadd %s326, %s336
          %s338 = smul.addr %s334, 4
          %s339 = smul.addr %s30, 128
          %s340 = sadd.s32 %s338, %s339
          %s341 = smul.addr %s340, 128
          %s342 = scalar_lea.hbm %s1, %s341
          %s343 = sshll.u32 %s329, 4
          %s344 = int_to_ptr.vmem [resolvable:$true] %s343
          %349 = dma.hbm_to_vmem [thread:$0]  %s342, 1024, %s344, %s326, 128, 128, 8
        $region40: #{tpu_custom_call.1} parent=31 // pred_fallthru
          _
        // Predicated region
        $region41: #{tpu_custom_call.1} parent=31 // pred_check
          %p350 = pneg %p129
        $region42: #{tpu_custom_call.1} parent=31 // pred_check_branch
          %352 = sbr.rel (%p350) target = $region44
        $region43: #{tpu_custom_call.1} parent=31 // pred_region
          %s353 = sand.u32 %s23, 1
          %s354 = scalar_lea.sflag [#allocation6], %s353
          %s355 = sand.u32 %s119, 1
          %s356 = smul.addr %s355, 64
          %s357 = scalar_lea.vmem [#allocation7], %s356
          %s358 = sadd.s32 %s31, 1
          %s359 = smul.u32 %s358, 8
          %p360 = scmp.lt.s32.totalorder %s359, 15
          %s361 = scalar_select %p360, %s359, 15
          %s362 = smul.u32 2, %s361
          %s364 = ssub.s32 1024, 1024
          %365 = vsyncadd %s354, %s364
          %s366 = smul.addr %s362, 4
          %s367 = smul.addr %s30, 128
          %s368 = sadd.s32 %s366, %s367
          %s369 = smul.addr %s368, 128
          %s370 = scalar_lea.hbm %s2, %s369
          %s371 = sshll.u32 %s357, 4
          %s372 = int_to_ptr.vmem [resolvable:$true] %s371
          %377 = dma.hbm_to_vmem [thread:$0]  %s370, 1024, %s372, %s354, 128, 128, 8
        $region44: #{tpu_custom_call.1} parent=31 // pred_fallthru
          _
      $region32: #{tpu_custom_call.1} parent=5 // pred_fallthru
        _
      %p378 = scmp.le.s32.totalorder 1, %s23
      %p379 = scmp.lt.s32.totalorder %s23, 5
      %p380 = pnand %p378, %p379
      %p381 = pneg %p380
      // Predicated region
      $region45: #{tpu_custom_call.1} parent=5 // pred_check
        _
      $region46: #{tpu_custom_call.1} parent=5 // pred_check_branch
        %383 = sbr.rel (%p380) target = $region48
      $region47: #{tpu_custom_call.1} parent=5 // pred_region
        %s384 = ssub.s32 %s23, 1
        %s385 = sand.u32 %s50, 1
        %s386 = scalar_lea.sflag [#allocation3], %s385
        %s387 = sand.u32 %s50, 1
        %s388 = smul.addr %s387, 512
        %s389 = scalar_lea.vmem [#allocation2], %s388
        // Predicated region
        $region49: #{tpu_custom_call.1} parent=47 // pred_check
          %p390 = pneg %p63
        $region50: #{tpu_custom_call.1} parent=47 // pred_check_branch
          %392 = sbr.rel (%p390) target = $region52
        $region51: #{tpu_custom_call.1} parent=47 // pred_region
          %393 = dma.done %s386, 8192
        $region52: #{tpu_custom_call.1} parent=47 // pred_fallthru
          _
        %s394 = sand.u32 %s28, 1
        %s395 = scalar_lea.sflag [#allocation6], %s394
        %s396 = sand.u32 %s86, 1
        %s397 = smul.addr %s396, 64
        %s398 = scalar_lea.vmem [#allocation5], %s397
        // Predicated region
        $region53: #{tpu_custom_call.1} parent=47 // pred_check
          %p399 = pneg %p99
        $region54: #{tpu_custom_call.1} parent=47 // pred_check_branch
          %401 = sbr.rel (%p399) target = $region56
        $region55: #{tpu_custom_call.1} parent=47 // pred_region
          %402 = dma.done %s395, 1024
        $region56: #{tpu_custom_call.1} parent=47 // pred_fallthru
          _
        %s403 = sand.u32 %s28, 1
        %s404 = scalar_lea.sflag [#allocation6], %s403
        %s405 = sand.u32 %s122, 1
        %s406 = smul.addr %s405, 64
        %s407 = scalar_lea.vmem [#allocation7], %s406
        // Predicated region
        $region57: #{tpu_custom_call.1} parent=47 // pred_check
          %p408 = pneg %p135
        $region58: #{tpu_custom_call.1} parent=47 // pred_check_branch
          %410 = sbr.rel (%p408) target = $region60
        $region59: #{tpu_custom_call.1} parent=47 // pred_region
          %411 = dma.done %s404, 1024
        $region60: #{tpu_custom_call.1} parent=47 // pred_fallthru
          _
        // Predicated region
        $region61: #{tpu_custom_call.1} parent=47 // pred_check
          %p412 = pneg %p156
        $region62: #{tpu_custom_call.1} parent=47 // pred_check_branch
          %414 = sbr.rel (%p412) target = $region64
        $region63: #{tpu_custom_call.1} parent=47 // pred_region
          %415 = dma.done [#allocation9], 9216
        $region64: #{tpu_custom_call.1} parent=47 // pred_fallthru
          _
        // Predicated region
        $region65: #{tpu_custom_call.1} parent=47 // pred_check
          %p416 = pneg %p198
        $region66: #{tpu_custom_call.1} parent=47 // pred_check_branch
          %418 = sbr.rel (%p416) target = $region68
        $region67: #{tpu_custom_call.1} parent=47 // pred_region
          %419 = dma.done [#allocation9], 9216
        $region68: #{tpu_custom_call.1} parent=47 // pred_fallthru
          _
        %s420 = sand.u32 %s50, 1
        %s421 = scalar_lea.sflag [#allocation3], %s420
        %s422 = sand.u32 %s50, 1
        %s423 = smul.addr %s422, 512
        %s424 = scalar_lea.vmem [#allocation2], %s423
        %p425 = pneg %p63
        %p426 = pneg %p60
        %s427 = sand.u32 %s28, 1
        %s428 = scalar_lea.sflag [#allocation6], %s427
        %s429 = sand.u32 %s86, 1
        %s430 = smul.addr %s429, 64
        %s431 = scalar_lea.vmem [#allocation5], %s430
        %p432 = pneg %p99
        %p433 = pneg %p96
        %s434 = sand.u32 %s28, 1
        %s435 = scalar_lea.sflag [#allocation6], %s434
        %s436 = sand.u32 %s122, 1
        %s437 = smul.addr %s436, 64
        %s438 = scalar_lea.vmem [#allocation7], %s437
        %p439 = pneg %p135
        %p440 = pneg %p132
        %p441 = pneg %p156
        %p442 = pneg %p153
        %p443 = pneg %p177
        %p444 = pneg %p174
        %p445 = pneg %p198
        %p446 = pneg %p195
        %p447 = pneg %p219
        %p448 = pneg %p216
        %p449 = pneg %p247
        %p450 = pneg %p244
        %s451 = sand.u32 %s234, 1
        %s452 = scalar_lea.sflag [#allocation4], %s451
        %s453 = sand.u32 %s234, 1
        %s454 = smul.addr %s453, 512
        %s455 = scalar_lea.vmem [#allocation11], %s454
        %s456 = smul.u32 16, %s33
        %s457 = smul.u32 %s33, 8
        %s458 = ssub.s32 %s457, 1
        %p459 = scmp.gt.s32.totalorder %s458, 0
        %s460 = scalar_select %p459, %s458, 0
        %s461 = smul.u32 2, %s460
        %s462 = sadd.s32 %s33, 1
        %s463 = smul.u32 %s462, 8
        %p464 = scmp.lt.s32.totalorder %s463, 15
        %s465 = scalar_select %p464, %s463, 15
        %s466 = smul.u32 2, %s465
        %s467 = smul.u32 16, %s33
        %p469 = scmp.gt.s32.totalorder %s33, 0
        %s470 = scalar_select %p469, 1.0, 0.0
        %p472 = scmp.ne.f32.partialorder %s470, %s470
        %s473 = sshrl.u32 %s470, 16
        %s474 = sand.u32 %s473, 1
        %s475 = sadd.s32 32767, %s474
        %s476 = sadd.s32 %s470, %s475
        %s477 = sand.u32 %s476, 4294901760
        %s478 = scalar_select %p472, 2143289344, %s477
        %s480 = sshrl.u32 %s478, 16
        %p481 = scmp.lt.s32.totalorder %s33, 1
        %s482 = scalar_select %p481, 1.0, 0.0
        %p484 = scmp.ne.f32.partialorder %s482, %s482
        %s485 = sshrl.u32 %s482, 16
        %s486 = sand.u32 %s485, 1
        %s487 = sadd.s32 32767, %s486
        %s488 = sadd.s32 %s482, %s487
        %s489 = sand.u32 %s488, 4294901760
        %s490 = scalar_select %p484, 2143289344, %s489
        %s492 = sshrl.u32 %s490, 16
        %v493 = vld [vmem:[%s389] sm:$0xff]
        %v494 = vld [vmem:[%s389 + $0x8] sm:$0xff]
        %v495 = vld [vmem:[%s389 + $0x10] sm:$0xff]
        %v496 = vld [vmem:[%s389 + $0x18] sm:$0xff]
        %v497 = vld [vmem:[%s389 + $0x20] sm:$0xff]
        %v498 = vld [vmem:[%s389 + $0x28] sm:$0xff]
        %v499 = vld [vmem:[%s389 + $0x30] sm:$0xff]
        %v500 = vld [vmem:[%s389 + $0x38] sm:$0xff]
        %v501 = vld [vmem:[%s389 + $0x40] sm:$0xff]
        %v502 = vld [vmem:[%s389 + $0x48] sm:$0xff]
        %v503 = vld [vmem:[%s389 + $0x50] sm:$0xff]
        %v504 = vld [vmem:[%s389 + $0x58] sm:$0xff]
        %v505 = vld [vmem:[%s389 + $0x60] sm:$0xff]
        %v506 = vld [vmem:[%s389 + $0x68] sm:$0xff]
        %v507 = vld [vmem:[%s389 + $0x70] sm:$0xff]
        %v508 = vld [vmem:[%s389 + $0x78] sm:$0xff]
        %v509 = vld [vmem:[%s389 + $0x80] sm:$0xff]
        %v510 = vld [vmem:[%s389 + $0x88] sm:$0xff]
        %v511 = vld [vmem:[%s389 + $0x90] sm:$0xff]
        %v512 = vld [vmem:[%s389 + $0x98] sm:$0xff]
        %v513 = vld [vmem:[%s389 + $0xa0] sm:$0xff]
        %v514 = vld [vmem:[%s389 + $0xa8] sm:$0xff]
        %v515 = vld [vmem:[%s389 + $0xb0] sm:$0xff]
        %v516 = vld [vmem:[%s389 + $0xb8] sm:$0xff]
        %v517 = vld [vmem:[%s389 + $0xc0] sm:$0xff]
        %v518 = vld [vmem:[%s389 + $0xc8] sm:$0xff]
        %v519 = vld [vmem:[%s389 + $0xd0] sm:$0xff]
        %v520 = vld [vmem:[%s389 + $0xd8] sm:$0xff]
        %v521 = vld [vmem:[%s389 + $0xe0] sm:$0xff]
        %v522 = vld [vmem:[%s389 + $0xe8] sm:$0xff]
        %v523 = vld [vmem:[%s389 + $0xf0] sm:$0xff]
        %v524 = vld [vmem:[%s389 + $0xf8] sm:$0xff]
        %v525 = vld [vmem:[%s389 + $0x100] sm:$0xff]
        %v526 = vld [vmem:[%s389 + $0x108] sm:$0xff]
        %v527 = vld [vmem:[%s389 + $0x110] sm:$0xff]
        %v528 = vld [vmem:[%s389 + $0x118] sm:$0xff]
        %v529 = vld [vmem:[%s389 + $0x120] sm:$0xff]
        %v530 = vld [vmem:[%s389 + $0x128] sm:$0xff]
        %v531 = vld [vmem:[%s389 + $0x130] sm:$0xff]
        %v532 = vld [vmem:[%s389 + $0x138] sm:$0xff]
        %v533 = vld [vmem:[%s389 + $0x140] sm:$0xff]
        %v534 = vld [vmem:[%s389 + $0x148] sm:$0xff]
        %v535 = vld [vmem:[%s389 + $0x150] sm:$0xff]
        %v536 = vld [vmem:[%s389 + $0x158] sm:$0xff]
        %v537 = vld [vmem:[%s389 + $0x160] sm:$0xff]
        %v538 = vld [vmem:[%s389 + $0x168] sm:$0xff]
        %v539 = vld [vmem:[%s389 + $0x170] sm:$0xff]
        %v540 = vld [vmem:[%s389 + $0x178] sm:$0xff]
        %v541 = vld [vmem:[%s389 + $0x180] sm:$0xff]
        %v542 = vld [vmem:[%s389 + $0x188] sm:$0xff]
        %v543 = vld [vmem:[%s389 + $0x190] sm:$0xff]
        %v544 = vld [vmem:[%s389 + $0x198] sm:$0xff]
        %v545 = vld [vmem:[%s389 + $0x1a0] sm:$0xff]
        %v546 = vld [vmem:[%s389 + $0x1a8] sm:$0xff]
        %v547 = vld [vmem:[%s389 + $0x1b0] sm:$0xff]
        %v548 = vld [vmem:[%s389 + $0x1b8] sm:$0xff]
        %v549 = vld [vmem:[%s389 + $0x1c0] sm:$0xff]
        %v550 = vld [vmem:[%s389 + $0x1c8] sm:$0xff]
        %v551 = vld [vmem:[%s389 + $0x1d0] sm:$0xff]
        %v552 = vld [vmem:[%s389 + $0x1d8] sm:$0xff]
        %v553 = vld [vmem:[%s389 + $0x1e0] sm:$0xff]
        %v554 = vld [vmem:[%s389 + $0x1e8] sm:$0xff]
        %v555 = vld [vmem:[%s389 + $0x1f0] sm:$0xff]
        %v556 = vld [vmem:[%s389 + $0x1f8] sm:$0xff]
        %v557 = vpack.c.bf16 %v494, %v493
        %v558 = vpack.c.bf16 %v496, %v495
        %v559 = vpack.c.bf16 %v498, %v497
        %v560 = vpack.c.bf16 %v500, %v499
        %v561 = vpack.c.bf16 %v502, %v501
        %v562 = vpack.c.bf16 %v504, %v503
        %v563 = vpack.c.bf16 %v506, %v505
        %v564 = vpack.c.bf16 %v508, %v507
        %v565 = vpack.c.bf16 %v510, %v509
        %v566 = vpack.c.bf16 %v512, %v511
        %v567 = vpack.c.bf16 %v514, %v513
        %v568 = vpack.c.bf16 %v516, %v515
        %v569 = vpack.c.bf16 %v518, %v517
        %v570 = vpack.c.bf16 %v520, %v519
        %v571 = vpack.c.bf16 %v522, %v521
        %v572 = vpack.c.bf16 %v524, %v523
        %v573 = vpack.c.bf16 %v526, %v525
        %v574 = vpack.c.bf16 %v528, %v527
        %v575 = vpack.c.bf16 %v530, %v529
        %v576 = vpack.c.bf16 %v532, %v531
        %v577 = vpack.c.bf16 %v534, %v533
        %v578 = vpack.c.bf16 %v536, %v535
        %v579 = vpack.c.bf16 %v538, %v537
        %v580 = vpack.c.bf16 %v540, %v539
        %v581 = vpack.c.bf16 %v542, %v541
        %v582 = vpack.c.bf16 %v544, %v543
        %v583 = vpack.c.bf16 %v546, %v545
        %v584 = vpack.c.bf16 %v548, %v547
        %v585 = vpack.c.bf16 %v550, %v549
        %v586 = vpack.c.bf16 %v552, %v551
        %v587 = vpack.c.bf16 %v554, %v553
        %v588 = vpack.c.bf16 %v556, %v555
        %v589 = vld [vmem:[%s398] sm:$0xff]
        %v590 = vld [vmem:[%s398 + $0x8] sm:$0xff]
        %v591 = vld [vmem:[%s398 + $0x10] sm:$0xff]
        %v592 = vld [vmem:[%s398 + $0x18] sm:$0xff]
        %v593 = vld [vmem:[%s398 + $0x20] sm:$0xff]
        %v594 = vld [vmem:[%s398 + $0x28] sm:$0xff]
        %v595 = vld [vmem:[%s398 + $0x30] sm:$0xff]
        %v596 = vld [vmem:[%s398 + $0x38] sm:$0xff]
        %v597 = vpack.c.bf16 %v590, %v589
        %v598 = vpack.c.bf16 %v592, %v591
        %v599 = vpack.c.bf16 %v594, %v593
        %v600 = vpack.c.bf16 %v596, %v595
        %s601 = sshll.u32 %s480, 16
        %s602 = sor.u32 %s480, %s601
        %v603 = vstv %s602
        %v605 = vmul.bf16 %v597, %v603
        %v606 = vmul.bf16 %v598, %v603
        %v607 = vmul.bf16 %v599, %v603
        %v608 = vmul.bf16 %v600, %v603
        %v609 = vld [vmem:[%s407] sm:$0xff]
        %v610 = vld [vmem:[%s407 + $0x8] sm:$0xff]
        %v611 = vld [vmem:[%s407 + $0x10] sm:$0xff]
        %v612 = vld [vmem:[%s407 + $0x18] sm:$0xff]
        %v613 = vld [vmem:[%s407 + $0x20] sm:$0xff]
        %v614 = vld [vmem:[%s407 + $0x28] sm:$0xff]
        %v615 = vld [vmem:[%s407 + $0x30] sm:$0xff]
        %v616 = vld [vmem:[%s407 + $0x38] sm:$0xff]
        %v617 = vpack.c.bf16 %v610, %v609
        %v618 = vpack.c.bf16 %v612, %v611
        %v619 = vpack.c.bf16 %v614, %v613
        %v620 = vpack.c.bf16 %v616, %v615
        %s621 = sshll.u32 %s492, 16
        %s622 = sor.u32 %s492, %s621
        %v623 = vstv %s622
        %v625 = vmul.bf16 %v617, %v623
        %v626 = vmul.bf16 %v618, %v623
        %v627 = vmul.bf16 %v619, %v623
        %v628 = vmul.bf16 %v620, %v623
        %vm629 = vsmask.f32 256
        %v631 = vshrl.u32 %v605, 16
        %v633 = vrot.slane %v631, 7
        %v634 = vshll.u32 %v605, 16
        %v636 = vor.u32 %v633, %v634
        %v638 = vshrl.u32 %v606, 16
        %v640 = vrot.slane %v638, 7
        %v641 = vshll.u32 %v606, 16
        %v643 = vor.u32 %v640, %v641
        %v644 = vsel %vm629, %v633, %v643
        %v646 = vshrl.u32 %v607, 16
        %v648 = vrot.slane %v646, 7
        %v649 = vshll.u32 %v607, 16
        %v651 = vor.u32 %v648, %v649
        %v653 = vshrl.u32 %v608, 16
        %v655 = vrot.slane %v653, 7
        %v656 = vshll.u32 %v608, 16
        %v658 = vor.u32 %v655, %v656
        %v659 = vsel %vm629, %v648, %v658
        %v661 = vshrl.u32 %v557, 16
        %v663 = vrot.slane %v661, 7
        %v664 = vshll.u32 %v557, 16
        %v666 = vor.u32 %v663, %v664
        %v668 = vshrl.u32 %v558, 16
        %v670 = vrot.slane %v668, 7
        %v671 = vshll.u32 %v558, 16
        %v673 = vor.u32 %v670, %v671
        %v674 = vsel %vm629, %v663, %v673
        %v676 = vshrl.u32 %v559, 16
        %v678 = vrot.slane %v676, 7
        %v679 = vshll.u32 %v559, 16
        %v681 = vor.u32 %v678, %v679
        %v683 = vshrl.u32 %v560, 16
        %v685 = vrot.slane %v683, 7
        %v686 = vshll.u32 %v560, 16
        %v688 = vor.u32 %v685, %v686
        %v689 = vsel %vm629, %v678, %v688
        %v691 = vshrl.u32 %v561, 16
        %v693 = vrot.slane %v691, 7
        %v694 = vshll.u32 %v561, 16
        %v696 = vor.u32 %v693, %v694
        %v698 = vshrl.u32 %v562, 16
        %v700 = vrot.slane %v698, 7
        %v701 = vshll.u32 %v562, 16
        %v703 = vor.u32 %v700, %v701
        %v704 = vsel %vm629, %v693, %v703
        %v706 = vshrl.u32 %v563, 16
        %v708 = vrot.slane %v706, 7
        %v709 = vshll.u32 %v563, 16
        %v711 = vor.u32 %v708, %v709
        %v713 = vshrl.u32 %v564, 16
        %v715 = vrot.slane %v713, 7
        %v716 = vshll.u32 %v564, 16
        %v718 = vor.u32 %v715, %v716
        %v719 = vsel %vm629, %v708, %v718
        %v721 = vshrl.u32 %v565, 16
        %v723 = vrot.slane %v721, 7
        %v724 = vshll.u32 %v565, 16
        %v726 = vor.u32 %v723, %v724
        %v728 = vshrl.u32 %v566, 16
        %v730 = vrot.slane %v728, 7
        %v731 = vshll.u32 %v566, 16
        %v733 = vor.u32 %v730, %v731
        %v734 = vsel %vm629, %v723, %v733
        %v736 = vshrl.u32 %v567, 16
        %v738 = vrot.slane %v736, 7
        %v739 = vshll.u32 %v567, 16
        %v741 = vor.u32 %v738, %v739
        %v743 = vshrl.u32 %v568, 16
        %v745 = vrot.slane %v743, 7
        %v746 = vshll.u32 %v568, 16
        %v748 = vor.u32 %v745, %v746
        %v749 = vsel %vm629, %v738, %v748
        %v751 = vshrl.u32 %v569, 16
        %v753 = vrot.slane %v751, 7
        %v754 = vshll.u32 %v569, 16
        %v756 = vor.u32 %v753, %v754
        %v758 = vshrl.u32 %v570, 16
        %v760 = vrot.slane %v758, 7
        %v761 = vshll.u32 %v570, 16
        %v763 = vor.u32 %v760, %v761
        %v764 = vsel %vm629, %v753, %v763
        %v766 = vshrl.u32 %v571, 16
        %v768 = vrot.slane %v766, 7
        %v769 = vshll.u32 %v571, 16
        %v771 = vor.u32 %v768, %v769
        %v773 = vshrl.u32 %v572, 16
        %v775 = vrot.slane %v773, 7
        %v776 = vshll.u32 %v572, 16
        %v778 = vor.u32 %v775, %v776
        %v779 = vsel %vm629, %v768, %v778
        %v781 = vshrl.u32 %v573, 16
        %v783 = vrot.slane %v781, 7
        %v784 = vshll.u32 %v573, 16
        %v786 = vor.u32 %v783, %v784
        %v788 = vshrl.u32 %v574, 16
        %v790 = vrot.slane %v788, 7
        %v791 = vshll.u32 %v574, 16
        %v793 = vor.u32 %v790, %v791
        %v794 = vsel %vm629, %v783, %v793
        %v796 = vshrl.u32 %v575, 16
        %v798 = vrot.slane %v796, 7
        %v799 = vshll.u32 %v575, 16
        %v801 = vor.u32 %v798, %v799
        %v803 = vshrl.u32 %v576, 16
        %v805 = vrot.slane %v803, 7
        %v806 = vshll.u32 %v576, 16
        %v808 = vor.u32 %v805, %v806
        %v809 = vsel %vm629, %v798, %v808
        %v811 = vshrl.u32 %v577, 16
        %v813 = vrot.slane %v811, 7
        %v814 = vshll.u32 %v577, 16
        %v816 = vor.u32 %v813, %v814
        %v818 = vshrl.u32 %v578, 16
        %v820 = vrot.slane %v818, 7
        %v821 = vshll.u32 %v578, 16
        %v823 = vor.u32 %v820, %v821
        %v824 = vsel %vm629, %v813, %v823
        %v826 = vshrl.u32 %v579, 16
        %v828 = vrot.slane %v826, 7
        %v829 = vshll.u32 %v579, 16
        %v831 = vor.u32 %v828, %v829
        %v833 = vshrl.u32 %v580, 16
        %v835 = vrot.slane %v833, 7
        %v836 = vshll.u32 %v580, 16
        %v838 = vor.u32 %v835, %v836
        %v839 = vsel %vm629, %v828, %v838
        %v841 = vshrl.u32 %v581, 16
        %v843 = vrot.slane %v841, 7
        %v844 = vshll.u32 %v581, 16
        %v846 = vor.u32 %v843, %v844
        %v848 = vshrl.u32 %v582, 16
        %v850 = vrot.slane %v848, 7
        %v851 = vshll.u32 %v582, 16
        %v853 = vor.u32 %v850, %v851
        %v854 = vsel %vm629, %v843, %v853
        %v856 = vshrl.u32 %v583, 16
        %v858 = vrot.slane %v856, 7
        %v859 = vshll.u32 %v583, 16
        %v861 = vor.u32 %v858, %v859
        %v863 = vshrl.u32 %v584, 16
        %v865 = vrot.slane %v863, 7
        %v866 = vshll.u32 %v584, 16
        %v868 = vor.u32 %v865, %v866
        %v869 = vsel %vm629, %v858, %v868
        %v871 = vshrl.u32 %v585, 16
        %v873 = vrot.slane %v871, 7
        %v874 = vshll.u32 %v585, 16
        %v876 = vor.u32 %v873, %v874
        %v878 = vshrl.u32 %v586, 16
        %v880 = vrot.slane %v878, 7
        %v881 = vshll.u32 %v586, 16
        %v883 = vor.u32 %v880, %v881
        %v884 = vsel %vm629, %v873, %v883
        %v886 = vshrl.u32 %v587, 16
        %v888 = vrot.slane %v886, 7
        %v889 = vshll.u32 %v587, 16
        %v891 = vor.u32 %v888, %v889
        %v893 = vshrl.u32 %v588, 16
        %v895 = vrot.slane %v893, 7
        %v896 = vshll.u32 %v588, 16
        %v898 = vor.u32 %v895, %v896
        %v899 = vsel %vm629, %v888, %v898
        %v901 = vshrl.u32 %v625, 16
        %v903 = vrot.slane %v901, 7
        %v904 = vshll.u32 %v625, 16
        %v906 = vor.u32 %v903, %v904
        %v908 = vshrl.u32 %v626, 16
        %v910 = vrot.slane %v908, 7
        %v911 = vshll.u32 %v626, 16
        %v913 = vor.u32 %v910, %v911
        %v914 = vsel %vm629, %v903, %v913
        %v916 = vshrl.u32 %v627, 16
        %v918 = vrot.slane %v916, 7
        %v919 = vshll.u32 %v627, 16
        %v921 = vor.u32 %v918, %v919
        %v923 = vshrl.u32 %v628, 16
        %v925 = vrot.slane %v923, 7
        %v926 = vshll.u32 %v628, 16
        %v928 = vor.u32 %v925, %v926
        %v929 = vsel %vm629, %v918, %v928
        %vm970 = vcmask 1040384
        %vm971 = vmand %vm970, %vm629
        %v972 = vsel %vm971, 0, %v636
        %v973 = vsel %vm971, 0, %v651
        %v974 = vsel %vm971, 0, %v666
        %v975 = vsel %vm971, 0, %v681
        %v976 = vsel %vm971, 0, %v696
        %v977 = vsel %vm971, 0, %v711
        %v978 = vsel %vm971, 0, %v726
        %v979 = vsel %vm971, 0, %v741
        %v980 = vsel %vm971, 0, %v756
        %v981 = vsel %vm971, 0, %v771
        %v982 = vsel %vm971, 0, %v786
        %v983 = vsel %vm971, 0, %v801
        %v984 = vsel %vm971, 0, %v816
        %v985 = vsel %vm971, 0, %v831
        %v986 = vsel %vm971, 0, %v846
        %v987 = vsel %vm971, 0, %v861
        %v988 = vsel %vm971, 0, %v876
        %v989 = vsel %vm971, 0, %v891
        %v990 = vsel %vm971, 0, %v906
        %v991 = vsel %vm971, 0, %v921
        %vm992 = vsmask.f32 7424
        %v993 = vrot.slane %v634, 1
        %v994 = vor.u32 %v631, %v993
        %v995 = vrot.slane %v641, 1
        %v996 = vsel %vm992, %v994, %v995
        %v997 = vor.u32 %v638, %v995
        %v998 = vrot.slane %v649, 1
        %v999 = vor.u32 %v646, %v998
        %v1000 = vrot.slane %v656, 1
        %v1001 = vsel %vm992, %v999, %v1000
        %v1002 = vor.u32 %v653, %v1000
        %v1003 = vrot.slane %v664, 1
        %v1004 = vor.u32 %v661, %v1003
        %v1005 = vrot.slane %v671, 1
        %v1006 = vsel %vm992, %v1004, %v1005
        %v1007 = vor.u32 %v668, %v1005
        %v1008 = vrot.slane %v679, 1
        %v1009 = vor.u32 %v676, %v1008
        %v1010 = vrot.slane %v686, 1
        %v1011 = vsel %vm992, %v1009, %v1010
        %v1012 = vor.u32 %v683, %v1010
        %v1013 = vrot.slane %v694, 1
        %v1014 = vor.u32 %v691, %v1013
        %v1015 = vrot.slane %v701, 1
        %v1016 = vsel %vm992, %v1014, %v1015
        %v1017 = vor.u32 %v698, %v1015
        %v1018 = vrot.slane %v709, 1
        %v1019 = vor.u32 %v706, %v1018
        %v1020 = vrot.slane %v716, 1
        %v1021 = vsel %vm992, %v1019, %v1020
        %v1022 = vor.u32 %v713, %v1020
        %v1023 = vrot.slane %v724, 1
        %v1024 = vor.u32 %v721, %v1023
        %v1025 = vrot.slane %v731, 1
        %v1026 = vsel %vm992, %v1024, %v1025
        %v1027 = vor.u32 %v728, %v1025
        %v1028 = vrot.slane %v739, 1
        %v1029 = vor.u32 %v736, %v1028
        %v1030 = vrot.slane %v746, 1
        %v1031 = vsel %vm992, %v1029, %v1030
        %v1032 = vor.u32 %v743, %v1030
        %v1033 = vrot.slane %v754, 1
        %v1034 = vor.u32 %v751, %v1033
        %v1035 = vrot.slane %v761, 1
        %v1036 = vsel %vm992, %v1034, %v1035
        %v1037 = vor.u32 %v758, %v1035
        %v1038 = vrot.slane %v769, 1
        %v1039 = vor.u32 %v766, %v1038
        %v1040 = vrot.slane %v776, 1
        %v1041 = vsel %vm992, %v1039, %v1040
        %v1042 = vor.u32 %v773, %v1040
        %v1043 = vrot.slane %v784, 1
        %v1044 = vor.u32 %v781, %v1043
        %v1045 = vrot.slane %v791, 1
        %v1046 = vsel %vm992, %v1044, %v1045
        %v1047 = vor.u32 %v788, %v1045
        %v1048 = vrot.slane %v799, 1
        %v1049 = vor.u32 %v796, %v1048
        %v1050 = vrot.slane %v806, 1
        %v1051 = vsel %vm992, %v1049, %v1050
        %v1052 = vor.u32 %v803, %v1050
        %v1053 = vrot.slane %v814, 1
        %v1054 = vor.u32 %v811, %v1053
        %v1055 = vrot.slane %v821, 1
        %v1056 = vsel %vm992, %v1054, %v1055
        %v1057 = vor.u32 %v818, %v1055
        %v1058 = vrot.slane %v829, 1
        %v1059 = vor.u32 %v826, %v1058
        %v1060 = vrot.slane %v836, 1
        %v1061 = vsel %vm992, %v1059, %v1060
        %v1062 = vor.u32 %v833, %v1060
        %v1063 = vrot.slane %v844, 1
        %v1064 = vor.u32 %v841, %v1063
        %v1065 = vrot.slane %v851, 1
        %v1066 = vsel %vm992, %v1064, %v1065
        %v1067 = vor.u32 %v848, %v1065
        %v1068 = vrot.slane %v859, 1
        %v1069 = vor.u32 %v856, %v1068
        %v1070 = vrot.slane %v866, 1
        %v1071 = vsel %vm992, %v1069, %v1070
        %v1072 = vor.u32 %v863, %v1070
        %v1073 = vrot.slane %v874, 1
        %v1074 = vor.u32 %v871, %v1073
        %v1075 = vrot.slane %v881, 1
        %v1076 = vsel %vm992, %v1074, %v1075
        %v1077 = vor.u32 %v878, %v1075
        %v1078 = vrot.slane %v889, 1
        %v1079 = vor.u32 %v886, %v1078
        %v1080 = vrot.slane %v896, 1
        %v1081 = vsel %vm992, %v1079, %v1080
        %v1082 = vor.u32 %v893, %v1080
        %v1083 = vrot.slane %v904, 1
        %v1084 = vor.u32 %v901, %v1083
        %v1085 = vrot.slane %v911, 1
        %v1086 = vsel %vm992, %v1084, %v1085
        %v1087 = vor.u32 %v908, %v1085
        %v1088 = vrot.slane %v919, 1
        %v1089 = vor.u32 %v916, %v1088
        %v1090 = vrot.slane %v926, 1
        %v1091 = vsel %vm992, %v1089, %v1090
        %v1092 = vor.u32 %v923, %v1090
        %vm1133 = vcmask 1047552
        %vm1134 = vmand %vm1133, %vm992
        %v1135 = vsel %vm1134, %v997, 0
        %v1136 = vsel %vm1134, %v1002, 0
        %v1137 = vsel %vm1134, %v1007, 0
        %v1138 = vsel %vm1134, %v1012, 0
        %v1139 = vsel %vm1134, %v1017, 0
        %v1140 = vsel %vm1134, %v1022, 0
        %v1141 = vsel %vm1134, %v1027, 0
        %v1142 = vsel %vm1134, %v1032, 0
        %v1143 = vsel %vm1134, %v1037, 0
        %v1144 = vsel %vm1134, %v1042, 0
        %v1145 = vsel %vm1134, %v1047, 0
        %v1146 = vsel %vm1134, %v1052, 0
        %v1147 = vsel %vm1134, %v1057, 0
        %v1148 = vsel %vm1134, %v1062, 0
        %v1149 = vsel %vm1134, %v1067, 0
        %v1150 = vsel %vm1134, %v1072, 0
        %v1151 = vsel %vm1134, %v1077, 0
        %v1152 = vsel %vm1134, %v1082, 0
        %v1153 = vsel %vm1134, %v1087, 0
        %v1154 = vsel %vm1134, %v1092, 0
        %v1155 = vld [vmem:[#allocation8] sm:$0xf]
        %v1156 = vld [vmem:[#allocation8 + $0x4] sm:$0xf]
        %v1157 = vld [vmem:[#allocation8 + $0x8] sm:$0xf]
        %v1158 = vld [vmem:[#allocation8 + $0xc] sm:$0xf]
        %v1159 = vld [vmem:[#allocation8 + $0x10] sm:$0xf]
        %v1160 = vld [vmem:[#allocation8 + $0x14] sm:$0xf]
        %v1161 = vld [vmem:[#allocation8 + $0x18] sm:$0xf]
        %v1162 = vld [vmem:[#allocation8 + $0x1c] sm:$0xf]
        %v1163 = vld [vmem:[#allocation8 + $0x20] sm:$0xf]
        %v1164 = vld [vmem:[#allocation8 + $0x24] sm:$0xf]
        %v1165 = vld [vmem:[#allocation8 + $0x28] sm:$0xf]
        %v1166 = vld [vmem:[#allocation8 + $0x2c] sm:$0xf]
        %v1167 = vld [vmem:[#allocation8 + $0x30] sm:$0xf]
        %v1168 = vld [vmem:[#allocation8 + $0x34] sm:$0xf]
        %v1169 = vld [vmem:[#allocation8 + $0x38] sm:$0xf]
        %v1170 = vld [vmem:[#allocation8 + $0x3c] sm:$0xf]
        %v1171 = vld [vmem:[#allocation8 + $0x40] sm:$0xf]
        %v1172 = vld [vmem:[#allocation8 + $0x44] sm:$0xf]
        %v1173 = vld [vmem:[#allocation8 + $0x48] sm:$0xf]
        %v1174 = vld [vmem:[#allocation8 + $0x4c] sm:$0xf]
        %v1175 = vld [vmem:[#allocation8 + $0x50] sm:$0xf]
        %v1176 = vld [vmem:[#allocation8 + $0x54] sm:$0xf]
        %v1177 = vld [vmem:[#allocation8 + $0x58] sm:$0xf]
        %v1178 = vld [vmem:[#allocation8 + $0x5c] sm:$0xf]
        %v1179 = vld [vmem:[#allocation8 + $0x60] sm:$0xf]
        %v1180 = vld [vmem:[#allocation8 + $0x64] sm:$0xf]
        %v1181 = vld [vmem:[#allocation8 + $0x68] sm:$0xf]
        %v1182 = vld [vmem:[#allocation8 + $0x6c] sm:$0xf]
        %v1183 = vld [vmem:[#allocation8 + $0x70] sm:$0xf]
        %v1184 = vld [vmem:[#allocation8 + $0x74] sm:$0xf]
        %v1185 = vld [vmem:[#allocation8 + $0x78] sm:$0xf]
        %v1186 = vld [vmem:[#allocation8 + $0x7c] sm:$0xf]
        %v1187 = vld [vmem:[#allocation8 + $0x80] sm:$0xf]
        %v1188 = vld [vmem:[#allocation8 + $0x84] sm:$0xf]
        %v1189 = vld [vmem:[#allocation8 + $0x88] sm:$0xf]
        %v1190 = vld [vmem:[#allocation8 + $0x8c] sm:$0xf]
        %v1191 = vld [vmem:[#allocation8 + $0x90] sm:$0xf]
        %v1192 = vld [vmem:[#allocation8 + $0x94] sm:$0xf]
        %v1193 = vld [vmem:[#allocation8 + $0x98] sm:$0xf]
        %v1194 = vld [vmem:[#allocation8 + $0x9c] sm:$0xf]
        %v1195 = vld [vmem:[#allocation8 + $0xa0] sm:$0xf]
        %v1196 = vld [vmem:[#allocation8 + $0xa4] sm:$0xf]
        %v1197 = vld [vmem:[#allocation8 + $0xa8] sm:$0xf]
        %v1198 = vld [vmem:[#allocation8 + $0xac] sm:$0xf]
        %v1199 = vld [vmem:[#allocation8 + $0xb0] sm:$0xf]
        %v1200 = vld [vmem:[#allocation8 + $0xb4] sm:$0xf]
        %v1201 = vld [vmem:[#allocation8 + $0xb8] sm:$0xf]
        %v1202 = vld [vmem:[#allocation8 + $0xbc] sm:$0xf]
        %s1203 = scalar_lea.vmem [#allocation8], 192
        %v1204 = vld [vmem:[%s1203] sm:$0xf]
        %v1205 = vld [vmem:[%s1203 + $0x4] sm:$0xf]
        %v1206 = vld [vmem:[%s1203 + $0x8] sm:$0xf]
        %v1207 = vld [vmem:[%s1203 + $0xc] sm:$0xf]
        %v1208 = vld [vmem:[%s1203 + $0x10] sm:$0xf]
        %v1209 = vld [vmem:[%s1203 + $0x14] sm:$0xf]
        %v1210 = vld [vmem:[%s1203 + $0x18] sm:$0xf]
        %v1211 = vld [vmem:[%s1203 + $0x1c] sm:$0xf]
        %v1212 = vld [vmem:[%s1203 + $0x20] sm:$0xf]
        %v1213 = vld [vmem:[%s1203 + $0x24] sm:$0xf]
        %v1214 = vld [vmem:[%s1203 + $0x28] sm:$0xf]
        %v1215 = vld [vmem:[%s1203 + $0x2c] sm:$0xf]
        %v1216 = vld [vmem:[%s1203 + $0x30] sm:$0xf]
        %v1217 = vld [vmem:[%s1203 + $0x34] sm:$0xf]
        %v1218 = vld [vmem:[%s1203 + $0x38] sm:$0xf]
        %v1219 = vld [vmem:[%s1203 + $0x3c] sm:$0xf]
        %v1220 = vld [vmem:[%s1203 + $0x40] sm:$0xf]
        %v1221 = vld [vmem:[%s1203 + $0x44] sm:$0xf]
        %v1222 = vld [vmem:[%s1203 + $0x48] sm:$0xf]
        %v1223 = vld [vmem:[%s1203 + $0x4c] sm:$0xf]
        %v1224 = vld [vmem:[%s1203 + $0x50] sm:$0xf]
        %v1225 = vld [vmem:[%s1203 + $0x54] sm:$0xf]
        %v1226 = vld [vmem:[%s1203 + $0x58] sm:$0xf]
        %v1227 = vld [vmem:[%s1203 + $0x5c] sm:$0xf]
        %v1228 = vld [vmem:[%s1203 + $0x60] sm:$0xf]
        %v1229 = vld [vmem:[%s1203 + $0x64] sm:$0xf]
        %v1230 = vld [vmem:[%s1203 + $0x68] sm:$0xf]
        %v1231 = vld [vmem:[%s1203 + $0x6c] sm:$0xf]
        %v1232 = vld [vmem:[%s1203 + $0x70] sm:$0xf]
        %v1233 = vld [vmem:[%s1203 + $0x74] sm:$0xf]
        %v1234 = vld [vmem:[%s1203 + $0x78] sm:$0xf]
        %v1235 = vld [vmem:[%s1203 + $0x7c] sm:$0xf]
        %v1236 = vld [vmem:[%s1203 + $0x80] sm:$0xf]
        %v1237 = vld [vmem:[%s1203 + $0x84] sm:$0xf]
        %v1238 = vld [vmem:[%s1203 + $0x88] sm:$0xf]
        %v1239 = vld [vmem:[%s1203 + $0x8c] sm:$0xf]
        %v1240 = vld [vmem:[%s1203 + $0x90] sm:$0xf]
        %v1241 = vld [vmem:[%s1203 + $0x94] sm:$0xf]
        %v1242 = vld [vmem:[%s1203 + $0x98] sm:$0xf]
        %v1243 = vld [vmem:[%s1203 + $0x9c] sm:$0xf]
        %v1244 = vld [vmem:[%s1203 + $0xa0] sm:$0xf]
        %v1245 = vld [vmem:[%s1203 + $0xa4] sm:$0xf]
        %v1246 = vld [vmem:[%s1203 + $0xa8] sm:$0xf]
        %v1247 = vld [vmem:[%s1203 + $0xac] sm:$0xf]
        %v1248 = vld [vmem:[%s1203 + $0xb0] sm:$0xf]
        %v1249 = vld [vmem:[%s1203 + $0xb4] sm:$0xf]
        %v1250 = vld [vmem:[%s1203 + $0xb8] sm:$0xf]
        %v1251 = vld [vmem:[%s1203 + $0xbc] sm:$0xf]
        %v1300 = vunpack.c.l.b16 %v1204
        %v1301 = vunpack.c.l.b16 %v1205
        %v1302 = vunpack.c.l.b16 %v1206
        %v1303 = vunpack.c.l.b16 %v1207
        %v1304 = vunpack.c.l.b16 %v1208
        %v1305 = vunpack.c.l.b16 %v1209
        %v1306 = vunpack.c.l.b16 %v1210
        %v1307 = vunpack.c.l.b16 %v1211
        %v1308 = vunpack.c.l.b16 %v1212
        %v1309 = vunpack.c.l.b16 %v1213
        %v1310 = vunpack.c.l.b16 %v1214
        %v1311 = vunpack.c.l.b16 %v1215
        %v1312 = vunpack.c.l.b16 %v1216
        %v1313 = vunpack.c.l.b16 %v1217
        %v1314 = vunpack.c.l.b16 %v1218
        %v1315 = vunpack.c.l.b16 %v1219
        %v1316 = vunpack.c.l.b16 %v1220
        %v1317 = vunpack.c.l.b16 %v1221
        %v1318 = vunpack.c.l.b16 %v1222
        %v1319 = vunpack.c.l.b16 %v1223
        %v1320 = vunpack.c.l.b16 %v1224
        %v1321 = vunpack.c.l.b16 %v1225
        %v1322 = vunpack.c.l.b16 %v1226
        %v1323 = vunpack.c.l.b16 %v1227
        %v1324 = vunpack.c.l.b16 %v1228
        %v1325 = vunpack.c.l.b16 %v1229
        %v1326 = vunpack.c.l.b16 %v1230
        %v1327 = vunpack.c.l.b16 %v1231
        %v1328 = vunpack.c.l.b16 %v1232
        %v1329 = vunpack.c.l.b16 %v1233
        %v1330 = vunpack.c.l.b16 %v1234
        %v1331 = vunpack.c.l.b16 %v1235
        %v1332 = vunpack.c.l.b16 %v1236
        %v1333 = vunpack.c.l.b16 %v1237
        %v1334 = vunpack.c.l.b16 %v1238
        %v1335 = vunpack.c.l.b16 %v1239
        %v1336 = vunpack.c.l.b16 %v1240
        %v1337 = vunpack.c.l.b16 %v1241
        %v1338 = vunpack.c.l.b16 %v1242
        %v1339 = vunpack.c.l.b16 %v1243
        %v1340 = vunpack.c.l.b16 %v1244
        %v1341 = vunpack.c.l.b16 %v1245
        %v1342 = vunpack.c.l.b16 %v1246
        %v1343 = vunpack.c.l.b16 %v1247
        %v1344 = vunpack.c.l.b16 %v1248
        %v1345 = vunpack.c.l.b16 %v1249
        %v1346 = vunpack.c.l.b16 %v1250
        %v1347 = vunpack.c.l.b16 %v1251
        %v1348 = vpack.c.b16 %v1301, %v1300
        %v1349 = vpack.c.b16 %v1303, %v1302
        %v1350 = vpack.c.b16 %v1305, %v1304
        %v1351 = vpack.c.b16 %v1307, %v1306
        %v1352 = vpack.c.b16 %v1309, %v1308
        %v1353 = vpack.c.b16 %v1311, %v1310
        %v1354 = vpack.c.b16 %v1313, %v1312
        %v1355 = vpack.c.b16 %v1315, %v1314
        %v1356 = vpack.c.b16 %v1317, %v1316
        %v1357 = vpack.c.b16 %v1319, %v1318
        %v1358 = vpack.c.b16 %v1321, %v1320
        %v1359 = vpack.c.b16 %v1323, %v1322
        %v1360 = vpack.c.b16 %v1325, %v1324
        %v1361 = vpack.c.b16 %v1327, %v1326
        %v1362 = vpack.c.b16 %v1329, %v1328
        %v1363 = vpack.c.b16 %v1331, %v1330
        %v1364 = vpack.c.b16 %v1333, %v1332
        %v1365 = vpack.c.b16 %v1335, %v1334
        %v1366 = vpack.c.b16 %v1337, %v1336
        %v1367 = vpack.c.b16 %v1339, %v1338
        %v1368 = vpack.c.b16 %v1341, %v1340
        %v1369 = vpack.c.b16 %v1343, %v1342
        %v1370 = vpack.c.b16 %v1345, %v1344
        %v1371 = vpack.c.b16 %v1347, %v1346
        %1396 = vmatprep.subr.bf16.mxu0 0
        %1397 = vmatpush1.bf16.msra.mxu0 %v1348
        %1398 = vmatprep.subr.bf16.mxu0 0
        %1399 = vmatpush1.bf16.msra.mxu0 %v1349
        %1400 = vmatprep.subr.bf16.mxu0 0
        %1401 = vmatpush1.bf16.msra.mxu0 %v1350
        %1402 = vmatprep.subr.bf16.mxu0 0
        %1403 = vmatpush1.bf16.msra.mxu0 %v1351
        %1404 = vmatprep.subr.bf16.mxu0 0
        %1405 = vmatpush1.bf16.msra.mxu0 %v1352
        %1406 = vmatprep.subr.bf16.mxu0 0
        %1407 = vmatpush1.bf16.msra.mxu0 %v1353
        %1408 = vmatprep.subr.bf16.mxu0 0
        %1409 = vmatpush1.bf16.msra.mxu0 %v1354
        %1410 = vmatprep.subr.bf16.mxu0 0
        %1411 = vmatpush1.bf16.msra.mxu0 %v1355
        %1412 = vmatprep.subr.bf16.mxu0 0
        %1413 = vmatpush1.bf16.msra.mxu0 %v1356
        %1414 = vmatprep.subr.bf16.mxu0 0
        %1415 = vmatpush1.bf16.msra.mxu0 %v1357
        %1416 = vmatprep.subr.bf16.mxu0 0
        %1417 = vmatpush1.bf16.msra.mxu0 %v1358
        %1418 = vmatprep.subr.bf16.mxu0 0
        %1419 = vmatpush1.bf16.msra.mxu0 %v1359
        %1420 = vmatprep.subr.bf16.mxu0 0
        %1421 = vmatpush1.bf16.msra.mxu0 %v1360
        %1422 = vmatprep.subr.bf16.mxu0 0
        %1423 = vmatpush1.bf16.msra.mxu0 %v1361
        %1424 = vmatprep.subr.bf16.mxu0 0
        %1425 = vmatpush1.bf16.msra.mxu0 %v1362
        %1426 = vmatprep.subr.bf16.mxu0 0
        %1427 = vmatpush1.bf16.msra.mxu0 %v1363
        %1428 = vmatprep.mubr.bf16.mxu0 %v607
        %1429 = vmatmul.mubr.bf16.gmra.mrb[0].mxu0 %v973
        %v1430 = vpop.f32.mrb[0].mxu0
        %v1431 = vadd.f32 0.0, %v1430
        %v1432 = vpop.f32.mrb[0].mxu0
        %v1433 = vpop.f32.mrb[0].mxu0
        %v1434 = vadd.f32 0.0, %v1433
        %v1435 = vpop.f32.mrb[0].mxu0
        %1436 = vmatprep.mubr.bf16.mxu0 %v608
        %1437 = vmatmul.mubr.bf16.gmra.mrb[0].mxu0 %v659
        %v1438 = vpop.f32.mrb[0].mxu0
        %v1439 = vadd.f32 0.0, %v1438
        %v1440 = vpop.f32.mrb[0].mxu0
        %v1441 = vpop.f32.mrb[0].mxu0
        %v1442 = vadd.f32 0.0, %v1441
        %v1443 = vpop.f32.mrb[0].mxu0
        %1444 = vmatprep.mubr.bf16.mxu0 %v557
        %1445 = vmatmul.mubr.bf16.gmra.mrb[0].mxu0 %v974
        %v1446 = vpop.f32.mrb[0].mxu0
        %v1447 = vadd.f32 0.0, %v1446
        %v1448 = vpop.f32.mrb[0].mxu0
        %v1449 = vpop.f32.mrb[0].mxu0
        %v1450 = vadd.f32 0.0, %v1449
        %v1451 = vpop.f32.mrb[0].mxu0
        %1452 = vmatprep.mubr.bf16.mxu0 %v558
        %1453 = vmatmul.mubr.bf16.gmra.mrb[0].mxu0 %v674
        %v1454 = vpop.f32.mrb[0].mxu0
        %v1455 = vadd.f32 0.0, %v1454
        %v1456 = vpop.f32.mrb[0].mxu0
        %v1457 = vpop.f32.mrb[0].mxu0
        %v1458 = vadd.f32 0.0, %v1457
        %v1459 = vpop.f32.mrb[0].mxu0
        %1460 = vmatprep.mubr.bf16.mxu0 %v559
        %1461 = vmatmul.mubr.bf16.gmra.mrb[0].mxu0 %v975
        %v1462 = vpop.f32.mrb[0].mxu0
        %v1463 = vadd.f32 0.0, %v1462
        %v1464 = vpop.f32.mrb[0].mxu0
        %v1465 = vpop.f32.mrb[0].mxu0
        %v1466 = vadd.f32 0.0, %v1465
        %v1467 = vpop.f32.mrb[0].mxu0
        %1468 = vmatprep.mubr.bf16.mxu0 %v560
        %1469 = vmatmul.mubr.bf16.gmra.mrb[0].mxu0 %v689
        %v1470 = vpop.f32.mrb[0].mxu0
        %v1471 = vadd.f32 0.0, %v1470
        %v1472 = vpop.f32.mrb[0].mxu0
        %v1473 = vpop.f32.mrb[0].mxu0
        %v1474 = vadd.f32 0.0, %v1473
        %v1475 = vpop.f32.mrb[0].mxu0
        %1476 = vmatprep.mubr.bf16.mxu0 %v561
        %1477 = vmatmul.mubr.bf16.gmra.mrb[0].mxu0 %v976
        %v1478 = vpop.f32.mrb[0].mxu0
        %v1479 = vadd.f32 0.0, %v1478
        %v1480 = vpop.f32.mrb[0].mxu0
        %v1481 = vpop.f32.mrb[0].mxu0
        %v1482 = vadd.f32 0.0, %v1481
        %v1483 = vpop.f32.mrb[0].mxu0
        %1484 = vmatprep.mubr.bf16.mxu0 %v562
        %1485 = vmatmul.mubr.bf16.gmra.mrb[0].mxu0 %v704
        %v1486 = vpop.f32.mrb[0].mxu0
        %v1487 = vadd.f32 0.0, %v1486
        %v1488 = vpop.f32.mrb[0].mxu0
        %v1489 = vpop.f32.mrb[0].mxu0
        %v1490 = vadd.f32 0.0, %v1489
        %v1491 = vpop.f32.mrb[0].mxu0
        %1492 = vmatprep.mubr.bf16.mxu0 %v563
        %1493 = vmatmul.mubr.bf16.gmra.mrb[0].mxu0 %v977
        %v1494 = vpop.f32.mrb[0].mxu0
        %v1495 = vadd.f32 0.0, %v1494
        %v1496 = vpop.f32.mrb[0].mxu0
        %v1497 = vpop.f32.mrb[0].mxu0
        %v1498 = vadd.f32 0.0, %v1497
        %v1499 = vpop.f32.mrb[0].mxu0
        %1500 = vmatprep.mubr.bf16.mxu0 %v564
        %1501 = vmatmul.mubr.bf16.gmra.mrb[0].mxu0 %v719
        %v1502 = vpop.f32.mrb[0].mxu0
        %v1503 = vadd.f32 0.0, %v1502
        %v1504 = vpop.f32.mrb[0].mxu0
        %v1505 = vpop.f32.mrb[0].mxu0
        %v1506 = vadd.f32 0.0, %v1505
        %v1507 = vpop.f32.mrb[0].mxu0
        %1508 = vmatprep.mubr.bf16.mxu0 %v565
        %1509 = vmatmul.mubr.bf16.gmra.mrb[0].mxu0 %v978
        %v1510 = vpop.f32.mrb[0].mxu0
        %v1511 = vadd.f32 0.0, %v1510
        %v1512 = vpop.f32.mrb[0].mxu0
        %v1513 = vpop.f32.mrb[0].mxu0
        %v1514 = vadd.f32 0.0, %v1513
        %v1515 = vpop.f32.mrb[0].mxu0
        %1516 = vmatprep.mubr.bf16.mxu0 %v566
        %1517 = vmatmul.mubr.bf16.gmra.mrb[0].mxu0 %v734
        %v1518 = vpop.f32.mrb[0].mxu0
        %v1519 = vadd.f32 0.0, %v1518
        %v1520 = vpop.f32.mrb[0].mxu0
        %v1521 = vpop.f32.mrb[0].mxu0
        %v1522 = vadd.f32 0.0, %v1521
        %v1523 = vpop.f32.mrb[0].mxu0
        %1524 = vmatprep.mubr.bf16.mxu0 %v567
        %1525 = vmatmul.mubr.bf16.gmra.mrb[0].mxu0 %v979
        %v1526 = vpop.f32.mrb[0].mxu0
        %v1527 = vadd.f32 0.0, %v1526
        %v1528 = vpop.f32.mrb[0].mxu0
        %v1529 = vpop.f32.mrb[0].mxu0
        %v1530 = vadd.f32 0.0, %v1529
        %v1531 = vpop.f32.mrb[0].mxu0
        %1532 = vmatprep.mubr.bf16.mxu0 %v568
        %1533 = vmatmul.mubr.bf16.gmra.mrb[0].mxu0 %v749
        %v1534 = vpop.f32.mrb[0].mxu0
        %v1535 = vadd.f32 0.0, %v1534
        %v1536 = vpop.f32.mrb[0].mxu0
        %v1537 = vpop.f32.mrb[0].mxu0
        %v1538 = vadd.f32 0.0, %v1537
        %v1539 = vpop.f32.mrb[0].mxu0
        %1540 = vmatprep.mubr.bf16.mxu0 %v569
        %1541 = vmatmul.mubr.bf16.gmra.mrb[0].mxu0 %v980
        %v1542 = vpop.f32.mrb[0].mxu0
        %v1543 = vadd.f32 0.0, %v1542
        %v1544 = vpop.f32.mrb[0].mxu0
        %v1545 = vpop.f32.mrb[0].mxu0
        %v1546 = vadd.f32 0.0, %v1545
        %v1547 = vpop.f32.mrb[0].mxu0
        %1548 = vmatprep.mubr.bf16.mxu0 %v570
        %1549 = vmatmul.mubr.bf16.gmra.mrb[0].mxu0 %v764
        %v1550 = vpop.f32.mrb[0].mxu0
        %v1551 = vadd.f32 0.0, %v1550
        %v1552 = vpop.f32.mrb[0].mxu0
        %v1553 = vpop.f32.mrb[0].mxu0
        %v1554 = vadd.f32 0.0, %v1553
        %v1555 = vpop.f32.mrb[0].mxu0
        %1556 = vmatprep.mubr.bf16.mxu0 %v571
        %1557 = vmatmul.mubr.bf16.gmra.mrb[0].mxu0 %v981
        %v1558 = vpop.f32.mrb[0].mxu0
        %v1559 = vadd.f32 0.0, %v1558
        %v1560 = vpop.f32.mrb[0].mxu0
        %v1561 = vpop.f32.mrb[0].mxu0
        %v1562 = vadd.f32 0.0, %v1561
        %v1563 = vpop.f32.mrb[0].mxu0
        %1564 = vmatprep.mubr.bf16.mxu0 %v572
        %1565 = vmatmul.mubr.bf16.gmra.mrb[0].mxu0 %v779
        %v1566 = vpop.f32.mrb[0].mxu0
        %v1567 = vadd.f32 0.0, %v1566
        %v1568 = vpop.f32.mrb[0].mxu0
        %v1569 = vpop.f32.mrb[0].mxu0
        %v1570 = vadd.f32 0.0, %v1569
        %v1571 = vpop.f32.mrb[0].mxu0
        %1572 = vmatprep.mubr.bf16.mxu0 %v573
        %1573 = vmatmul.mubr.bf16.gmra.mrb[0].mxu0 %v982
        %v1574 = vpop.f32.mrb[0].mxu0
        %v1575 = vadd.f32 0.0, %v1574
        %v1576 = vpop.f32.mrb[0].mxu0
        %v1577 = vpop.f32.mrb[0].mxu0
        %v1578 = vadd.f32 0.0, %v1577
        %v1579 = vpop.f32.mrb[0].mxu0
        %1580 = vmatprep.mubr.bf16.mxu0 %v574
        %1581 = vmatmul.mubr.bf16.gmra.mrb[0].mxu0 %v794
        %v1582 = vpop.f32.mrb[0].mxu0
        %v1583 = vadd.f32 0.0, %v1582
        %v1584 = vpop.f32.mrb[0].mxu0
        %v1585 = vpop.f32.mrb[0].mxu0
        %v1586 = vadd.f32 0.0, %v1585
        %v1587 = vpop.f32.mrb[0].mxu0
        %1588 = vmatprep.mubr.bf16.mxu0 %v575
        %1589 = vmatmul.mubr.bf16.gmra.mrb[0].mxu0 %v983
        %v1590 = vpop.f32.mrb[0].mxu0
        %v1591 = vadd.f32 0.0, %v1590
        %v1592 = vpop.f32.mrb[0].mxu0
        %v1593 = vpop.f32.mrb[0].mxu0
        %v1594 = vadd.f32 0.0, %v1593
        %v1595 = vpop.f32.mrb[0].mxu0
        %1596 = vmatprep.mubr.bf16.mxu0 %v576
        %1597 = vmatmul.mubr.bf16.gmra.mrb[0].mxu0 %v809
        %v1598 = vpop.f32.mrb[0].mxu0
        %v1599 = vadd.f32 0.0, %v1598
        %v1600 = vpop.f32.mrb[0].mxu0
        %v1601 = vpop.f32.mrb[0].mxu0
        %v1602 = vadd.f32 0.0, %v1601
        %v1603 = vpop.f32.mrb[0].mxu0
        %1604 = vmatprep.mubr.bf16.mxu0 %v577
        %1605 = vmatmul.mubr.bf16.gmra.mrb[0].mxu0 %v984
        %v1606 = vpop.f32.mrb[0].mxu0
        %v1607 = vadd.f32 0.0, %v1606
        %v1608 = vpop.f32.mrb[0].mxu0
        %v1609 = vpop.f32.mrb[0].mxu0
        %v1610 = vadd.f32 0.0, %v1609
        %v1611 = vpop.f32.mrb[0].mxu0
        %1612 = vmatprep.mubr.bf16.mxu0 %v578
        %1613 = vmatmul.mubr.bf16.gmra.mrb[0].mxu0 %v824
        %v1614 = vpop.f32.mrb[0].mxu0
        %v1615 = vadd.f32 0.0, %v1614
        %v1616 = vpop.f32.mrb[0].mxu0
        %v1617 = vpop.f32.mrb[0].mxu0
        %v1618 = vadd.f32 0.0, %v1617
        %v1619 = vpop.f32.mrb[0].mxu0
        %1620 = vmatprep.mubr.bf16.mxu0 %v579
        %1621 = vmatmul.mubr.bf16.gmra.mrb[0].mxu0 %v985
        %v1622 = vpop.f32.mrb[0].mxu0
        %v1623 = vadd.f32 0.0, %v1622
        %v1624 = vpop.f32.mrb[0].mxu0
        %v1625 = vpop.f32.mrb[0].mxu0
        %v1626 = vadd.f32 0.0, %v1625
        %v1627 = vpop.f32.mrb[0].mxu0
        %1628 = vmatprep.mubr.bf16.mxu0 %v580
        %1629 = vmatmul.mubr.bf16.gmra.mrb[0].mxu0 %v839
        %v1630 = vpop.f32.mrb[0].mxu0
        %v1631 = vadd.f32 0.0, %v1630
        %v1632 = vpop.f32.mrb[0].mxu0
        %v1633 = vpop.f32.mrb[0].mxu0
        %v1634 = vadd.f32 0.0, %v1633
        %v1635 = vpop.f32.mrb[0].mxu0
        %1636 = vmatprep.mubr.bf16.mxu0 %v581
        %1637 = vmatmul.mubr.bf16.gmra.mrb[0].mxu0 %v986
        %v1638 = vpop.f32.mrb[0].mxu0
        %v1639 = vadd.f32 0.0, %v1638
        %v1640 = vpop.f32.mrb[0].mxu0
        %v1641 = vpop.f32.mrb[0].mxu0
        %v1642 = vadd.f32 0.0, %v1641
        %v1643 = vpop.f32.mrb[0].mxu0
        %1644 = vmatprep.mubr.bf16.mxu0 %v582
        %1645 = vmatmul.mubr.bf16.gmra.mrb[0].mxu0 %v854
        %v1646 = vpop.f32.mrb[0].mxu0
        %v1647 = vadd.f32 0.0, %v1646
        %v1648 = vpop.f32.mrb[0].mxu0
        %v1649 = vpop.f32.mrb[0].mxu0
        %v1650 = vadd.f32 0.0, %v1649
        %v1651 = vpop.f32.mrb[0].mxu0
        %1652 = vmatprep.mubr.bf16.mxu0 %v583
        %1653 = vmatmul.mubr.bf16.gmra.mrb[0].mxu0 %v987
        %v1654 = vpop.f32.mrb[0].mxu0
        %v1655 = vadd.f32 0.0, %v1654
        %v1656 = vpop.f32.mrb[0].mxu0
        %v1657 = vpop.f32.mrb[0].mxu0
        %v1658 = vadd.f32 0.0, %v1657
        %v1659 = vpop.f32.mrb[0].mxu0
        %1660 = vmatprep.mubr.bf16.mxu0 %v584
        %1661 = vmatmul.mubr.bf16.gmra.mrb[0].mxu0 %v869
        %v1662 = vpop.f32.mrb[0].mxu0
        %v1663 = vadd.f32 0.0, %v1662
        %v1664 = vpop.f32.mrb[0].mxu0
        %v1665 = vpop.f32.mrb[0].mxu0
        %v1666 = vadd.f32 0.0, %v1665
        %v1667 = vpop.f32.mrb[0].mxu0
        %1668 = vmatprep.mubr.bf16.mxu0 %v585
        %1669 = vmatmul.mubr.bf16.gmra.mrb[0].mxu0 %v988
        %v1670 = vpop.f32.mrb[0].mxu0
        %v1671 = vadd.f32 0.0, %v1670
        %v1672 = vpop.f32.mrb[0].mxu0
        %v1673 = vpop.f32.mrb[0].mxu0
        %v1674 = vadd.f32 0.0, %v1673
        %v1675 = vpop.f32.mrb[0].mxu0
        %1676 = vmatprep.mubr.bf16.mxu0 %v586
        %1677 = vmatmul.mubr.bf16.gmra.mrb[0].mxu0 %v884
        %v1678 = vpop.f32.mrb[0].mxu0
        %v1679 = vadd.f32 0.0, %v1678
        %v1680 = vpop.f32.mrb[0].mxu0
        %v1681 = vpop.f32.mrb[0].mxu0
        %v1682 = vadd.f32 0.0, %v1681
        %v1683 = vpop.f32.mrb[0].mxu0
        %1684 = vmatprep.mubr.bf16.mxu0 %v587
        %1685 = vmatmul.mubr.bf16.gmra.mrb[0].mxu0 %v989
        %v1686 = vpop.f32.mrb[0].mxu0
        %v1687 = vadd.f32 0.0, %v1686
        %v1688 = vpop.f32.mrb[0].mxu0
        %v1689 = vpop.f32.mrb[0].mxu0
        %v1690 = vadd.f32 0.0, %v1689
        %v1691 = vpop.f32.mrb[0].mxu0
        %1692 = vmatprep.mubr.bf16.mxu0 %v588
        %1693 = vmatmul.mubr.bf16.gmra.mrb[0].mxu0 %v899
        %v1694 = vpop.f32.mrb[0].mxu0
        %v1695 = vadd.f32 0.0, %v1694
        %v1696 = vpop.f32.mrb[0].mxu0
        %v1697 = vpop.f32.mrb[0].mxu0
        %v1698 = vadd.f32 0.0, %v1697
        %v1699 = vpop.f32.mrb[0].mxu0
        %1700 = vmatprep.mubr.bf16.mxu0 %v625
        %1701 = vmatmul.mubr.bf16.gmra.mrb[0].mxu0 %v990
        %v1702 = vpop.f32.mrb[0].mxu0
        %v1703 = vadd.f32 0.0, %v1702
        %v1704 = vpop.f32.mrb[0].mxu0
        %v1705 = vpop.f32.mrb[0].mxu0
        %v1706 = vadd.f32 0.0, %v1705
        %v1707 = vpop.f32.mrb[0].mxu0
        %1708 = vmatprep.mubr.bf16.mxu0 %v626
        %1709 = vmatmul.mubr.bf16.gmra.mrb[0].mxu0 %v914
        %v1710 = vpop.f32.mrb[0].mxu0
        %v1711 = vadd.f32 0.0, %v1710
        %v1712 = vpop.f32.mrb[0].mxu0
        %v1713 = vpop.f32.mrb[0].mxu0
        %v1714 = vadd.f32 0.0, %v1713
        %v1715 = vpop.f32.mrb[0].mxu0
        %1716 = vdwg.mxu0
        %1717 = vmatprep.subr.bf16.mxu0 0
        %1718 = vmatpush1.bf16.msra.mxu0 %v1364
        %1719 = vmatprep.subr.bf16.mxu0 0
        %1720 = vmatpush1.bf16.msra.mxu0 %v1365
        %1721 = vmatprep.subr.bf16.mxu0 0
        %1722 = vmatpush1.bf16.msra.mxu0 %v1366
        %1723 = vmatprep.subr.bf16.mxu0 0
        %1724 = vmatpush1.bf16.msra.mxu0 %v1367
        %1725 = vmatprep.subr.bf16.mxu0 0
        %1726 = vmatpush1.bf16.msra.mxu0 %v1368
        %1727 = vmatprep.subr.bf16.mxu0 0
        %1728 = vmatpush1.bf16.msra.mxu0 %v1369
        %1729 = vmatprep.subr.bf16.mxu0 0
        %1730 = vmatpush1.bf16.msra.mxu0 %v1370
        %1731 = vmatprep.subr.bf16.mxu0 0
        %1732 = vmatpush1.bf16.msra.mxu0 %v1371
        %1733 = vmatprep.subr.bf16.mxu0 0
        %1734 = vmatpush1.bf16.msra.mxu0 0
        %1735 = vmatprep.subr.bf16.mxu0 0
        %1736 = vmatpush1.bf16.msra.mxu0 0
        %1737 = vmatprep.subr.bf16.mxu0 0
        %1738 = vmatpush1.bf16.msra.mxu0 0
        %1739 = vmatprep.subr.bf16.mxu0 0
        %1740 = vmatpush1.bf16.msra.mxu0 0
        %1741 = vmatprep.subr.bf16.mxu0 0
        %1742 = vmatpush1.bf16.msra.mxu0 0
        %1743 = vmatprep.subr.bf16.mxu0 0
        %1744 = vmatpush1.bf16.msra.mxu0 0
        %1745 = vmatprep.subr.bf16.mxu0 0
        %1746 = vmatpush1.bf16.msra.mxu0 0
        %1747 = vmatprep.subr.bf16.mxu0 0
        %1748 = vmatpush1.bf16.msra.mxu0 0
        %1749 = vmatprep.mubr.bf16.mxu0 0
        %1750 = vmatmul.mubr.bf16.gmra.mrb[0].mxu0 %v1001
        %v1751 = vpop.f32.mrb[0].mxu0
        %v1752 = vadd.f32 %v1431, %v1751
        %v1753 = vpop.f32.mrb[0].mxu0
        %v1754 = vpop.f32.mrb[0].mxu0
        %v1755 = vadd.f32 %v1434, %v1754
        %v1756 = vpop.f32.mrb[0].mxu0
        %1757 = vmatprep.mubr.bf16.mxu0 0
        %1758 = vmatmul.mubr.bf16.gmra.mrb[0].mxu0 %v1136
        %v1759 = vpop.f32.mrb[0].mxu0
        %v1760 = vadd.f32 %v1439, %v1759
        %v1761 = vpop.f32.mrb[0].mxu0
        %v1762 = vpop.f32.mrb[0].mxu0
        %v1763 = vadd.f32 %v1442, %v1762
        %v1764 = vpop.f32.mrb[0].mxu0
        %1765 = vmatprep.mubr.bf16.mxu0 0
        %1766 = vmatmul.mubr.bf16.gmra.mrb[0].mxu0 %v1006
        %v1767 = vpop.f32.mrb[0].mxu0
        %v1768 = vadd.f32 %v1447, %v1767
        %v1769 = vpop.f32.mrb[0].mxu0
        %v1770 = vpop.f32.mrb[0].mxu0
        %v1771 = vadd.f32 %v1450, %v1770
        %v1772 = vpop.f32.mrb[0].mxu0
        %1773 = vmatprep.mubr.bf16.mxu0 0
        %1774 = vmatmul.mubr.bf16.gmra.mrb[0].mxu0 %v1137
        %v1775 = vpop.f32.mrb[0].mxu0
        %v1776 = vadd.f32 %v1455, %v1775
        %v1777 = vpop.f32.mrb[0].mxu0
        %v1778 = vpop.f32.mrb[0].mxu0
        %v1779 = vadd.f32 %v1458, %v1778
        %v1780 = vpop.f32.mrb[0].mxu0
        %1781 = vmatprep.mubr.bf16.mxu0 0
        %1782 = vmatmul.mubr.bf16.gmra.mrb[0].mxu0 %v1011
        %v1783 = vpop.f32.mrb[0].mxu0
        %v1784 = vadd.f32 %v1463, %v1783
        %v1785 = vpop.f32.mrb[0].mxu0
        %v1786 = vpop.f32.mrb[0].mxu0
        %v1787 = vadd.f32 %v1466, %v1786
        %v1788 = vpop.f32.mrb[0].mxu0
        %1789 = vmatprep.mubr.bf16.mxu0 0
        %1790 = vmatmul.mubr.bf16.gmra.mrb[0].mxu0 %v1138
        %v1791 = vpop.f32.mrb[0].mxu0
        %v1792 = vadd.f32 %v1471, %v1791
        %v1793 = vpop.f32.mrb[0].mxu0
        %v1794 = vpop.f32.mrb[0].mxu0
        %v1795 = vadd.f32 %v1474, %v1794
        %v1796 = vpop.f32.mrb[0].mxu0
        %1797 = vmatprep.mubr.bf16.mxu0 0
        %1798 = vmatmul.mubr.bf16.gmra.mrb[0].mxu0 %v1016
        %v1799 = vpop.f32.mrb[0].mxu0
        %v1800 = vadd.f32 %v1479, %v1799
        %v1801 = vpop.f32.mrb[0].mxu0
        %v1802 = vpop.f32.mrb[0].mxu0
        %v1803 = vadd.f32 %v1482, %v1802
        %v1804 = vpop.f32.mrb[0].mxu0
        %1805 = vmatprep.mubr.bf16.mxu0 0
        %1806 = vmatmul.mubr.bf16.gmra.mrb[0].mxu0 %v1139
        %v1807 = vpop.f32.mrb[0].mxu0
        %v1808 = vadd.f32 %v1487, %v1807
        %v1809 = vpop.f32.mrb[0].mxu0
        %v1810 = vpop.f32.mrb[0].mxu0
        %v1811 = vadd.f32 %v1490, %v1810
        %v1812 = vpop.f32.mrb[0].mxu0
        %1813 = vmatprep.mubr.bf16.mxu0 0
        %1814 = vmatmul.mubr.bf16.gmra.mrb[0].mxu0 %v1021
        %v1815 = vpop.f32.mrb[0].mxu0
        %v1816 = vadd.f32 %v1495, %v1815
        %v1817 = vpop.f32.mrb[0].mxu0
        %v1818 = vpop.f32.mrb[0].mxu0
        %v1819 = vadd.f32 %v1498, %v1818
        %v1820 = vpop.f32.mrb[0].mxu0
        %1821 = vmatprep.mubr.bf16.mxu0 0
        %1822 = vmatmul.mubr.bf16.gmra.mrb[0].mxu0 %v1140
        %v1823 = vpop.f32.mrb[0].mxu0
        %v1824 = vadd.f32 %v1503, %v1823
        %v1825 = vpop.f32.mrb[0].mxu0
        %v1826 = vpop.f32.mrb[0].mxu0
        %v1827 = vadd.f32 %v1506, %v1826
        %v1828 = vpop.f32.mrb[0].mxu0
        %1829 = vmatprep.mubr.bf16.mxu0 0
        %1830 = vmatmul.mubr.bf16.gmra.mrb[0].mxu0 %v1026
        %v1831 = vpop.f32.mrb[0].mxu0
        %v1832 = vadd.f32 %v1511, %v1831
        %v1833 = vpop.f32.mrb[0].mxu0
        %v1834 = vpop.f32.mrb[0].mxu0
        %v1835 = vadd.f32 %v1514, %v1834
        %v1836 = vpop.f32.mrb[0].mxu0
        %1837 = vmatprep.mubr.bf16.mxu0 0
        %1838 = vmatmul.mubr.bf16.gmra.mrb[0].mxu0 %v1141
        %v1839 = vpop.f32.mrb[0].mxu0
        %v1840 = vadd.f32 %v1519, %v1839
        %v1841 = vpop.f32.mrb[0].mxu0
        %v1842 = vpop.f32.mrb[0].mxu0
        %v1843 = vadd.f32 %v1522, %v1842
        %v1844 = vpop.f32.mrb[0].mxu0
        %1845 = vmatprep.mubr.bf16.mxu0 0
        %1846 = vmatmul.mubr.bf16.gmra.mrb[0].mxu0 %v1031
        %v1847 = vpop.f32.mrb[0].mxu0
        %v1848 = vadd.f32 %v1527, %v1847
        %v1849 = vpop.f32.mrb[0].mxu0
        %v1850 = vpop.f32.mrb[0].mxu0
        %v1851 = vadd.f32 %v1530, %v1850
        %v1852 = vpop.f32.mrb[0].mxu0
        %1853 = vmatprep.mubr.bf16.mxu0 0
        %1854 = vmatmul.mubr.bf16.gmra.mrb[0].mxu0 %v1142
        %v1855 = vpop.f32.mrb[0].mxu0
        %v1856 = vadd.f32 %v1535, %v1855
        %v1857 = vpop.f32.mrb[0].mxu0
        %v1858 = vpop.f32.mrb[0].mxu0
        %v1859 = vadd.f32 %v1538, %v1858
        %v1860 = vpop.f32.mrb[0].mxu0
        %1861 = vmatprep.mubr.bf16.mxu0 0
        %1862 = vmatmul.mubr.bf16.gmra.mrb[0].mxu0 %v1036
        %v1863 = vpop.f32.mrb[0].mxu0
        %v1864 = vadd.f32 %v1543, %v1863
        %v1865 = vpop.f32.mrb[0].mxu0
        %v1866 = vpop.f32.mrb[0].mxu0
        %v1867 = vadd.f32 %v1546, %v1866
        %v1868 = vpop.f32.mrb[0].mxu0
        %1869 = vmatprep.mubr.bf16.mxu0 0
        %1870 = vmatmul.mubr.bf16.gmra.mrb[0].mxu0 %v1143
        %v1871 = vpop.f32.mrb[0].mxu0
        %v1872 = vadd.f32 %v1551, %v1871
        %v1873 = vpop.f32.mrb[0].mxu0
        %v1874 = vpop.f32.mrb[0].mxu0
        %v1875 = vadd.f32 %v1554, %v1874
        %v1876 = vpop.f32.mrb[0].mxu0
        %1877 = vmatprep.mubr.bf16.mxu0 0
        %1878 = vmatmul.mubr.bf16.gmra.mrb[0].mxu0 %v1041
        %v1879 = vpop.f32.mrb[0].mxu0
        %v1880 = vadd.f32 %v1559, %v1879
        %v1881 = vpop.f32.mrb[0].mxu0
        %v1882 = vpop.f32.mrb[0].mxu0
        %v1883 = vadd.f32 %v1562, %v1882
        %v1884 = vpop.f32.mrb[0].mxu0
        %1885 = vmatprep.mubr.bf16.mxu0 0
        %1886 = vmatmul.mubr.bf16.gmra.mrb[0].mxu0 %v1144
        %v1887 = vpop.f32.mrb[0].mxu0
        %v1888 = vadd.f32 %v1567, %v1887
        %v1889 = vpop.f32.mrb[0].mxu0
        %v1890 = vpop.f32.mrb[0].mxu0
        %v1891 = vadd.f32 %v1570, %v1890
        %v1892 = vpop.f32.mrb[0].mxu0
        %1893 = vmatprep.mubr.bf16.mxu0 0
        %1894 = vmatmul.mubr.bf16.gmra.mrb[0].mxu0 %v1046
        %v1895 = vpop.f32.mrb[0].mxu0
        %v1896 = vadd.f32 %v1575, %v1895
        %v1897 = vpop.f32.mrb[0].mxu0
        %v1898 = vpop.f32.mrb[0].mxu0
        %v1899 = vadd.f32 %v1578, %v1898
        %v1900 = vpop.f32.mrb[0].mxu0
        %1901 = vmatprep.mubr.bf16.mxu0 0
        %1902 = vmatmul.mubr.bf16.gmra.mrb[0].mxu0 %v1145
        %v1903 = vpop.f32.mrb[0].mxu0
        %v1904 = vadd.f32 %v1583, %v1903
        %v1905 = vpop.f32.mrb[0].mxu0
        %v1906 = vpop.f32.mrb[0].mxu0
        %v1907 = vadd.f32 %v1586, %v1906
        %v1908 = vpop.f32.mrb[0].mxu0
        %1909 = vmatprep.mubr.bf16.mxu0 0
        %1910 = vmatmul.mubr.bf16.gmra.mrb[0].mxu0 %v1051
        %v1911 = vpop.f32.mrb[0].mxu0
        %v1912 = vadd.f32 %v1591, %v1911
        %v1913 = vpop.f32.mrb[0].mxu0
        %v1914 = vpop.f32.mrb[0].mxu0
        %v1915 = vadd.f32 %v1594, %v1914
        %v1916 = vpop.f32.mrb[0].mxu0
        %1917 = vmatprep.mubr.bf16.mxu0 0
        %1918 = vmatmul.mubr.bf16.gmra.mrb[0].mxu0 %v1146
        %v1919 = vpop.f32.mrb[0].mxu0
        %v1920 = vadd.f32 %v1599, %v1919
        %v1921 = vpop.f32.mrb[0].mxu0
        %v1922 = vpop.f32.mrb[0].mxu0
        %v1923 = vadd.f32 %v1602, %v1922
        %v1924 = vpop.f32.mrb[0].mxu0
        %1925 = vmatprep.mubr.bf16.mxu0 0
        %1926 = vmatmul.mubr.bf16.gmra.mrb[0].mxu0 %v1056
        %v1927 = vpop.f32.mrb[0].mxu0
        %v1928 = vadd.f32 %v1607, %v1927
        %v1929 = vpop.f32.mrb[0].mxu0
        %v1930 = vpop.f32.mrb[0].mxu0
        %v1931 = vadd.f32 %v1610, %v1930
        %v1932 = vpop.f32.mrb[0].mxu0
        %1933 = vmatprep.mubr.bf16.mxu0 0
        %1934 = vmatmul.mubr.bf16.gmra.mrb[0].mxu0 %v1147
        %v1935 = vpop.f32.mrb[0].mxu0
        %v1936 = vadd.f32 %v1615, %v1935
        %v1937 = vpop.f32.mrb[0].mxu0
        %v1938 = vpop.f32.mrb[0].mxu0
        %v1939 = vadd.f32 %v1618, %v1938
        %v1940 = vpop.f32.mrb[0].mxu0
        %1941 = vmatprep.mubr.bf16.mxu0 0
        %1942 = vmatmul.mubr.bf16.gmra.mrb[0].mxu0 %v1061
        %v1943 = vpop.f32.mrb[0].mxu0
        %v1944 = vadd.f32 %v1623, %v1943
        %v1945 = vpop.f32.mrb[0].mxu0
        %v1946 = vpop.f32.mrb[0].mxu0
        %v1947 = vadd.f32 %v1626, %v1946
        %v1948 = vpop.f32.mrb[0].mxu0
        %1949 = vmatprep.mubr.bf16.mxu0 0
        %1950 = vmatmul.mubr.bf16.gmra.mrb[0].mxu0 %v1148
        %v1951 = vpop.f32.mrb[0].mxu0
        %v1952 = vadd.f32 %v1631, %v1951
        %v1953 = vpop.f32.mrb[0].mxu0
        %v1954 = vpop.f32.mrb[0].mxu0
        %v1955 = vadd.f32 %v1634, %v1954
        %v1956 = vpop.f32.mrb[0].mxu0
        %1957 = vmatprep.mubr.bf16.mxu0 0
        %1958 = vmatmul.mubr.bf16.gmra.mrb[0].mxu0 %v1066
        %v1959 = vpop.f32.mrb[0].mxu0
        %v1960 = vadd.f32 %v1639, %v1959
        %v1961 = vpop.f32.mrb[0].mxu0
        %v1962 = vpop.f32.mrb[0].mxu0
        %v1963 = vadd.f32 %v1642, %v1962
        %v1964 = vpop.f32.mrb[0].mxu0
        %1965 = vmatprep.mubr.bf16.mxu0 0
        %1966 = vmatmul.mubr.bf16.gmra.mrb[0].mxu0 %v1149
        %v1967 = vpop.f32.mrb[0].mxu0
        %v1968 = vadd.f32 %v1647, %v1967
        %v1969 = vpop.f32.mrb[0].mxu0
        %v1970 = vpop.f32.mrb[0].mxu0
        %v1971 = vadd.f32 %v1650, %v1970
        %v1972 = vpop.f32.mrb[0].mxu0
        %1973 = vmatprep.mubr.bf16.mxu0 0
        %1974 = vmatmul.mubr.bf16.gmra.mrb[0].mxu0 %v1071
        %v1975 = vpop.f32.mrb[0].mxu0
        %v1976 = vadd.f32 %v1655, %v1975
        %v1977 = vpop.f32.mrb[0].mxu0
        %v1978 = vpop.f32.mrb[0].mxu0
        %v1979 = vadd.f32 %v1658, %v1978
        %v1980 = vpop.f32.mrb[0].mxu0
        %1981 = vmatprep.mubr.bf16.mxu0 0
        %1982 = vmatmul.mubr.bf16.gmra.mrb[0].mxu0 %v1150
        %v1983 = vpop.f32.mrb[0].mxu0
        %v1984 = vadd.f32 %v1663, %v1983
        %v1985 = vpop.f32.mrb[0].mxu0
        %v1986 = vpop.f32.mrb[0].mxu0
        %v1987 = vadd.f32 %v1666, %v1986
        %v1988 = vpop.f32.mrb[0].mxu0
        %1989 = vmatprep.mubr.bf16.mxu0 0
        %1990 = vmatmul.mubr.bf16.gmra.mrb[0].mxu0 %v1076
        %v1991 = vpop.f32.mrb[0].mxu0
        %v1992 = vadd.f32 %v1671, %v1991
        %v1993 = vpop.f32.mrb[0].mxu0
        %v1994 = vpop.f32.mrb[0].mxu0
        %v1995 = vadd.f32 %v1674, %v1994
        %v1996 = vpop.f32.mrb[0].mxu0
        %1997 = vmatprep.mubr.bf16.mxu0 0
        %1998 = vmatmul.mubr.bf16.gmra.mrb[0].mxu0 %v1151
        %v1999 = vpop.f32.mrb[0].mxu0
        %v2000 = vadd.f32 %v1679, %v1999
        %v2001 = vpop.f32.mrb[0].mxu0
        %v2002 = vpop.f32.mrb[0].mxu0
        %v2003 = vadd.f32 %v1682, %v2002
        %v2004 = vpop.f32.mrb[0].mxu0
        %2005 = vmatprep.mubr.bf16.mxu0 0
        %2006 = vmatmul.mubr.bf16.gmra.mrb[0].mxu0 %v1081
        %v2007 = vpop.f32.mrb[0].mxu0
        %v2008 = vadd.f32 %v1687, %v2007
        %v2009 = vpop.f32.mrb[0].mxu0
        %v2010 = vpop.f32.mrb[0].mxu0
        %v2011 = vadd.f32 %v1690, %v2010
        %v2012 = vpop.f32.mrb[0].mxu0
        %2013 = vmatprep.mubr.bf16.mxu0 0
        %2014 = vmatmul.mubr.bf16.gmra.mrb[0].mxu0 %v1152
        %v2015 = vpop.f32.mrb[0].mxu0
        %v2016 = vadd.f32 %v1695, %v2015
        %v2017 = vpop.f32.mrb[0].mxu0
        %v2018 = vpop.f32.mrb[0].mxu0
        %v2019 = vadd.f32 %v1698, %v2018
        %v2020 = vpop.f32.mrb[0].mxu0
        %2021 = vmatprep.mubr.bf16.mxu0 0
        %2022 = vmatmul.mubr.bf16.gmra.mrb[0].mxu0 %v1086
        %v2023 = vpop.f32.mrb[0].mxu0
        %v2024 = vadd.f32 %v1703, %v2023
        %v2025 = vpop.f32.mrb[0].mxu0
        %v2026 = vpop.f32.mrb[0].mxu0
        %v2027 = vadd.f32 %v1706, %v2026
        %v2028 = vpop.f32.mrb[0].mxu0
        %2029 = vmatprep.mubr.bf16.mxu0 0
        %2030 = vmatmul.mubr.bf16.gmra.mrb[0].mxu0 %v1153
        %v2031 = vpop.f32.mrb[0].mxu0
        %v2032 = vadd.f32 %v1711, %v2031
        %v2033 = vpop.f32.mrb[0].mxu0
        %v2034 = vpop.f32.mrb[0].mxu0
        %v2035 = vadd.f32 %v1714, %v2034
        %v2036 = vpop.f32.mrb[0].mxu0
        %2037 = vdwg.mxu0
        %v2086 = vunpack.c.l.b16 %v1155
        %v2087 = vunpack.c.l.b16 %v1156
        %v2088 = vunpack.c.l.b16 %v1157
        %v2089 = vunpack.c.l.b16 %v1158
        %v2090 = vunpack.c.l.b16 %v1159
        %v2091 = vunpack.c.l.b16 %v1160
        %v2092 = vunpack.c.l.b16 %v1161
        %v2093 = vunpack.c.l.b16 %v1162
        %v2094 = vunpack.c.l.b16 %v1163
        %v2095 = vunpack.c.l.b16 %v1164
        %v2096 = vunpack.c.l.b16 %v1165
        %v2097 = vunpack.c.l.b16 %v1166
        %v2098 = vunpack.c.l.b16 %v1167
        %v2099 = vunpack.c.l.b16 %v1168
        %v2100 = vunpack.c.l.b16 %v1169
        %v2101 = vunpack.c.l.b16 %v1170
        %v2102 = vunpack.c.l.b16 %v1171
        %v2103 = vunpack.c.l.b16 %v1172
        %v2104 = vunpack.c.l.b16 %v1173
        %v2105 = vunpack.c.l.b16 %v1174
        %v2106 = vunpack.c.l.b16 %v1175
        %v2107 = vunpack.c.l.b16 %v1176
        %v2108 = vunpack.c.l.b16 %v1177
        %v2109 = vunpack.c.l.b16 %v1178
        %v2110 = vunpack.c.l.b16 %v1179
        %v2111 = vunpack.c.l.b16 %v1180
        %v2112 = vunpack.c.l.b16 %v1181
        %v2113 = vunpack.c.l.b16 %v1182
        %v2114 = vunpack.c.l.b16 %v1183
        %v2115 = vunpack.c.l.b16 %v1184
        %v2116 = vunpack.c.l.b16 %v1185
        %v2117 = vunpack.c.l.b16 %v1186
        %v2118 = vunpack.c.l.b16 %v1187
        %v2119 = vunpack.c.l.b16 %v1188
        %v2120 = vunpack.c.l.b16 %v1189
        %v2121 = vunpack.c.l.b16 %v1190
        %v2122 = vunpack.c.l.b16 %v1191
        %v2123 = vunpack.c.l.b16 %v1192
        %v2124 = vunpack.c.l.b16 %v1193
        %v2125 = vunpack.c.l.b16 %v1194
        %v2126 = vunpack.c.l.b16 %v1195
        %v2127 = vunpack.c.l.b16 %v1196
        %v2128 = vunpack.c.l.b16 %v1197
        %v2129 = vunpack.c.l.b16 %v1198
        %v2130 = vunpack.c.l.b16 %v1199
        %v2131 = vunpack.c.l.b16 %v1200
        %v2132 = vunpack.c.l.b16 %v1201
        %v2133 = vunpack.c.l.b16 %v1202
        %v2134 = vpack.c.b16 %v2087, %v2086
        %v2135 = vpack.c.b16 %v2089, %v2088
        %v2136 = vpack.c.b16 %v2091, %v2090
        %v2137 = vpack.c.b16 %v2093, %v2092
        %v2138 = vpack.c.b16 %v2095, %v2094
        %v2139 = vpack.c.b16 %v2097, %v2096
        %v2140 = vpack.c.b16 %v2099, %v2098
        %v2141 = vpack.c.b16 %v2101, %v2100
        %v2142 = vpack.c.b16 %v2103, %v2102
        %v2143 = vpack.c.b16 %v2105, %v2104
        %v2144 = vpack.c.b16 %v2107, %v2106
        %v2145 = vpack.c.b16 %v2109, %v2108
        %v2146 = vpack.c.b16 %v2111, %v2110
        %v2147 = vpack.c.b16 %v2113, %v2112
        %v2148 = vpack.c.b16 %v2115, %v2114
        %v2149 = vpack.c.b16 %v2117, %v2116
        %v2150 = vpack.c.b16 %v2119, %v2118
        %v2151 = vpack.c.b16 %v2121, %v2120
        %v2152 = vpack.c.b16 %v2123, %v2122
        %v2153 = vpack.c.b16 %v2125, %v2124
        %v2154 = vpack.c.b16 %v2127, %v2126
        %v2155 = vpack.c.b16 %v2129, %v2128
        %v2156 = vpack.c.b16 %v2131, %v2130
        %v2157 = vpack.c.b16 %v2133, %v2132
        %2182 = vmatprep.subr.bf16.mxu0 0
        %2183 = vmatpush1.bf16.msra.mxu0 %v2134
        %2184 = vmatprep.subr.bf16.mxu0 0
        %2185 = vmatpush1.bf16.msra.mxu0 %v2135
        %2186 = vmatprep.subr.bf16.mxu0 0
        %2187 = vmatpush1.bf16.msra.mxu0 %v2136
        %2188 = vmatprep.subr.bf16.mxu0 0
        %2189 = vmatpush1.bf16.msra.mxu0 %v2137
        %2190 = vmatprep.subr.bf16.mxu0 0
        %2191 = vmatpush1.bf16.msra.mxu0 %v2138
        %2192 = vmatprep.subr.bf16.mxu0 0
        %2193 = vmatpush1.bf16.msra.mxu0 %v2139
        %2194 = vmatprep.subr.bf16.mxu0 0
        %2195 = vmatpush1.bf16.msra.mxu0 %v2140
        %2196 = vmatprep.subr.bf16.mxu0 0
        %2197 = vmatpush1.bf16.msra.mxu0 %v2141
        %2198 = vmatprep.subr.bf16.mxu0 0
        %2199 = vmatpush1.bf16.msra.mxu0 %v2142
        %2200 = vmatprep.subr.bf16.mxu0 0
        %2201 = vmatpush1.bf16.msra.mxu0 %v2143
        %2202 = vmatprep.subr.bf16.mxu0 0
        %2203 = vmatpush1.bf16.msra.mxu0 %v2144
        %2204 = vmatprep.subr.bf16.mxu0 0
        %2205 = vmatpush1.bf16.msra.mxu0 %v2145
        %2206 = vmatprep.subr.bf16.mxu0 0
        %2207 = vmatpush1.bf16.msra.mxu0 %v2146
        %2208 = vmatprep.subr.bf16.mxu0 0
        %2209 = vmatpush1.bf16.msra.mxu0 %v2147
        %2210 = vmatprep.subr.bf16.mxu0 0
        %2211 = vmatpush1.bf16.msra.mxu0 %v2148
        %2212 = vmatprep.subr.bf16.mxu0 0
        %2213 = vmatpush1.bf16.msra.mxu0 %v2149
        %2214 = vmatprep.mubr.bf16.mxu0 %v605
        %2215 = vmatmul.mubr.bf16.gmra.mrb[0].mxu0 %v972
        %v2216 = vpop.f32.mrb[0].mxu0
        %v2217 = vadd.f32 %v1752, %v2216
        %v2218 = vpop.f32.mrb[0].mxu0
        %v2219 = vpop.f32.mrb[0].mxu0
        %v2220 = vadd.f32 %v1755, %v2219
        %v2221 = vpop.f32.mrb[0].mxu0
        %2222 = vmatprep.mubr.bf16.mxu0 %v606
        %2223 = vmatmul.mubr.bf16.gmra.mrb[0].mxu0 %v644
        %v2224 = vpop.f32.mrb[0].mxu0
        %v2225 = vadd.f32 %v1760, %v2224
        %v2226 = vpop.f32.mrb[0].mxu0
        %v2227 = vpop.f32.mrb[0].mxu0
        %v2228 = vadd.f32 %v1763, %v2227
        %v2229 = vpop.f32.mrb[0].mxu0
        %2230 = vmatprep.mubr.bf16.mxu0 %v607
        %2231 = vmatmul.mubr.bf16.gmra.mrb[0].mxu0 %v973
        %v2232 = vpop.f32.mrb[0].mxu0
        %v2233 = vadd.f32 %v1768, %v2232
        %v2234 = vpop.f32.mrb[0].mxu0
        %v2235 = vpop.f32.mrb[0].mxu0
        %v2236 = vadd.f32 %v1771, %v2235
        %v2237 = vpop.f32.mrb[0].mxu0
        %2238 = vmatprep.mubr.bf16.mxu0 %v608
        %2239 = vmatmul.mubr.bf16.gmra.mrb[0].mxu0 %v659
        %v2240 = vpop.f32.mrb[0].mxu0
        %v2241 = vadd.f32 %v1776, %v2240
        %v2242 = vpop.f32.mrb[0].mxu0
        %v2243 = vpop.f32.mrb[0].mxu0
        %v2244 = vadd.f32 %v1779, %v2243
        %v2245 = vpop.f32.mrb[0].mxu0
        %2246 = vmatprep.mubr.bf16.mxu0 %v557
        %2247 = vmatmul.mubr.bf16.gmra.mrb[0].mxu0 %v974
        %v2248 = vpop.f32.mrb[0].mxu0
        %v2249 = vadd.f32 %v1784, %v2248
        %v2250 = vpop.f32.mrb[0].mxu0
        %v2251 = vpop.f32.mrb[0].mxu0
        %v2252 = vadd.f32 %v1787, %v2251
        %v2253 = vpop.f32.mrb[0].mxu0
        %2254 = vmatprep.mubr.bf16.mxu0 %v558
        %2255 = vmatmul.mubr.bf16.gmra.mrb[0].mxu0 %v674
        %v2256 = vpop.f32.mrb[0].mxu0
        %v2257 = vadd.f32 %v1792, %v2256
        %v2258 = vpop.f32.mrb[0].mxu0
        %v2259 = vpop.f32.mrb[0].mxu0
        %v2260 = vadd.f32 %v1795, %v2259
        %v2261 = vpop.f32.mrb[0].mxu0
        %2262 = vmatprep.mubr.bf16.mxu0 %v559
        %2263 = vmatmul.mubr.bf16.gmra.mrb[0].mxu0 %v975
        %v2264 = vpop.f32.mrb[0].mxu0
        %v2265 = vadd.f32 %v1800, %v2264
        %v2266 = vpop.f32.mrb[0].mxu0
        %v2267 = vpop.f32.mrb[0].mxu0
        %v2268 = vadd.f32 %v1803, %v2267
        %v2269 = vpop.f32.mrb[0].mxu0
        %2270 = vmatprep.mubr.bf16.mxu0 %v560
        %2271 = vmatmul.mubr.bf16.gmra.mrb[0].mxu0 %v689
        %v2272 = vpop.f32.mrb[0].mxu0
        %v2273 = vadd.f32 %v1808, %v2272
        %v2274 = vpop.f32.mrb[0].mxu0
        %v2275 = vpop.f32.mrb[0].mxu0
        %v2276 = vadd.f32 %v1811, %v2275
        %v2277 = vpop.f32.mrb[0].mxu0
        %2278 = vmatprep.mubr.bf16.mxu0 %v561
        %2279 = vmatmul.mubr.bf16.gmra.mrb[0].mxu0 %v976
        %v2280 = vpop.f32.mrb[0].mxu0
        %v2281 = vadd.f32 %v1816, %v2280
        %v2282 = vpop.f32.mrb[0].mxu0
        %v2283 = vpop.f32.mrb[0].mxu0
        %v2284 = vadd.f32 %v1819, %v2283
        %v2285 = vpop.f32.mrb[0].mxu0
        %2286 = vmatprep.mubr.bf16.mxu0 %v562
        %2287 = vmatmul.mubr.bf16.gmra.mrb[0].mxu0 %v704
        %v2288 = vpop.f32.mrb[0].mxu0
        %v2289 = vadd.f32 %v1824, %v2288
        %v2290 = vpop.f32.mrb[0].mxu0
        %v2291 = vpop.f32.mrb[0].mxu0
        %v2292 = vadd.f32 %v1827, %v2291
        %v2293 = vpop.f32.mrb[0].mxu0
        %2294 = vmatprep.mubr.bf16.mxu0 %v563
        %2295 = vmatmul.mubr.bf16.gmra.mrb[0].mxu0 %v977
        %v2296 = vpop.f32.mrb[0].mxu0
        %v2297 = vadd.f32 %v1832, %v2296
        %v2298 = vpop.f32.mrb[0].mxu0
        %v2299 = vpop.f32.mrb[0].mxu0
        %v2300 = vadd.f32 %v1835, %v2299
        %v2301 = vpop.f32.mrb[0].mxu0
        %2302 = vmatprep.mubr.bf16.mxu0 %v564
        %2303 = vmatmul.mubr.bf16.gmra.mrb[0].mxu0 %v719
        %v2304 = vpop.f32.mrb[0].mxu0
        %v2305 = vadd.f32 %v1840, %v2304
        %v2306 = vpop.f32.mrb[0].mxu0
        %v2307 = vpop.f32.mrb[0].mxu0
        %v2308 = vadd.f32 %v1843, %v2307
        %v2309 = vpop.f32.mrb[0].mxu0
        %2310 = vmatprep.mubr.bf16.mxu0 %v565
        %2311 = vmatmul.mubr.bf16.gmra.mrb[0].mxu0 %v978
        %v2312 = vpop.f32.mrb[0].mxu0
        %v2313 = vadd.f32 %v1848, %v2312
        %v2314 = vpop.f32.mrb[0].mxu0
        %v2315 = vpop.f32.mrb[0].mxu0
        %v2316 = vadd.f32 %v1851, %v2315
        %v2317 = vpop.f32.mrb[0].mxu0
        %2318 = vmatprep.mubr.bf16.mxu0 %v566
        %2319 = vmatmul.mubr.bf16.gmra.mrb[0].mxu0 %v734
        %v2320 = vpop.f32.mrb[0].mxu0
        %v2321 = vadd.f32 %v1856, %v2320
        %v2322 = vpop.f32.mrb[0].mxu0
        %v2323 = vpop.f32.mrb[0].mxu0
        %v2324 = vadd.f32 %v1859, %v2323
        %v2325 = vpop.f32.mrb[0].mxu0
        %2326 = vmatprep.mubr.bf16.mxu0 %v567
        %2327 = vmatmul.mubr.bf16.gmra.mrb[0].mxu0 %v979
        %v2328 = vpop.f32.mrb[0].mxu0
        %v2329 = vadd.f32 %v1864, %v2328
        %v2330 = vpop.f32.mrb[0].mxu0
        %v2331 = vpop.f32.mrb[0].mxu0
        %v2332 = vadd.f32 %v1867, %v2331
        %v2333 = vpop.f32.mrb[0].mxu0
        %2334 = vmatprep.mubr.bf16.mxu0 %v568
        %2335 = vmatmul.mubr.bf16.gmra.mrb[0].mxu0 %v749
        %v2336 = vpop.f32.mrb[0].mxu0
        %v2337 = vadd.f32 %v1872, %v2336
        %v2338 = vpop.f32.mrb[0].mxu0
        %v2339 = vpop.f32.mrb[0].mxu0
        %v2340 = vadd.f32 %v1875, %v2339
        %v2341 = vpop.f32.mrb[0].mxu0
        %2342 = vmatprep.mubr.bf16.mxu0 %v569
        %2343 = vmatmul.mubr.bf16.gmra.mrb[0].mxu0 %v980
        %v2344 = vpop.f32.mrb[0].mxu0
        %v2345 = vadd.f32 %v1880, %v2344
        %v2346 = vpop.f32.mrb[0].mxu0
        %v2347 = vpop.f32.mrb[0].mxu0
        %v2348 = vadd.f32 %v1883, %v2347
        %v2349 = vpop.f32.mrb[0].mxu0
        %2350 = vmatprep.mubr.bf16.mxu0 %v570
        %2351 = vmatmul.mubr.bf16.gmra.mrb[0].mxu0 %v764
        %v2352 = vpop.f32.mrb[0].mxu0
        %v2353 = vadd.f32 %v1888, %v2352
        %v2354 = vpop.f32.mrb[0].mxu0
        %v2355 = vpop.f32.mrb[0].mxu0
        %v2356 = vadd.f32 %v1891, %v2355
        %v2357 = vpop.f32.mrb[0].mxu0
        %2358 = vmatprep.mubr.bf16.mxu0 %v571
        %2359 = vmatmul.mubr.bf16.gmra.mrb[0].mxu0 %v981
        %v2360 = vpop.f32.mrb[0].mxu0
        %v2361 = vadd.f32 %v1896, %v2360
        %v2362 = vpop.f32.mrb[0].mxu0
        %v2363 = vpop.f32.mrb[0].mxu0
        %v2364 = vadd.f32 %v1899, %v2363
        %v2365 = vpop.f32.mrb[0].mxu0
        %2366 = vmatprep.mubr.bf16.mxu0 %v572
        %2367 = vmatmul.mubr.bf16.gmra.mrb[0].mxu0 %v779
        %v2368 = vpop.f32.mrb[0].mxu0
        %v2369 = vadd.f32 %v1904, %v2368
        %v2370 = vpop.f32.mrb[0].mxu0
        %v2371 = vpop.f32.mrb[0].mxu0
        %v2372 = vadd.f32 %v1907, %v2371
        %v2373 = vpop.f32.mrb[0].mxu0
        %2374 = vmatprep.mubr.bf16.mxu0 %v573
        %2375 = vmatmul.mubr.bf16.gmra.mrb[0].mxu0 %v982
        %v2376 = vpop.f32.mrb[0].mxu0
        %v2377 = vadd.f32 %v1912, %v2376
        %v2378 = vpop.f32.mrb[0].mxu0
        %v2379 = vpop.f32.mrb[0].mxu0
        %v2380 = vadd.f32 %v1915, %v2379
        %v2381 = vpop.f32.mrb[0].mxu0
        %2382 = vmatprep.mubr.bf16.mxu0 %v574
        %2383 = vmatmul.mubr.bf16.gmra.mrb[0].mxu0 %v794
        %v2384 = vpop.f32.mrb[0].mxu0
        %v2385 = vadd.f32 %v1920, %v2384
        %v2386 = vpop.f32.mrb[0].mxu0
        %v2387 = vpop.f32.mrb[0].mxu0
        %v2388 = vadd.f32 %v1923, %v2387
        %v2389 = vpop.f32.mrb[0].mxu0
        %2390 = vmatprep.mubr.bf16.mxu0 %v575
        %2391 = vmatmul.mubr.bf16.gmra.mrb[0].mxu0 %v983
        %v2392 = vpop.f32.mrb[0].mxu0
        %v2393 = vadd.f32 %v1928, %v2392
        %v2394 = vpop.f32.mrb[0].mxu0
        %v2395 = vpop.f32.mrb[0].mxu0
        %v2396 = vadd.f32 %v1931, %v2395
        %v2397 = vpop.f32.mrb[0].mxu0
        %2398 = vmatprep.mubr.bf16.mxu0 %v576
        %2399 = vmatmul.mubr.bf16.gmra.mrb[0].mxu0 %v809
        %v2400 = vpop.f32.mrb[0].mxu0
        %v2401 = vadd.f32 %v1936, %v2400
        %v2402 = vpop.f32.mrb[0].mxu0
        %v2403 = vpop.f32.mrb[0].mxu0
        %v2404 = vadd.f32 %v1939, %v2403
        %v2405 = vpop.f32.mrb[0].mxu0
        %2406 = vmatprep.mubr.bf16.mxu0 %v577
        %2407 = vmatmul.mubr.bf16.gmra.mrb[0].mxu0 %v984
        %v2408 = vpop.f32.mrb[0].mxu0
        %v2409 = vadd.f32 %v1944, %v2408
        %v2410 = vpop.f32.mrb[0].mxu0
        %v2411 = vpop.f32.mrb[0].mxu0
        %v2412 = vadd.f32 %v1947, %v2411
        %v2413 = vpop.f32.mrb[0].mxu0
        %2414 = vmatprep.mubr.bf16.mxu0 %v578
        %2415 = vmatmul.mubr.bf16.gmra.mrb[0].mxu0 %v824
        %v2416 = vpop.f32.mrb[0].mxu0
        %v2417 = vadd.f32 %v1952, %v2416
        %v2418 = vpop.f32.mrb[0].mxu0
        %v2419 = vpop.f32.mrb[0].mxu0
        %v2420 = vadd.f32 %v1955, %v2419
        %v2421 = vpop.f32.mrb[0].mxu0
        %2422 = vmatprep.mubr.bf16.mxu0 %v579
        %2423 = vmatmul.mubr.bf16.gmra.mrb[0].mxu0 %v985
        %v2424 = vpop.f32.mrb[0].mxu0
        %v2425 = vadd.f32 %v1960, %v2424
        %v2426 = vpop.f32.mrb[0].mxu0
        %v2427 = vpop.f32.mrb[0].mxu0
        %v2428 = vadd.f32 %v1963, %v2427
        %v2429 = vpop.f32.mrb[0].mxu0
        %2430 = vmatprep.mubr.bf16.mxu0 %v580
        %2431 = vmatmul.mubr.bf16.gmra.mrb[0].mxu0 %v839
        %v2432 = vpop.f32.mrb[0].mxu0
        %v2433 = vadd.f32 %v1968, %v2432
        %v2434 = vpop.f32.mrb[0].mxu0
        %v2435 = vpop.f32.mrb[0].mxu0
        %v2436 = vadd.f32 %v1971, %v2435
        %v2437 = vpop.f32.mrb[0].mxu0
        %2438 = vmatprep.mubr.bf16.mxu0 %v581
        %2439 = vmatmul.mubr.bf16.gmra.mrb[0].mxu0 %v986
        %v2440 = vpop.f32.mrb[0].mxu0
        %v2441 = vadd.f32 %v1976, %v2440
        %v2442 = vpop.f32.mrb[0].mxu0
        %v2443 = vpop.f32.mrb[0].mxu0
        %v2444 = vadd.f32 %v1979, %v2443
        %v2445 = vpop.f32.mrb[0].mxu0
        %2446 = vmatprep.mubr.bf16.mxu0 %v582
        %2447 = vmatmul.mubr.bf16.gmra.mrb[0].mxu0 %v854
        %v2448 = vpop.f32.mrb[0].mxu0
        %v2449 = vadd.f32 %v1984, %v2448
        %v2450 = vpop.f32.mrb[0].mxu0
        %v2451 = vpop.f32.mrb[0].mxu0
        %v2452 = vadd.f32 %v1987, %v2451
        %v2453 = vpop.f32.mrb[0].mxu0
        %2454 = vmatprep.mubr.bf16.mxu0 %v583
        %2455 = vmatmul.mubr.bf16.gmra.mrb[0].mxu0 %v987
        %v2456 = vpop.f32.mrb[0].mxu0
        %v2457 = vadd.f32 %v1992, %v2456
        %v2458 = vpop.f32.mrb[0].mxu0
        %v2459 = vpop.f32.mrb[0].mxu0
        %v2460 = vadd.f32 %v1995, %v2459
        %v2461 = vpop.f32.mrb[0].mxu0
        %2462 = vmatprep.mubr.bf16.mxu0 %v584
        %2463 = vmatmul.mubr.bf16.gmra.mrb[0].mxu0 %v869
        %v2464 = vpop.f32.mrb[0].mxu0
        %v2465 = vadd.f32 %v2000, %v2464
        %v2466 = vpop.f32.mrb[0].mxu0
        %v2467 = vpop.f32.mrb[0].mxu0
        %v2468 = vadd.f32 %v2003, %v2467
        %v2469 = vpop.f32.mrb[0].mxu0
        %2470 = vmatprep.mubr.bf16.mxu0 %v585
        %2471 = vmatmul.mubr.bf16.gmra.mrb[0].mxu0 %v988
        %v2472 = vpop.f32.mrb[0].mxu0
        %v2473 = vadd.f32 %v2008, %v2472
        %v2474 = vpop.f32.mrb[0].mxu0
        %v2475 = vpop.f32.mrb[0].mxu0
        %v2476 = vadd.f32 %v2011, %v2475
        %v2477 = vpop.f32.mrb[0].mxu0
        %2478 = vmatprep.mubr.bf16.mxu0 %v586
        %2479 = vmatmul.mubr.bf16.gmra.mrb[0].mxu0 %v884
        %v2480 = vpop.f32.mrb[0].mxu0
        %v2481 = vadd.f32 %v2016, %v2480
        %v2482 = vpop.f32.mrb[0].mxu0
        %v2483 = vpop.f32.mrb[0].mxu0
        %v2484 = vadd.f32 %v2019, %v2483
        %v2485 = vpop.f32.mrb[0].mxu0
        %2486 = vmatprep.mubr.bf16.mxu0 %v587
        %2487 = vmatmul.mubr.bf16.gmra.mrb[0].mxu0 %v989
        %v2488 = vpop.f32.mrb[0].mxu0
        %v2489 = vadd.f32 %v2024, %v2488
        %v2490 = vpop.f32.mrb[0].mxu0
        %v2491 = vpop.f32.mrb[0].mxu0
        %v2492 = vadd.f32 %v2027, %v2491
        %v2493 = vpop.f32.mrb[0].mxu0
        %2494 = vmatprep.mubr.bf16.mxu0 %v588
        %2495 = vmatmul.mubr.bf16.gmra.mrb[0].mxu0 %v899
        %v2496 = vpop.f32.mrb[0].mxu0
        %v2497 = vadd.f32 %v2032, %v2496
        %v2498 = vpop.f32.mrb[0].mxu0
        %v2499 = vpop.f32.mrb[0].mxu0
        %v2500 = vadd.f32 %v2035, %v2499
        %v2501 = vpop.f32.mrb[0].mxu0
        %2502 = vdwg.mxu0
        %2503 = vmatprep.subr.bf16.mxu0 0
        %2504 = vmatpush1.bf16.msra.mxu0 %v2150
        %2505 = vmatprep.subr.bf16.mxu0 0
        %2506 = vmatpush1.bf16.msra.mxu0 %v2151
        %2507 = vmatprep.subr.bf16.mxu0 0
        %2508 = vmatpush1.bf16.msra.mxu0 %v2152
        %2509 = vmatprep.subr.bf16.mxu0 0
        %2510 = vmatpush1.bf16.msra.mxu0 %v2153
        %2511 = vmatprep.subr.bf16.mxu0 0
        %2512 = vmatpush1.bf16.msra.mxu0 %v2154
        %2513 = vmatprep.subr.bf16.mxu0 0
        %2514 = vmatpush1.bf16.msra.mxu0 %v2155
        %2515 = vmatprep.subr.bf16.mxu0 0
        %2516 = vmatpush1.bf16.msra.mxu0 %v2156
        %2517 = vmatprep.subr.bf16.mxu0 0
        %2518 = vmatpush1.bf16.msra.mxu0 %v2157
        %2519 = vmatprep.subr.bf16.mxu0 0
        %2520 = vmatpush1.bf16.msra.mxu0 0
        %2521 = vmatprep.subr.bf16.mxu0 0
        %2522 = vmatpush1.bf16.msra.mxu0 0
        %2523 = vmatprep.subr.bf16.mxu0 0
        %2524 = vmatpush1.bf16.msra.mxu0 0
        %2525 = vmatprep.subr.bf16.mxu0 0
        %2526 = vmatpush1.bf16.msra.mxu0 0
        %2527 = vmatprep.subr.bf16.mxu0 0
        %2528 = vmatpush1.bf16.msra.mxu0 0
        %2529 = vmatprep.subr.bf16.mxu0 0
        %2530 = vmatpush1.bf16.msra.mxu0 0
        %2531 = vmatprep.subr.bf16.mxu0 0
        %2532 = vmatpush1.bf16.msra.mxu0 0
        %2533 = vmatprep.subr.bf16.mxu0 0
        %2534 = vmatpush1.bf16.msra.mxu0 0
        %2535 = vmatprep.mubr.bf16.mxu0 0
        %2536 = vmatmul.mubr.bf16.gmra.mrb[0].mxu0 %v996
        %v2537 = vpop.f32.mrb[0].mxu0
        %v2538 = vadd.f32 %v2217, %v2537
        %v2539 = vpop.f32.mrb[0].mxu0
        %v2540 = vpop.f32.mrb[0].mxu0
        %v2541 = vadd.f32 %v2220, %v2540
        %v2542 = vpop.f32.mrb[0].mxu0
        %2543 = vmatprep.mubr.bf16.mxu0 0
        %2544 = vmatmul.mubr.bf16.gmra.mrb[0].mxu0 %v1135
        %v2545 = vpop.f32.mrb[0].mxu0
        %v2546 = vadd.f32 %v2225, %v2545
        %v2547 = vpop.f32.mrb[0].mxu0
        %v2548 = vpop.f32.mrb[0].mxu0
        %v2549 = vadd.f32 %v2228, %v2548
        %v2550 = vpop.f32.mrb[0].mxu0
        %2551 = vmatprep.mubr.bf16.mxu0 0
        %2552 = vmatmul.mubr.bf16.gmra.mrb[0].mxu0 %v1001
        %v2553 = vpop.f32.mrb[0].mxu0
        %v2554 = vadd.f32 %v2233, %v2553
        %v2555 = vpop.f32.mrb[0].mxu0
        %v2556 = vpop.f32.mrb[0].mxu0
        %v2557 = vadd.f32 %v2236, %v2556
        %v2558 = vpop.f32.mrb[0].mxu0
        %2559 = vmatprep.mubr.bf16.mxu0 0
        %2560 = vmatmul.mubr.bf16.gmra.mrb[0].mxu0 %v1136
        %v2561 = vpop.f32.mrb[0].mxu0
        %v2562 = vadd.f32 %v2241, %v2561
        %v2563 = vpop.f32.mrb[0].mxu0
        %v2564 = vpop.f32.mrb[0].mxu0
        %v2565 = vadd.f32 %v2244, %v2564
        %v2566 = vpop.f32.mrb[0].mxu0
        %2567 = vmatprep.mubr.bf16.mxu0 0
        %2568 = vmatmul.mubr.bf16.gmra.mrb[0].mxu0 %v1006
        %v2569 = vpop.f32.mrb[0].mxu0
        %v2570 = vadd.f32 %v2249, %v2569
        %v2571 = vpop.f32.mrb[0].mxu0
        %v2572 = vpop.f32.mrb[0].mxu0
        %v2573 = vadd.f32 %v2252, %v2572
        %v2574 = vpop.f32.mrb[0].mxu0
        %2575 = vmatprep.mubr.bf16.mxu0 0
        %2576 = vmatmul.mubr.bf16.gmra.mrb[0].mxu0 %v1137
        %v2577 = vpop.f32.mrb[0].mxu0
        %v2578 = vadd.f32 %v2257, %v2577
        %v2579 = vpop.f32.mrb[0].mxu0
        %v2580 = vpop.f32.mrb[0].mxu0
        %v2581 = vadd.f32 %v2260, %v2580
        %v2582 = vpop.f32.mrb[0].mxu0
        %2583 = vmatprep.mubr.bf16.mxu0 0
        %2584 = vmatmul.mubr.bf16.gmra.mrb[0].mxu0 %v1011
        %v2585 = vpop.f32.mrb[0].mxu0
        %v2586 = vadd.f32 %v2265, %v2585
        %v2587 = vpop.f32.mrb[0].mxu0
        %v2588 = vpop.f32.mrb[0].mxu0
        %v2589 = vadd.f32 %v2268, %v2588
        %v2590 = vpop.f32.mrb[0].mxu0
        %2591 = vmatprep.mubr.bf16.mxu0 0
        %2592 = vmatmul.mubr.bf16.gmra.mrb[0].mxu0 %v1138
        %v2593 = vpop.f32.mrb[0].mxu0
        %v2594 = vadd.f32 %v2273, %v2593
        %v2595 = vpop.f32.mrb[0].mxu0
        %v2596 = vpop.f32.mrb[0].mxu0
        %v2597 = vadd.f32 %v2276, %v2596
        %v2598 = vpop.f32.mrb[0].mxu0
        %2599 = vmatprep.mubr.bf16.mxu0 0
        %2600 = vmatmul.mubr.bf16.gmra.mrb[0].mxu0 %v1016
        %v2601 = vpop.f32.mrb[0].mxu0
        %v2602 = vadd.f32 %v2281, %v2601
        %v2603 = vpop.f32.mrb[0].mxu0
        %v2604 = vpop.f32.mrb[0].mxu0
        %v2605 = vadd.f32 %v2284, %v2604
        %v2606 = vpop.f32.mrb[0].mxu0
        %2607 = vmatprep.mubr.bf16.mxu0 0
        %2608 = vmatmul.mubr.bf16.gmra.mrb[0].mxu0 %v1139
        %v2609 = vpop.f32.mrb[0].mxu0
        %v2610 = vadd.f32 %v2289, %v2609
        %v2611 = vpop.f32.mrb[0].mxu0
        %v2612 = vpop.f32.mrb[0].mxu0
        %v2613 = vadd.f32 %v2292, %v2612
        %v2614 = vpop.f32.mrb[0].mxu0
        %2615 = vmatprep.mubr.bf16.mxu0 0
        %2616 = vmatmul.mubr.bf16.gmra.mrb[0].mxu0 %v1021
        %v2617 = vpop.f32.mrb[0].mxu0
        %v2618 = vadd.f32 %v2297, %v2617
        %v2619 = vpop.f32.mrb[0].mxu0
        %v2620 = vpop.f32.mrb[0].mxu0
        %v2621 = vadd.f32 %v2300, %v2620
        %v2622 = vpop.f32.mrb[0].mxu0
        %2623 = vmatprep.mubr.bf16.mxu0 0
        %2624 = vmatmul.mubr.bf16.gmra.mrb[0].mxu0 %v1140
        %v2625 = vpop.f32.mrb[0].mxu0
        %v2626 = vadd.f32 %v2305, %v2625
        %v2627 = vpop.f32.mrb[0].mxu0
        %v2628 = vpop.f32.mrb[0].mxu0
        %v2629 = vadd.f32 %v2308, %v2628
        %v2630 = vpop.f32.mrb[0].mxu0
        %2631 = vmatprep.mubr.bf16.mxu0 0
        %2632 = vmatmul.mubr.bf16.gmra.mrb[0].mxu0 %v1026
        %v2633 = vpop.f32.mrb[0].mxu0
        %v2634 = vadd.f32 %v2313, %v2633
        %v2635 = vpop.f32.mrb[0].mxu0
        %v2636 = vpop.f32.mrb[0].mxu0
        %v2637 = vadd.f32 %v2316, %v2636
        %v2638 = vpop.f32.mrb[0].mxu0
        %2639 = vmatprep.mubr.bf16.mxu0 0
        %2640 = vmatmul.mubr.bf16.gmra.mrb[0].mxu0 %v1141
        %v2641 = vpop.f32.mrb[0].mxu0
        %v2642 = vadd.f32 %v2321, %v2641
        %v2643 = vpop.f32.mrb[0].mxu0
        %v2644 = vpop.f32.mrb[0].mxu0
        %v2645 = vadd.f32 %v2324, %v2644
        %v2646 = vpop.f32.mrb[0].mxu0
        %2647 = vmatprep.mubr.bf16.mxu0 0
        %2648 = vmatmul.mubr.bf16.gmra.mrb[0].mxu0 %v1031
        %v2649 = vpop.f32.mrb[0].mxu0
        %v2650 = vadd.f32 %v2329, %v2649
        %v2651 = vpop.f32.mrb[0].mxu0
        %v2652 = vpop.f32.mrb[0].mxu0
        %v2653 = vadd.f32 %v2332, %v2652
        %v2654 = vpop.f32.mrb[0].mxu0
        %2655 = vmatprep.mubr.bf16.mxu0 0
        %2656 = vmatmul.mubr.bf16.gmra.mrb[0].mxu0 %v1142
        %v2657 = vpop.f32.mrb[0].mxu0
        %v2658 = vadd.f32 %v2337, %v2657
        %v2659 = vpop.f32.mrb[0].mxu0
        %v2660 = vpop.f32.mrb[0].mxu0
        %v2661 = vadd.f32 %v2340, %v2660
        %v2662 = vpop.f32.mrb[0].mxu0
        %2663 = vmatprep.mubr.bf16.mxu0 0
        %2664 = vmatmul.mubr.bf16.gmra.mrb[0].mxu0 %v1036
        %v2665 = vpop.f32.mrb[0].mxu0
        %v2666 = vadd.f32 %v2345, %v2665
        %v2667 = vpop.f32.mrb[0].mxu0
        %v2668 = vpop.f32.mrb[0].mxu0
        %v2669 = vadd.f32 %v2348, %v2668
        %v2670 = vpop.f32.mrb[0].mxu0
        %2671 = vmatprep.mubr.bf16.mxu0 0
        %2672 = vmatmul.mubr.bf16.gmra.mrb[0].mxu0 %v1143
        %v2673 = vpop.f32.mrb[0].mxu0
        %v2674 = vadd.f32 %v2353, %v2673
        %v2675 = vpop.f32.mrb[0].mxu0
        %v2676 = vpop.f32.mrb[0].mxu0
        %v2677 = vadd.f32 %v2356, %v2676
        %v2678 = vpop.f32.mrb[0].mxu0
        %2679 = vmatprep.mubr.bf16.mxu0 0
        %2680 = vmatmul.mubr.bf16.gmra.mrb[0].mxu0 %v1041
        %v2681 = vpop.f32.mrb[0].mxu0
        %v2682 = vadd.f32 %v2361, %v2681
        %v2683 = vpop.f32.mrb[0].mxu0
        %v2684 = vpop.f32.mrb[0].mxu0
        %v2685 = vadd.f32 %v2364, %v2684
        %v2686 = vpop.f32.mrb[0].mxu0
        %2687 = vmatprep.mubr.bf16.mxu0 0
        %2688 = vmatmul.mubr.bf16.gmra.mrb[0].mxu0 %v1144
        %v2689 = vpop.f32.mrb[0].mxu0
        %v2690 = vadd.f32 %v2369, %v2689
        %v2691 = vpop.f32.mrb[0].mxu0
        %v2692 = vpop.f32.mrb[0].mxu0
        %v2693 = vadd.f32 %v2372, %v2692
        %v2694 = vpop.f32.mrb[0].mxu0
        %2695 = vmatprep.mubr.bf16.mxu0 0
        %2696 = vmatmul.mubr.bf16.gmra.mrb[0].mxu0 %v1046
        %v2697 = vpop.f32.mrb[0].mxu0
        %v2698 = vadd.f32 %v2377, %v2697
        %v2699 = vpop.f32.mrb[0].mxu0
        %v2700 = vpop.f32.mrb[0].mxu0
        %v2701 = vadd.f32 %v2380, %v2700
        %v2702 = vpop.f32.mrb[0].mxu0
        %2703 = vmatprep.mubr.bf16.mxu0 0
        %2704 = vmatmul.mubr.bf16.gmra.mrb[0].mxu0 %v1145
        %v2705 = vpop.f32.mrb[0].mxu0
        %v2706 = vadd.f32 %v2385, %v2705
        %v2707 = vpop.f32.mrb[0].mxu0
        %v2708 = vpop.f32.mrb[0].mxu0
        %v2709 = vadd.f32 %v2388, %v2708
        %v2710 = vpop.f32.mrb[0].mxu0
        %2711 = vmatprep.mubr.bf16.mxu0 0
        %2712 = vmatmul.mubr.bf16.gmra.mrb[0].mxu0 %v1051
        %v2713 = vpop.f32.mrb[0].mxu0
        %v2714 = vadd.f32 %v2393, %v2713
        %v2715 = vpop.f32.mrb[0].mxu0
        %v2716 = vpop.f32.mrb[0].mxu0
        %v2717 = vadd.f32 %v2396, %v2716
        %v2718 = vpop.f32.mrb[0].mxu0
        %2719 = vmatprep.mubr.bf16.mxu0 0
        %2720 = vmatmul.mubr.bf16.gmra.mrb[0].mxu0 %v1146
        %v2721 = vpop.f32.mrb[0].mxu0
        %v2722 = vadd.f32 %v2401, %v2721
        %v2723 = vpop.f32.mrb[0].mxu0
        %v2724 = vpop.f32.mrb[0].mxu0
        %v2725 = vadd.f32 %v2404, %v2724
        %v2726 = vpop.f32.mrb[0].mxu0
        %2727 = vmatprep.mubr.bf16.mxu0 0
        %2728 = vmatmul.mubr.bf16.gmra.mrb[0].mxu0 %v1056
        %v2729 = vpop.f32.mrb[0].mxu0
        %v2730 = vadd.f32 %v2409, %v2729
        %v2731 = vpop.f32.mrb[0].mxu0
        %v2732 = vpop.f32.mrb[0].mxu0
        %v2733 = vadd.f32 %v2412, %v2732
        %v2734 = vpop.f32.mrb[0].mxu0
        %2735 = vmatprep.mubr.bf16.mxu0 0
        %2736 = vmatmul.mubr.bf16.gmra.mrb[0].mxu0 %v1147
        %v2737 = vpop.f32.mrb[0].mxu0
        %v2738 = vadd.f32 %v2417, %v2737
        %v2739 = vpop.f32.mrb[0].mxu0
        %v2740 = vpop.f32.mrb[0].mxu0
        %v2741 = vadd.f32 %v2420, %v2740
        %v2742 = vpop.f32.mrb[0].mxu0
        %2743 = vmatprep.mubr.bf16.mxu0 0
        %2744 = vmatmul.mubr.bf16.gmra.mrb[0].mxu0 %v1061
        %v2745 = vpop.f32.mrb[0].mxu0
        %v2746 = vadd.f32 %v2425, %v2745
        %v2747 = vpop.f32.mrb[0].mxu0
        %v2748 = vpop.f32.mrb[0].mxu0
        %v2749 = vadd.f32 %v2428, %v2748
        %v2750 = vpop.f32.mrb[0].mxu0
        %2751 = vmatprep.mubr.bf16.mxu0 0
        %2752 = vmatmul.mubr.bf16.gmra.mrb[0].mxu0 %v1148
        %v2753 = vpop.f32.mrb[0].mxu0
        %v2754 = vadd.f32 %v2433, %v2753
        %v2755 = vpop.f32.mrb[0].mxu0
        %v2756 = vpop.f32.mrb[0].mxu0
        %v2757 = vadd.f32 %v2436, %v2756
        %v2758 = vpop.f32.mrb[0].mxu0
        %2759 = vmatprep.mubr.bf16.mxu0 0
        %2760 = vmatmul.mubr.bf16.gmra.mrb[0].mxu0 %v1066
        %v2761 = vpop.f32.mrb[0].mxu0
        %v2762 = vadd.f32 %v2441, %v2761
        %v2763 = vpop.f32.mrb[0].mxu0
        %v2764 = vpop.f32.mrb[0].mxu0
        %v2765 = vadd.f32 %v2444, %v2764
        %v2766 = vpop.f32.mrb[0].mxu0
        %2767 = vmatprep.mubr.bf16.mxu0 0
        %2768 = vmatmul.mubr.bf16.gmra.mrb[0].mxu0 %v1149
        %v2769 = vpop.f32.mrb[0].mxu0
        %v2770 = vadd.f32 %v2449, %v2769
        %v2771 = vpop.f32.mrb[0].mxu0
        %v2772 = vpop.f32.mrb[0].mxu0
        %v2773 = vadd.f32 %v2452, %v2772
        %v2774 = vpop.f32.mrb[0].mxu0
        %2775 = vmatprep.mubr.bf16.mxu0 0
        %2776 = vmatmul.mubr.bf16.gmra.mrb[0].mxu0 %v1071
        %v2777 = vpop.f32.mrb[0].mxu0
        %v2778 = vadd.f32 %v2457, %v2777
        %v2779 = vpop.f32.mrb[0].mxu0
        %v2780 = vpop.f32.mrb[0].mxu0
        %v2781 = vadd.f32 %v2460, %v2780
        %v2782 = vpop.f32.mrb[0].mxu0
        %2783 = vmatprep.mubr.bf16.mxu0 0
        %2784 = vmatmul.mubr.bf16.gmra.mrb[0].mxu0 %v1150
        %v2785 = vpop.f32.mrb[0].mxu0
        %v2786 = vadd.f32 %v2465, %v2785
        %v2787 = vpop.f32.mrb[0].mxu0
        %v2788 = vpop.f32.mrb[0].mxu0
        %v2789 = vadd.f32 %v2468, %v2788
        %v2790 = vpop.f32.mrb[0].mxu0
        %2791 = vmatprep.mubr.bf16.mxu0 0
        %2792 = vmatmul.mubr.bf16.gmra.mrb[0].mxu0 %v1076
        %v2793 = vpop.f32.mrb[0].mxu0
        %v2794 = vadd.f32 %v2473, %v2793
        %v2795 = vpop.f32.mrb[0].mxu0
        %v2796 = vpop.f32.mrb[0].mxu0
        %v2797 = vadd.f32 %v2476, %v2796
        %v2798 = vpop.f32.mrb[0].mxu0
        %2799 = vmatprep.mubr.bf16.mxu0 0
        %2800 = vmatmul.mubr.bf16.gmra.mrb[0].mxu0 %v1151
        %v2801 = vpop.f32.mrb[0].mxu0
        %v2802 = vadd.f32 %v2481, %v2801
        %v2803 = vpop.f32.mrb[0].mxu0
        %v2804 = vpop.f32.mrb[0].mxu0
        %v2805 = vadd.f32 %v2484, %v2804
        %v2806 = vpop.f32.mrb[0].mxu0
        %2807 = vmatprep.mubr.bf16.mxu0 0
        %2808 = vmatmul.mubr.bf16.gmra.mrb[0].mxu0 %v1081
        %v2809 = vpop.f32.mrb[0].mxu0
        %v2810 = vadd.f32 %v2489, %v2809
        %v2811 = vpop.f32.mrb[0].mxu0
        %v2812 = vpop.f32.mrb[0].mxu0
        %v2813 = vadd.f32 %v2492, %v2812
        %v2814 = vpop.f32.mrb[0].mxu0
        %2815 = vmatprep.mubr.bf16.mxu0 0
        %2816 = vmatmul.mubr.bf16.gmra.mrb[0].mxu0 %v1152
        %v2817 = vpop.f32.mrb[0].mxu0
        %v2818 = vadd.f32 %v2497, %v2817
        %v2819 = vpop.f32.mrb[0].mxu0
        %v2820 = vpop.f32.mrb[0].mxu0
        %v2821 = vadd.f32 %v2500, %v2820
        %v2822 = vpop.f32.mrb[0].mxu0
        %2823 = vdwg.mxu0
        %s2824 = scalar_lea.vmem [#allocation8], 384
        %v2825 = vld [vmem:[%s2824] sm:$0xf]
        %v2826 = vld [vmem:[%s2824 + $0x4] sm:$0xf]
        %v2827 = vld [vmem:[%s2824 + $0x8] sm:$0xf]
        %v2828 = vld [vmem:[%s2824 + $0xc] sm:$0xf]
        %v2829 = vld [vmem:[%s2824 + $0x10] sm:$0xf]
        %v2830 = vld [vmem:[%s2824 + $0x14] sm:$0xf]
        %v2831 = vld [vmem:[%s2824 + $0x18] sm:$0xf]
        %v2832 = vld [vmem:[%s2824 + $0x1c] sm:$0xf]
        %v2833 = vld [vmem:[%s2824 + $0x20] sm:$0xf]
        %v2834 = vld [vmem:[%s2824 + $0x24] sm:$0xf]
        %v2835 = vld [vmem:[%s2824 + $0x28] sm:$0xf]
        %v2836 = vld [vmem:[%s2824 + $0x2c] sm:$0xf]
        %v2837 = vld [vmem:[%s2824 + $0x30] sm:$0xf]
        %v2838 = vld [vmem:[%s2824 + $0x34] sm:$0xf]
        %v2839 = vld [vmem:[%s2824 + $0x38] sm:$0xf]
        %v2840 = vld [vmem:[%s2824 + $0x3c] sm:$0xf]
        %v2841 = vld [vmem:[%s2824 + $0x40] sm:$0xf]
        %v2842 = vld [vmem:[%s2824 + $0x44] sm:$0xf]
        %v2843 = vld [vmem:[%s2824 + $0x48] sm:$0xf]
        %v2844 = vld [vmem:[%s2824 + $0x4c] sm:$0xf]
        %v2845 = vld [vmem:[%s2824 + $0x50] sm:$0xf]
        %v2846 = vld [vmem:[%s2824 + $0x54] sm:$0xf]
        %v2847 = vld [vmem:[%s2824 + $0x58] sm:$0xf]
        %v2848 = vld [vmem:[%s2824 + $0x5c] sm:$0xf]
        %v2849 = vld [vmem:[%s2824 + $0x60] sm:$0xf]
        %v2850 = vld [vmem:[%s2824 + $0x64] sm:$0xf]
        %v2851 = vld [vmem:[%s2824 + $0x68] sm:$0xf]
        %v2852 = vld [vmem:[%s2824 + $0x6c] sm:$0xf]
        %v2853 = vld [vmem:[%s2824 + $0x70] sm:$0xf]
        %v2854 = vld [vmem:[%s2824 + $0x74] sm:$0xf]
        %v2855 = vld [vmem:[%s2824 + $0x78] sm:$0xf]
        %v2856 = vld [vmem:[%s2824 + $0x7c] sm:$0xf]
        %v2857 = vld [vmem:[%s2824 + $0x80] sm:$0xf]
        %v2858 = vld [vmem:[%s2824 + $0x84] sm:$0xf]
        %v2859 = vld [vmem:[%s2824 + $0x88] sm:$0xf]
        %v2860 = vld [vmem:[%s2824 + $0x8c] sm:$0xf]
        %v2861 = vld [vmem:[%s2824 + $0x90] sm:$0xf]
        %v2862 = vld [vmem:[%s2824 + $0x94] sm:$0xf]
        %v2863 = vld [vmem:[%s2824 + $0x98] sm:$0xf]
        %v2864 = vld [vmem:[%s2824 + $0x9c] sm:$0xf]
        %v2865 = vld [vmem:[%s2824 + $0xa0] sm:$0xf]
        %v2866 = vld [vmem:[%s2824 + $0xa4] sm:$0xf]
        %v2867 = vld [vmem:[%s2824 + $0xa8] sm:$0xf]
        %v2868 = vld [vmem:[%s2824 + $0xac] sm:$0xf]
        %v2869 = vld [vmem:[%s2824 + $0xb0] sm:$0xf]
        %v2870 = vld [vmem:[%s2824 + $0xb4] sm:$0xf]
        %v2871 = vld [vmem:[%s2824 + $0xb8] sm:$0xf]
        %v2872 = vld [vmem:[%s2824 + $0xbc] sm:$0xf]
        %v2921 = vunpack.c.l.b16 %v2825
        %v2922 = vunpack.c.l.b16 %v2826
        %v2923 = vunpack.c.l.b16 %v2827
        %v2924 = vunpack.c.l.b16 %v2828
        %v2925 = vunpack.c.l.b16 %v2829
        %v2926 = vunpack.c.l.b16 %v2830
        %v2927 = vunpack.c.l.b16 %v2831
        %v2928 = vunpack.c.l.b16 %v2832
        %v2929 = vunpack.c.l.b16 %v2833
        %v2930 = vunpack.c.l.b16 %v2834
        %v2931 = vunpack.c.l.b16 %v2835
        %v2932 = vunpack.c.l.b16 %v2836
        %v2933 = vunpack.c.l.b16 %v2837
        %v2934 = vunpack.c.l.b16 %v2838
        %v2935 = vunpack.c.l.b16 %v2839
        %v2936 = vunpack.c.l.b16 %v2840
        %v2937 = vunpack.c.l.b16 %v2841
        %v2938 = vunpack.c.l.b16 %v2842
        %v2939 = vunpack.c.l.b16 %v2843
        %v2940 = vunpack.c.l.b16 %v2844
        %v2941 = vunpack.c.l.b16 %v2845
        %v2942 = vunpack.c.l.b16 %v2846
        %v2943 = vunpack.c.l.b16 %v2847
        %v2944 = vunpack.c.l.b16 %v2848
        %v2945 = vunpack.c.l.b16 %v2849
        %v2946 = vunpack.c.l.b16 %v2850
        %v2947 = vunpack.c.l.b16 %v2851
        %v2948 = vunpack.c.l.b16 %v2852
        %v2949 = vunpack.c.l.b16 %v2853
        %v2950 = vunpack.c.l.b16 %v2854
        %v2951 = vunpack.c.l.b16 %v2855
        %v2952 = vunpack.c.l.b16 %v2856
        %v2953 = vunpack.c.l.b16 %v2857
        %v2954 = vunpack.c.l.b16 %v2858
        %v2955 = vunpack.c.l.b16 %v2859
        %v2956 = vunpack.c.l.b16 %v2860
        %v2957 = vunpack.c.l.b16 %v2861
        %v2958 = vunpack.c.l.b16 %v2862
        %v2959 = vunpack.c.l.b16 %v2863
        %v2960 = vunpack.c.l.b16 %v2864
        %v2961 = vunpack.c.l.b16 %v2865
        %v2962 = vunpack.c.l.b16 %v2866
        %v2963 = vunpack.c.l.b16 %v2867
        %v2964 = vunpack.c.l.b16 %v2868
        %v2965 = vunpack.c.l.b16 %v2869
        %v2966 = vunpack.c.l.b16 %v2870
        %v2967 = vunpack.c.l.b16 %v2871
        %v2968 = vunpack.c.l.b16 %v2872
        %v2969 = vpack.c.b16 %v2922, %v2921
        %v2970 = vpack.c.b16 %v2924, %v2923
        %v2971 = vpack.c.b16 %v2926, %v2925
        %v2972 = vpack.c.b16 %v2928, %v2927
        %v2973 = vpack.c.b16 %v2930, %v2929
        %v2974 = vpack.c.b16 %v2932, %v2931
        %v2975 = vpack.c.b16 %v2934, %v2933
        %v2976 = vpack.c.b16 %v2936, %v2935
        %v2977 = vpack.c.b16 %v2938, %v2937
        %v2978 = vpack.c.b16 %v2940, %v2939
        %v2979 = vpack.c.b16 %v2942, %v2941
        %v2980 = vpack.c.b16 %v2944, %v2943
        %v2981 = vpack.c.b16 %v2946, %v2945
        %v2982 = vpack.c.b16 %v2948, %v2947
        %v2983 = vpack.c.b16 %v2950, %v2949
        %v2984 = vpack.c.b16 %v2952, %v2951
        %v2985 = vpack.c.b16 %v2954, %v2953
        %v2986 = vpack.c.b16 %v2956, %v2955
        %v2987 = vpack.c.b16 %v2958, %v2957
        %v2988 = vpack.c.b16 %v2960, %v2959
        %v2989 = vpack.c.b16 %v2962, %v2961
        %v2990 = vpack.c.b16 %v2964, %v2963
        %v2991 = vpack.c.b16 %v2966, %v2965
        %v2992 = vpack.c.b16 %v2968, %v2967
        %3017 = vmatprep.subr.bf16.mxu0 0
        %3018 = vmatpush1.bf16.msra.mxu0 %v2969
        %3019 = vmatprep.subr.bf16.mxu0 0
        %3020 = vmatpush1.bf16.msra.mxu0 %v2970
        %3021 = vmatprep.subr.bf16.mxu0 0
        %3022 = vmatpush1.bf16.msra.mxu0 %v2971
        %3023 = vmatprep.subr.bf16.mxu0 0
        %3024 = vmatpush1.bf16.msra.mxu0 %v2972
        %3025 = vmatprep.subr.bf16.mxu0 0
        %3026 = vmatpush1.bf16.msra.mxu0 %v2973
        %3027 = vmatprep.subr.bf16.mxu0 0
        %3028 = vmatpush1.bf16.msra.mxu0 %v2974
        %3029 = vmatprep.subr.bf16.mxu0 0
        %3030 = vmatpush1.bf16.msra.mxu0 %v2975
        %3031 = vmatprep.subr.bf16.mxu0 0
        %3032 = vmatpush1.bf16.msra.mxu0 %v2976
        %3033 = vmatprep.subr.bf16.mxu0 0
        %3034 = vmatpush1.bf16.msra.mxu0 %v2977
        %3035 = vmatprep.subr.bf16.mxu0 0
        %3036 = vmatpush1.bf16.msra.mxu0 %v2978
        %3037 = vmatprep.subr.bf16.mxu0 0
        %3038 = vmatpush1.bf16.msra.mxu0 %v2979
        %3039 = vmatprep.subr.bf16.mxu0 0
        %3040 = vmatpush1.bf16.msra.mxu0 %v2980
        %3041 = vmatprep.subr.bf16.mxu0 0
        %3042 = vmatpush1.bf16.msra.mxu0 %v2981
        %3043 = vmatprep.subr.bf16.mxu0 0
        %3044 = vmatpush1.bf16.msra.mxu0 %v2982
        %3045 = vmatprep.subr.bf16.mxu0 0
        %3046 = vmatpush1.bf16.msra.mxu0 %v2983
        %3047 = vmatprep.subr.bf16.mxu0 0
        %3048 = vmatpush1.bf16.msra.mxu0 %v2984
        %3049 = vmatprep.mubr.bf16.mxu0 %v557
        %3050 = vmatmul.mubr.bf16.gmra.mrb[0].mxu0 %v974
        %v3051 = vpop.f32.mrb[0].mxu0
        %v3052 = vadd.f32 0.0, %v3051
        %v3053 = vpop.f32.mrb[0].mxu0
        %v3054 = vpop.f32.mrb[0].mxu0
        %v3055 = vadd.f32 0.0, %v3054
        %v3056 = vpop.f32.mrb[0].mxu0
        %3057 = vmatprep.mubr.bf16.mxu0 %v558
        %3058 = vmatmul.mubr.bf16.gmra.mrb[0].mxu0 %v674
        %v3059 = vpop.f32.mrb[0].mxu0
        %v3060 = vadd.f32 0.0, %v3059
        %v3061 = vpop.f32.mrb[0].mxu0
        %v3062 = vpop.f32.mrb[0].mxu0
        %v3063 = vadd.f32 0.0, %v3062
        %v3064 = vpop.f32.mrb[0].mxu0
        %3065 = vmatprep.mubr.bf16.mxu0 %v559
        %3066 = vmatmul.mubr.bf16.gmra.mrb[0].mxu0 %v975
        %v3067 = vpop.f32.mrb[0].mxu0
        %v3068 = vadd.f32 0.0, %v3067
        %v3069 = vpop.f32.mrb[0].mxu0
        %v3070 = vpop.f32.mrb[0].mxu0
        %v3071 = vadd.f32 0.0, %v3070
        %v3072 = vpop.f32.mrb[0].mxu0
        %3073 = vmatprep.mubr.bf16.mxu0 %v560
        %3074 = vmatmul.mubr.bf16.gmra.mrb[0].mxu0 %v689
        %v3075 = vpop.f32.mrb[0].mxu0
        %v3076 = vadd.f32 0.0, %v3075
        %v3077 = vpop.f32.mrb[0].mxu0
        %v3078 = vpop.f32.mrb[0].mxu0
        %v3079 = vadd.f32 0.0, %v3078
        %v3080 = vpop.f32.mrb[0].mxu0
        %3081 = vmatprep.mubr.bf16.mxu0 %v561
        %3082 = vmatmul.mubr.bf16.gmra.mrb[0].mxu0 %v976
        %v3083 = vpop.f32.mrb[0].mxu0
        %v3084 = vadd.f32 0.0, %v3083
        %v3085 = vpop.f32.mrb[0].mxu0
        %v3086 = vpop.f32.mrb[0].mxu0
        %v3087 = vadd.f32 0.0, %v3086
        %v3088 = vpop.f32.mrb[0].mxu0
        %3089 = vmatprep.mubr.bf16.mxu0 %v562
        %3090 = vmatmul.mubr.bf16.gmra.mrb[0].mxu0 %v704
        %v3091 = vpop.f32.mrb[0].mxu0
        %v3092 = vadd.f32 0.0, %v3091
        %v3093 = vpop.f32.mrb[0].mxu0
        %v3094 = vpop.f32.mrb[0].mxu0
        %v3095 = vadd.f32 0.0, %v3094
        %v3096 = vpop.f32.mrb[0].mxu0
        %3097 = vmatprep.mubr.bf16.mxu0 %v563
        %3098 = vmatmul.mubr.bf16.gmra.mrb[0].mxu0 %v977
        %v3099 = vpop.f32.mrb[0].mxu0
        %v3100 = vadd.f32 0.0, %v3099
        %v3101 = vpop.f32.mrb[0].mxu0
        %v3102 = vpop.f32.mrb[0].mxu0
        %v3103 = vadd.f32 0.0, %v3102
        %v3104 = vpop.f32.mrb[0].mxu0
        %3105 = vmatprep.mubr.bf16.mxu0 %v564
        %3106 = vmatmul.mubr.bf16.gmra.mrb[0].mxu0 %v719
        %v3107 = vpop.f32.mrb[0].mxu0
        %v3108 = vadd.f32 0.0, %v3107
        %v3109 = vpop.f32.mrb[0].mxu0
        %v3110 = vpop.f32.mrb[0].mxu0
        %v3111 = vadd.f32 0.0, %v3110
        %v3112 = vpop.f32.mrb[0].mxu0
        %3113 = vmatprep.mubr.bf16.mxu0 %v565
        %3114 = vmatmul.mubr.bf16.gmra.mrb[0].mxu0 %v978
        %v3115 = vpop.f32.mrb[0].mxu0
        %v3116 = vadd.f32 0.0, %v3115
        %v3117 = vpop.f32.mrb[0].mxu0
        %v3118 = vpop.f32.mrb[0].mxu0
        %v3119 = vadd.f32 0.0, %v3118
        %v3120 = vpop.f32.mrb[0].mxu0
        %3121 = vmatprep.mubr.bf16.mxu0 %v566
        %3122 = vmatmul.mubr.bf16.gmra.mrb[0].mxu0 %v734
        %v3123 = vpop.f32.mrb[0].mxu0
        %v3124 = vadd.f32 0.0, %v3123
        %v3125 = vpop.f32.mrb[0].mxu0
        %v3126 = vpop.f32.mrb[0].mxu0
        %v3127 = vadd.f32 0.0, %v3126
        %v3128 = vpop.f32.mrb[0].mxu0
        %3129 = vmatprep.mubr.bf16.mxu0 %v567
        %3130 = vmatmul.mubr.bf16.gmra.mrb[0].mxu0 %v979
        %v3131 = vpop.f32.mrb[0].mxu0
        %v3132 = vadd.f32 0.0, %v3131
        %v3133 = vpop.f32.mrb[0].mxu0
        %v3134 = vpop.f32.mrb[0].mxu0
        %v3135 = vadd.f32 0.0, %v3134
        %v3136 = vpop.f32.mrb[0].mxu0
        %3137 = vmatprep.mubr.bf16.mxu0 %v568
        %3138 = vmatmul.mubr.bf16.gmra.mrb[0].mxu0 %v749
        %v3139 = vpop.f32.mrb[0].mxu0
        %v3140 = vadd.f32 0.0, %v3139
        %v3141 = vpop.f32.mrb[0].mxu0
        %v3142 = vpop.f32.mrb[0].mxu0
        %v3143 = vadd.f32 0.0, %v3142
        %v3144 = vpop.f32.mrb[0].mxu0
        %3145 = vmatprep.mubr.bf16.mxu0 %v569
        %3146 = vmatmul.mubr.bf16.gmra.mrb[0].mxu0 %v980
        %v3147 = vpop.f32.mrb[0].mxu0
        %v3148 = vadd.f32 0.0, %v3147
        %v3149 = vpop.f32.mrb[0].mxu0
        %v3150 = vpop.f32.mrb[0].mxu0
        %v3151 = vadd.f32 0.0, %v3150
        %v3152 = vpop.f32.mrb[0].mxu0
        %3153 = vmatprep.mubr.bf16.mxu0 %v570
        %3154 = vmatmul.mubr.bf16.gmra.mrb[0].mxu0 %v764
        %v3155 = vpop.f32.mrb[0].mxu0
        %v3156 = vadd.f32 0.0, %v3155
        %v3157 = vpop.f32.mrb[0].mxu0
        %v3158 = vpop.f32.mrb[0].mxu0
        %v3159 = vadd.f32 0.0, %v3158
        %v3160 = vpop.f32.mrb[0].mxu0
        %3161 = vmatprep.mubr.bf16.mxu0 %v571
        %3162 = vmatmul.mubr.bf16.gmra.mrb[0].mxu0 %v981
        %v3163 = vpop.f32.mrb[0].mxu0
        %v3164 = vadd.f32 0.0, %v3163
        %v3165 = vpop.f32.mrb[0].mxu0
        %v3166 = vpop.f32.mrb[0].mxu0
        %v3167 = vadd.f32 0.0, %v3166
        %v3168 = vpop.f32.mrb[0].mxu0
        %3169 = vmatprep.mubr.bf16.mxu0 %v572
        %3170 = vmatmul.mubr.bf16.gmra.mrb[0].mxu0 %v779
        %v3171 = vpop.f32.mrb[0].mxu0
        %v3172 = vadd.f32 0.0, %v3171
        %v3173 = vpop.f32.mrb[0].mxu0
        %v3174 = vpop.f32.mrb[0].mxu0
        %v3175 = vadd.f32 0.0, %v3174
        %v3176 = vpop.f32.mrb[0].mxu0
        %3177 = vmatprep.mubr.bf16.mxu0 %v573
        %3178 = vmatmul.mubr.bf16.gmra.mrb[0].mxu0 %v982
        %v3179 = vpop.f32.mrb[0].mxu0
        %v3180 = vadd.f32 0.0, %v3179
        %v3181 = vpop.f32.mrb[0].mxu0
        %v3182 = vpop.f32.mrb[0].mxu0
        %v3183 = vadd.f32 0.0, %v3182
        %v3184 = vpop.f32.mrb[0].mxu0
        %3185 = vmatprep.mubr.bf16.mxu0 %v574
        %3186 = vmatmul.mubr.bf16.gmra.mrb[0].mxu0 %v794
        %v3187 = vpop.f32.mrb[0].mxu0
        %v3188 = vadd.f32 0.0, %v3187
        %v3189 = vpop.f32.mrb[0].mxu0
        %v3190 = vpop.f32.mrb[0].mxu0
        %v3191 = vadd.f32 0.0, %v3190
        %v3192 = vpop.f32.mrb[0].mxu0
        %3193 = vmatprep.mubr.bf16.mxu0 %v575
        %3194 = vmatmul.mubr.bf16.gmra.mrb[0].mxu0 %v983
        %v3195 = vpop.f32.mrb[0].mxu0
        %v3196 = vadd.f32 0.0, %v3195
        %v3197 = vpop.f32.mrb[0].mxu0
        %v3198 = vpop.f32.mrb[0].mxu0
        %v3199 = vadd.f32 0.0, %v3198
        %v3200 = vpop.f32.mrb[0].mxu0
        %3201 = vmatprep.mubr.bf16.mxu0 %v576
        %3202 = vmatmul.mubr.bf16.gmra.mrb[0].mxu0 %v809
        %v3203 = vpop.f32.mrb[0].mxu0
        %v3204 = vadd.f32 0.0, %v3203
        %v3205 = vpop.f32.mrb[0].mxu0
        %v3206 = vpop.f32.mrb[0].mxu0
        %v3207 = vadd.f32 0.0, %v3206
        %v3208 = vpop.f32.mrb[0].mxu0
        %3209 = vmatprep.mubr.bf16.mxu0 %v577
        %3210 = vmatmul.mubr.bf16.gmra.mrb[0].mxu0 %v984
        %v3211 = vpop.f32.mrb[0].mxu0
        %v3212 = vadd.f32 0.0, %v3211
        %v3213 = vpop.f32.mrb[0].mxu0
        %v3214 = vpop.f32.mrb[0].mxu0
        %v3215 = vadd.f32 0.0, %v3214
        %v3216 = vpop.f32.mrb[0].mxu0
        %3217 = vmatprep.mubr.bf16.mxu0 %v578
        %3218 = vmatmul.mubr.bf16.gmra.mrb[0].mxu0 %v824
        %v3219 = vpop.f32.mrb[0].mxu0
        %v3220 = vadd.f32 0.0, %v3219
        %v3221 = vpop.f32.mrb[0].mxu0
        %v3222 = vpop.f32.mrb[0].mxu0
        %v3223 = vadd.f32 0.0, %v3222
        %v3224 = vpop.f32.mrb[0].mxu0
        %3225 = vmatprep.mubr.bf16.mxu0 %v579
        %3226 = vmatmul.mubr.bf16.gmra.mrb[0].mxu0 %v985
        %v3227 = vpop.f32.mrb[0].mxu0
        %v3228 = vadd.f32 0.0, %v3227
        %v3229 = vpop.f32.mrb[0].mxu0
        %v3230 = vpop.f32.mrb[0].mxu0
        %v3231 = vadd.f32 0.0, %v3230
        %v3232 = vpop.f32.mrb[0].mxu0
        %3233 = vmatprep.mubr.bf16.mxu0 %v580
        %3234 = vmatmul.mubr.bf16.gmra.mrb[0].mxu0 %v839
        %v3235 = vpop.f32.mrb[0].mxu0
        %v3236 = vadd.f32 0.0, %v3235
        %v3237 = vpop.f32.mrb[0].mxu0
        %v3238 = vpop.f32.mrb[0].mxu0
        %v3239 = vadd.f32 0.0, %v3238
        %v3240 = vpop.f32.mrb[0].mxu0
        %3241 = vmatprep.mubr.bf16.mxu0 %v581
        %3242 = vmatmul.mubr.bf16.gmra.mrb[0].mxu0 %v986
        %v3243 = vpop.f32.mrb[0].mxu0
        %v3244 = vadd.f32 0.0, %v3243
        %v3245 = vpop.f32.mrb[0].mxu0
        %v3246 = vpop.f32.mrb[0].mxu0
        %v3247 = vadd.f32 0.0, %v3246
        %v3248 = vpop.f32.mrb[0].mxu0
        %3249 = vmatprep.mubr.bf16.mxu0 %v582
        %3250 = vmatmul.mubr.bf16.gmra.mrb[0].mxu0 %v854
        %v3251 = vpop.f32.mrb[0].mxu0
        %v3252 = vadd.f32 0.0, %v3251
        %v3253 = vpop.f32.mrb[0].mxu0
        %v3254 = vpop.f32.mrb[0].mxu0
        %v3255 = vadd.f32 0.0, %v3254
        %v3256 = vpop.f32.mrb[0].mxu0
        %3257 = vmatprep.mubr.bf16.mxu0 %v583
        %3258 = vmatmul.mubr.bf16.gmra.mrb[0].mxu0 %v987
        %v3259 = vpop.f32.mrb[0].mxu0
        %v3260 = vadd.f32 0.0, %v3259
        %v3261 = vpop.f32.mrb[0].mxu0
        %v3262 = vpop.f32.mrb[0].mxu0
        %v3263 = vadd.f32 0.0, %v3262
        %v3264 = vpop.f32.mrb[0].mxu0
        %3265 = vmatprep.mubr.bf16.mxu0 %v584
        %3266 = vmatmul.mubr.bf16.gmra.mrb[0].mxu0 %v869
        %v3267 = vpop.f32.mrb[0].mxu0
        %v3268 = vadd.f32 0.0, %v3267
        %v3269 = vpop.f32.mrb[0].mxu0
        %v3270 = vpop.f32.mrb[0].mxu0
        %v3271 = vadd.f32 0.0, %v3270
        %v3272 = vpop.f32.mrb[0].mxu0
        %3273 = vmatprep.mubr.bf16.mxu0 %v585
        %3274 = vmatmul.mubr.bf16.gmra.mrb[0].mxu0 %v988
        %v3275 = vpop.f32.mrb[0].mxu0
        %v3276 = vadd.f32 0.0, %v3275
        %v3277 = vpop.f32.mrb[0].mxu0
        %v3278 = vpop.f32.mrb[0].mxu0
        %v3279 = vadd.f32 0.0, %v3278
        %v3280 = vpop.f32.mrb[0].mxu0
        %3281 = vmatprep.mubr.bf16.mxu0 %v586
        %3282 = vmatmul.mubr.bf16.gmra.mrb[0].mxu0 %v884
        %v3283 = vpop.f32.mrb[0].mxu0
        %v3284 = vadd.f32 0.0, %v3283
        %v3285 = vpop.f32.mrb[0].mxu0
        %v3286 = vpop.f32.mrb[0].mxu0
        %v3287 = vadd.f32 0.0, %v3286
        %v3288 = vpop.f32.mrb[0].mxu0
        %3289 = vmatprep.mubr.bf16.mxu0 %v587
        %3290 = vmatmul.mubr.bf16.gmra.mrb[0].mxu0 %v989
        %v3291 = vpop.f32.mrb[0].mxu0
        %v3292 = vadd.f32 0.0, %v3291
        %v3293 = vpop.f32.mrb[0].mxu0
        %v3294 = vpop.f32.mrb[0].mxu0
        %v3295 = vadd.f32 0.0, %v3294
        %v3296 = vpop.f32.mrb[0].mxu0
        %3297 = vmatprep.mubr.bf16.mxu0 %v588
        %3298 = vmatmul.mubr.bf16.gmra.mrb[0].mxu0 %v899
        %v3299 = vpop.f32.mrb[0].mxu0
        %v3300 = vadd.f32 0.0, %v3299
        %v3301 = vpop.f32.mrb[0].mxu0
        %v3302 = vpop.f32.mrb[0].mxu0
        %v3303 = vadd.f32 0.0, %v3302
        %v3304 = vpop.f32.mrb[0].mxu0
        %3305 = vmatprep.mubr.bf16.mxu0 %v625
        %3306 = vmatmul.mubr.bf16.gmra.mrb[0].mxu0 %v990
        %v3307 = vpop.f32.mrb[0].mxu0
        %v3308 = vadd.f32 0.0, %v3307
        %v3309 = vpop.f32.mrb[0].mxu0
        %v3310 = vpop.f32.mrb[0].mxu0
        %v3311 = vadd.f32 0.0, %v3310
        %v3312 = vpop.f32.mrb[0].mxu0
        %3313 = vmatprep.mubr.bf16.mxu0 %v626
        %3314 = vmatmul.mubr.bf16.gmra.mrb[0].mxu0 %v914
        %v3315 = vpop.f32.mrb[0].mxu0
        %v3316 = vadd.f32 0.0, %v3315
        %v3317 = vpop.f32.mrb[0].mxu0
        %v3318 = vpop.f32.mrb[0].mxu0
        %v3319 = vadd.f32 0.0, %v3318
        %v3320 = vpop.f32.mrb[0].mxu0
        %3321 = vmatprep.mubr.bf16.mxu0 %v627
        %3322 = vmatmul.mubr.bf16.gmra.mrb[0].mxu0 %v991
        %v3323 = vpop.f32.mrb[0].mxu0
        %v3324 = vadd.f32 0.0, %v3323
        %v3325 = vpop.f32.mrb[0].mxu0
        %v3326 = vpop.f32.mrb[0].mxu0
        %v3327 = vadd.f32 0.0, %v3326
        %v3328 = vpop.f32.mrb[0].mxu0
        %3329 = vmatprep.mubr.bf16.mxu0 %v628
        %3330 = vmatmul.mubr.bf16.gmra.mrb[0].mxu0 %v929
        %v3331 = vpop.f32.mrb[0].mxu0
        %v3332 = vadd.f32 0.0, %v3331
        %v3333 = vpop.f32.mrb[0].mxu0
        %v3334 = vpop.f32.mrb[0].mxu0
        %v3335 = vadd.f32 0.0, %v3334
        %v3336 = vpop.f32.mrb[0].mxu0
        %3337 = vdwg.mxu0
        %3338 = vmatprep.subr.bf16.mxu0 0
        %3339 = vmatpush1.bf16.msra.mxu0 %v2985
        %3340 = vmatprep.subr.bf16.mxu0 0
        %3341 = vmatpush1.bf16.msra.mxu0 %v2986
        %3342 = vmatprep.subr.bf16.mxu0 0
        %3343 = vmatpush1.bf16.msra.mxu0 %v2987
        %3344 = vmatprep.subr.bf16.mxu0 0
        %3345 = vmatpush1.bf16.msra.mxu0 %v2988
        %3346 = vmatprep.subr.bf16.mxu0 0
        %3347 = vmatpush1.bf16.msra.mxu0 %v2989
        %3348 = vmatprep.subr.bf16.mxu0 0
        %3349 = vmatpush1.bf16.msra.mxu0 %v2990
        %3350 = vmatprep.subr.bf16.mxu0 0
        %3351 = vmatpush1.bf16.msra.mxu0 %v2991
        %3352 = vmatprep.subr.bf16.mxu0 0
        %3353 = vmatpush1.bf16.msra.mxu0 %v2992
        %3354 = vmatprep.subr.bf16.mxu0 0
        %3355 = vmatpush1.bf16.msra.mxu0 0
        %3356 = vmatprep.subr.bf16.mxu0 0
        %3357 = vmatpush1.bf16.msra.mxu0 0
        %3358 = vmatprep.subr.bf16.mxu0 0
        %3359 = vmatpush1.bf16.msra.mxu0 0
        %3360 = vmatprep.subr.bf16.mxu0 0
        %3361 = vmatpush1.bf16.msra.mxu0 0
        %3362 = vmatprep.subr.bf16.mxu0 0
        %3363 = vmatpush1.bf16.msra.mxu0 0
        %3364 = vmatprep.subr.bf16.mxu0 0
        %3365 = vmatpush1.bf16.msra.mxu0 0
        %3366 = vmatprep.subr.bf16.mxu0 0
        %3367 = vmatpush1.bf16.msra.mxu0 0
        %3368 = vmatprep.subr.bf16.mxu0 0
        %3369 = vmatpush1.bf16.msra.mxu0 0
        %3370 = vmatprep.mubr.bf16.mxu0 0
        %3371 = vmatmul.mubr.bf16.gmra.mrb[0].mxu0 %v1006
        %v3372 = vpop.f32.mrb[0].mxu0
        %v3373 = vadd.f32 %v3052, %v3372
        %v3374 = vpop.f32.mrb[0].mxu0
        %v3375 = vpop.f32.mrb[0].mxu0
        %v3376 = vadd.f32 %v3055, %v3375
        %v3377 = vpop.f32.mrb[0].mxu0
        %3378 = vmatprep.mubr.bf16.mxu0 0
        %3379 = vmatmul.mubr.bf16.gmra.mrb[0].mxu0 %v1137
        %v3380 = vpop.f32.mrb[0].mxu0
        %v3381 = vadd.f32 %v3060, %v3380
        %v3382 = vpop.f32.mrb[0].mxu0
        %v3383 = vpop.f32.mrb[0].mxu0
        %v3384 = vadd.f32 %v3063, %v3383
        %v3385 = vpop.f32.mrb[0].mxu0
        %3386 = vmatprep.mubr.bf16.mxu0 0
        %3387 = vmatmul.mubr.bf16.gmra.mrb[0].mxu0 %v1011
        %v3388 = vpop.f32.mrb[0].mxu0
        %v3389 = vadd.f32 %v3068, %v3388
        %v3390 = vpop.f32.mrb[0].mxu0
        %v3391 = vpop.f32.mrb[0].mxu0
        %v3392 = vadd.f32 %v3071, %v3391
        %v3393 = vpop.f32.mrb[0].mxu0
        %3394 = vmatprep.mubr.bf16.mxu0 0
        %3395 = vmatmul.mubr.bf16.gmra.mrb[0].mxu0 %v1138
        %v3396 = vpop.f32.mrb[0].mxu0
        %v3397 = vadd.f32 %v3076, %v3396
        %v3398 = vpop.f32.mrb[0].mxu0
        %v3399 = vpop.f32.mrb[0].mxu0
        %v3400 = vadd.f32 %v3079, %v3399
        %v3401 = vpop.f32.mrb[0].mxu0
        %3402 = vmatprep.mubr.bf16.mxu0 0
        %3403 = vmatmul.mubr.bf16.gmra.mrb[0].mxu0 %v1016
        %v3404 = vpop.f32.mrb[0].mxu0
        %v3405 = vadd.f32 %v3084, %v3404
        %v3406 = vpop.f32.mrb[0].mxu0
        %v3407 = vpop.f32.mrb[0].mxu0
        %v3408 = vadd.f32 %v3087, %v3407
        %v3409 = vpop.f32.mrb[0].mxu0
        %3410 = vmatprep.mubr.bf16.mxu0 0
        %3411 = vmatmul.mubr.bf16.gmra.mrb[0].mxu0 %v1139
        %v3412 = vpop.f32.mrb[0].mxu0
        %v3413 = vadd.f32 %v3092, %v3412
        %v3414 = vpop.f32.mrb[0].mxu0
        %v3415 = vpop.f32.mrb[0].mxu0
        %v3416 = vadd.f32 %v3095, %v3415
        %v3417 = vpop.f32.mrb[0].mxu0
        %3418 = vmatprep.mubr.bf16.mxu0 0
        %3419 = vmatmul.mubr.bf16.gmra.mrb[0].mxu0 %v1021
        %v3420 = vpop.f32.mrb[0].mxu0
        %v3421 = vadd.f32 %v3100, %v3420
        %v3422 = vpop.f32.mrb[0].mxu0
        %v3423 = vpop.f32.mrb[0].mxu0
        %v3424 = vadd.f32 %v3103, %v3423
        %v3425 = vpop.f32.mrb[0].mxu0
        %3426 = vmatprep.mubr.bf16.mxu0 0
        %3427 = vmatmul.mubr.bf16.gmra.mrb[0].mxu0 %v1140
        %v3428 = vpop.f32.mrb[0].mxu0
        %v3429 = vadd.f32 %v3108, %v3428
        %v3430 = vpop.f32.mrb[0].mxu0
        %v3431 = vpop.f32.mrb[0].mxu0
        %v3432 = vadd.f32 %v3111, %v3431
        %v3433 = vpop.f32.mrb[0].mxu0
        %3434 = vmatprep.mubr.bf16.mxu0 0
        %3435 = vmatmul.mubr.bf16.gmra.mrb[0].mxu0 %v1026
        %v3436 = vpop.f32.mrb[0].mxu0
        %v3437 = vadd.f32 %v3116, %v3436
        %v3438 = vpop.f32.mrb[0].mxu0
        %v3439 = vpop.f32.mrb[0].mxu0
        %v3440 = vadd.f32 %v3119, %v3439
        %v3441 = vpop.f32.mrb[0].mxu0
        %3442 = vmatprep.mubr.bf16.mxu0 0
        %3443 = vmatmul.mubr.bf16.gmra.mrb[0].mxu0 %v1141
        %v3444 = vpop.f32.mrb[0].mxu0
        %v3445 = vadd.f32 %v3124, %v3444
        %v3446 = vpop.f32.mrb[0].mxu0
        %v3447 = vpop.f32.mrb[0].mxu0
        %v3448 = vadd.f32 %v3127, %v3447
        %v3449 = vpop.f32.mrb[0].mxu0
        %3450 = vmatprep.mubr.bf16.mxu0 0
        %3451 = vmatmul.mubr.bf16.gmra.mrb[0].mxu0 %v1031
        %v3452 = vpop.f32.mrb[0].mxu0
        %v3453 = vadd.f32 %v3132, %v3452
        %v3454 = vpop.f32.mrb[0].mxu0
        %v3455 = vpop.f32.mrb[0].mxu0
        %v3456 = vadd.f32 %v3135, %v3455
        %v3457 = vpop.f32.mrb[0].mxu0
        %3458 = vmatprep.mubr.bf16.mxu0 0
        %3459 = vmatmul.mubr.bf16.gmra.mrb[0].mxu0 %v1142
        %v3460 = vpop.f32.mrb[0].mxu0
        %v3461 = vadd.f32 %v3140, %v3460
        %v3462 = vpop.f32.mrb[0].mxu0
        %v3463 = vpop.f32.mrb[0].mxu0
        %v3464 = vadd.f32 %v3143, %v3463
        %v3465 = vpop.f32.mrb[0].mxu0
        %3466 = vmatprep.mubr.bf16.mxu0 0
        %3467 = vmatmul.mubr.bf16.gmra.mrb[0].mxu0 %v1036
        %v3468 = vpop.f32.mrb[0].mxu0
        %v3469 = vadd.f32 %v3148, %v3468
        %v3470 = vpop.f32.mrb[0].mxu0
        %v3471 = vpop.f32.mrb[0].mxu0
        %v3472 = vadd.f32 %v3151, %v3471
        %v3473 = vpop.f32.mrb[0].mxu0
        %3474 = vmatprep.mubr.bf16.mxu0 0
        %3475 = vmatmul.mubr.bf16.gmra.mrb[0].mxu0 %v1143
        %v3476 = vpop.f32.mrb[0].mxu0
        %v3477 = vadd.f32 %v3156, %v3476
        %v3478 = vpop.f32.mrb[0].mxu0
        %v3479 = vpop.f32.mrb[0].mxu0
        %v3480 = vadd.f32 %v3159, %v3479
        %v3481 = vpop.f32.mrb[0].mxu0
        %3482 = vmatprep.mubr.bf16.mxu0 0
        %3483 = vmatmul.mubr.bf16.gmra.mrb[0].mxu0 %v1041
        %v3484 = vpop.f32.mrb[0].mxu0
        %v3485 = vadd.f32 %v3164, %v3484
        %v3486 = vpop.f32.mrb[0].mxu0
        %v3487 = vpop.f32.mrb[0].mxu0
        %v3488 = vadd.f32 %v3167, %v3487
        %v3489 = vpop.f32.mrb[0].mxu0
        %3490 = vmatprep.mubr.bf16.mxu0 0
        %3491 = vmatmul.mubr.bf16.gmra.mrb[0].mxu0 %v1144
        %v3492 = vpop.f32.mrb[0].mxu0
        %v3493 = vadd.f32 %v3172, %v3492
        %v3494 = vpop.f32.mrb[0].mxu0
        %v3495 = vpop.f32.mrb[0].mxu0
        %v3496 = vadd.f32 %v3175, %v3495
        %v3497 = vpop.f32.mrb[0].mxu0
        %3498 = vmatprep.mubr.bf16.mxu0 0
        %3499 = vmatmul.mubr.bf16.gmra.mrb[0].mxu0 %v1046
        %v3500 = vpop.f32.mrb[0].mxu0
        %v3501 = vadd.f32 %v3180, %v3500
        %v3502 = vpop.f32.mrb[0].mxu0
        %v3503 = vpop.f32.mrb[0].mxu0
        %v3504 = vadd.f32 %v3183, %v3503
        %v3505 = vpop.f32.mrb[0].mxu0
        %3506 = vmatprep.mubr.bf16.mxu0 0
        %3507 = vmatmul.mubr.bf16.gmra.mrb[0].mxu0 %v1145
        %v3508 = vpop.f32.mrb[0].mxu0
        %v3509 = vadd.f32 %v3188, %v3508
        %v3510 = vpop.f32.mrb[0].mxu0
        %v3511 = vpop.f32.mrb[0].mxu0
        %v3512 = vadd.f32 %v3191, %v3511
        %v3513 = vpop.f32.mrb[0].mxu0
        %3514 = vmatprep.mubr.bf16.mxu0 0
        %3515 = vmatmul.mubr.bf16.gmra.mrb[0].mxu0 %v1051
        %v3516 = vpop.f32.mrb[0].mxu0
        %v3517 = vadd.f32 %v3196, %v3516
        %v3518 = vpop.f32.mrb[0].mxu0
        %v3519 = vpop.f32.mrb[0].mxu0
        %v3520 = vadd.f32 %v3199, %v3519
        %v3521 = vpop.f32.mrb[0].mxu0
        %3522 = vmatprep.mubr.bf16.mxu0 0
        %3523 = vmatmul.mubr.bf16.gmra.mrb[0].mxu0 %v1146
        %v3524 = vpop.f32.mrb[0].mxu0
        %v3525 = vadd.f32 %v3204, %v3524
        %v3526 = vpop.f32.mrb[0].mxu0
        %v3527 = vpop.f32.mrb[0].mxu0
        %v3528 = vadd.f32 %v3207, %v3527
        %v3529 = vpop.f32.mrb[0].mxu0
        %3530 = vmatprep.mubr.bf16.mxu0 0
        %3531 = vmatmul.mubr.bf16.gmra.mrb[0].mxu0 %v1056
        %v3532 = vpop.f32.mrb[0].mxu0
        %v3533 = vadd.f32 %v3212, %v3532
        %v3534 = vpop.f32.mrb[0].mxu0
        %v3535 = vpop.f32.mrb[0].mxu0
        %v3536 = vadd.f32 %v3215, %v3535
        %v3537 = vpop.f32.mrb[0].mxu0
        %3538 = vmatprep.mubr.bf16.mxu0 0
        %3539 = vmatmul.mubr.bf16.gmra.mrb[0].mxu0 %v1147
        %v3540 = vpop.f32.mrb[0].mxu0
        %v3541 = vadd.f32 %v3220, %v3540
        %v3542 = vpop.f32.mrb[0].mxu0
        %v3543 = vpop.f32.mrb[0].mxu0
        %v3544 = vadd.f32 %v3223, %v3543
        %v3545 = vpop.f32.mrb[0].mxu0
        %3546 = vmatprep.mubr.bf16.mxu0 0
        %3547 = vmatmul.mubr.bf16.gmra.mrb[0].mxu0 %v1061
        %v3548 = vpop.f32.mrb[0].mxu0
        %v3549 = vadd.f32 %v3228, %v3548
        %v3550 = vpop.f32.mrb[0].mxu0
        %v3551 = vpop.f32.mrb[0].mxu0
        %v3552 = vadd.f32 %v3231, %v3551
        %v3553 = vpop.f32.mrb[0].mxu0
        %3554 = vmatprep.mubr.bf16.mxu0 0
        %3555 = vmatmul.mubr.bf16.gmra.mrb[0].mxu0 %v1148
        %v3556 = vpop.f32.mrb[0].mxu0
        %v3557 = vadd.f32 %v3236, %v3556
        %v3558 = vpop.f32.mrb[0].mxu0
        %v3559 = vpop.f32.mrb[0].mxu0
        %v3560 = vadd.f32 %v3239, %v3559
        %v3561 = vpop.f32.mrb[0].mxu0
        %3562 = vmatprep.mubr.bf16.mxu0 0
        %3563 = vmatmul.mubr.bf16.gmra.mrb[0].mxu0 %v1066
        %v3564 = vpop.f32.mrb[0].mxu0
        %v3565 = vadd.f32 %v3244, %v3564
        %v3566 = vpop.f32.mrb[0].mxu0
        %v3567 = vpop.f32.mrb[0].mxu0
        %v3568 = vadd.f32 %v3247, %v3567
        %v3569 = vpop.f32.mrb[0].mxu0
        %3570 = vmatprep.mubr.bf16.mxu0 0
        %3571 = vmatmul.mubr.bf16.gmra.mrb[0].mxu0 %v1149
        %v3572 = vpop.f32.mrb[0].mxu0
        %v3573 = vadd.f32 %v3252, %v3572
        %v3574 = vpop.f32.mrb[0].mxu0
        %v3575 = vpop.f32.mrb[0].mxu0
        %v3576 = vadd.f32 %v3255, %v3575
        %v3577 = vpop.f32.mrb[0].mxu0
        %3578 = vmatprep.mubr.bf16.mxu0 0
        %3579 = vmatmul.mubr.bf16.gmra.mrb[0].mxu0 %v1071
        %v3580 = vpop.f32.mrb[0].mxu0
        %v3581 = vadd.f32 %v3260, %v3580
        %v3582 = vpop.f32.mrb[0].mxu0
        %v3583 = vpop.f32.mrb[0].mxu0
        %v3584 = vadd.f32 %v3263, %v3583
        %v3585 = vpop.f32.mrb[0].mxu0
        %3586 = vmatprep.mubr.bf16.mxu0 0
        %3587 = vmatmul.mubr.bf16.gmra.mrb[0].mxu0 %v1150
        %v3588 = vpop.f32.mrb[0].mxu0
        %v3589 = vadd.f32 %v3268, %v3588
        %v3590 = vpop.f32.mrb[0].mxu0
        %v3591 = vpop.f32.mrb[0].mxu0
        %v3592 = vadd.f32 %v3271, %v3591
        %v3593 = vpop.f32.mrb[0].mxu0
        %3594 = vmatprep.mubr.bf16.mxu0 0
        %3595 = vmatmul.mubr.bf16.gmra.mrb[0].mxu0 %v1076
        %v3596 = vpop.f32.mrb[0].mxu0
        %v3597 = vadd.f32 %v3276, %v3596
        %v3598 = vpop.f32.mrb[0].mxu0
        %v3599 = vpop.f32.mrb[0].mxu0
        %v3600 = vadd.f32 %v3279, %v3599
        %v3601 = vpop.f32.mrb[0].mxu0
        %3602 = vmatprep.mubr.bf16.mxu0 0
        %3603 = vmatmul.mubr.bf16.gmra.mrb[0].mxu0 %v1151
        %v3604 = vpop.f32.mrb[0].mxu0
        %v3605 = vadd.f32 %v3284, %v3604
        %v3606 = vpop.f32.mrb[0].mxu0
        %v3607 = vpop.f32.mrb[0].mxu0
        %v3608 = vadd.f32 %v3287, %v3607
        %v3609 = vpop.f32.mrb[0].mxu0
        %3610 = vmatprep.mubr.bf16.mxu0 0
        %3611 = vmatmul.mubr.bf16.gmra.mrb[0].mxu0 %v1081
        %v3612 = vpop.f32.mrb[0].mxu0
        %v3613 = vadd.f32 %v3292, %v3612
        %v3614 = vpop.f32.mrb[0].mxu0
        %v3615 = vpop.f32.mrb[0].mxu0
        %v3616 = vadd.f32 %v3295, %v3615
        %v3617 = vpop.f32.mrb[0].mxu0
        %3618 = vmatprep.mubr.bf16.mxu0 0
        %3619 = vmatmul.mubr.bf16.gmra.mrb[0].mxu0 %v1152
        %v3620 = vpop.f32.mrb[0].mxu0
        %v3621 = vadd.f32 %v3300, %v3620
        %v3622 = vpop.f32.mrb[0].mxu0
        %v3623 = vpop.f32.mrb[0].mxu0
        %v3624 = vadd.f32 %v3303, %v3623
        %v3625 = vpop.f32.mrb[0].mxu0
        %3626 = vmatprep.mubr.bf16.mxu0 0
        %3627 = vmatmul.mubr.bf16.gmra.mrb[0].mxu0 %v1086
        %v3628 = vpop.f32.mrb[0].mxu0
        %v3629 = vadd.f32 %v3308, %v3628
        %v3630 = vpop.f32.mrb[0].mxu0
        %v3631 = vpop.f32.mrb[0].mxu0
        %v3632 = vadd.f32 %v3311, %v3631
        %v3633 = vpop.f32.mrb[0].mxu0
        %3634 = vmatprep.mubr.bf16.mxu0 0
        %3635 = vmatmul.mubr.bf16.gmra.mrb[0].mxu0 %v1153
        %v3636 = vpop.f32.mrb[0].mxu0
        %v3637 = vadd.f32 %v3316, %v3636
        %v3638 = vpop.f32.mrb[0].mxu0
        %v3639 = vpop.f32.mrb[0].mxu0
        %v3640 = vadd.f32 %v3319, %v3639
        %v3641 = vpop.f32.mrb[0].mxu0
        %3642 = vmatprep.mubr.bf16.mxu0 0
        %3643 = vmatmul.mubr.bf16.gmra.mrb[0].mxu0 %v1091
        %v3644 = vpop.f32.mrb[0].mxu0
        %v3645 = vadd.f32 %v3324, %v3644
        %v3646 = vpop.f32.mrb[0].mxu0
        %v3647 = vpop.f32.mrb[0].mxu0
        %v3648 = vadd.f32 %v3327, %v3647
        %v3649 = vpop.f32.mrb[0].mxu0
        %3650 = vmatprep.mubr.bf16.mxu0 0
        %3651 = vmatmul.mubr.bf16.gmra.mrb[0].mxu0 %v1154
        %v3652 = vpop.f32.mrb[0].mxu0
        %v3653 = vadd.f32 %v3332, %v3652
        %v3654 = vpop.f32.mrb[0].mxu0
        %v3655 = vpop.f32.mrb[0].mxu0
        %v3656 = vadd.f32 %v3335, %v3655
        %v3657 = vpop.f32.mrb[0].mxu0
        %3658 = vdwg.mxu0
        %v3659 = vadd.f32 %v2538, %v3373
        %v3660 = vadd.f32 %v2541, %v3376
        %v3661 = vadd.f32 %v2546, %v3381
        %v3662 = vadd.f32 %v2549, %v3384
        %v3663 = vadd.f32 %v2554, %v3389
        %v3664 = vadd.f32 %v2557, %v3392
        %v3665 = vadd.f32 %v2562, %v3397
        %v3666 = vadd.f32 %v2565, %v3400
        %v3667 = vadd.f32 %v2570, %v3405
        %v3668 = vadd.f32 %v2573, %v3408
        %v3669 = vadd.f32 %v2578, %v3413
        %v3670 = vadd.f32 %v2581, %v3416
        %v3671 = vadd.f32 %v2586, %v3421
        %v3672 = vadd.f32 %v2589, %v3424
        %v3673 = vadd.f32 %v2594, %v3429
        %v3674 = vadd.f32 %v2597, %v3432
        %v3675 = vadd.f32 %v2602, %v3437
        %v3676 = vadd.f32 %v2605, %v3440
        %v3677 = vadd.f32 %v2610, %v3445
        %v3678 = vadd.f32 %v2613, %v3448
        %v3679 = vadd.f32 %v2618, %v3453
        %v3680 = vadd.f32 %v2621, %v3456
        %v3681 = vadd.f32 %v2626, %v3461
        %v3682 = vadd.f32 %v2629, %v3464
        %v3683 = vadd.f32 %v2634, %v3469
        %v3684 = vadd.f32 %v2637, %v3472
        %v3685 = vadd.f32 %v2642, %v3477
        %v3686 = vadd.f32 %v2645, %v3480
        %v3687 = vadd.f32 %v2650, %v3485
        %v3688 = vadd.f32 %v2653, %v3488
        %v3689 = vadd.f32 %v2658, %v3493
        %v3690 = vadd.f32 %v2661, %v3496
        %v3691 = vadd.f32 %v2666, %v3501
        %v3692 = vadd.f32 %v2669, %v3504
        %v3693 = vadd.f32 %v2674, %v3509
        %v3694 = vadd.f32 %v2677, %v3512
        %v3695 = vadd.f32 %v2682, %v3517
        %v3696 = vadd.f32 %v2685, %v3520
        %v3697 = vadd.f32 %v2690, %v3525
        %v3698 = vadd.f32 %v2693, %v3528
        %v3699 = vadd.f32 %v2698, %v3533
        %v3700 = vadd.f32 %v2701, %v3536
        %v3701 = vadd.f32 %v2706, %v3541
        %v3702 = vadd.f32 %v2709, %v3544
        %v3703 = vadd.f32 %v2714, %v3549
        %v3704 = vadd.f32 %v2717, %v3552
        %v3705 = vadd.f32 %v2722, %v3557
        %v3706 = vadd.f32 %v2725, %v3560
        %v3707 = vadd.f32 %v2730, %v3565
        %v3708 = vadd.f32 %v2733, %v3568
        %v3709 = vadd.f32 %v2738, %v3573
        %v3710 = vadd.f32 %v2741, %v3576
        %v3711 = vadd.f32 %v2746, %v3581
        %v3712 = vadd.f32 %v2749, %v3584
        %v3713 = vadd.f32 %v2754, %v3589
        %v3714 = vadd.f32 %v2757, %v3592
        %v3715 = vadd.f32 %v2762, %v3597
        %v3716 = vadd.f32 %v2765, %v3600
        %v3717 = vadd.f32 %v2770, %v3605
        %v3718 = vadd.f32 %v2773, %v3608
        %v3719 = vadd.f32 %v2778, %v3613
        %v3720 = vadd.f32 %v2781, %v3616
        %v3721 = vadd.f32 %v2786, %v3621
        %v3722 = vadd.f32 %v2789, %v3624
        %v3723 = vadd.f32 %v2794, %v3629
        %v3724 = vadd.f32 %v2797, %v3632
        %v3725 = vadd.f32 %v2802, %v3637
        %v3726 = vadd.f32 %v2805, %v3640
        %v3727 = vadd.f32 %v2810, %v3645
        %v3728 = vadd.f32 %v2813, %v3648
        %v3729 = vadd.f32 %v2818, %v3653
        %v3730 = vadd.f32 %v2821, %v3656
        %v3731 = vld [vmem:[%s4] sm:$0x1]
        %v3733 = vlaneseq
        %v3734 = vshrl.u32 %v3733, 7
        %v3735 = vsub.s32 0, %v3734
        %v3736 = vrot.slane %v3731, %v3735
        %v3738 = vadd.f32 %v3659, %v3736
        %v3739 = vadd.f32 %v3660, %v3736
        %v3740 = vadd.f32 %v3661, %v3736
        %v3741 = vadd.f32 %v3662, %v3736
        %v3742 = vadd.f32 %v3663, %v3736
        %v3743 = vadd.f32 %v3664, %v3736
        %v3744 = vadd.f32 %v3665, %v3736
        %v3745 = vadd.f32 %v3666, %v3736
        %v3746 = vadd.f32 %v3667, %v3736
        %v3747 = vadd.f32 %v3668, %v3736
        %v3748 = vadd.f32 %v3669, %v3736
        %v3749 = vadd.f32 %v3670, %v3736
        %v3750 = vadd.f32 %v3671, %v3736
        %v3751 = vadd.f32 %v3672, %v3736
        %v3752 = vadd.f32 %v3673, %v3736
        %v3753 = vadd.f32 %v3674, %v3736
        %v3754 = vadd.f32 %v3675, %v3736
        %v3755 = vadd.f32 %v3676, %v3736
        %v3756 = vadd.f32 %v3677, %v3736
        %v3757 = vadd.f32 %v3678, %v3736
        %v3758 = vadd.f32 %v3679, %v3736
        %v3759 = vadd.f32 %v3680, %v3736
        %v3760 = vadd.f32 %v3681, %v3736
        %v3761 = vadd.f32 %v3682, %v3736
        %v3762 = vadd.f32 %v3683, %v3736
        %v3763 = vadd.f32 %v3684, %v3736
        %v3764 = vadd.f32 %v3685, %v3736
        %v3765 = vadd.f32 %v3686, %v3736
        %v3766 = vadd.f32 %v3687, %v3736
        %v3767 = vadd.f32 %v3688, %v3736
        %v3768 = vadd.f32 %v3689, %v3736
        %v3769 = vadd.f32 %v3690, %v3736
        %v3770 = vadd.f32 %v3691, %v3736
        %v3771 = vadd.f32 %v3692, %v3736
        %v3772 = vadd.f32 %v3693, %v3736
        %v3773 = vadd.f32 %v3694, %v3736
        %v3774 = vadd.f32 %v3695, %v3736
        %v3775 = vadd.f32 %v3696, %v3736
        %v3776 = vadd.f32 %v3697, %v3736
        %v3777 = vadd.f32 %v3698, %v3736
        %v3778 = vadd.f32 %v3699, %v3736
        %v3779 = vadd.f32 %v3700, %v3736
        %v3780 = vadd.f32 %v3701, %v3736
        %v3781 = vadd.f32 %v3702, %v3736
        %v3782 = vadd.f32 %v3703, %v3736
        %v3783 = vadd.f32 %v3704, %v3736
        %v3784 = vadd.f32 %v3705, %v3736
        %v3785 = vadd.f32 %v3706, %v3736
        %v3786 = vadd.f32 %v3707, %v3736
        %v3787 = vadd.f32 %v3708, %v3736
        %v3788 = vadd.f32 %v3709, %v3736
        %v3789 = vadd.f32 %v3710, %v3736
        %v3790 = vadd.f32 %v3711, %v3736
        %v3791 = vadd.f32 %v3712, %v3736
        %v3792 = vadd.f32 %v3713, %v3736
        %v3793 = vadd.f32 %v3714, %v3736
        %v3794 = vadd.f32 %v3715, %v3736
        %v3795 = vadd.f32 %v3716, %v3736
        %v3796 = vadd.f32 %v3717, %v3736
        %v3797 = vadd.f32 %v3718, %v3736
        %v3798 = vadd.f32 %v3719, %v3736
        %v3799 = vadd.f32 %v3720, %v3736
        %v3800 = vadd.f32 %v3721, %v3736
        %v3801 = vadd.f32 %v3722, %v3736
        %v3802 = vadd.f32 %v3723, %v3736
        %v3803 = vadd.f32 %v3724, %v3736
        %v3804 = vadd.f32 %v3725, %v3736
        %v3805 = vadd.f32 %v3726, %v3736
        %v3806 = vadd.f32 %v3727, %v3736
        %v3807 = vadd.f32 %v3728, %v3736
        %v3808 = vadd.f32 %v3729, %v3736
        %v3809 = vadd.f32 %v3730, %v3736
        %v3810 = vmax.f32 %v3738, 0.0
        %v3811 = vmax.f32 %v3739, 0.0
        %v3812 = vmax.f32 %v3740, 0.0
        %v3813 = vmax.f32 %v3741, 0.0
        %v3814 = vmax.f32 %v3742, 0.0
        %v3815 = vmax.f32 %v3743, 0.0
        %v3816 = vmax.f32 %v3744, 0.0
        %v3817 = vmax.f32 %v3745, 0.0
        %v3818 = vmax.f32 %v3746, 0.0
        %v3819 = vmax.f32 %v3747, 0.0
        %v3820 = vmax.f32 %v3748, 0.0
        %v3821 = vmax.f32 %v3749, 0.0
        %v3822 = vmax.f32 %v3750, 0.0
        %v3823 = vmax.f32 %v3751, 0.0
        %v3824 = vmax.f32 %v3752, 0.0
        %v3825 = vmax.f32 %v3753, 0.0
        %v3826 = vmax.f32 %v3754, 0.0
        %v3827 = vmax.f32 %v3755, 0.0
        %v3828 = vmax.f32 %v3756, 0.0
        %v3829 = vmax.f32 %v3757, 0.0
        %v3830 = vmax.f32 %v3758, 0.0
        %v3831 = vmax.f32 %v3759, 0.0
        %v3832 = vmax.f32 %v3760, 0.0
        %v3833 = vmax.f32 %v3761, 0.0
        %v3834 = vmax.f32 %v3762, 0.0
        %v3835 = vmax.f32 %v3763, 0.0
        %v3836 = vmax.f32 %v3764, 0.0
        %v3837 = vmax.f32 %v3765, 0.0
        %v3838 = vmax.f32 %v3766, 0.0
        %v3839 = vmax.f32 %v3767, 0.0
        %v3840 = vmax.f32 %v3768, 0.0
        %v3841 = vmax.f32 %v3769, 0.0
        %v3842 = vmax.f32 %v3770, 0.0
        %v3843 = vmax.f32 %v3771, 0.0
        %v3844 = vmax.f32 %v3772, 0.0
        %v3845 = vmax.f32 %v3773, 0.0
        %v3846 = vmax.f32 %v3774, 0.0
        %v3847 = vmax.f32 %v3775, 0.0
        %v3848 = vmax.f32 %v3776, 0.0
        %v3849 = vmax.f32 %v3777, 0.0
        %v3850 = vmax.f32 %v3778, 0.0
        %v3851 = vmax.f32 %v3779, 0.0
        %v3852 = vmax.f32 %v3780, 0.0
        %v3853 = vmax.f32 %v3781, 0.0
        %v3854 = vmax.f32 %v3782, 0.0
        %v3855 = vmax.f32 %v3783, 0.0
        %v3856 = vmax.f32 %v3784, 0.0
        %v3857 = vmax.f32 %v3785, 0.0
        %v3858 = vmax.f32 %v3786, 0.0
        %v3859 = vmax.f32 %v3787, 0.0
        %v3860 = vmax.f32 %v3788, 0.0
        %v3861 = vmax.f32 %v3789, 0.0
        %v3862 = vmax.f32 %v3790, 0.0
        %v3863 = vmax.f32 %v3791, 0.0
        %v3864 = vmax.f32 %v3792, 0.0
        %v3865 = vmax.f32 %v3793, 0.0
        %v3866 = vmax.f32 %v3794, 0.0
        %v3867 = vmax.f32 %v3795, 0.0
        %v3868 = vmax.f32 %v3796, 0.0
        %v3869 = vmax.f32 %v3797, 0.0
        %v3870 = vmax.f32 %v3798, 0.0
        %v3871 = vmax.f32 %v3799, 0.0
        %v3872 = vmax.f32 %v3800, 0.0
        %v3873 = vmax.f32 %v3801, 0.0
        %v3874 = vmax.f32 %v3802, 0.0
        %v3875 = vmax.f32 %v3803, 0.0
        %v3876 = vmax.f32 %v3804, 0.0
        %v3877 = vmax.f32 %v3805, 0.0
        %v3878 = vmax.f32 %v3806, 0.0
        %v3879 = vmax.f32 %v3807, 0.0
        %v3880 = vmax.f32 %v3808, 0.0
        %v3881 = vmax.f32 %v3809, 0.0
        %v3882 = vpack.c.bf16 %v3811, %v3810
        %v3883 = vpack.c.bf16 %v3813, %v3812
        %v3884 = vpack.c.bf16 %v3815, %v3814
        %v3885 = vpack.c.bf16 %v3817, %v3816
        %v3886 = vpack.c.bf16 %v3819, %v3818
        %v3887 = vpack.c.bf16 %v3821, %v3820
        %v3888 = vpack.c.bf16 %v3823, %v3822
        %v3889 = vpack.c.bf16 %v3825, %v3824
        %v3890 = vpack.c.bf16 %v3827, %v3826
        %v3891 = vpack.c.bf16 %v3829, %v3828
        %v3892 = vpack.c.bf16 %v3831, %v3830
        %v3893 = vpack.c.bf16 %v3833, %v3832
        %v3894 = vpack.c.bf16 %v3835, %v3834
        %v3895 = vpack.c.bf16 %v3837, %v3836
        %v3896 = vpack.c.bf16 %v3839, %v3838
        %v3897 = vpack.c.bf16 %v3841, %v3840
        %v3898 = vpack.c.bf16 %v3843, %v3842
        %v3899 = vpack.c.bf16 %v3845, %v3844
        %v3900 = vpack.c.bf16 %v3847, %v3846
        %v3901 = vpack.c.bf16 %v3849, %v3848
        %v3902 = vpack.c.bf16 %v3851, %v3850
        %v3903 = vpack.c.bf16 %v3853, %v3852
        %v3904 = vpack.c.bf16 %v3855, %v3854
        %v3905 = vpack.c.bf16 %v3857, %v3856
        %v3906 = vpack.c.bf16 %v3859, %v3858
        %v3907 = vpack.c.bf16 %v3861, %v3860
        %v3908 = vpack.c.bf16 %v3863, %v3862
        %v3909 = vpack.c.bf16 %v3865, %v3864
        %v3910 = vpack.c.bf16 %v3867, %v3866
        %v3911 = vpack.c.bf16 %v3869, %v3868
        %v3912 = vpack.c.bf16 %v3871, %v3870
        %v3913 = vpack.c.bf16 %v3873, %v3872
        %v3914 = vpack.c.bf16 %v3875, %v3874
        %v3915 = vpack.c.bf16 %v3877, %v3876
        %v3916 = vpack.c.bf16 %v3879, %v3878
        %v3917 = vpack.c.bf16 %v3881, %v3880
        %s3918 = scalar_select %p469, 1, 0
        %v3919 = vstv %s3918
        %vm3920 = vcmp.eq.s32.totalorder %v3919, 1
        %s3921 = scalar_select %p481, 1, 0
        %v3922 = vstv %s3921
        %vm3923 = vcmp.eq.s32.totalorder %v3922, 1
        %v3924 = vsel %vm3920, 1, 0
        %v3925 = vsel %vm3923, 1, 0
        %vm3926 = vcmp.eq.s32.totalorder %v3924, 1
        %vm3927 = vcmp.eq.s32.totalorder %v3925, 1
        %v3928 = vsel %vm3926, %v3882, 0
        %v3929 = vsel %vm3926, %v3883, 0
        %v3930 = vsel 1, %v3884, 0
        %v3931 = vsel 1, %v3885, 0
        %v3932 = vsel 1, %v3886, 0
        %v3933 = vsel 1, %v3887, 0
        %v3934 = vsel 1, %v3888, 0
        %v3935 = vsel 1, %v3889, 0
        %v3936 = vsel 1, %v3890, 0
        %v3937 = vsel 1, %v3891, 0
        %v3938 = vsel 1, %v3892, 0
        %v3939 = vsel 1, %v3893, 0
        %v3940 = vsel 1, %v3894, 0
        %v3941 = vsel 1, %v3895, 0
        %v3942 = vsel 1, %v3896, 0
        %v3943 = vsel 1, %v3897, 0
        %v3944 = vsel 1, %v3898, 0
        %v3945 = vsel 1, %v3899, 0
        %v3946 = vsel 1, %v3900, 0
        %v3947 = vsel 1, %v3901, 0
        %v3948 = vsel 1, %v3902, 0
        %v3949 = vsel 1, %v3903, 0
        %v3950 = vsel 1, %v3904, 0
        %v3951 = vsel 1, %v3905, 0
        %v3952 = vsel 1, %v3906, 0
        %v3953 = vsel 1, %v3907, 0
        %v3954 = vsel 1, %v3908, 0
        %v3955 = vsel 1, %v3909, 0
        %v3956 = vsel 1, %v3910, 0
        %v3957 = vsel 1, %v3911, 0
        %v3958 = vsel 1, %v3912, 0
        %v3959 = vsel 1, %v3913, 0
        %v3960 = vsel 1, %v3914, 0
        %v3961 = vsel 1, %v3915, 0
        %v3962 = vsel %vm3927, %v3916, 0
        %v3963 = vsel %vm3927, %v3917, 0
        %v3965 = vshrl.u32 %v3928, 16
        %v3967 = vrot.slane %v3965, 7
        %v3968 = vshll.u32 %v3928, 16
        %v3970 = vor.u32 %v3967, %v3968
        %v3972 = vshrl.u32 %v3929, 16
        %v3974 = vrot.slane %v3972, 7
        %v3975 = vshll.u32 %v3929, 16
        %v3977 = vor.u32 %v3974, %v3975
        %v3978 = vsel %vm629, %v3967, %v3977
        %v3980 = vshrl.u32 %v3930, 16
        %v3982 = vrot.slane %v3980, 7
        %v3983 = vshll.u32 %v3930, 16
        %v3985 = vor.u32 %v3982, %v3983
        %v3987 = vshrl.u32 %v3931, 16
        %v3989 = vrot.slane %v3987, 7
        %v3990 = vshll.u32 %v3931, 16
        %v3992 = vor.u32 %v3989, %v3990
        %v3993 = vsel %vm629, %v3982, %v3992
        %v3995 = vshrl.u32 %v3932, 16
        %v3997 = vrot.slane %v3995, 7
        %v3998 = vshll.u32 %v3932, 16
        %v4000 = vor.u32 %v3997, %v3998
        %v4002 = vshrl.u32 %v3933, 16
        %v4004 = vrot.slane %v4002, 7
        %v4005 = vshll.u32 %v3933, 16
        %v4007 = vor.u32 %v4004, %v4005
        %v4008 = vsel %vm629, %v3997, %v4007
        %v4010 = vshrl.u32 %v3934, 16
        %v4012 = vrot.slane %v4010, 7
        %v4013 = vshll.u32 %v3934, 16
        %v4015 = vor.u32 %v4012, %v4013
        %v4017 = vshrl.u32 %v3935, 16
        %v4019 = vrot.slane %v4017, 7
        %v4020 = vshll.u32 %v3935, 16
        %v4022 = vor.u32 %v4019, %v4020
        %v4023 = vsel %vm629, %v4012, %v4022
        %v4025 = vshrl.u32 %v3936, 16
        %v4027 = vrot.slane %v4025, 7
        %v4028 = vshll.u32 %v3936, 16
        %v4030 = vor.u32 %v4027, %v4028
        %v4032 = vshrl.u32 %v3937, 16
        %v4034 = vrot.slane %v4032, 7
        %v4035 = vshll.u32 %v3937, 16
        %v4037 = vor.u32 %v4034, %v4035
        %v4038 = vsel %vm629, %v4027, %v4037
        %v4040 = vshrl.u32 %v3938, 16
        %v4042 = vrot.slane %v4040, 7
        %v4043 = vshll.u32 %v3938, 16
        %v4045 = vor.u32 %v4042, %v4043
        %v4047 = vshrl.u32 %v3939, 16
        %v4049 = vrot.slane %v4047, 7
        %v4050 = vshll.u32 %v3939, 16
        %v4052 = vor.u32 %v4049, %v4050
        %v4053 = vsel %vm629, %v4042, %v4052
        %v4055 = vshrl.u32 %v3940, 16
        %v4057 = vrot.slane %v4055, 7
        %v4058 = vshll.u32 %v3940, 16
        %v4060 = vor.u32 %v4057, %v4058
        %v4062 = vshrl.u32 %v3941, 16
        %v4064 = vrot.slane %v4062, 7
        %v4065 = vshll.u32 %v3941, 16
        %v4067 = vor.u32 %v4064, %v4065
        %v4068 = vsel %vm629, %v4057, %v4067
        %v4070 = vshrl.u32 %v3942, 16
        %v4072 = vrot.slane %v4070, 7
        %v4073 = vshll.u32 %v3942, 16
        %v4075 = vor.u32 %v4072, %v4073
        %v4077 = vshrl.u32 %v3943, 16
        %v4079 = vrot.slane %v4077, 7
        %v4080 = vshll.u32 %v3943, 16
        %v4082 = vor.u32 %v4079, %v4080
        %v4083 = vsel %vm629, %v4072, %v4082
        %v4085 = vshrl.u32 %v3944, 16
        %v4087 = vrot.slane %v4085, 7
        %v4088 = vshll.u32 %v3944, 16
        %v4090 = vor.u32 %v4087, %v4088
        %v4092 = vshrl.u32 %v3945, 16
        %v4094 = vrot.slane %v4092, 7
        %v4095 = vshll.u32 %v3945, 16
        %v4097 = vor.u32 %v4094, %v4095
        %v4098 = vsel %vm629, %v4087, %v4097
        %v4100 = vshrl.u32 %v3946, 16
        %v4102 = vrot.slane %v4100, 7
        %v4103 = vshll.u32 %v3946, 16
        %v4105 = vor.u32 %v4102, %v4103
        %v4107 = vshrl.u32 %v3947, 16
        %v4109 = vrot.slane %v4107, 7
        %v4110 = vshll.u32 %v3947, 16
        %v4112 = vor.u32 %v4109, %v4110
        %v4113 = vsel %vm629, %v4102, %v4112
        %v4115 = vshrl.u32 %v3948, 16
        %v4117 = vrot.slane %v4115, 7
        %v4118 = vshll.u32 %v3948, 16
        %v4120 = vor.u32 %v4117, %v4118
        %v4122 = vshrl.u32 %v3949, 16
        %v4124 = vrot.slane %v4122, 7
        %v4125 = vshll.u32 %v3949, 16
        %v4127 = vor.u32 %v4124, %v4125
        %v4128 = vsel %vm629, %v4117, %v4127
        %v4130 = vshrl.u32 %v3950, 16
        %v4132 = vrot.slane %v4130, 7
        %v4133 = vshll.u32 %v3950, 16
        %v4135 = vor.u32 %v4132, %v4133
        %v4137 = vshrl.u32 %v3951, 16
        %v4139 = vrot.slane %v4137, 7
        %v4140 = vshll.u32 %v3951, 16
        %v4142 = vor.u32 %v4139, %v4140
        %v4143 = vsel %vm629, %v4132, %v4142
        %v4145 = vshrl.u32 %v3952, 16
        %v4147 = vrot.slane %v4145, 7
        %v4148 = vshll.u32 %v3952, 16
        %v4150 = vor.u32 %v4147, %v4148
        %v4152 = vshrl.u32 %v3953, 16
        %v4154 = vrot.slane %v4152, 7
        %v4155 = vshll.u32 %v3953, 16
        %v4157 = vor.u32 %v4154, %v4155
        %v4158 = vsel %vm629, %v4147, %v4157
        %v4160 = vshrl.u32 %v3954, 16
        %v4162 = vrot.slane %v4160, 7
        %v4163 = vshll.u32 %v3954, 16
        %v4165 = vor.u32 %v4162, %v4163
        %v4167 = vshrl.u32 %v3955, 16
        %v4169 = vrot.slane %v4167, 7
        %v4170 = vshll.u32 %v3955, 16
        %v4172 = vor.u32 %v4169, %v4170
        %v4173 = vsel %vm629, %v4162, %v4172
        %v4175 = vshrl.u32 %v3956, 16
        %v4177 = vrot.slane %v4175, 7
        %v4178 = vshll.u32 %v3956, 16
        %v4180 = vor.u32 %v4177, %v4178
        %v4182 = vshrl.u32 %v3957, 16
        %v4184 = vrot.slane %v4182, 7
        %v4185 = vshll.u32 %v3957, 16
        %v4187 = vor.u32 %v4184, %v4185
        %v4188 = vsel %vm629, %v4177, %v4187
        %v4190 = vshrl.u32 %v3958, 16
        %v4192 = vrot.slane %v4190, 7
        %v4193 = vshll.u32 %v3958, 16
        %v4195 = vor.u32 %v4192, %v4193
        %v4197 = vshrl.u32 %v3959, 16
        %v4199 = vrot.slane %v4197, 7
        %v4200 = vshll.u32 %v3959, 16
        %v4202 = vor.u32 %v4199, %v4200
        %v4203 = vsel %vm629, %v4192, %v4202
        %v4205 = vshrl.u32 %v3960, 16
        %v4207 = vrot.slane %v4205, 7
        %v4208 = vshll.u32 %v3960, 16
        %v4210 = vor.u32 %v4207, %v4208
        %v4212 = vshrl.u32 %v3961, 16
        %v4214 = vrot.slane %v4212, 7
        %v4215 = vshll.u32 %v3961, 16
        %v4217 = vor.u32 %v4214, %v4215
        %v4218 = vsel %vm629, %v4207, %v4217
        %v4220 = vshrl.u32 %v3962, 16
        %v4222 = vrot.slane %v4220, 7
        %v4223 = vshll.u32 %v3962, 16
        %v4225 = vor.u32 %v4222, %v4223
        %v4227 = vshrl.u32 %v3963, 16
        %v4229 = vrot.slane %v4227, 7
        %v4230 = vshll.u32 %v3963, 16
        %v4232 = vor.u32 %v4229, %v4230
        %v4233 = vsel %vm629, %v4222, %v4232
        %v4270 = vsel %vm971, 0, %v3970
        %v4271 = vsel %vm971, 0, %v3985
        %v4272 = vsel %vm971, 0, %v4000
        %v4273 = vsel %vm971, 0, %v4015
        %v4274 = vsel %vm971, 0, %v4030
        %v4275 = vsel %vm971, 0, %v4045
        %v4276 = vsel %vm971, 0, %v4060
        %v4277 = vsel %vm971, 0, %v4075
        %v4278 = vsel %vm971, 0, %v4090
        %v4279 = vsel %vm971, 0, %v4105
        %v4280 = vsel %vm971, 0, %v4120
        %v4281 = vsel %vm971, 0, %v4135
        %v4282 = vsel %vm971, 0, %v4150
        %v4283 = vsel %vm971, 0, %v4165
        %v4284 = vsel %vm971, 0, %v4180
        %v4285 = vsel %vm971, 0, %v4195
        %v4286 = vsel %vm971, 0, %v4210
        %v4287 = vsel %vm971, 0, %v4225
        %v4288 = vrot.slane %v3968, 1
        %v4289 = vor.u32 %v3965, %v4288
        %v4290 = vrot.slane %v3975, 1
        %v4291 = vsel %vm992, %v4289, %v4290
        %v4292 = vor.u32 %v3972, %v4290
        %v4293 = vrot.slane %v3983, 1
        %v4294 = vor.u32 %v3980, %v4293
        %v4295 = vrot.slane %v3990, 1
        %v4296 = vsel %vm992, %v4294, %v4295
        %v4297 = vor.u32 %v3987, %v4295
        %v4298 = vrot.slane %v3998, 1
        %v4299 = vor.u32 %v3995, %v4298
        %v4300 = vrot.slane %v4005, 1
        %v4301 = vsel %vm992, %v4299, %v4300
        %v4302 = vor.u32 %v4002, %v4300
        %v4303 = vrot.slane %v4013, 1
        %v4304 = vor.u32 %v4010, %v4303
        %v4305 = vrot.slane %v4020, 1
        %v4306 = vsel %vm992, %v4304, %v4305
        %v4307 = vor.u32 %v4017, %v4305
        %v4308 = vrot.slane %v4028, 1
        %v4309 = vor.u32 %v4025, %v4308
        %v4310 = vrot.slane %v4035, 1
        %v4311 = vsel %vm992, %v4309, %v4310
        %v4312 = vor.u32 %v4032, %v4310
        %v4313 = vrot.slane %v4043, 1
        %v4314 = vor.u32 %v4040, %v4313
        %v4315 = vrot.slane %v4050, 1
        %v4316 = vsel %vm992, %v4314, %v4315
        %v4317 = vor.u32 %v4047, %v4315
        %v4318 = vrot.slane %v4058, 1
        %v4319 = vor.u32 %v4055, %v4318
        %v4320 = vrot.slane %v4065, 1
        %v4321 = vsel %vm992, %v4319, %v4320
        %v4322 = vor.u32 %v4062, %v4320
        %v4323 = vrot.slane %v4073, 1
        %v4324 = vor.u32 %v4070, %v4323
        %v4325 = vrot.slane %v4080, 1
        %v4326 = vsel %vm992, %v4324, %v4325
        %v4327 = vor.u32 %v4077, %v4325
        %v4328 = vrot.slane %v4088, 1
        %v4329 = vor.u32 %v4085, %v4328
        %v4330 = vrot.slane %v4095, 1
        %v4331 = vsel %vm992, %v4329, %v4330
        %v4332 = vor.u32 %v4092, %v4330
        %v4333 = vrot.slane %v4103, 1
        %v4334 = vor.u32 %v4100, %v4333
        %v4335 = vrot.slane %v4110, 1
        %v4336 = vsel %vm992, %v4334, %v4335
        %v4337 = vor.u32 %v4107, %v4335
        %v4338 = vrot.slane %v4118, 1
        %v4339 = vor.u32 %v4115, %v4338
        %v4340 = vrot.slane %v4125, 1
        %v4341 = vsel %vm992, %v4339, %v4340
        %v4342 = vor.u32 %v4122, %v4340
        %v4343 = vrot.slane %v4133, 1
        %v4344 = vor.u32 %v4130, %v4343
        %v4345 = vrot.slane %v4140, 1
        %v4346 = vsel %vm992, %v4344, %v4345
        %v4347 = vor.u32 %v4137, %v4345
        %v4348 = vrot.slane %v4148, 1
        %v4349 = vor.u32 %v4145, %v4348
        %v4350 = vrot.slane %v4155, 1
        %v4351 = vsel %vm992, %v4349, %v4350
        %v4352 = vor.u32 %v4152, %v4350
        %v4353 = vrot.slane %v4163, 1
        %v4354 = vor.u32 %v4160, %v4353
        %v4355 = vrot.slane %v4170, 1
        %v4356 = vsel %vm992, %v4354, %v4355
        %v4357 = vor.u32 %v4167, %v4355
        %v4358 = vrot.slane %v4178, 1
        %v4359 = vor.u32 %v4175, %v4358
        %v4360 = vrot.slane %v4185, 1
        %v4361 = vsel %vm992, %v4359, %v4360
        %v4362 = vor.u32 %v4182, %v4360
        %v4363 = vrot.slane %v4193, 1
        %v4364 = vor.u32 %v4190, %v4363
        %v4365 = vrot.slane %v4200, 1
        %v4366 = vsel %vm992, %v4364, %v4365
        %v4367 = vor.u32 %v4197, %v4365
        %v4368 = vrot.slane %v4208, 1
        %v4369 = vor.u32 %v4205, %v4368
        %v4370 = vrot.slane %v4215, 1
        %v4371 = vsel %vm992, %v4369, %v4370
        %v4372 = vor.u32 %v4212, %v4370
        %v4373 = vrot.slane %v4223, 1
        %v4374 = vor.u32 %v4220, %v4373
        %v4375 = vrot.slane %v4230, 1
        %v4376 = vsel %vm992, %v4374, %v4375
        %v4377 = vor.u32 %v4227, %v4375
        %v4414 = vsel %vm1134, %v4292, 0
        %v4415 = vsel %vm1134, %v4297, 0
        %v4416 = vsel %vm1134, %v4302, 0
        %v4417 = vsel %vm1134, %v4307, 0
        %v4418 = vsel %vm1134, %v4312, 0
        %v4419 = vsel %vm1134, %v4317, 0
        %v4420 = vsel %vm1134, %v4322, 0
        %v4421 = vsel %vm1134, %v4327, 0
        %v4422 = vsel %vm1134, %v4332, 0
        %v4423 = vsel %vm1134, %v4337, 0
        %v4424 = vsel %vm1134, %v4342, 0
        %v4425 = vsel %vm1134, %v4347, 0
        %v4426 = vsel %vm1134, %v4352, 0
        %v4427 = vsel %vm1134, %v4357, 0
        %v4428 = vsel %vm1134, %v4362, 0
        %v4429 = vsel %vm1134, %v4367, 0
        %v4430 = vsel %vm1134, %v4372, 0
        %v4431 = vsel %vm1134, %v4377, 0
        %v4432 = vld [vmem:[#allocation10] sm:$0xf]
        %v4433 = vld [vmem:[#allocation10 + $0x4] sm:$0xf]
        %v4434 = vld [vmem:[#allocation10 + $0x8] sm:$0xf]
        %v4435 = vld [vmem:[#allocation10 + $0xc] sm:$0xf]
        %v4436 = vld [vmem:[#allocation10 + $0x10] sm:$0xf]
        %v4437 = vld [vmem:[#allocation10 + $0x14] sm:$0xf]
        %v4438 = vld [vmem:[#allocation10 + $0x18] sm:$0xf]
        %v4439 = vld [vmem:[#allocation10 + $0x1c] sm:$0xf]
        %v4440 = vld [vmem:[#allocation10 + $0x20] sm:$0xf]
        %v4441 = vld [vmem:[#allocation10 + $0x24] sm:$0xf]
        %v4442 = vld [vmem:[#allocation10 + $0x28] sm:$0xf]
        %v4443 = vld [vmem:[#allocation10 + $0x2c] sm:$0xf]
        %v4444 = vld [vmem:[#allocation10 + $0x30] sm:$0xf]
        %v4445 = vld [vmem:[#allocation10 + $0x34] sm:$0xf]
        %v4446 = vld [vmem:[#allocation10 + $0x38] sm:$0xf]
        %v4447 = vld [vmem:[#allocation10 + $0x3c] sm:$0xf]
        %v4448 = vld [vmem:[#allocation10 + $0x40] sm:$0xf]
        %v4449 = vld [vmem:[#allocation10 + $0x44] sm:$0xf]
        %v4450 = vld [vmem:[#allocation10 + $0x48] sm:$0xf]
        %v4451 = vld [vmem:[#allocation10 + $0x4c] sm:$0xf]
        %v4452 = vld [vmem:[#allocation10 + $0x50] sm:$0xf]
        %v4453 = vld [vmem:[#allocation10 + $0x54] sm:$0xf]
        %v4454 = vld [vmem:[#allocation10 + $0x58] sm:$0xf]
        %v4455 = vld [vmem:[#allocation10 + $0x5c] sm:$0xf]
        %v4456 = vld [vmem:[#allocation10 + $0x60] sm:$0xf]
        %v4457 = vld [vmem:[#allocation10 + $0x64] sm:$0xf]
        %v4458 = vld [vmem:[#allocation10 + $0x68] sm:$0xf]
        %v4459 = vld [vmem:[#allocation10 + $0x6c] sm:$0xf]
        %v4460 = vld [vmem:[#allocation10 + $0x70] sm:$0xf]
        %v4461 = vld [vmem:[#allocation10 + $0x74] sm:$0xf]
        %v4462 = vld [vmem:[#allocation10 + $0x78] sm:$0xf]
        %v4463 = vld [vmem:[#allocation10 + $0x7c] sm:$0xf]
        %v4464 = vld [vmem:[#allocation10 + $0x80] sm:$0xf]
        %v4465 = vld [vmem:[#allocation10 + $0x84] sm:$0xf]
        %v4466 = vld [vmem:[#allocation10 + $0x88] sm:$0xf]
        %v4467 = vld [vmem:[#allocation10 + $0x8c] sm:$0xf]
        %v4468 = vld [vmem:[#allocation10 + $0x90] sm:$0xf]
        %v4469 = vld [vmem:[#allocation10 + $0x94] sm:$0xf]
        %v4470 = vld [vmem:[#allocation10 + $0x98] sm:$0xf]
        %v4471 = vld [vmem:[#allocation10 + $0x9c] sm:$0xf]
        %v4472 = vld [vmem:[#allocation10 + $0xa0] sm:$0xf]
        %v4473 = vld [vmem:[#allocation10 + $0xa4] sm:$0xf]
        %v4474 = vld [vmem:[#allocation10 + $0xa8] sm:$0xf]
        %v4475 = vld [vmem:[#allocation10 + $0xac] sm:$0xf]
        %v4476 = vld [vmem:[#allocation10 + $0xb0] sm:$0xf]
        %v4477 = vld [vmem:[#allocation10 + $0xb4] sm:$0xf]
        %v4478 = vld [vmem:[#allocation10 + $0xb8] sm:$0xf]
        %v4479 = vld [vmem:[#allocation10 + $0xbc] sm:$0xf]
        %s4480 = scalar_lea.vmem [#allocation10], 192
        %v4481 = vld [vmem:[%s4480] sm:$0xf]
        %v4482 = vld [vmem:[%s4480 + $0x4] sm:$0xf]
        %v4483 = vld [vmem:[%s4480 + $0x8] sm:$0xf]
        %v4484 = vld [vmem:[%s4480 + $0xc] sm:$0xf]
        %v4485 = vld [vmem:[%s4480 + $0x10] sm:$0xf]
        %v4486 = vld [vmem:[%s4480 + $0x14] sm:$0xf]
        %v4487 = vld [vmem:[%s4480 + $0x18] sm:$0xf]
        %v4488 = vld [vmem:[%s4480 + $0x1c] sm:$0xf]
        %v4489 = vld [vmem:[%s4480 + $0x20] sm:$0xf]
        %v4490 = vld [vmem:[%s4480 + $0x24] sm:$0xf]
        %v4491 = vld [vmem:[%s4480 + $0x28] sm:$0xf]
        %v4492 = vld [vmem:[%s4480 + $0x2c] sm:$0xf]
        %v4493 = vld [vmem:[%s4480 + $0x30] sm:$0xf]
        %v4494 = vld [vmem:[%s4480 + $0x34] sm:$0xf]
        %v4495 = vld [vmem:[%s4480 + $0x38] sm:$0xf]
        %v4496 = vld [vmem:[%s4480 + $0x3c] sm:$0xf]
        %v4497 = vld [vmem:[%s4480 + $0x40] sm:$0xf]
        %v4498 = vld [vmem:[%s4480 + $0x44] sm:$0xf]
        %v4499 = vld [vmem:[%s4480 + $0x48] sm:$0xf]
        %v4500 = vld [vmem:[%s4480 + $0x4c] sm:$0xf]
        %v4501 = vld [vmem:[%s4480 + $0x50] sm:$0xf]
        %v4502 = vld [vmem:[%s4480 + $0x54] sm:$0xf]
        %v4503 = vld [vmem:[%s4480 + $0x58] sm:$0xf]
        %v4504 = vld [vmem:[%s4480 + $0x5c] sm:$0xf]
        %v4505 = vld [vmem:[%s4480 + $0x60] sm:$0xf]
        %v4506 = vld [vmem:[%s4480 + $0x64] sm:$0xf]
        %v4507 = vld [vmem:[%s4480 + $0x68] sm:$0xf]
        %v4508 = vld [vmem:[%s4480 + $0x6c] sm:$0xf]
        %v4509 = vld [vmem:[%s4480 + $0x70] sm:$0xf]
        %v4510 = vld [vmem:[%s4480 + $0x74] sm:$0xf]
        %v4511 = vld [vmem:[%s4480 + $0x78] sm:$0xf]
        %v4512 = vld [vmem:[%s4480 + $0x7c] sm:$0xf]
        %v4513 = vld [vmem:[%s4480 + $0x80] sm:$0xf]
        %v4514 = vld [vmem:[%s4480 + $0x84] sm:$0xf]
        %v4515 = vld [vmem:[%s4480 + $0x88] sm:$0xf]
        %v4516 = vld [vmem:[%s4480 + $0x8c] sm:$0xf]
        %v4517 = vld [vmem:[%s4480 + $0x90] sm:$0xf]
        %v4518 = vld [vmem:[%s4480 + $0x94] sm:$0xf]
        %v4519 = vld [vmem:[%s4480 + $0x98] sm:$0xf]
        %v4520 = vld [vmem:[%s4480 + $0x9c] sm:$0xf]
        %v4521 = vld [vmem:[%s4480 + $0xa0] sm:$0xf]
        %v4522 = vld [vmem:[%s4480 + $0xa4] sm:$0xf]
        %v4523 = vld [vmem:[%s4480 + $0xa8] sm:$0xf]
        %v4524 = vld [vmem:[%s4480 + $0xac] sm:$0xf]
        %v4525 = vld [vmem:[%s4480 + $0xb0] sm:$0xf]
        %v4526 = vld [vmem:[%s4480 + $0xb4] sm:$0xf]
        %v4527 = vld [vmem:[%s4480 + $0xb8] sm:$0xf]
        %v4528 = vld [vmem:[%s4480 + $0xbc] sm:$0xf]
        %v4577 = vunpack.c.l.b16 %v4481
        %v4578 = vunpack.c.l.b16 %v4482
        %v4579 = vunpack.c.l.b16 %v4483
        %v4580 = vunpack.c.l.b16 %v4484
        %v4581 = vunpack.c.l.b16 %v4485
        %v4582 = vunpack.c.l.b16 %v4486
        %v4583 = vunpack.c.l.b16 %v4487
        %v4584 = vunpack.c.l.b16 %v4488
        %v4585 = vunpack.c.l.b16 %v4489
        %v4586 = vunpack.c.l.b16 %v4490
        %v4587 = vunpack.c.l.b16 %v4491
        %v4588 = vunpack.c.l.b16 %v4492
        %v4589 = vunpack.c.l.b16 %v4493
        %v4590 = vunpack.c.l.b16 %v4494
        %v4591 = vunpack.c.l.b16 %v4495
        %v4592 = vunpack.c.l.b16 %v4496
        %v4593 = vunpack.c.l.b16 %v4497
        %v4594 = vunpack.c.l.b16 %v4498
        %v4595 = vunpack.c.l.b16 %v4499
        %v4596 = vunpack.c.l.b16 %v4500
        %v4597 = vunpack.c.l.b16 %v4501
        %v4598 = vunpack.c.l.b16 %v4502
        %v4599 = vunpack.c.l.b16 %v4503
        %v4600 = vunpack.c.l.b16 %v4504
        %v4601 = vunpack.c.l.b16 %v4505
        %v4602 = vunpack.c.l.b16 %v4506
        %v4603 = vunpack.c.l.b16 %v4507
        %v4604 = vunpack.c.l.b16 %v4508
        %v4605 = vunpack.c.l.b16 %v4509
        %v4606 = vunpack.c.l.b16 %v4510
        %v4607 = vunpack.c.l.b16 %v4511
        %v4608 = vunpack.c.l.b16 %v4512
        %v4609 = vunpack.c.l.b16 %v4513
        %v4610 = vunpack.c.l.b16 %v4514
        %v4611 = vunpack.c.l.b16 %v4515
        %v4612 = vunpack.c.l.b16 %v4516
        %v4613 = vunpack.c.l.b16 %v4517
        %v4614 = vunpack.c.l.b16 %v4518
        %v4615 = vunpack.c.l.b16 %v4519
        %v4616 = vunpack.c.l.b16 %v4520
        %v4617 = vunpack.c.l.b16 %v4521
        %v4618 = vunpack.c.l.b16 %v4522
        %v4619 = vunpack.c.l.b16 %v4523
        %v4620 = vunpack.c.l.b16 %v4524
        %v4621 = vunpack.c.l.b16 %v4525
        %v4622 = vunpack.c.l.b16 %v4526
        %v4623 = vunpack.c.l.b16 %v4527
        %v4624 = vunpack.c.l.b16 %v4528
        %v4625 = vpack.c.b16 %v4578, %v4577
        %v4626 = vpack.c.b16 %v4580, %v4579
        %v4627 = vpack.c.b16 %v4582, %v4581
        %v4628 = vpack.c.b16 %v4584, %v4583
        %v4629 = vpack.c.b16 %v4586, %v4585
        %v4630 = vpack.c.b16 %v4588, %v4587
        %v4631 = vpack.c.b16 %v4590, %v4589
        %v4632 = vpack.c.b16 %v4592, %v4591
        %v4633 = vpack.c.b16 %v4594, %v4593
        %v4634 = vpack.c.b16 %v4596, %v4595
        %v4635 = vpack.c.b16 %v4598, %v4597
        %v4636 = vpack.c.b16 %v4600, %v4599
        %v4637 = vpack.c.b16 %v4602, %v4601
        %v4638 = vpack.c.b16 %v4604, %v4603
        %v4639 = vpack.c.b16 %v4606, %v4605
        %v4640 = vpack.c.b16 %v4608, %v4607
        %v4641 = vpack.c.b16 %v4610, %v4609
        %v4642 = vpack.c.b16 %v4612, %v4611
        %v4643 = vpack.c.b16 %v4614, %v4613
        %v4644 = vpack.c.b16 %v4616, %v4615
        %v4645 = vpack.c.b16 %v4618, %v4617
        %v4646 = vpack.c.b16 %v4620, %v4619
        %v4647 = vpack.c.b16 %v4622, %v4621
        %v4648 = vpack.c.b16 %v4624, %v4623
        %4673 = vmatprep.subr.bf16.mxu0 0
        %4674 = vmatpush1.bf16.msra.mxu0 %v4625
        %4675 = vmatprep.subr.bf16.mxu0 0
        %4676 = vmatpush1.bf16.msra.mxu0 %v4626
        %4677 = vmatprep.subr.bf16.mxu0 0
        %4678 = vmatpush1.bf16.msra.mxu0 %v4627
        %4679 = vmatprep.subr.bf16.mxu0 0
        %4680 = vmatpush1.bf16.msra.mxu0 %v4628
        %4681 = vmatprep.subr.bf16.mxu0 0
        %4682 = vmatpush1.bf16.msra.mxu0 %v4629
        %4683 = vmatprep.subr.bf16.mxu0 0
        %4684 = vmatpush1.bf16.msra.mxu0 %v4630
        %4685 = vmatprep.subr.bf16.mxu0 0
        %4686 = vmatpush1.bf16.msra.mxu0 %v4631
        %4687 = vmatprep.subr.bf16.mxu0 0
        %4688 = vmatpush1.bf16.msra.mxu0 %v4632
        %4689 = vmatprep.subr.bf16.mxu0 0
        %4690 = vmatpush1.bf16.msra.mxu0 %v4633
        %4691 = vmatprep.subr.bf16.mxu0 0
        %4692 = vmatpush1.bf16.msra.mxu0 %v4634
        %4693 = vmatprep.subr.bf16.mxu0 0
        %4694 = vmatpush1.bf16.msra.mxu0 %v4635
        %4695 = vmatprep.subr.bf16.mxu0 0
        %4696 = vmatpush1.bf16.msra.mxu0 %v4636
        %4697 = vmatprep.subr.bf16.mxu0 0
        %4698 = vmatpush1.bf16.msra.mxu0 %v4637
        %4699 = vmatprep.subr.bf16.mxu0 0
        %4700 = vmatpush1.bf16.msra.mxu0 %v4638
        %4701 = vmatprep.subr.bf16.mxu0 0
        %4702 = vmatpush1.bf16.msra.mxu0 %v4639
        %4703 = vmatprep.subr.bf16.mxu0 0
        %4704 = vmatpush1.bf16.msra.mxu0 %v4640
        %4705 = vmatprep.mubr.bf16.mxu0 %v3930
        %4706 = vmatmul.mubr.bf16.gmra.mrb[0].mxu0 %v4271
        %v4707 = vpop.f32.mrb[0].mxu0
        %v4708 = vadd.f32 0.0, %v4707
        %v4709 = vpop.f32.mrb[0].mxu0
        %v4710 = vpop.f32.mrb[0].mxu0
        %v4711 = vadd.f32 0.0, %v4710
        %v4712 = vpop.f32.mrb[0].mxu0
        %4713 = vmatprep.mubr.bf16.mxu0 %v3931
        %4714 = vmatmul.mubr.bf16.gmra.mrb[0].mxu0 %v3993
        %v4715 = vpop.f32.mrb[0].mxu0
        %v4716 = vadd.f32 0.0, %v4715
        %v4717 = vpop.f32.mrb[0].mxu0
        %v4718 = vpop.f32.mrb[0].mxu0
        %v4719 = vadd.f32 0.0, %v4718
        %v4720 = vpop.f32.mrb[0].mxu0
        %4721 = vmatprep.mubr.bf16.mxu0 %v3932
        %4722 = vmatmul.mubr.bf16.gmra.mrb[0].mxu0 %v4272
        %v4723 = vpop.f32.mrb[0].mxu0
        %v4724 = vadd.f32 0.0, %v4723
        %v4725 = vpop.f32.mrb[0].mxu0
        %v4726 = vpop.f32.mrb[0].mxu0
        %v4727 = vadd.f32 0.0, %v4726
        %v4728 = vpop.f32.mrb[0].mxu0
        %4729 = vmatprep.mubr.bf16.mxu0 %v3933
        %4730 = vmatmul.mubr.bf16.gmra.mrb[0].mxu0 %v4008
        %v4731 = vpop.f32.mrb[0].mxu0
        %v4732 = vadd.f32 0.0, %v4731
        %v4733 = vpop.f32.mrb[0].mxu0
        %v4734 = vpop.f32.mrb[0].mxu0
        %v4735 = vadd.f32 0.0, %v4734
        %v4736 = vpop.f32.mrb[0].mxu0
        %4737 = vmatprep.mubr.bf16.mxu0 %v3934
        %4738 = vmatmul.mubr.bf16.gmra.mrb[0].mxu0 %v4273
        %v4739 = vpop.f32.mrb[0].mxu0
        %v4740 = vadd.f32 0.0, %v4739
        %v4741 = vpop.f32.mrb[0].mxu0
        %v4742 = vpop.f32.mrb[0].mxu0
        %v4743 = vadd.f32 0.0, %v4742
        %v4744 = vpop.f32.mrb[0].mxu0
        %4745 = vmatprep.mubr.bf16.mxu0 %v3935
        %4746 = vmatmul.mubr.bf16.gmra.mrb[0].mxu0 %v4023
        %v4747 = vpop.f32.mrb[0].mxu0
        %v4748 = vadd.f32 0.0, %v4747
        %v4749 = vpop.f32.mrb[0].mxu0
        %v4750 = vpop.f32.mrb[0].mxu0
        %v4751 = vadd.f32 0.0, %v4750
        %v4752 = vpop.f32.mrb[0].mxu0
        %4753 = vmatprep.mubr.bf16.mxu0 %v3936
        %4754 = vmatmul.mubr.bf16.gmra.mrb[0].mxu0 %v4274
        %v4755 = vpop.f32.mrb[0].mxu0
        %v4756 = vadd.f32 0.0, %v4755
        %v4757 = vpop.f32.mrb[0].mxu0
        %v4758 = vpop.f32.mrb[0].mxu0
        %v4759 = vadd.f32 0.0, %v4758
        %v4760 = vpop.f32.mrb[0].mxu0
        %4761 = vmatprep.mubr.bf16.mxu0 %v3937
        %4762 = vmatmul.mubr.bf16.gmra.mrb[0].mxu0 %v4038
        %v4763 = vpop.f32.mrb[0].mxu0
        %v4764 = vadd.f32 0.0, %v4763
        %v4765 = vpop.f32.mrb[0].mxu0
        %v4766 = vpop.f32.mrb[0].mxu0
        %v4767 = vadd.f32 0.0, %v4766
        %v4768 = vpop.f32.mrb[0].mxu0
        %4769 = vmatprep.mubr.bf16.mxu0 %v3938
        %4770 = vmatmul.mubr.bf16.gmra.mrb[0].mxu0 %v4275
        %v4771 = vpop.f32.mrb[0].mxu0
        %v4772 = vadd.f32 0.0, %v4771
        %v4773 = vpop.f32.mrb[0].mxu0
        %v4774 = vpop.f32.mrb[0].mxu0
        %v4775 = vadd.f32 0.0, %v4774
        %v4776 = vpop.f32.mrb[0].mxu0
        %4777 = vmatprep.mubr.bf16.mxu0 %v3939
        %4778 = vmatmul.mubr.bf16.gmra.mrb[0].mxu0 %v4053
        %v4779 = vpop.f32.mrb[0].mxu0
        %v4780 = vadd.f32 0.0, %v4779
        %v4781 = vpop.f32.mrb[0].mxu0
        %v4782 = vpop.f32.mrb[0].mxu0
        %v4783 = vadd.f32 0.0, %v4782
        %v4784 = vpop.f32.mrb[0].mxu0
        %4785 = vmatprep.mubr.bf16.mxu0 %v3940
        %4786 = vmatmul.mubr.bf16.gmra.mrb[0].mxu0 %v4276
        %v4787 = vpop.f32.mrb[0].mxu0
        %v4788 = vadd.f32 0.0, %v4787
        %v4789 = vpop.f32.mrb[0].mxu0
        %v4790 = vpop.f32.mrb[0].mxu0
        %v4791 = vadd.f32 0.0, %v4790
        %v4792 = vpop.f32.mrb[0].mxu0
        %4793 = vmatprep.mubr.bf16.mxu0 %v3941
        %4794 = vmatmul.mubr.bf16.gmra.mrb[0].mxu0 %v4068
        %v4795 = vpop.f32.mrb[0].mxu0
        %v4796 = vadd.f32 0.0, %v4795
        %v4797 = vpop.f32.mrb[0].mxu0
        %v4798 = vpop.f32.mrb[0].mxu0
        %v4799 = vadd.f32 0.0, %v4798
        %v4800 = vpop.f32.mrb[0].mxu0
        %4801 = vmatprep.mubr.bf16.mxu0 %v3942
        %4802 = vmatmul.mubr.bf16.gmra.mrb[0].mxu0 %v4277
        %v4803 = vpop.f32.mrb[0].mxu0
        %v4804 = vadd.f32 0.0, %v4803
        %v4805 = vpop.f32.mrb[0].mxu0
        %v4806 = vpop.f32.mrb[0].mxu0
        %v4807 = vadd.f32 0.0, %v4806
        %v4808 = vpop.f32.mrb[0].mxu0
        %4809 = vmatprep.mubr.bf16.mxu0 %v3943
        %4810 = vmatmul.mubr.bf16.gmra.mrb[0].mxu0 %v4083
        %v4811 = vpop.f32.mrb[0].mxu0
        %v4812 = vadd.f32 0.0, %v4811
        %v4813 = vpop.f32.mrb[0].mxu0
        %v4814 = vpop.f32.mrb[0].mxu0
        %v4815 = vadd.f32 0.0, %v4814
        %v4816 = vpop.f32.mrb[0].mxu0
        %4817 = vmatprep.mubr.bf16.mxu0 %v3944
        %4818 = vmatmul.mubr.bf16.gmra.mrb[0].mxu0 %v4278
        %v4819 = vpop.f32.mrb[0].mxu0
        %v4820 = vadd.f32 0.0, %v4819
        %v4821 = vpop.f32.mrb[0].mxu0
        %v4822 = vpop.f32.mrb[0].mxu0
        %v4823 = vadd.f32 0.0, %v4822
        %v4824 = vpop.f32.mrb[0].mxu0
        %4825 = vmatprep.mubr.bf16.mxu0 %v3945
        %4826 = vmatmul.mubr.bf16.gmra.mrb[0].mxu0 %v4098
        %v4827 = vpop.f32.mrb[0].mxu0
        %v4828 = vadd.f32 0.0, %v4827
        %v4829 = vpop.f32.mrb[0].mxu0
        %v4830 = vpop.f32.mrb[0].mxu0
        %v4831 = vadd.f32 0.0, %v4830
        %v4832 = vpop.f32.mrb[0].mxu0
        %4833 = vmatprep.mubr.bf16.mxu0 %v3946
        %4834 = vmatmul.mubr.bf16.gmra.mrb[0].mxu0 %v4279
        %v4835 = vpop.f32.mrb[0].mxu0
        %v4836 = vadd.f32 0.0, %v4835
        %v4837 = vpop.f32.mrb[0].mxu0
        %v4838 = vpop.f32.mrb[0].mxu0
        %v4839 = vadd.f32 0.0, %v4838
        %v4840 = vpop.f32.mrb[0].mxu0
        %4841 = vmatprep.mubr.bf16.mxu0 %v3947
        %4842 = vmatmul.mubr.bf16.gmra.mrb[0].mxu0 %v4113
        %v4843 = vpop.f32.mrb[0].mxu0
        %v4844 = vadd.f32 0.0, %v4843
        %v4845 = vpop.f32.mrb[0].mxu0
        %v4846 = vpop.f32.mrb[0].mxu0
        %v4847 = vadd.f32 0.0, %v4846
        %v4848 = vpop.f32.mrb[0].mxu0
        %4849 = vmatprep.mubr.bf16.mxu0 %v3948
        %4850 = vmatmul.mubr.bf16.gmra.mrb[0].mxu0 %v4280
        %v4851 = vpop.f32.mrb[0].mxu0
        %v4852 = vadd.f32 0.0, %v4851
        %v4853 = vpop.f32.mrb[0].mxu0
        %v4854 = vpop.f32.mrb[0].mxu0
        %v4855 = vadd.f32 0.0, %v4854
        %v4856 = vpop.f32.mrb[0].mxu0
        %4857 = vmatprep.mubr.bf16.mxu0 %v3949
        %4858 = vmatmul.mubr.bf16.gmra.mrb[0].mxu0 %v4128
        %v4859 = vpop.f32.mrb[0].mxu0
        %v4860 = vadd.f32 0.0, %v4859
        %v4861 = vpop.f32.mrb[0].mxu0
        %v4862 = vpop.f32.mrb[0].mxu0
        %v4863 = vadd.f32 0.0, %v4862
        %v4864 = vpop.f32.mrb[0].mxu0
        %4865 = vmatprep.mubr.bf16.mxu0 %v3950
        %4866 = vmatmul.mubr.bf16.gmra.mrb[0].mxu0 %v4281
        %v4867 = vpop.f32.mrb[0].mxu0
        %v4868 = vadd.f32 0.0, %v4867
        %v4869 = vpop.f32.mrb[0].mxu0
        %v4870 = vpop.f32.mrb[0].mxu0
        %v4871 = vadd.f32 0.0, %v4870
        %v4872 = vpop.f32.mrb[0].mxu0
        %4873 = vmatprep.mubr.bf16.mxu0 %v3951
        %4874 = vmatmul.mubr.bf16.gmra.mrb[0].mxu0 %v4143
        %v4875 = vpop.f32.mrb[0].mxu0
        %v4876 = vadd.f32 0.0, %v4875
        %v4877 = vpop.f32.mrb[0].mxu0
        %v4878 = vpop.f32.mrb[0].mxu0
        %v4879 = vadd.f32 0.0, %v4878
        %v4880 = vpop.f32.mrb[0].mxu0
        %4881 = vmatprep.mubr.bf16.mxu0 %v3952
        %4882 = vmatmul.mubr.bf16.gmra.mrb[0].mxu0 %v4282
        %v4883 = vpop.f32.mrb[0].mxu0
        %v4884 = vadd.f32 0.0, %v4883
        %v4885 = vpop.f32.mrb[0].mxu0
        %v4886 = vpop.f32.mrb[0].mxu0
        %v4887 = vadd.f32 0.0, %v4886
        %v4888 = vpop.f32.mrb[0].mxu0
        %4889 = vmatprep.mubr.bf16.mxu0 %v3953
        %4890 = vmatmul.mubr.bf16.gmra.mrb[0].mxu0 %v4158
        %v4891 = vpop.f32.mrb[0].mxu0
        %v4892 = vadd.f32 0.0, %v4891
        %v4893 = vpop.f32.mrb[0].mxu0
        %v4894 = vpop.f32.mrb[0].mxu0
        %v4895 = vadd.f32 0.0, %v4894
        %v4896 = vpop.f32.mrb[0].mxu0
        %4897 = vmatprep.mubr.bf16.mxu0 %v3954
        %4898 = vmatmul.mubr.bf16.gmra.mrb[0].mxu0 %v4283
        %v4899 = vpop.f32.mrb[0].mxu0
        %v4900 = vadd.f32 0.0, %v4899
        %v4901 = vpop.f32.mrb[0].mxu0
        %v4902 = vpop.f32.mrb[0].mxu0
        %v4903 = vadd.f32 0.0, %v4902
        %v4904 = vpop.f32.mrb[0].mxu0
        %4905 = vmatprep.mubr.bf16.mxu0 %v3955
        %4906 = vmatmul.mubr.bf16.gmra.mrb[0].mxu0 %v4173
        %v4907 = vpop.f32.mrb[0].mxu0
        %v4908 = vadd.f32 0.0, %v4907
        %v4909 = vpop.f32.mrb[0].mxu0
        %v4910 = vpop.f32.mrb[0].mxu0
        %v4911 = vadd.f32 0.0, %v4910
        %v4912 = vpop.f32.mrb[0].mxu0
        %4913 = vmatprep.mubr.bf16.mxu0 %v3956
        %4914 = vmatmul.mubr.bf16.gmra.mrb[0].mxu0 %v4284
        %v4915 = vpop.f32.mrb[0].mxu0
        %v4916 = vadd.f32 0.0, %v4915
        %v4917 = vpop.f32.mrb[0].mxu0
        %v4918 = vpop.f32.mrb[0].mxu0
        %v4919 = vadd.f32 0.0, %v4918
        %v4920 = vpop.f32.mrb[0].mxu0
        %4921 = vmatprep.mubr.bf16.mxu0 %v3957
        %4922 = vmatmul.mubr.bf16.gmra.mrb[0].mxu0 %v4188
        %v4923 = vpop.f32.mrb[0].mxu0
        %v4924 = vadd.f32 0.0, %v4923
        %v4925 = vpop.f32.mrb[0].mxu0
        %v4926 = vpop.f32.mrb[0].mxu0
        %v4927 = vadd.f32 0.0, %v4926
        %v4928 = vpop.f32.mrb[0].mxu0
        %4929 = vmatprep.mubr.bf16.mxu0 %v3958
        %4930 = vmatmul.mubr.bf16.gmra.mrb[0].mxu0 %v4285
        %v4931 = vpop.f32.mrb[0].mxu0
        %v4932 = vadd.f32 0.0, %v4931
        %v4933 = vpop.f32.mrb[0].mxu0
        %v4934 = vpop.f32.mrb[0].mxu0
        %v4935 = vadd.f32 0.0, %v4934
        %v4936 = vpop.f32.mrb[0].mxu0
        %4937 = vmatprep.mubr.bf16.mxu0 %v3959
        %4938 = vmatmul.mubr.bf16.gmra.mrb[0].mxu0 %v4203
        %v4939 = vpop.f32.mrb[0].mxu0
        %v4940 = vadd.f32 0.0, %v4939
        %v4941 = vpop.f32.mrb[0].mxu0
        %v4942 = vpop.f32.mrb[0].mxu0
        %v4943 = vadd.f32 0.0, %v4942
        %v4944 = vpop.f32.mrb[0].mxu0
        %4945 = vmatprep.mubr.bf16.mxu0 %v3960
        %4946 = vmatmul.mubr.bf16.gmra.mrb[0].mxu0 %v4286
        %v4947 = vpop.f32.mrb[0].mxu0
        %v4948 = vadd.f32 0.0, %v4947
        %v4949 = vpop.f32.mrb[0].mxu0
        %v4950 = vpop.f32.mrb[0].mxu0
        %v4951 = vadd.f32 0.0, %v4950
        %v4952 = vpop.f32.mrb[0].mxu0
        %4953 = vmatprep.mubr.bf16.mxu0 %v3961
        %4954 = vmatmul.mubr.bf16.gmra.mrb[0].mxu0 %v4218
        %v4955 = vpop.f32.mrb[0].mxu0
        %v4956 = vadd.f32 0.0, %v4955
        %v4957 = vpop.f32.mrb[0].mxu0
        %v4958 = vpop.f32.mrb[0].mxu0
        %v4959 = vadd.f32 0.0, %v4958
        %v4960 = vpop.f32.mrb[0].mxu0
        %4961 = vdwg.mxu0
        %4962 = vmatprep.subr.bf16.mxu0 0
        %4963 = vmatpush1.bf16.msra.mxu0 %v4641
        %4964 = vmatprep.subr.bf16.mxu0 0
        %4965 = vmatpush1.bf16.msra.mxu0 %v4642
        %4966 = vmatprep.subr.bf16.mxu0 0
        %4967 = vmatpush1.bf16.msra.mxu0 %v4643
        %4968 = vmatprep.subr.bf16.mxu0 0
        %4969 = vmatpush1.bf16.msra.mxu0 %v4644
        %4970 = vmatprep.subr.bf16.mxu0 0
        %4971 = vmatpush1.bf16.msra.mxu0 %v4645
        %4972 = vmatprep.subr.bf16.mxu0 0
        %4973 = vmatpush1.bf16.msra.mxu0 %v4646
        %4974 = vmatprep.subr.bf16.mxu0 0
        %4975 = vmatpush1.bf16.msra.mxu0 %v4647
        %4976 = vmatprep.subr.bf16.mxu0 0
        %4977 = vmatpush1.bf16.msra.mxu0 %v4648
        %4978 = vmatprep.subr.bf16.mxu0 0
        %4979 = vmatpush1.bf16.msra.mxu0 0
        %4980 = vmatprep.subr.bf16.mxu0 0
        %4981 = vmatpush1.bf16.msra.mxu0 0
        %4982 = vmatprep.subr.bf16.mxu0 0
        %4983 = vmatpush1.bf16.msra.mxu0 0
        %4984 = vmatprep.subr.bf16.mxu0 0
        %4985 = vmatpush1.bf16.msra.mxu0 0
        %4986 = vmatprep.subr.bf16.mxu0 0
        %4987 = vmatpush1.bf16.msra.mxu0 0
        %4988 = vmatprep.subr.bf16.mxu0 0
        %4989 = vmatpush1.bf16.msra.mxu0 0
        %4990 = vmatprep.subr.bf16.mxu0 0
        %4991 = vmatpush1.bf16.msra.mxu0 0
        %4992 = vmatprep.subr.bf16.mxu0 0
        %4993 = vmatpush1.bf16.msra.mxu0 0
        %4994 = vmatprep.mubr.bf16.mxu0 0
        %4995 = vmatmul.mubr.bf16.gmra.mrb[0].mxu0 %v4296
        %v4996 = vpop.f32.mrb[0].mxu0
        %v4997 = vadd.f32 %v4708, %v4996
        %v4998 = vpop.f32.mrb[0].mxu0
        %v4999 = vpop.f32.mrb[0].mxu0
        %v5000 = vadd.f32 %v4711, %v4999
        %v5001 = vpop.f32.mrb[0].mxu0
        %5002 = vmatprep.mubr.bf16.mxu0 0
        %5003 = vmatmul.mubr.bf16.gmra.mrb[0].mxu0 %v4415
        %v5004 = vpop.f32.mrb[0].mxu0
        %v5005 = vadd.f32 %v4716, %v5004
        %v5006 = vpop.f32.mrb[0].mxu0
        %v5007 = vpop.f32.mrb[0].mxu0
        %v5008 = vadd.f32 %v4719, %v5007
        %v5009 = vpop.f32.mrb[0].mxu0
        %5010 = vmatprep.mubr.bf16.mxu0 0
        %5011 = vmatmul.mubr.bf16.gmra.mrb[0].mxu0 %v4301
        %v5012 = vpop.f32.mrb[0].mxu0
        %v5013 = vadd.f32 %v4724, %v5012
        %v5014 = vpop.f32.mrb[0].mxu0
        %v5015 = vpop.f32.mrb[0].mxu0
        %v5016 = vadd.f32 %v4727, %v5015
        %v5017 = vpop.f32.mrb[0].mxu0
        %5018 = vmatprep.mubr.bf16.mxu0 0
        %5019 = vmatmul.mubr.bf16.gmra.mrb[0].mxu0 %v4416
        %v5020 = vpop.f32.mrb[0].mxu0
        %v5021 = vadd.f32 %v4732, %v5020
        %v5022 = vpop.f32.mrb[0].mxu0
        %v5023 = vpop.f32.mrb[0].mxu0
        %v5024 = vadd.f32 %v4735, %v5023
        %v5025 = vpop.f32.mrb[0].mxu0
        %5026 = vmatprep.mubr.bf16.mxu0 0
        %5027 = vmatmul.mubr.bf16.gmra.mrb[0].mxu0 %v4306
        %v5028 = vpop.f32.mrb[0].mxu0
        %v5029 = vadd.f32 %v4740, %v5028
        %v5030 = vpop.f32.mrb[0].mxu0
        %v5031 = vpop.f32.mrb[0].mxu0
        %v5032 = vadd.f32 %v4743, %v5031
        %v5033 = vpop.f32.mrb[0].mxu0
        %5034 = vmatprep.mubr.bf16.mxu0 0
        %5035 = vmatmul.mubr.bf16.gmra.mrb[0].mxu0 %v4417
        %v5036 = vpop.f32.mrb[0].mxu0
        %v5037 = vadd.f32 %v4748, %v5036
        %v5038 = vpop.f32.mrb[0].mxu0
        %v5039 = vpop.f32.mrb[0].mxu0
        %v5040 = vadd.f32 %v4751, %v5039
        %v5041 = vpop.f32.mrb[0].mxu0
        %5042 = vmatprep.mubr.bf16.mxu0 0
        %5043 = vmatmul.mubr.bf16.gmra.mrb[0].mxu0 %v4311
        %v5044 = vpop.f32.mrb[0].mxu0
        %v5045 = vadd.f32 %v4756, %v5044
        %v5046 = vpop.f32.mrb[0].mxu0
        %v5047 = vpop.f32.mrb[0].mxu0
        %v5048 = vadd.f32 %v4759, %v5047
        %v5049 = vpop.f32.mrb[0].mxu0
        %5050 = vmatprep.mubr.bf16.mxu0 0
        %5051 = vmatmul.mubr.bf16.gmra.mrb[0].mxu0 %v4418
        %v5052 = vpop.f32.mrb[0].mxu0
        %v5053 = vadd.f32 %v4764, %v5052
        %v5054 = vpop.f32.mrb[0].mxu0
        %v5055 = vpop.f32.mrb[0].mxu0
        %v5056 = vadd.f32 %v4767, %v5055
        %v5057 = vpop.f32.mrb[0].mxu0
        %5058 = vmatprep.mubr.bf16.mxu0 0
        %5059 = vmatmul.mubr.bf16.gmra.mrb[0].mxu0 %v4316
        %v5060 = vpop.f32.mrb[0].mxu0
        %v5061 = vadd.f32 %v4772, %v5060
        %v5062 = vpop.f32.mrb[0].mxu0
        %v5063 = vpop.f32.mrb[0].mxu0
        %v5064 = vadd.f32 %v4775, %v5063
        %v5065 = vpop.f32.mrb[0].mxu0
        %5066 = vmatprep.mubr.bf16.mxu0 0
        %5067 = vmatmul.mubr.bf16.gmra.mrb[0].mxu0 %v4419
        %v5068 = vpop.f32.mrb[0].mxu0
        %v5069 = vadd.f32 %v4780, %v5068
        %v5070 = vpop.f32.mrb[0].mxu0
        %v5071 = vpop.f32.mrb[0].mxu0
        %v5072 = vadd.f32 %v4783, %v5071
        %v5073 = vpop.f32.mrb[0].mxu0
        %5074 = vmatprep.mubr.bf16.mxu0 0
        %5075 = vmatmul.mubr.bf16.gmra.mrb[0].mxu0 %v4321
        %v5076 = vpop.f32.mrb[0].mxu0
        %v5077 = vadd.f32 %v4788, %v5076
        %v5078 = vpop.f32.mrb[0].mxu0
        %v5079 = vpop.f32.mrb[0].mxu0
        %v5080 = vadd.f32 %v4791, %v5079
        %v5081 = vpop.f32.mrb[0].mxu0
        %5082 = vmatprep.mubr.bf16.mxu0 0
        %5083 = vmatmul.mubr.bf16.gmra.mrb[0].mxu0 %v4420
        %v5084 = vpop.f32.mrb[0].mxu0
        %v5085 = vadd.f32 %v4796, %v5084
        %v5086 = vpop.f32.mrb[0].mxu0
        %v5087 = vpop.f32.mrb[0].mxu0
        %v5088 = vadd.f32 %v4799, %v5087
        %v5089 = vpop.f32.mrb[0].mxu0
        %5090 = vmatprep.mubr.bf16.mxu0 0
        %5091 = vmatmul.mubr.bf16.gmra.mrb[0].mxu0 %v4326
        %v5092 = vpop.f32.mrb[0].mxu0
        %v5093 = vadd.f32 %v4804, %v5092
        %v5094 = vpop.f32.mrb[0].mxu0
        %v5095 = vpop.f32.mrb[0].mxu0
        %v5096 = vadd.f32 %v4807, %v5095
        %v5097 = vpop.f32.mrb[0].mxu0
        %5098 = vmatprep.mubr.bf16.mxu0 0
        %5099 = vmatmul.mubr.bf16.gmra.mrb[0].mxu0 %v4421
        %v5100 = vpop.f32.mrb[0].mxu0
        %v5101 = vadd.f32 %v4812, %v5100
        %v5102 = vpop.f32.mrb[0].mxu0
        %v5103 = vpop.f32.mrb[0].mxu0
        %v5104 = vadd.f32 %v4815, %v5103
        %v5105 = vpop.f32.mrb[0].mxu0
        %5106 = vmatprep.mubr.bf16.mxu0 0
        %5107 = vmatmul.mubr.bf16.gmra.mrb[0].mxu0 %v4331
        %v5108 = vpop.f32.mrb[0].mxu0
        %v5109 = vadd.f32 %v4820, %v5108
        %v5110 = vpop.f32.mrb[0].mxu0
        %v5111 = vpop.f32.mrb[0].mxu0
        %v5112 = vadd.f32 %v4823, %v5111
        %v5113 = vpop.f32.mrb[0].mxu0
        %5114 = vmatprep.mubr.bf16.mxu0 0
        %5115 = vmatmul.mubr.bf16.gmra.mrb[0].mxu0 %v4422
        %v5116 = vpop.f32.mrb[0].mxu0
        %v5117 = vadd.f32 %v4828, %v5116
        %v5118 = vpop.f32.mrb[0].mxu0
        %v5119 = vpop.f32.mrb[0].mxu0
        %v5120 = vadd.f32 %v4831, %v5119
        %v5121 = vpop.f32.mrb[0].mxu0
        %5122 = vmatprep.mubr.bf16.mxu0 0
        %5123 = vmatmul.mubr.bf16.gmra.mrb[0].mxu0 %v4336
        %v5124 = vpop.f32.mrb[0].mxu0
        %v5125 = vadd.f32 %v4836, %v5124
        %v5126 = vpop.f32.mrb[0].mxu0
        %v5127 = vpop.f32.mrb[0].mxu0
        %v5128 = vadd.f32 %v4839, %v5127
        %v5129 = vpop.f32.mrb[0].mxu0
        %5130 = vmatprep.mubr.bf16.mxu0 0
        %5131 = vmatmul.mubr.bf16.gmra.mrb[0].mxu0 %v4423
        %v5132 = vpop.f32.mrb[0].mxu0
        %v5133 = vadd.f32 %v4844, %v5132
        %v5134 = vpop.f32.mrb[0].mxu0
        %v5135 = vpop.f32.mrb[0].mxu0
        %v5136 = vadd.f32 %v4847, %v5135
        %v5137 = vpop.f32.mrb[0].mxu0
        %5138 = vmatprep.mubr.bf16.mxu0 0
        %5139 = vmatmul.mubr.bf16.gmra.mrb[0].mxu0 %v4341
        %v5140 = vpop.f32.mrb[0].mxu0
        %v5141 = vadd.f32 %v4852, %v5140
        %v5142 = vpop.f32.mrb[0].mxu0
        %v5143 = vpop.f32.mrb[0].mxu0
        %v5144 = vadd.f32 %v4855, %v5143
        %v5145 = vpop.f32.mrb[0].mxu0
        %5146 = vmatprep.mubr.bf16.mxu0 0
        %5147 = vmatmul.mubr.bf16.gmra.mrb[0].mxu0 %v4424
        %v5148 = vpop.f32.mrb[0].mxu0
        %v5149 = vadd.f32 %v4860, %v5148
        %v5150 = vpop.f32.mrb[0].mxu0
        %v5151 = vpop.f32.mrb[0].mxu0
        %v5152 = vadd.f32 %v4863, %v5151
        %v5153 = vpop.f32.mrb[0].mxu0
        %5154 = vmatprep.mubr.bf16.mxu0 0
        %5155 = vmatmul.mubr.bf16.gmra.mrb[0].mxu0 %v4346
        %v5156 = vpop.f32.mrb[0].mxu0
        %v5157 = vadd.f32 %v4868, %v5156
        %v5158 = vpop.f32.mrb[0].mxu0
        %v5159 = vpop.f32.mrb[0].mxu0
        %v5160 = vadd.f32 %v4871, %v5159
        %v5161 = vpop.f32.mrb[0].mxu0
        %5162 = vmatprep.mubr.bf16.mxu0 0
        %5163 = vmatmul.mubr.bf16.gmra.mrb[0].mxu0 %v4425
        %v5164 = vpop.f32.mrb[0].mxu0
        %v5165 = vadd.f32 %v4876, %v5164
        %v5166 = vpop.f32.mrb[0].mxu0
        %v5167 = vpop.f32.mrb[0].mxu0
        %v5168 = vadd.f32 %v4879, %v5167
        %v5169 = vpop.f32.mrb[0].mxu0
        %5170 = vmatprep.mubr.bf16.mxu0 0
        %5171 = vmatmul.mubr.bf16.gmra.mrb[0].mxu0 %v4351
        %v5172 = vpop.f32.mrb[0].mxu0
        %v5173 = vadd.f32 %v4884, %v5172
        %v5174 = vpop.f32.mrb[0].mxu0
        %v5175 = vpop.f32.mrb[0].mxu0
        %v5176 = vadd.f32 %v4887, %v5175
        %v5177 = vpop.f32.mrb[0].mxu0
        %5178 = vmatprep.mubr.bf16.mxu0 0
        %5179 = vmatmul.mubr.bf16.gmra.mrb[0].mxu0 %v4426
        %v5180 = vpop.f32.mrb[0].mxu0
        %v5181 = vadd.f32 %v4892, %v5180
        %v5182 = vpop.f32.mrb[0].mxu0
        %v5183 = vpop.f32.mrb[0].mxu0
        %v5184 = vadd.f32 %v4895, %v5183
        %v5185 = vpop.f32.mrb[0].mxu0
        %5186 = vmatprep.mubr.bf16.mxu0 0
        %5187 = vmatmul.mubr.bf16.gmra.mrb[0].mxu0 %v4356
        %v5188 = vpop.f32.mrb[0].mxu0
        %v5189 = vadd.f32 %v4900, %v5188
        %v5190 = vpop.f32.mrb[0].mxu0
        %v5191 = vpop.f32.mrb[0].mxu0
        %v5192 = vadd.f32 %v4903, %v5191
        %v5193 = vpop.f32.mrb[0].mxu0
        %5194 = vmatprep.mubr.bf16.mxu0 0
        %5195 = vmatmul.mubr.bf16.gmra.mrb[0].mxu0 %v4427
        %v5196 = vpop.f32.mrb[0].mxu0
        %v5197 = vadd.f32 %v4908, %v5196
        %v5198 = vpop.f32.mrb[0].mxu0
        %v5199 = vpop.f32.mrb[0].mxu0
        %v5200 = vadd.f32 %v4911, %v5199
        %v5201 = vpop.f32.mrb[0].mxu0
        %5202 = vmatprep.mubr.bf16.mxu0 0
        %5203 = vmatmul.mubr.bf16.gmra.mrb[0].mxu0 %v4361
        %v5204 = vpop.f32.mrb[0].mxu0
        %v5205 = vadd.f32 %v4916, %v5204
        %v5206 = vpop.f32.mrb[0].mxu0
        %v5207 = vpop.f32.mrb[0].mxu0
        %v5208 = vadd.f32 %v4919, %v5207
        %v5209 = vpop.f32.mrb[0].mxu0
        %5210 = vmatprep.mubr.bf16.mxu0 0
        %5211 = vmatmul.mubr.bf16.gmra.mrb[0].mxu0 %v4428
        %v5212 = vpop.f32.mrb[0].mxu0
        %v5213 = vadd.f32 %v4924, %v5212
        %v5214 = vpop.f32.mrb[0].mxu0
        %v5215 = vpop.f32.mrb[0].mxu0
        %v5216 = vadd.f32 %v4927, %v5215
        %v5217 = vpop.f32.mrb[0].mxu0
        %5218 = vmatprep.mubr.bf16.mxu0 0
        %5219 = vmatmul.mubr.bf16.gmra.mrb[0].mxu0 %v4366
        %v5220 = vpop.f32.mrb[0].mxu0
        %v5221 = vadd.f32 %v4932, %v5220
        %v5222 = vpop.f32.mrb[0].mxu0
        %v5223 = vpop.f32.mrb[0].mxu0
        %v5224 = vadd.f32 %v4935, %v5223
        %v5225 = vpop.f32.mrb[0].mxu0
        %5226 = vmatprep.mubr.bf16.mxu0 0
        %5227 = vmatmul.mubr.bf16.gmra.mrb[0].mxu0 %v4429
        %v5228 = vpop.f32.mrb[0].mxu0
        %v5229 = vadd.f32 %v4940, %v5228
        %v5230 = vpop.f32.mrb[0].mxu0
        %v5231 = vpop.f32.mrb[0].mxu0
        %v5232 = vadd.f32 %v4943, %v5231
        %v5233 = vpop.f32.mrb[0].mxu0
        %5234 = vmatprep.mubr.bf16.mxu0 0
        %5235 = vmatmul.mubr.bf16.gmra.mrb[0].mxu0 %v4371
        %v5236 = vpop.f32.mrb[0].mxu0
        %v5237 = vadd.f32 %v4948, %v5236
        %v5238 = vpop.f32.mrb[0].mxu0
        %v5239 = vpop.f32.mrb[0].mxu0
        %v5240 = vadd.f32 %v4951, %v5239
        %v5241 = vpop.f32.mrb[0].mxu0
        %5242 = vmatprep.mubr.bf16.mxu0 0
        %5243 = vmatmul.mubr.bf16.gmra.mrb[0].mxu0 %v4430
        %v5244 = vpop.f32.mrb[0].mxu0
        %v5245 = vadd.f32 %v4956, %v5244
        %v5246 = vpop.f32.mrb[0].mxu0
        %v5247 = vpop.f32.mrb[0].mxu0
        %v5248 = vadd.f32 %v4959, %v5247
        %v5249 = vpop.f32.mrb[0].mxu0
        %5250 = vdwg.mxu0
        %v5299 = vunpack.c.l.b16 %v4432
        %v5300 = vunpack.c.l.b16 %v4433
        %v5301 = vunpack.c.l.b16 %v4434
        %v5302 = vunpack.c.l.b16 %v4435
        %v5303 = vunpack.c.l.b16 %v4436
        %v5304 = vunpack.c.l.b16 %v4437
        %v5305 = vunpack.c.l.b16 %v4438
        %v5306 = vunpack.c.l.b16 %v4439
        %v5307 = vunpack.c.l.b16 %v4440
        %v5308 = vunpack.c.l.b16 %v4441
        %v5309 = vunpack.c.l.b16 %v4442
        %v5310 = vunpack.c.l.b16 %v4443
        %v5311 = vunpack.c.l.b16 %v4444
        %v5312 = vunpack.c.l.b16 %v4445
        %v5313 = vunpack.c.l.b16 %v4446
        %v5314 = vunpack.c.l.b16 %v4447
        %v5315 = vunpack.c.l.b16 %v4448
        %v5316 = vunpack.c.l.b16 %v4449
        %v5317 = vunpack.c.l.b16 %v4450
        %v5318 = vunpack.c.l.b16 %v4451
        %v5319 = vunpack.c.l.b16 %v4452
        %v5320 = vunpack.c.l.b16 %v4453
        %v5321 = vunpack.c.l.b16 %v4454
        %v5322 = vunpack.c.l.b16 %v4455
        %v5323 = vunpack.c.l.b16 %v4456
        %v5324 = vunpack.c.l.b16 %v4457
        %v5325 = vunpack.c.l.b16 %v4458
        %v5326 = vunpack.c.l.b16 %v4459
        %v5327 = vunpack.c.l.b16 %v4460
        %v5328 = vunpack.c.l.b16 %v4461
        %v5329 = vunpack.c.l.b16 %v4462
        %v5330 = vunpack.c.l.b16 %v4463
        %v5331 = vunpack.c.l.b16 %v4464
        %v5332 = vunpack.c.l.b16 %v4465
        %v5333 = vunpack.c.l.b16 %v4466
        %v5334 = vunpack.c.l.b16 %v4467
        %v5335 = vunpack.c.l.b16 %v4468
        %v5336 = vunpack.c.l.b16 %v4469
        %v5337 = vunpack.c.l.b16 %v4470
        %v5338 = vunpack.c.l.b16 %v4471
        %v5339 = vunpack.c.l.b16 %v4472
        %v5340 = vunpack.c.l.b16 %v4473
        %v5341 = vunpack.c.l.b16 %v4474
        %v5342 = vunpack.c.l.b16 %v4475
        %v5343 = vunpack.c.l.b16 %v4476
        %v5344 = vunpack.c.l.b16 %v4477
        %v5345 = vunpack.c.l.b16 %v4478
        %v5346 = vunpack.c.l.b16 %v4479
        %v5347 = vpack.c.b16 %v5300, %v5299
        %v5348 = vpack.c.b16 %v5302, %v5301
        %v5349 = vpack.c.b16 %v5304, %v5303
        %v5350 = vpack.c.b16 %v5306, %v5305
        %v5351 = vpack.c.b16 %v5308, %v5307
        %v5352 = vpack.c.b16 %v5310, %v5309
        %v5353 = vpack.c.b16 %v5312, %v5311
        %v5354 = vpack.c.b16 %v5314, %v5313
        %v5355 = vpack.c.b16 %v5316, %v5315
        %v5356 = vpack.c.b16 %v5318, %v5317
        %v5357 = vpack.c.b16 %v5320, %v5319
        %v5358 = vpack.c.b16 %v5322, %v5321
        %v5359 = vpack.c.b16 %v5324, %v5323
        %v5360 = vpack.c.b16 %v5326, %v5325
        %v5361 = vpack.c.b16 %v5328, %v5327
        %v5362 = vpack.c.b16 %v5330, %v5329
        %v5363 = vpack.c.b16 %v5332, %v5331
        %v5364 = vpack.c.b16 %v5334, %v5333
        %v5365 = vpack.c.b16 %v5336, %v5335
        %v5366 = vpack.c.b16 %v5338, %v5337
        %v5367 = vpack.c.b16 %v5340, %v5339
        %v5368 = vpack.c.b16 %v5342, %v5341
        %v5369 = vpack.c.b16 %v5344, %v5343
        %v5370 = vpack.c.b16 %v5346, %v5345
        %5395 = vmatprep.subr.bf16.mxu0 0
        %5396 = vmatpush1.bf16.msra.mxu0 %v5347
        %5397 = vmatprep.subr.bf16.mxu0 0
        %5398 = vmatpush1.bf16.msra.mxu0 %v5348
        %5399 = vmatprep.subr.bf16.mxu0 0
        %5400 = vmatpush1.bf16.msra.mxu0 %v5349
        %5401 = vmatprep.subr.bf16.mxu0 0
        %5402 = vmatpush1.bf16.msra.mxu0 %v5350
        %5403 = vmatprep.subr.bf16.mxu0 0
        %5404 = vmatpush1.bf16.msra.mxu0 %v5351
        %5405 = vmatprep.subr.bf16.mxu0 0
        %5406 = vmatpush1.bf16.msra.mxu0 %v5352
        %5407 = vmatprep.subr.bf16.mxu0 0
        %5408 = vmatpush1.bf16.msra.mxu0 %v5353
        %5409 = vmatprep.subr.bf16.mxu0 0
        %5410 = vmatpush1.bf16.msra.mxu0 %v5354
        %5411 = vmatprep.subr.bf16.mxu0 0
        %5412 = vmatpush1.bf16.msra.mxu0 %v5355
        %5413 = vmatprep.subr.bf16.mxu0 0
        %5414 = vmatpush1.bf16.msra.mxu0 %v5356
        %5415 = vmatprep.subr.bf16.mxu0 0
        %5416 = vmatpush1.bf16.msra.mxu0 %v5357
        %5417 = vmatprep.subr.bf16.mxu0 0
        %5418 = vmatpush1.bf16.msra.mxu0 %v5358
        %5419 = vmatprep.subr.bf16.mxu0 0
        %5420 = vmatpush1.bf16.msra.mxu0 %v5359
        %5421 = vmatprep.subr.bf16.mxu0 0
        %5422 = vmatpush1.bf16.msra.mxu0 %v5360
        %5423 = vmatprep.subr.bf16.mxu0 0
        %5424 = vmatpush1.bf16.msra.mxu0 %v5361
        %5425 = vmatprep.subr.bf16.mxu0 0
        %5426 = vmatpush1.bf16.msra.mxu0 %v5362
        %5427 = vmatprep.mubr.bf16.mxu0 %v3928
        %5428 = vmatmul.mubr.bf16.gmra.mrb[0].mxu0 %v4270
        %v5429 = vpop.f32.mrb[0].mxu0
        %v5430 = vadd.f32 %v4997, %v5429
        %v5431 = vpop.f32.mrb[0].mxu0
        %v5432 = vpop.f32.mrb[0].mxu0
        %v5433 = vadd.f32 %v5000, %v5432
        %v5434 = vpop.f32.mrb[0].mxu0
        %5435 = vmatprep.mubr.bf16.mxu0 %v3929
        %5436 = vmatmul.mubr.bf16.gmra.mrb[0].mxu0 %v3978
        %v5437 = vpop.f32.mrb[0].mxu0
        %v5438 = vadd.f32 %v5005, %v5437
        %v5439 = vpop.f32.mrb[0].mxu0
        %v5440 = vpop.f32.mrb[0].mxu0
        %v5441 = vadd.f32 %v5008, %v5440
        %v5442 = vpop.f32.mrb[0].mxu0
        %5443 = vmatprep.mubr.bf16.mxu0 %v3930
        %5444 = vmatmul.mubr.bf16.gmra.mrb[0].mxu0 %v4271
        %v5445 = vpop.f32.mrb[0].mxu0
        %v5446 = vadd.f32 %v5013, %v5445
        %v5447 = vpop.f32.mrb[0].mxu0
        %v5448 = vpop.f32.mrb[0].mxu0
        %v5449 = vadd.f32 %v5016, %v5448
        %v5450 = vpop.f32.mrb[0].mxu0
        %5451 = vmatprep.mubr.bf16.mxu0 %v3931
        %5452 = vmatmul.mubr.bf16.gmra.mrb[0].mxu0 %v3993
        %v5453 = vpop.f32.mrb[0].mxu0
        %v5454 = vadd.f32 %v5021, %v5453
        %v5455 = vpop.f32.mrb[0].mxu0
        %v5456 = vpop.f32.mrb[0].mxu0
        %v5457 = vadd.f32 %v5024, %v5456
        %v5458 = vpop.f32.mrb[0].mxu0
        %5459 = vmatprep.mubr.bf16.mxu0 %v3932
        %5460 = vmatmul.mubr.bf16.gmra.mrb[0].mxu0 %v4272
        %v5461 = vpop.f32.mrb[0].mxu0
        %v5462 = vadd.f32 %v5029, %v5461
        %v5463 = vpop.f32.mrb[0].mxu0
        %v5464 = vpop.f32.mrb[0].mxu0
        %v5465 = vadd.f32 %v5032, %v5464
        %v5466 = vpop.f32.mrb[0].mxu0
        %5467 = vmatprep.mubr.bf16.mxu0 %v3933
        %5468 = vmatmul.mubr.bf16.gmra.mrb[0].mxu0 %v4008
        %v5469 = vpop.f32.mrb[0].mxu0
        %v5470 = vadd.f32 %v5037, %v5469
        %v5471 = vpop.f32.mrb[0].mxu0
        %v5472 = vpop.f32.mrb[0].mxu0
        %v5473 = vadd.f32 %v5040, %v5472
        %v5474 = vpop.f32.mrb[0].mxu0
        %5475 = vmatprep.mubr.bf16.mxu0 %v3934
        %5476 = vmatmul.mubr.bf16.gmra.mrb[0].mxu0 %v4273
        %v5477 = vpop.f32.mrb[0].mxu0
        %v5478 = vadd.f32 %v5045, %v5477
        %v5479 = vpop.f32.mrb[0].mxu0
        %v5480 = vpop.f32.mrb[0].mxu0
        %v5481 = vadd.f32 %v5048, %v5480
        %v5482 = vpop.f32.mrb[0].mxu0
        %5483 = vmatprep.mubr.bf16.mxu0 %v3935
        %5484 = vmatmul.mubr.bf16.gmra.mrb[0].mxu0 %v4023
        %v5485 = vpop.f32.mrb[0].mxu0
        %v5486 = vadd.f32 %v5053, %v5485
        %v5487 = vpop.f32.mrb[0].mxu0
        %v5488 = vpop.f32.mrb[0].mxu0
        %v5489 = vadd.f32 %v5056, %v5488
        %v5490 = vpop.f32.mrb[0].mxu0
        %5491 = vmatprep.mubr.bf16.mxu0 %v3936
        %5492 = vmatmul.mubr.bf16.gmra.mrb[0].mxu0 %v4274
        %v5493 = vpop.f32.mrb[0].mxu0
        %v5494 = vadd.f32 %v5061, %v5493
        %v5495 = vpop.f32.mrb[0].mxu0
        %v5496 = vpop.f32.mrb[0].mxu0
        %v5497 = vadd.f32 %v5064, %v5496
        %v5498 = vpop.f32.mrb[0].mxu0
        %5499 = vmatprep.mubr.bf16.mxu0 %v3937
        %5500 = vmatmul.mubr.bf16.gmra.mrb[0].mxu0 %v4038
        %v5501 = vpop.f32.mrb[0].mxu0
        %v5502 = vadd.f32 %v5069, %v5501
        %v5503 = vpop.f32.mrb[0].mxu0
        %v5504 = vpop.f32.mrb[0].mxu0
        %v5505 = vadd.f32 %v5072, %v5504
        %v5506 = vpop.f32.mrb[0].mxu0
        %5507 = vmatprep.mubr.bf16.mxu0 %v3938
        %5508 = vmatmul.mubr.bf16.gmra.mrb[0].mxu0 %v4275
        %v5509 = vpop.f32.mrb[0].mxu0
        %v5510 = vadd.f32 %v5077, %v5509
        %v5511 = vpop.f32.mrb[0].mxu0
        %v5512 = vpop.f32.mrb[0].mxu0
        %v5513 = vadd.f32 %v5080, %v5512
        %v5514 = vpop.f32.mrb[0].mxu0
        %5515 = vmatprep.mubr.bf16.mxu0 %v3939
        %5516 = vmatmul.mubr.bf16.gmra.mrb[0].mxu0 %v4053
        %v5517 = vpop.f32.mrb[0].mxu0
        %v5518 = vadd.f32 %v5085, %v5517
        %v5519 = vpop.f32.mrb[0].mxu0
        %v5520 = vpop.f32.mrb[0].mxu0
        %v5521 = vadd.f32 %v5088, %v5520
        %v5522 = vpop.f32.mrb[0].mxu0
        %5523 = vmatprep.mubr.bf16.mxu0 %v3940
        %5524 = vmatmul.mubr.bf16.gmra.mrb[0].mxu0 %v4276
        %v5525 = vpop.f32.mrb[0].mxu0
        %v5526 = vadd.f32 %v5093, %v5525
        %v5527 = vpop.f32.mrb[0].mxu0
        %v5528 = vpop.f32.mrb[0].mxu0
        %v5529 = vadd.f32 %v5096, %v5528
        %v5530 = vpop.f32.mrb[0].mxu0
        %5531 = vmatprep.mubr.bf16.mxu0 %v3941
        %5532 = vmatmul.mubr.bf16.gmra.mrb[0].mxu0 %v4068
        %v5533 = vpop.f32.mrb[0].mxu0
        %v5534 = vadd.f32 %v5101, %v5533
        %v5535 = vpop.f32.mrb[0].mxu0
        %v5536 = vpop.f32.mrb[0].mxu0
        %v5537 = vadd.f32 %v5104, %v5536
        %v5538 = vpop.f32.mrb[0].mxu0
        %5539 = vmatprep.mubr.bf16.mxu0 %v3942
        %5540 = vmatmul.mubr.bf16.gmra.mrb[0].mxu0 %v4277
        %v5541 = vpop.f32.mrb[0].mxu0
        %v5542 = vadd.f32 %v5109, %v5541
        %v5543 = vpop.f32.mrb[0].mxu0
        %v5544 = vpop.f32.mrb[0].mxu0
        %v5545 = vadd.f32 %v5112, %v5544
        %v5546 = vpop.f32.mrb[0].mxu0
        %5547 = vmatprep.mubr.bf16.mxu0 %v3943
        %5548 = vmatmul.mubr.bf16.gmra.mrb[0].mxu0 %v4083
        %v5549 = vpop.f32.mrb[0].mxu0
        %v5550 = vadd.f32 %v5117, %v5549
        %v5551 = vpop.f32.mrb[0].mxu0
        %v5552 = vpop.f32.mrb[0].mxu0
        %v5553 = vadd.f32 %v5120, %v5552
        %v5554 = vpop.f32.mrb[0].mxu0
        %5555 = vmatprep.mubr.bf16.mxu0 %v3944
        %5556 = vmatmul.mubr.bf16.gmra.mrb[0].mxu0 %v4278
        %v5557 = vpop.f32.mrb[0].mxu0
        %v5558 = vadd.f32 %v5125, %v5557
        %v5559 = vpop.f32.mrb[0].mxu0
        %v5560 = vpop.f32.mrb[0].mxu0
        %v5561 = vadd.f32 %v5128, %v5560
        %v5562 = vpop.f32.mrb[0].mxu0
        %5563 = vmatprep.mubr.bf16.mxu0 %v3945
        %5564 = vmatmul.mubr.bf16.gmra.mrb[0].mxu0 %v4098
        %v5565 = vpop.f32.mrb[0].mxu0
        %v5566 = vadd.f32 %v5133, %v5565
        %v5567 = vpop.f32.mrb[0].mxu0
        %v5568 = vpop.f32.mrb[0].mxu0
        %v5569 = vadd.f32 %v5136, %v5568
        %v5570 = vpop.f32.mrb[0].mxu0
        %5571 = vmatprep.mubr.bf16.mxu0 %v3946
        %5572 = vmatmul.mubr.bf16.gmra.mrb[0].mxu0 %v4279
        %v5573 = vpop.f32.mrb[0].mxu0
        %v5574 = vadd.f32 %v5141, %v5573
        %v5575 = vpop.f32.mrb[0].mxu0
        %v5576 = vpop.f32.mrb[0].mxu0
        %v5577 = vadd.f32 %v5144, %v5576
        %v5578 = vpop.f32.mrb[0].mxu0
        %5579 = vmatprep.mubr.bf16.mxu0 %v3947
        %5580 = vmatmul.mubr.bf16.gmra.mrb[0].mxu0 %v4113
        %v5581 = vpop.f32.mrb[0].mxu0
        %v5582 = vadd.f32 %v5149, %v5581
        %v5583 = vpop.f32.mrb[0].mxu0
        %v5584 = vpop.f32.mrb[0].mxu0
        %v5585 = vadd.f32 %v5152, %v5584
        %v5586 = vpop.f32.mrb[0].mxu0
        %5587 = vmatprep.mubr.bf16.mxu0 %v3948
        %5588 = vmatmul.mubr.bf16.gmra.mrb[0].mxu0 %v4280
        %v5589 = vpop.f32.mrb[0].mxu0
        %v5590 = vadd.f32 %v5157, %v5589
        %v5591 = vpop.f32.mrb[0].mxu0
        %v5592 = vpop.f32.mrb[0].mxu0
        %v5593 = vadd.f32 %v5160, %v5592
        %v5594 = vpop.f32.mrb[0].mxu0
        %5595 = vmatprep.mubr.bf16.mxu0 %v3949
        %5596 = vmatmul.mubr.bf16.gmra.mrb[0].mxu0 %v4128
        %v5597 = vpop.f32.mrb[0].mxu0
        %v5598 = vadd.f32 %v5165, %v5597
        %v5599 = vpop.f32.mrb[0].mxu0
        %v5600 = vpop.f32.mrb[0].mxu0
        %v5601 = vadd.f32 %v5168, %v5600
        %v5602 = vpop.f32.mrb[0].mxu0
        %5603 = vmatprep.mubr.bf16.mxu0 %v3950
        %5604 = vmatmul.mubr.bf16.gmra.mrb[0].mxu0 %v4281
        %v5605 = vpop.f32.mrb[0].mxu0
        %v5606 = vadd.f32 %v5173, %v5605
        %v5607 = vpop.f32.mrb[0].mxu0
        %v5608 = vpop.f32.mrb[0].mxu0
        %v5609 = vadd.f32 %v5176, %v5608
        %v5610 = vpop.f32.mrb[0].mxu0
        %5611 = vmatprep.mubr.bf16.mxu0 %v3951
        %5612 = vmatmul.mubr.bf16.gmra.mrb[0].mxu0 %v4143
        %v5613 = vpop.f32.mrb[0].mxu0
        %v5614 = vadd.f32 %v5181, %v5613
        %v5615 = vpop.f32.mrb[0].mxu0
        %v5616 = vpop.f32.mrb[0].mxu0
        %v5617 = vadd.f32 %v5184, %v5616
        %v5618 = vpop.f32.mrb[0].mxu0
        %5619 = vmatprep.mubr.bf16.mxu0 %v3952
        %5620 = vmatmul.mubr.bf16.gmra.mrb[0].mxu0 %v4282
        %v5621 = vpop.f32.mrb[0].mxu0
        %v5622 = vadd.f32 %v5189, %v5621
        %v5623 = vpop.f32.mrb[0].mxu0
        %v5624 = vpop.f32.mrb[0].mxu0
        %v5625 = vadd.f32 %v5192, %v5624
        %v5626 = vpop.f32.mrb[0].mxu0
        %5627 = vmatprep.mubr.bf16.mxu0 %v3953
        %5628 = vmatmul.mubr.bf16.gmra.mrb[0].mxu0 %v4158
        %v5629 = vpop.f32.mrb[0].mxu0
        %v5630 = vadd.f32 %v5197, %v5629
        %v5631 = vpop.f32.mrb[0].mxu0
        %v5632 = vpop.f32.mrb[0].mxu0
        %v5633 = vadd.f32 %v5200, %v5632
        %v5634 = vpop.f32.mrb[0].mxu0
        %5635 = vmatprep.mubr.bf16.mxu0 %v3954
        %5636 = vmatmul.mubr.bf16.gmra.mrb[0].mxu0 %v4283
        %v5637 = vpop.f32.mrb[0].mxu0
        %v5638 = vadd.f32 %v5205, %v5637
        %v5639 = vpop.f32.mrb[0].mxu0
        %v5640 = vpop.f32.mrb[0].mxu0
        %v5641 = vadd.f32 %v5208, %v5640
        %v5642 = vpop.f32.mrb[0].mxu0
        %5643 = vmatprep.mubr.bf16.mxu0 %v3955
        %5644 = vmatmul.mubr.bf16.gmra.mrb[0].mxu0 %v4173
        %v5645 = vpop.f32.mrb[0].mxu0
        %v5646 = vadd.f32 %v5213, %v5645
        %v5647 = vpop.f32.mrb[0].mxu0
        %v5648 = vpop.f32.mrb[0].mxu0
        %v5649 = vadd.f32 %v5216, %v5648
        %v5650 = vpop.f32.mrb[0].mxu0
        %5651 = vmatprep.mubr.bf16.mxu0 %v3956
        %5652 = vmatmul.mubr.bf16.gmra.mrb[0].mxu0 %v4284
        %v5653 = vpop.f32.mrb[0].mxu0
        %v5654 = vadd.f32 %v5221, %v5653
        %v5655 = vpop.f32.mrb[0].mxu0
        %v5656 = vpop.f32.mrb[0].mxu0
        %v5657 = vadd.f32 %v5224, %v5656
        %v5658 = vpop.f32.mrb[0].mxu0
        %5659 = vmatprep.mubr.bf16.mxu0 %v3957
        %5660 = vmatmul.mubr.bf16.gmra.mrb[0].mxu0 %v4188
        %v5661 = vpop.f32.mrb[0].mxu0
        %v5662 = vadd.f32 %v5229, %v5661
        %v5663 = vpop.f32.mrb[0].mxu0
        %v5664 = vpop.f32.mrb[0].mxu0
        %v5665 = vadd.f32 %v5232, %v5664
        %v5666 = vpop.f32.mrb[0].mxu0
        %5667 = vmatprep.mubr.bf16.mxu0 %v3958
        %5668 = vmatmul.mubr.bf16.gmra.mrb[0].mxu0 %v4285
        %v5669 = vpop.f32.mrb[0].mxu0
        %v5670 = vadd.f32 %v5237, %v5669
        %v5671 = vpop.f32.mrb[0].mxu0
        %v5672 = vpop.f32.mrb[0].mxu0
        %v5673 = vadd.f32 %v5240, %v5672
        %v5674 = vpop.f32.mrb[0].mxu0
        %5675 = vmatprep.mubr.bf16.mxu0 %v3959
        %5676 = vmatmul.mubr.bf16.gmra.mrb[0].mxu0 %v4203
        %v5677 = vpop.f32.mrb[0].mxu0
        %v5678 = vadd.f32 %v5245, %v5677
        %v5679 = vpop.f32.mrb[0].mxu0
        %v5680 = vpop.f32.mrb[0].mxu0
        %v5681 = vadd.f32 %v5248, %v5680
        %v5682 = vpop.f32.mrb[0].mxu0
        %5683 = vdwg.mxu0
        %5684 = vmatprep.subr.bf16.mxu0 0
        %5685 = vmatpush1.bf16.msra.mxu0 %v5363
        %5686 = vmatprep.subr.bf16.mxu0 0
        %5687 = vmatpush1.bf16.msra.mxu0 %v5364
        %5688 = vmatprep.subr.bf16.mxu0 0
        %5689 = vmatpush1.bf16.msra.mxu0 %v5365
        %5690 = vmatprep.subr.bf16.mxu0 0
        %5691 = vmatpush1.bf16.msra.mxu0 %v5366
        %5692 = vmatprep.subr.bf16.mxu0 0
        %5693 = vmatpush1.bf16.msra.mxu0 %v5367
        %5694 = vmatprep.subr.bf16.mxu0 0
        %5695 = vmatpush1.bf16.msra.mxu0 %v5368
        %5696 = vmatprep.subr.bf16.mxu0 0
        %5697 = vmatpush1.bf16.msra.mxu0 %v5369
        %5698 = vmatprep.subr.bf16.mxu0 0
        %5699 = vmatpush1.bf16.msra.mxu0 %v5370
        %5700 = vmatprep.subr.bf16.mxu0 0
        %5701 = vmatpush1.bf16.msra.mxu0 0
        %5702 = vmatprep.subr.bf16.mxu0 0
        %5703 = vmatpush1.bf16.msra.mxu0 0
        %5704 = vmatprep.subr.bf16.mxu0 0
        %5705 = vmatpush1.bf16.msra.mxu0 0
        %5706 = vmatprep.subr.bf16.mxu0 0
        %5707 = vmatpush1.bf16.msra.mxu0 0
        %5708 = vmatprep.subr.bf16.mxu0 0
        %5709 = vmatpush1.bf16.msra.mxu0 0
        %5710 = vmatprep.subr.bf16.mxu0 0
        %5711 = vmatpush1.bf16.msra.mxu0 0
        %5712 = vmatprep.subr.bf16.mxu0 0
        %5713 = vmatpush1.bf16.msra.mxu0 0
        %5714 = vmatprep.subr.bf16.mxu0 0
        %5715 = vmatpush1.bf16.msra.mxu0 0
        %5716 = vmatprep.mubr.bf16.mxu0 0
        %5717 = vmatmul.mubr.bf16.gmra.mrb[0].mxu0 %v4291
        %v5718 = vpop.f32.mrb[0].mxu0
        %v5719 = vadd.f32 %v5430, %v5718
        %v5720 = vpop.f32.mrb[0].mxu0
        %v5721 = vpop.f32.mrb[0].mxu0
        %v5722 = vadd.f32 %v5433, %v5721
        %v5723 = vpop.f32.mrb[0].mxu0
        %5724 = vmatprep.mubr.bf16.mxu0 0
        %5725 = vmatmul.mubr.bf16.gmra.mrb[0].mxu0 %v4414
        %v5726 = vpop.f32.mrb[0].mxu0
        %v5727 = vadd.f32 %v5438, %v5726
        %v5728 = vpop.f32.mrb[0].mxu0
        %v5729 = vpop.f32.mrb[0].mxu0
        %v5730 = vadd.f32 %v5441, %v5729
        %v5731 = vpop.f32.mrb[0].mxu0
        %5732 = vmatprep.mubr.bf16.mxu0 0
        %5733 = vmatmul.mubr.bf16.gmra.mrb[0].mxu0 %v4296
        %v5734 = vpop.f32.mrb[0].mxu0
        %v5735 = vadd.f32 %v5446, %v5734
        %v5736 = vpop.f32.mrb[0].mxu0
        %v5737 = vpop.f32.mrb[0].mxu0
        %v5738 = vadd.f32 %v5449, %v5737
        %v5739 = vpop.f32.mrb[0].mxu0
        %5740 = vmatprep.mubr.bf16.mxu0 0
        %5741 = vmatmul.mubr.bf16.gmra.mrb[0].mxu0 %v4415
        %v5742 = vpop.f32.mrb[0].mxu0
        %v5743 = vadd.f32 %v5454, %v5742
        %v5744 = vpop.f32.mrb[0].mxu0
        %v5745 = vpop.f32.mrb[0].mxu0
        %v5746 = vadd.f32 %v5457, %v5745
        %v5747 = vpop.f32.mrb[0].mxu0
        %5748 = vmatprep.mubr.bf16.mxu0 0
        %5749 = vmatmul.mubr.bf16.gmra.mrb[0].mxu0 %v4301
        %v5750 = vpop.f32.mrb[0].mxu0
        %v5751 = vadd.f32 %v5462, %v5750
        %v5752 = vpop.f32.mrb[0].mxu0
        %v5753 = vpop.f32.mrb[0].mxu0
        %v5754 = vadd.f32 %v5465, %v5753
        %v5755 = vpop.f32.mrb[0].mxu0
        %5756 = vmatprep.mubr.bf16.mxu0 0
        %5757 = vmatmul.mubr.bf16.gmra.mrb[0].mxu0 %v4416
        %v5758 = vpop.f32.mrb[0].mxu0
        %v5759 = vadd.f32 %v5470, %v5758
        %v5760 = vpop.f32.mrb[0].mxu0
        %v5761 = vpop.f32.mrb[0].mxu0
        %v5762 = vadd.f32 %v5473, %v5761
        %v5763 = vpop.f32.mrb[0].mxu0
        %5764 = vmatprep.mubr.bf16.mxu0 0
        %5765 = vmatmul.mubr.bf16.gmra.mrb[0].mxu0 %v4306
        %v5766 = vpop.f32.mrb[0].mxu0
        %v5767 = vadd.f32 %v5478, %v5766
        %v5768 = vpop.f32.mrb[0].mxu0
        %v5769 = vpop.f32.mrb[0].mxu0
        %v5770 = vadd.f32 %v5481, %v5769
        %v5771 = vpop.f32.mrb[0].mxu0
        %5772 = vmatprep.mubr.bf16.mxu0 0
        %5773 = vmatmul.mubr.bf16.gmra.mrb[0].mxu0 %v4417
        %v5774 = vpop.f32.mrb[0].mxu0
        %v5775 = vadd.f32 %v5486, %v5774
        %v5776 = vpop.f32.mrb[0].mxu0
        %v5777 = vpop.f32.mrb[0].mxu0
        %v5778 = vadd.f32 %v5489, %v5777
        %v5779 = vpop.f32.mrb[0].mxu0
        %5780 = vmatprep.mubr.bf16.mxu0 0
        %5781 = vmatmul.mubr.bf16.gmra.mrb[0].mxu0 %v4311
        %v5782 = vpop.f32.mrb[0].mxu0
        %v5783 = vadd.f32 %v5494, %v5782
        %v5784 = vpop.f32.mrb[0].mxu0
        %v5785 = vpop.f32.mrb[0].mxu0
        %v5786 = vadd.f32 %v5497, %v5785
        %v5787 = vpop.f32.mrb[0].mxu0
        %5788 = vmatprep.mubr.bf16.mxu0 0
        %5789 = vmatmul.mubr.bf16.gmra.mrb[0].mxu0 %v4418
        %v5790 = vpop.f32.mrb[0].mxu0
        %v5791 = vadd.f32 %v5502, %v5790
        %v5792 = vpop.f32.mrb[0].mxu0
        %v5793 = vpop.f32.mrb[0].mxu0
        %v5794 = vadd.f32 %v5505, %v5793
        %v5795 = vpop.f32.mrb[0].mxu0
        %5796 = vmatprep.mubr.bf16.mxu0 0
        %5797 = vmatmul.mubr.bf16.gmra.mrb[0].mxu0 %v4316
        %v5798 = vpop.f32.mrb[0].mxu0
        %v5799 = vadd.f32 %v5510, %v5798
        %v5800 = vpop.f32.mrb[0].mxu0
        %v5801 = vpop.f32.mrb[0].mxu0
        %v5802 = vadd.f32 %v5513, %v5801
        %v5803 = vpop.f32.mrb[0].mxu0
        %5804 = vmatprep.mubr.bf16.mxu0 0
        %5805 = vmatmul.mubr.bf16.gmra.mrb[0].mxu0 %v4419
        %v5806 = vpop.f32.mrb[0].mxu0
        %v5807 = vadd.f32 %v5518, %v5806
        %v5808 = vpop.f32.mrb[0].mxu0
        %v5809 = vpop.f32.mrb[0].mxu0
        %v5810 = vadd.f32 %v5521, %v5809
        %v5811 = vpop.f32.mrb[0].mxu0
        %5812 = vmatprep.mubr.bf16.mxu0 0
        %5813 = vmatmul.mubr.bf16.gmra.mrb[0].mxu0 %v4321
        %v5814 = vpop.f32.mrb[0].mxu0
        %v5815 = vadd.f32 %v5526, %v5814
        %v5816 = vpop.f32.mrb[0].mxu0
        %v5817 = vpop.f32.mrb[0].mxu0
        %v5818 = vadd.f32 %v5529, %v5817
        %v5819 = vpop.f32.mrb[0].mxu0
        %5820 = vmatprep.mubr.bf16.mxu0 0
        %5821 = vmatmul.mubr.bf16.gmra.mrb[0].mxu0 %v4420
        %v5822 = vpop.f32.mrb[0].mxu0
        %v5823 = vadd.f32 %v5534, %v5822
        %v5824 = vpop.f32.mrb[0].mxu0
        %v5825 = vpop.f32.mrb[0].mxu0
        %v5826 = vadd.f32 %v5537, %v5825
        %v5827 = vpop.f32.mrb[0].mxu0
        %5828 = vmatprep.mubr.bf16.mxu0 0
        %5829 = vmatmul.mubr.bf16.gmra.mrb[0].mxu0 %v4326
        %v5830 = vpop.f32.mrb[0].mxu0
        %v5831 = vadd.f32 %v5542, %v5830
        %v5832 = vpop.f32.mrb[0].mxu0
        %v5833 = vpop.f32.mrb[0].mxu0
        %v5834 = vadd.f32 %v5545, %v5833
        %v5835 = vpop.f32.mrb[0].mxu0
        %5836 = vmatprep.mubr.bf16.mxu0 0
        %5837 = vmatmul.mubr.bf16.gmra.mrb[0].mxu0 %v4421
        %v5838 = vpop.f32.mrb[0].mxu0
        %v5839 = vadd.f32 %v5550, %v5838
        %v5840 = vpop.f32.mrb[0].mxu0
        %v5841 = vpop.f32.mrb[0].mxu0
        %v5842 = vadd.f32 %v5553, %v5841
        %v5843 = vpop.f32.mrb[0].mxu0
        %5844 = vmatprep.mubr.bf16.mxu0 0
        %5845 = vmatmul.mubr.bf16.gmra.mrb[0].mxu0 %v4331
        %v5846 = vpop.f32.mrb[0].mxu0
        %v5847 = vadd.f32 %v5558, %v5846
        %v5848 = vpop.f32.mrb[0].mxu0
        %v5849 = vpop.f32.mrb[0].mxu0
        %v5850 = vadd.f32 %v5561, %v5849
        %v5851 = vpop.f32.mrb[0].mxu0
        %5852 = vmatprep.mubr.bf16.mxu0 0
        %5853 = vmatmul.mubr.bf16.gmra.mrb[0].mxu0 %v4422
        %v5854 = vpop.f32.mrb[0].mxu0
        %v5855 = vadd.f32 %v5566, %v5854
        %v5856 = vpop.f32.mrb[0].mxu0
        %v5857 = vpop.f32.mrb[0].mxu0
        %v5858 = vadd.f32 %v5569, %v5857
        %v5859 = vpop.f32.mrb[0].mxu0
        %5860 = vmatprep.mubr.bf16.mxu0 0
        %5861 = vmatmul.mubr.bf16.gmra.mrb[0].mxu0 %v4336
        %v5862 = vpop.f32.mrb[0].mxu0
        %v5863 = vadd.f32 %v5574, %v5862
        %v5864 = vpop.f32.mrb[0].mxu0
        %v5865 = vpop.f32.mrb[0].mxu0
        %v5866 = vadd.f32 %v5577, %v5865
        %v5867 = vpop.f32.mrb[0].mxu0
        %5868 = vmatprep.mubr.bf16.mxu0 0
        %5869 = vmatmul.mubr.bf16.gmra.mrb[0].mxu0 %v4423
        %v5870 = vpop.f32.mrb[0].mxu0
        %v5871 = vadd.f32 %v5582, %v5870
        %v5872 = vpop.f32.mrb[0].mxu0
        %v5873 = vpop.f32.mrb[0].mxu0
        %v5874 = vadd.f32 %v5585, %v5873
        %v5875 = vpop.f32.mrb[0].mxu0
        %5876 = vmatprep.mubr.bf16.mxu0 0
        %5877 = vmatmul.mubr.bf16.gmra.mrb[0].mxu0 %v4341
        %v5878 = vpop.f32.mrb[0].mxu0
        %v5879 = vadd.f32 %v5590, %v5878
        %v5880 = vpop.f32.mrb[0].mxu0
        %v5881 = vpop.f32.mrb[0].mxu0
        %v5882 = vadd.f32 %v5593, %v5881
        %v5883 = vpop.f32.mrb[0].mxu0
        %5884 = vmatprep.mubr.bf16.mxu0 0
        %5885 = vmatmul.mubr.bf16.gmra.mrb[0].mxu0 %v4424
        %v5886 = vpop.f32.mrb[0].mxu0
        %v5887 = vadd.f32 %v5598, %v5886
        %v5888 = vpop.f32.mrb[0].mxu0
        %v5889 = vpop.f32.mrb[0].mxu0
        %v5890 = vadd.f32 %v5601, %v5889
        %v5891 = vpop.f32.mrb[0].mxu0
        %5892 = vmatprep.mubr.bf16.mxu0 0
        %5893 = vmatmul.mubr.bf16.gmra.mrb[0].mxu0 %v4346
        %v5894 = vpop.f32.mrb[0].mxu0
        %v5895 = vadd.f32 %v5606, %v5894
        %v5896 = vpop.f32.mrb[0].mxu0
        %v5897 = vpop.f32.mrb[0].mxu0
        %v5898 = vadd.f32 %v5609, %v5897
        %v5899 = vpop.f32.mrb[0].mxu0
        %5900 = vmatprep.mubr.bf16.mxu0 0
        %5901 = vmatmul.mubr.bf16.gmra.mrb[0].mxu0 %v4425
        %v5902 = vpop.f32.mrb[0].mxu0
        %v5903 = vadd.f32 %v5614, %v5902
        %v5904 = vpop.f32.mrb[0].mxu0
        %v5905 = vpop.f32.mrb[0].mxu0
        %v5906 = vadd.f32 %v5617, %v5905
        %v5907 = vpop.f32.mrb[0].mxu0
        %5908 = vmatprep.mubr.bf16.mxu0 0
        %5909 = vmatmul.mubr.bf16.gmra.mrb[0].mxu0 %v4351
        %v5910 = vpop.f32.mrb[0].mxu0
        %v5911 = vadd.f32 %v5622, %v5910
        %v5912 = vpop.f32.mrb[0].mxu0
        %v5913 = vpop.f32.mrb[0].mxu0
        %v5914 = vadd.f32 %v5625, %v5913
        %v5915 = vpop.f32.mrb[0].mxu0
        %5916 = vmatprep.mubr.bf16.mxu0 0
        %5917 = vmatmul.mubr.bf16.gmra.mrb[0].mxu0 %v4426
        %v5918 = vpop.f32.mrb[0].mxu0
        %v5919 = vadd.f32 %v5630, %v5918
        %v5920 = vpop.f32.mrb[0].mxu0
        %v5921 = vpop.f32.mrb[0].mxu0
        %v5922 = vadd.f32 %v5633, %v5921
        %v5923 = vpop.f32.mrb[0].mxu0
        %5924 = vmatprep.mubr.bf16.mxu0 0
        %5925 = vmatmul.mubr.bf16.gmra.mrb[0].mxu0 %v4356
        %v5926 = vpop.f32.mrb[0].mxu0
        %v5927 = vadd.f32 %v5638, %v5926
        %v5928 = vpop.f32.mrb[0].mxu0
        %v5929 = vpop.f32.mrb[0].mxu0
        %v5930 = vadd.f32 %v5641, %v5929
        %v5931 = vpop.f32.mrb[0].mxu0
        %5932 = vmatprep.mubr.bf16.mxu0 0
        %5933 = vmatmul.mubr.bf16.gmra.mrb[0].mxu0 %v4427
        %v5934 = vpop.f32.mrb[0].mxu0
        %v5935 = vadd.f32 %v5646, %v5934
        %v5936 = vpop.f32.mrb[0].mxu0
        %v5937 = vpop.f32.mrb[0].mxu0
        %v5938 = vadd.f32 %v5649, %v5937
        %v5939 = vpop.f32.mrb[0].mxu0
        %5940 = vmatprep.mubr.bf16.mxu0 0
        %5941 = vmatmul.mubr.bf16.gmra.mrb[0].mxu0 %v4361
        %v5942 = vpop.f32.mrb[0].mxu0
        %v5943 = vadd.f32 %v5654, %v5942
        %v5944 = vpop.f32.mrb[0].mxu0
        %v5945 = vpop.f32.mrb[0].mxu0
        %v5946 = vadd.f32 %v5657, %v5945
        %v5947 = vpop.f32.mrb[0].mxu0
        %5948 = vmatprep.mubr.bf16.mxu0 0
        %5949 = vmatmul.mubr.bf16.gmra.mrb[0].mxu0 %v4428
        %v5950 = vpop.f32.mrb[0].mxu0
        %v5951 = vadd.f32 %v5662, %v5950
        %v5952 = vpop.f32.mrb[0].mxu0
        %v5953 = vpop.f32.mrb[0].mxu0
        %v5954 = vadd.f32 %v5665, %v5953
        %v5955 = vpop.f32.mrb[0].mxu0
        %5956 = vmatprep.mubr.bf16.mxu0 0
        %5957 = vmatmul.mubr.bf16.gmra.mrb[0].mxu0 %v4366
        %v5958 = vpop.f32.mrb[0].mxu0
        %v5959 = vadd.f32 %v5670, %v5958
        %v5960 = vpop.f32.mrb[0].mxu0
        %v5961 = vpop.f32.mrb[0].mxu0
        %v5962 = vadd.f32 %v5673, %v5961
        %v5963 = vpop.f32.mrb[0].mxu0
        %5964 = vmatprep.mubr.bf16.mxu0 0
        %5965 = vmatmul.mubr.bf16.gmra.mrb[0].mxu0 %v4429
        %v5966 = vpop.f32.mrb[0].mxu0
        %v5967 = vadd.f32 %v5678, %v5966
        %v5968 = vpop.f32.mrb[0].mxu0
        %v5969 = vpop.f32.mrb[0].mxu0
        %v5970 = vadd.f32 %v5681, %v5969
        %v5971 = vpop.f32.mrb[0].mxu0
        %5972 = vdwg.mxu0
        %s5973 = scalar_lea.vmem [#allocation10], 384
        %v5974 = vld [vmem:[%s5973] sm:$0xf]
        %v5975 = vld [vmem:[%s5973 + $0x4] sm:$0xf]
        %v5976 = vld [vmem:[%s5973 + $0x8] sm:$0xf]
        %v5977 = vld [vmem:[%s5973 + $0xc] sm:$0xf]
        %v5978 = vld [vmem:[%s5973 + $0x10] sm:$0xf]
        %v5979 = vld [vmem:[%s5973 + $0x14] sm:$0xf]
        %v5980 = vld [vmem:[%s5973 + $0x18] sm:$0xf]
        %v5981 = vld [vmem:[%s5973 + $0x1c] sm:$0xf]
        %v5982 = vld [vmem:[%s5973 + $0x20] sm:$0xf]
        %v5983 = vld [vmem:[%s5973 + $0x24] sm:$0xf]
        %v5984 = vld [vmem:[%s5973 + $0x28] sm:$0xf]
        %v5985 = vld [vmem:[%s5973 + $0x2c] sm:$0xf]
        %v5986 = vld [vmem:[%s5973 + $0x30] sm:$0xf]
        %v5987 = vld [vmem:[%s5973 + $0x34] sm:$0xf]
        %v5988 = vld [vmem:[%s5973 + $0x38] sm:$0xf]
        %v5989 = vld [vmem:[%s5973 + $0x3c] sm:$0xf]
        %v5990 = vld [vmem:[%s5973 + $0x40] sm:$0xf]
        %v5991 = vld [vmem:[%s5973 + $0x44] sm:$0xf]
        %v5992 = vld [vmem:[%s5973 + $0x48] sm:$0xf]
        %v5993 = vld [vmem:[%s5973 + $0x4c] sm:$0xf]
        %v5994 = vld [vmem:[%s5973 + $0x50] sm:$0xf]
        %v5995 = vld [vmem:[%s5973 + $0x54] sm:$0xf]
        %v5996 = vld [vmem:[%s5973 + $0x58] sm:$0xf]
        %v5997 = vld [vmem:[%s5973 + $0x5c] sm:$0xf]
        %v5998 = vld [vmem:[%s5973 + $0x60] sm:$0xf]
        %v5999 = vld [vmem:[%s5973 + $0x64] sm:$0xf]
        %v6000 = vld [vmem:[%s5973 + $0x68] sm:$0xf]
        %v6001 = vld [vmem:[%s5973 + $0x6c] sm:$0xf]
        %v6002 = vld [vmem:[%s5973 + $0x70] sm:$0xf]
        %v6003 = vld [vmem:[%s5973 + $0x74] sm:$0xf]
        %v6004 = vld [vmem:[%s5973 + $0x78] sm:$0xf]
        %v6005 = vld [vmem:[%s5973 + $0x7c] sm:$0xf]
        %v6006 = vld [vmem:[%s5973 + $0x80] sm:$0xf]
        %v6007 = vld [vmem:[%s5973 + $0x84] sm:$0xf]
        %v6008 = vld [vmem:[%s5973 + $0x88] sm:$0xf]
        %v6009 = vld [vmem:[%s5973 + $0x8c] sm:$0xf]
        %v6010 = vld [vmem:[%s5973 + $0x90] sm:$0xf]
        %v6011 = vld [vmem:[%s5973 + $0x94] sm:$0xf]
        %v6012 = vld [vmem:[%s5973 + $0x98] sm:$0xf]
        %v6013 = vld [vmem:[%s5973 + $0x9c] sm:$0xf]
        %v6014 = vld [vmem:[%s5973 + $0xa0] sm:$0xf]
        %v6015 = vld [vmem:[%s5973 + $0xa4] sm:$0xf]
        %v6016 = vld [vmem:[%s5973 + $0xa8] sm:$0xf]
        %v6017 = vld [vmem:[%s5973 + $0xac] sm:$0xf]
        %v6018 = vld [vmem:[%s5973 + $0xb0] sm:$0xf]
        %v6019 = vld [vmem:[%s5973 + $0xb4] sm:$0xf]
        %v6020 = vld [vmem:[%s5973 + $0xb8] sm:$0xf]
        %v6021 = vld [vmem:[%s5973 + $0xbc] sm:$0xf]
        %v6070 = vunpack.c.l.b16 %v5974
        %v6071 = vunpack.c.l.b16 %v5975
        %v6072 = vunpack.c.l.b16 %v5976
        %v6073 = vunpack.c.l.b16 %v5977
        %v6074 = vunpack.c.l.b16 %v5978
        %v6075 = vunpack.c.l.b16 %v5979
        %v6076 = vunpack.c.l.b16 %v5980
        %v6077 = vunpack.c.l.b16 %v5981
        %v6078 = vunpack.c.l.b16 %v5982
        %v6079 = vunpack.c.l.b16 %v5983
        %v6080 = vunpack.c.l.b16 %v5984
        %v6081 = vunpack.c.l.b16 %v5985
        %v6082 = vunpack.c.l.b16 %v5986
        %v6083 = vunpack.c.l.b16 %v5987
        %v6084 = vunpack.c.l.b16 %v5988
        %v6085 = vunpack.c.l.b16 %v5989
        %v6086 = vunpack.c.l.b16 %v5990
        %v6087 = vunpack.c.l.b16 %v5991
        %v6088 = vunpack.c.l.b16 %v5992
        %v6089 = vunpack.c.l.b16 %v5993
        %v6090 = vunpack.c.l.b16 %v5994
        %v6091 = vunpack.c.l.b16 %v5995
        %v6092 = vunpack.c.l.b16 %v5996
        %v6093 = vunpack.c.l.b16 %v5997
        %v6094 = vunpack.c.l.b16 %v5998
        %v6095 = vunpack.c.l.b16 %v5999
        %v6096 = vunpack.c.l.b16 %v6000
        %v6097 = vunpack.c.l.b16 %v6001
        %v6098 = vunpack.c.l.b16 %v6002
        %v6099 = vunpack.c.l.b16 %v6003
        %v6100 = vunpack.c.l.b16 %v6004
        %v6101 = vunpack.c.l.b16 %v6005
        %v6102 = vunpack.c.l.b16 %v6006
        %v6103 = vunpack.c.l.b16 %v6007
        %v6104 = vunpack.c.l.b16 %v6008
        %v6105 = vunpack.c.l.b16 %v6009
        %v6106 = vunpack.c.l.b16 %v6010
        %v6107 = vunpack.c.l.b16 %v6011
        %v6108 = vunpack.c.l.b16 %v6012
        %v6109 = vunpack.c.l.b16 %v6013
        %v6110 = vunpack.c.l.b16 %v6014
        %v6111 = vunpack.c.l.b16 %v6015
        %v6112 = vunpack.c.l.b16 %v6016
        %v6113 = vunpack.c.l.b16 %v6017
        %v6114 = vunpack.c.l.b16 %v6018
        %v6115 = vunpack.c.l.b16 %v6019
        %v6116 = vunpack.c.l.b16 %v6020
        %v6117 = vunpack.c.l.b16 %v6021
        %v6118 = vpack.c.b16 %v6071, %v6070
        %v6119 = vpack.c.b16 %v6073, %v6072
        %v6120 = vpack.c.b16 %v6075, %v6074
        %v6121 = vpack.c.b16 %v6077, %v6076
        %v6122 = vpack.c.b16 %v6079, %v6078
        %v6123 = vpack.c.b16 %v6081, %v6080
        %v6124 = vpack.c.b16 %v6083, %v6082
        %v6125 = vpack.c.b16 %v6085, %v6084
        %v6126 = vpack.c.b16 %v6087, %v6086
        %v6127 = vpack.c.b16 %v6089, %v6088
        %v6128 = vpack.c.b16 %v6091, %v6090
        %v6129 = vpack.c.b16 %v6093, %v6092
        %v6130 = vpack.c.b16 %v6095, %v6094
        %v6131 = vpack.c.b16 %v6097, %v6096
        %v6132 = vpack.c.b16 %v6099, %v6098
        %v6133 = vpack.c.b16 %v6101, %v6100
        %v6134 = vpack.c.b16 %v6103, %v6102
        %v6135 = vpack.c.b16 %v6105, %v6104
        %v6136 = vpack.c.b16 %v6107, %v6106
        %v6137 = vpack.c.b16 %v6109, %v6108
        %v6138 = vpack.c.b16 %v6111, %v6110
        %v6139 = vpack.c.b16 %v6113, %v6112
        %v6140 = vpack.c.b16 %v6115, %v6114
        %v6141 = vpack.c.b16 %v6117, %v6116
        %6166 = vmatprep.subr.bf16.mxu0 0
        %6167 = vmatpush1.bf16.msra.mxu0 %v6118
        %6168 = vmatprep.subr.bf16.mxu0 0
        %6169 = vmatpush1.bf16.msra.mxu0 %v6119
        %6170 = vmatprep.subr.bf16.mxu0 0
        %6171 = vmatpush1.bf16.msra.mxu0 %v6120
        %6172 = vmatprep.subr.bf16.mxu0 0
        %6173 = vmatpush1.bf16.msra.mxu0 %v6121
        %6174 = vmatprep.subr.bf16.mxu0 0
        %6175 = vmatpush1.bf16.msra.mxu0 %v6122
        %6176 = vmatprep.subr.bf16.mxu0 0
        %6177 = vmatpush1.bf16.msra.mxu0 %v6123
        %6178 = vmatprep.subr.bf16.mxu0 0
        %6179 = vmatpush1.bf16.msra.mxu0 %v6124
        %6180 = vmatprep.subr.bf16.mxu0 0
        %6181 = vmatpush1.bf16.msra.mxu0 %v6125
        %6182 = vmatprep.subr.bf16.mxu0 0
        %6183 = vmatpush1.bf16.msra.mxu0 %v6126
        %6184 = vmatprep.subr.bf16.mxu0 0
        %6185 = vmatpush1.bf16.msra.mxu0 %v6127
        %6186 = vmatprep.subr.bf16.mxu0 0
        %6187 = vmatpush1.bf16.msra.mxu0 %v6128
        %6188 = vmatprep.subr.bf16.mxu0 0
        %6189 = vmatpush1.bf16.msra.mxu0 %v6129
        %6190 = vmatprep.subr.bf16.mxu0 0
        %6191 = vmatpush1.bf16.msra.mxu0 %v6130
        %6192 = vmatprep.subr.bf16.mxu0 0
        %6193 = vmatpush1.bf16.msra.mxu0 %v6131
        %6194 = vmatprep.subr.bf16.mxu0 0
        %6195 = vmatpush1.bf16.msra.mxu0 %v6132
        %6196 = vmatprep.subr.bf16.mxu0 0
        %6197 = vmatpush1.bf16.msra.mxu0 %v6133
        %6198 = vmatprep.mubr.bf16.mxu0 %v3932
        %6199 = vmatmul.mubr.bf16.gmra.mrb[0].mxu0 %v4272
        %v6200 = vpop.f32.mrb[0].mxu0
        %v6201 = vadd.f32 0.0, %v6200
        %v6202 = vpop.f32.mrb[0].mxu0
        %v6203 = vpop.f32.mrb[0].mxu0
        %v6204 = vadd.f32 0.0, %v6203
        %v6205 = vpop.f32.mrb[0].mxu0
        %6206 = vmatprep.mubr.bf16.mxu0 %v3933
        %6207 = vmatmul.mubr.bf16.gmra.mrb[0].mxu0 %v4008
        %v6208 = vpop.f32.mrb[0].mxu0
        %v6209 = vadd.f32 0.0, %v6208
        %v6210 = vpop.f32.mrb[0].mxu0
        %v6211 = vpop.f32.mrb[0].mxu0
        %v6212 = vadd.f32 0.0, %v6211
        %v6213 = vpop.f32.mrb[0].mxu0
        %6214 = vmatprep.mubr.bf16.mxu0 %v3934
        %6215 = vmatmul.mubr.bf16.gmra.mrb[0].mxu0 %v4273
        %v6216 = vpop.f32.mrb[0].mxu0
        %v6217 = vadd.f32 0.0, %v6216
        %v6218 = vpop.f32.mrb[0].mxu0
        %v6219 = vpop.f32.mrb[0].mxu0
        %v6220 = vadd.f32 0.0, %v6219
        %v6221 = vpop.f32.mrb[0].mxu0
        %6222 = vmatprep.mubr.bf16.mxu0 %v3935
        %6223 = vmatmul.mubr.bf16.gmra.mrb[0].mxu0 %v4023
        %v6224 = vpop.f32.mrb[0].mxu0
        %v6225 = vadd.f32 0.0, %v6224
        %v6226 = vpop.f32.mrb[0].mxu0
        %v6227 = vpop.f32.mrb[0].mxu0
        %v6228 = vadd.f32 0.0, %v6227
        %v6229 = vpop.f32.mrb[0].mxu0
        %6230 = vmatprep.mubr.bf16.mxu0 %v3936
        %6231 = vmatmul.mubr.bf16.gmra.mrb[0].mxu0 %v4274
        %v6232 = vpop.f32.mrb[0].mxu0
        %v6233 = vadd.f32 0.0, %v6232
        %v6234 = vpop.f32.mrb[0].mxu0
        %v6235 = vpop.f32.mrb[0].mxu0
        %v6236 = vadd.f32 0.0, %v6235
        %v6237 = vpop.f32.mrb[0].mxu0
        %6238 = vmatprep.mubr.bf16.mxu0 %v3937
        %6239 = vmatmul.mubr.bf16.gmra.mrb[0].mxu0 %v4038
        %v6240 = vpop.f32.mrb[0].mxu0
        %v6241 = vadd.f32 0.0, %v6240
        %v6242 = vpop.f32.mrb[0].mxu0
        %v6243 = vpop.f32.mrb[0].mxu0
        %v6244 = vadd.f32 0.0, %v6243
        %v6245 = vpop.f32.mrb[0].mxu0
        %6246 = vmatprep.mubr.bf16.mxu0 %v3938
        %6247 = vmatmul.mubr.bf16.gmra.mrb[0].mxu0 %v4275
        %v6248 = vpop.f32.mrb[0].mxu0
        %v6249 = vadd.f32 0.0, %v6248
        %v6250 = vpop.f32.mrb[0].mxu0
        %v6251 = vpop.f32.mrb[0].mxu0
        %v6252 = vadd.f32 0.0, %v6251
        %v6253 = vpop.f32.mrb[0].mxu0
        %6254 = vmatprep.mubr.bf16.mxu0 %v3939
        %6255 = vmatmul.mubr.bf16.gmra.mrb[0].mxu0 %v4053
        %v6256 = vpop.f32.mrb[0].mxu0
        %v6257 = vadd.f32 0.0, %v6256
        %v6258 = vpop.f32.mrb[0].mxu0
        %v6259 = vpop.f32.mrb[0].mxu0
        %v6260 = vadd.f32 0.0, %v6259
        %v6261 = vpop.f32.mrb[0].mxu0
        %6262 = vmatprep.mubr.bf16.mxu0 %v3940
        %6263 = vmatmul.mubr.bf16.gmra.mrb[0].mxu0 %v4276
        %v6264 = vpop.f32.mrb[0].mxu0
        %v6265 = vadd.f32 0.0, %v6264
        %v6266 = vpop.f32.mrb[0].mxu0
        %v6267 = vpop.f32.mrb[0].mxu0
        %v6268 = vadd.f32 0.0, %v6267
        %v6269 = vpop.f32.mrb[0].mxu0
        %6270 = vmatprep.mubr.bf16.mxu0 %v3941
        %6271 = vmatmul.mubr.bf16.gmra.mrb[0].mxu0 %v4068
        %v6272 = vpop.f32.mrb[0].mxu0
        %v6273 = vadd.f32 0.0, %v6272
        %v6274 = vpop.f32.mrb[0].mxu0
        %v6275 = vpop.f32.mrb[0].mxu0
        %v6276 = vadd.f32 0.0, %v6275
        %v6277 = vpop.f32.mrb[0].mxu0
        %6278 = vmatprep.mubr.bf16.mxu0 %v3942
        %6279 = vmatmul.mubr.bf16.gmra.mrb[0].mxu0 %v4277
        %v6280 = vpop.f32.mrb[0].mxu0
        %v6281 = vadd.f32 0.0, %v6280
        %v6282 = vpop.f32.mrb[0].mxu0
        %v6283 = vpop.f32.mrb[0].mxu0
        %v6284 = vadd.f32 0.0, %v6283
        %v6285 = vpop.f32.mrb[0].mxu0
        %6286 = vmatprep.mubr.bf16.mxu0 %v3943
        %6287 = vmatmul.mubr.bf16.gmra.mrb[0].mxu0 %v4083
        %v6288 = vpop.f32.mrb[0].mxu0
        %v6289 = vadd.f32 0.0, %v6288
        %v6290 = vpop.f32.mrb[0].mxu0
        %v6291 = vpop.f32.mrb[0].mxu0
        %v6292 = vadd.f32 0.0, %v6291
        %v6293 = vpop.f32.mrb[0].mxu0
        %6294 = vmatprep.mubr.bf16.mxu0 %v3944
        %6295 = vmatmul.mubr.bf16.gmra.mrb[0].mxu0 %v4278
        %v6296 = vpop.f32.mrb[0].mxu0
        %v6297 = vadd.f32 0.0, %v6296
        %v6298 = vpop.f32.mrb[0].mxu0
        %v6299 = vpop.f32.mrb[0].mxu0
        %v6300 = vadd.f32 0.0, %v6299
        %v6301 = vpop.f32.mrb[0].mxu0
        %6302 = vmatprep.mubr.bf16.mxu0 %v3945
        %6303 = vmatmul.mubr.bf16.gmra.mrb[0].mxu0 %v4098
        %v6304 = vpop.f32.mrb[0].mxu0
        %v6305 = vadd.f32 0.0, %v6304
        %v6306 = vpop.f32.mrb[0].mxu0
        %v6307 = vpop.f32.mrb[0].mxu0
        %v6308 = vadd.f32 0.0, %v6307
        %v6309 = vpop.f32.mrb[0].mxu0
        %6310 = vmatprep.mubr.bf16.mxu0 %v3946
        %6311 = vmatmul.mubr.bf16.gmra.mrb[0].mxu0 %v4279
        %v6312 = vpop.f32.mrb[0].mxu0
        %v6313 = vadd.f32 0.0, %v6312
        %v6314 = vpop.f32.mrb[0].mxu0
        %v6315 = vpop.f32.mrb[0].mxu0
        %v6316 = vadd.f32 0.0, %v6315
        %v6317 = vpop.f32.mrb[0].mxu0
        %6318 = vmatprep.mubr.bf16.mxu0 %v3947
        %6319 = vmatmul.mubr.bf16.gmra.mrb[0].mxu0 %v4113
        %v6320 = vpop.f32.mrb[0].mxu0
        %v6321 = vadd.f32 0.0, %v6320
        %v6322 = vpop.f32.mrb[0].mxu0
        %v6323 = vpop.f32.mrb[0].mxu0
        %v6324 = vadd.f32 0.0, %v6323
        %v6325 = vpop.f32.mrb[0].mxu0
        %6326 = vmatprep.mubr.bf16.mxu0 %v3948
        %6327 = vmatmul.mubr.bf16.gmra.mrb[0].mxu0 %v4280
        %v6328 = vpop.f32.mrb[0].mxu0
        %v6329 = vadd.f32 0.0, %v6328
        %v6330 = vpop.f32.mrb[0].mxu0
        %v6331 = vpop.f32.mrb[0].mxu0
        %v6332 = vadd.f32 0.0, %v6331
        %v6333 = vpop.f32.mrb[0].mxu0
        %6334 = vmatprep.mubr.bf16.mxu0 %v3949
        %6335 = vmatmul.mubr.bf16.gmra.mrb[0].mxu0 %v4128
        %v6336 = vpop.f32.mrb[0].mxu0
        %v6337 = vadd.f32 0.0, %v6336
        %v6338 = vpop.f32.mrb[0].mxu0
        %v6339 = vpop.f32.mrb[0].mxu0
        %v6340 = vadd.f32 0.0, %v6339
        %v6341 = vpop.f32.mrb[0].mxu0
        %6342 = vmatprep.mubr.bf16.mxu0 %v3950
        %6343 = vmatmul.mubr.bf16.gmra.mrb[0].mxu0 %v4281
        %v6344 = vpop.f32.mrb[0].mxu0
        %v6345 = vadd.f32 0.0, %v6344
        %v6346 = vpop.f32.mrb[0].mxu0
        %v6347 = vpop.f32.mrb[0].mxu0
        %v6348 = vadd.f32 0.0, %v6347
        %v6349 = vpop.f32.mrb[0].mxu0
        %6350 = vmatprep.mubr.bf16.mxu0 %v3951
        %6351 = vmatmul.mubr.bf16.gmra.mrb[0].mxu0 %v4143
        %v6352 = vpop.f32.mrb[0].mxu0
        %v6353 = vadd.f32 0.0, %v6352
        %v6354 = vpop.f32.mrb[0].mxu0
        %v6355 = vpop.f32.mrb[0].mxu0
        %v6356 = vadd.f32 0.0, %v6355
        %v6357 = vpop.f32.mrb[0].mxu0
        %6358 = vmatprep.mubr.bf16.mxu0 %v3952
        %6359 = vmatmul.mubr.bf16.gmra.mrb[0].mxu0 %v4282
        %v6360 = vpop.f32.mrb[0].mxu0
        %v6361 = vadd.f32 0.0, %v6360
        %v6362 = vpop.f32.mrb[0].mxu0
        %v6363 = vpop.f32.mrb[0].mxu0
        %v6364 = vadd.f32 0.0, %v6363
        %v6365 = vpop.f32.mrb[0].mxu0
        %6366 = vmatprep.mubr.bf16.mxu0 %v3953
        %6367 = vmatmul.mubr.bf16.gmra.mrb[0].mxu0 %v4158
        %v6368 = vpop.f32.mrb[0].mxu0
        %v6369 = vadd.f32 0.0, %v6368
        %v6370 = vpop.f32.mrb[0].mxu0
        %v6371 = vpop.f32.mrb[0].mxu0
        %v6372 = vadd.f32 0.0, %v6371
        %v6373 = vpop.f32.mrb[0].mxu0
        %6374 = vmatprep.mubr.bf16.mxu0 %v3954
        %6375 = vmatmul.mubr.bf16.gmra.mrb[0].mxu0 %v4283
        %v6376 = vpop.f32.mrb[0].mxu0
        %v6377 = vadd.f32 0.0, %v6376
        %v6378 = vpop.f32.mrb[0].mxu0
        %v6379 = vpop.f32.mrb[0].mxu0
        %v6380 = vadd.f32 0.0, %v6379
        %v6381 = vpop.f32.mrb[0].mxu0
        %6382 = vmatprep.mubr.bf16.mxu0 %v3955
        %6383 = vmatmul.mubr.bf16.gmra.mrb[0].mxu0 %v4173
        %v6384 = vpop.f32.mrb[0].mxu0
        %v6385 = vadd.f32 0.0, %v6384
        %v6386 = vpop.f32.mrb[0].mxu0
        %v6387 = vpop.f32.mrb[0].mxu0
        %v6388 = vadd.f32 0.0, %v6387
        %v6389 = vpop.f32.mrb[0].mxu0
        %6390 = vmatprep.mubr.bf16.mxu0 %v3956
        %6391 = vmatmul.mubr.bf16.gmra.mrb[0].mxu0 %v4284
        %v6392 = vpop.f32.mrb[0].mxu0
        %v6393 = vadd.f32 0.0, %v6392
        %v6394 = vpop.f32.mrb[0].mxu0
        %v6395 = vpop.f32.mrb[0].mxu0
        %v6396 = vadd.f32 0.0, %v6395
        %v6397 = vpop.f32.mrb[0].mxu0
        %6398 = vmatprep.mubr.bf16.mxu0 %v3957
        %6399 = vmatmul.mubr.bf16.gmra.mrb[0].mxu0 %v4188
        %v6400 = vpop.f32.mrb[0].mxu0
        %v6401 = vadd.f32 0.0, %v6400
        %v6402 = vpop.f32.mrb[0].mxu0
        %v6403 = vpop.f32.mrb[0].mxu0
        %v6404 = vadd.f32 0.0, %v6403
        %v6405 = vpop.f32.mrb[0].mxu0
        %6406 = vmatprep.mubr.bf16.mxu0 %v3958
        %6407 = vmatmul.mubr.bf16.gmra.mrb[0].mxu0 %v4285
        %v6408 = vpop.f32.mrb[0].mxu0
        %v6409 = vadd.f32 0.0, %v6408
        %v6410 = vpop.f32.mrb[0].mxu0
        %v6411 = vpop.f32.mrb[0].mxu0
        %v6412 = vadd.f32 0.0, %v6411
        %v6413 = vpop.f32.mrb[0].mxu0
        %6414 = vmatprep.mubr.bf16.mxu0 %v3959
        %6415 = vmatmul.mubr.bf16.gmra.mrb[0].mxu0 %v4203
        %v6416 = vpop.f32.mrb[0].mxu0
        %v6417 = vadd.f32 0.0, %v6416
        %v6418 = vpop.f32.mrb[0].mxu0
        %v6419 = vpop.f32.mrb[0].mxu0
        %v6420 = vadd.f32 0.0, %v6419
        %v6421 = vpop.f32.mrb[0].mxu0
        %6422 = vmatprep.mubr.bf16.mxu0 %v3960
        %6423 = vmatmul.mubr.bf16.gmra.mrb[0].mxu0 %v4286
        %v6424 = vpop.f32.mrb[0].mxu0
        %v6425 = vadd.f32 0.0, %v6424
        %v6426 = vpop.f32.mrb[0].mxu0
        %v6427 = vpop.f32.mrb[0].mxu0
        %v6428 = vadd.f32 0.0, %v6427
        %v6429 = vpop.f32.mrb[0].mxu0
        %6430 = vmatprep.mubr.bf16.mxu0 %v3961
        %6431 = vmatmul.mubr.bf16.gmra.mrb[0].mxu0 %v4218
        %v6432 = vpop.f32.mrb[0].mxu0
        %v6433 = vadd.f32 0.0, %v6432
        %v6434 = vpop.f32.mrb[0].mxu0
        %v6435 = vpop.f32.mrb[0].mxu0
        %v6436 = vadd.f32 0.0, %v6435
        %v6437 = vpop.f32.mrb[0].mxu0
        %6438 = vmatprep.mubr.bf16.mxu0 %v3962
        %6439 = vmatmul.mubr.bf16.gmra.mrb[0].mxu0 %v4287
        %v6440 = vpop.f32.mrb[0].mxu0
        %v6441 = vadd.f32 0.0, %v6440
        %v6442 = vpop.f32.mrb[0].mxu0
        %v6443 = vpop.f32.mrb[0].mxu0
        %v6444 = vadd.f32 0.0, %v6443
        %v6445 = vpop.f32.mrb[0].mxu0
        %6446 = vmatprep.mubr.bf16.mxu0 %v3963
        %6447 = vmatmul.mubr.bf16.gmra.mrb[0].mxu0 %v4233
        %v6448 = vpop.f32.mrb[0].mxu0
        %v6449 = vadd.f32 0.0, %v6448
        %v6450 = vpop.f32.mrb[0].mxu0
        %v6451 = vpop.f32.mrb[0].mxu0
        %v6452 = vadd.f32 0.0, %v6451
        %v6453 = vpop.f32.mrb[0].mxu0
        %6454 = vdwg.mxu0
        %6455 = vmatprep.subr.bf16.mxu0 0
        %6456 = vmatpush1.bf16.msra.mxu0 %v6134
        %6457 = vmatprep.subr.bf16.mxu0 0
        %6458 = vmatpush1.bf16.msra.mxu0 %v6135
        %6459 = vmatprep.subr.bf16.mxu0 0
        %6460 = vmatpush1.bf16.msra.mxu0 %v6136
        %6461 = vmatprep.subr.bf16.mxu0 0
        %6462 = vmatpush1.bf16.msra.mxu0 %v6137
        %6463 = vmatprep.subr.bf16.mxu0 0
        %6464 = vmatpush1.bf16.msra.mxu0 %v6138
        %6465 = vmatprep.subr.bf16.mxu0 0
        %6466 = vmatpush1.bf16.msra.mxu0 %v6139
        %6467 = vmatprep.subr.bf16.mxu0 0
        %6468 = vmatpush1.bf16.msra.mxu0 %v6140
        %6469 = vmatprep.subr.bf16.mxu0 0
        %6470 = vmatpush1.bf16.msra.mxu0 %v6141
        %6471 = vmatprep.subr.bf16.mxu0 0
        %6472 = vmatpush1.bf16.msra.mxu0 0
        %6473 = vmatprep.subr.bf16.mxu0 0
        %6474 = vmatpush1.bf16.msra.mxu0 0
        %6475 = vmatprep.subr.bf16.mxu0 0
        %6476 = vmatpush1.bf16.msra.mxu0 0
        %6477 = vmatprep.subr.bf16.mxu0 0
        %6478 = vmatpush1.bf16.msra.mxu0 0
        %6479 = vmatprep.subr.bf16.mxu0 0
        %6480 = vmatpush1.bf16.msra.mxu0 0
        %6481 = vmatprep.subr.bf16.mxu0 0
        %6482 = vmatpush1.bf16.msra.mxu0 0
        %6483 = vmatprep.subr.bf16.mxu0 0
        %6484 = vmatpush1.bf16.msra.mxu0 0
        %6485 = vmatprep.subr.bf16.mxu0 0
        %6486 = vmatpush1.bf16.msra.mxu0 0
        %6487 = vmatprep.mubr.bf16.mxu0 0
        %6488 = vmatmul.mubr.bf16.gmra.mrb[0].mxu0 %v4301
        %v6489 = vpop.f32.mrb[0].mxu0
        %v6490 = vadd.f32 %v6201, %v6489
        %v6491 = vpop.f32.mrb[0].mxu0
        %v6492 = vpop.f32.mrb[0].mxu0
        %v6493 = vadd.f32 %v6204, %v6492
        %v6494 = vpop.f32.mrb[0].mxu0
        %6495 = vmatprep.mubr.bf16.mxu0 0
        %6496 = vmatmul.mubr.bf16.gmra.mrb[0].mxu0 %v4416
        %v6497 = vpop.f32.mrb[0].mxu0
        %v6498 = vadd.f32 %v6209, %v6497
        %v6499 = vpop.f32.mrb[0].mxu0
        %v6500 = vpop.f32.mrb[0].mxu0
        %v6501 = vadd.f32 %v6212, %v6500
        %v6502 = vpop.f32.mrb[0].mxu0
        %6503 = vmatprep.mubr.bf16.mxu0 0
        %6504 = vmatmul.mubr.bf16.gmra.mrb[0].mxu0 %v4306
        %v6505 = vpop.f32.mrb[0].mxu0
        %v6506 = vadd.f32 %v6217, %v6505
        %v6507 = vpop.f32.mrb[0].mxu0
        %v6508 = vpop.f32.mrb[0].mxu0
        %v6509 = vadd.f32 %v6220, %v6508
        %v6510 = vpop.f32.mrb[0].mxu0
        %6511 = vmatprep.mubr.bf16.mxu0 0
        %6512 = vmatmul.mubr.bf16.gmra.mrb[0].mxu0 %v4417
        %v6513 = vpop.f32.mrb[0].mxu0
        %v6514 = vadd.f32 %v6225, %v6513
        %v6515 = vpop.f32.mrb[0].mxu0
        %v6516 = vpop.f32.mrb[0].mxu0
        %v6517 = vadd.f32 %v6228, %v6516
        %v6518 = vpop.f32.mrb[0].mxu0
        %6519 = vmatprep.mubr.bf16.mxu0 0
        %6520 = vmatmul.mubr.bf16.gmra.mrb[0].mxu0 %v4311
        %v6521 = vpop.f32.mrb[0].mxu0
        %v6522 = vadd.f32 %v6233, %v6521
        %v6523 = vpop.f32.mrb[0].mxu0
        %v6524 = vpop.f32.mrb[0].mxu0
        %v6525 = vadd.f32 %v6236, %v6524
        %v6526 = vpop.f32.mrb[0].mxu0
        %6527 = vmatprep.mubr.bf16.mxu0 0
        %6528 = vmatmul.mubr.bf16.gmra.mrb[0].mxu0 %v4418
        %v6529 = vpop.f32.mrb[0].mxu0
        %v6530 = vadd.f32 %v6241, %v6529
        %v6531 = vpop.f32.mrb[0].mxu0
        %v6532 = vpop.f32.mrb[0].mxu0
        %v6533 = vadd.f32 %v6244, %v6532
        %v6534 = vpop.f32.mrb[0].mxu0
        %6535 = vmatprep.mubr.bf16.mxu0 0
        %6536 = vmatmul.mubr.bf16.gmra.mrb[0].mxu0 %v4316
        %v6537 = vpop.f32.mrb[0].mxu0
        %v6538 = vadd.f32 %v6249, %v6537
        %v6539 = vpop.f32.mrb[0].mxu0
        %v6540 = vpop.f32.mrb[0].mxu0
        %v6541 = vadd.f32 %v6252, %v6540
        %v6542 = vpop.f32.mrb[0].mxu0
        %6543 = vmatprep.mubr.bf16.mxu0 0
        %6544 = vmatmul.mubr.bf16.gmra.mrb[0].mxu0 %v4419
        %v6545 = vpop.f32.mrb[0].mxu0
        %v6546 = vadd.f32 %v6257, %v6545
        %v6547 = vpop.f32.mrb[0].mxu0
        %v6548 = vpop.f32.mrb[0].mxu0
        %v6549 = vadd.f32 %v6260, %v6548
        %v6550 = vpop.f32.mrb[0].mxu0
        %6551 = vmatprep.mubr.bf16.mxu0 0
        %6552 = vmatmul.mubr.bf16.gmra.mrb[0].mxu0 %v4321
        %v6553 = vpop.f32.mrb[0].mxu0
        %v6554 = vadd.f32 %v6265, %v6553
        %v6555 = vpop.f32.mrb[0].mxu0
        %v6556 = vpop.f32.mrb[0].mxu0
        %v6557 = vadd.f32 %v6268, %v6556
        %v6558 = vpop.f32.mrb[0].mxu0
        %6559 = vmatprep.mubr.bf16.mxu0 0
        %6560 = vmatmul.mubr.bf16.gmra.mrb[0].mxu0 %v4420
        %v6561 = vpop.f32.mrb[0].mxu0
        %v6562 = vadd.f32 %v6273, %v6561
        %v6563 = vpop.f32.mrb[0].mxu0
        %v6564 = vpop.f32.mrb[0].mxu0
        %v6565 = vadd.f32 %v6276, %v6564
        %v6566 = vpop.f32.mrb[0].mxu0
        %6567 = vmatprep.mubr.bf16.mxu0 0
        %6568 = vmatmul.mubr.bf16.gmra.mrb[0].mxu0 %v4326
        %v6569 = vpop.f32.mrb[0].mxu0
        %v6570 = vadd.f32 %v6281, %v6569
        %v6571 = vpop.f32.mrb[0].mxu0
        %v6572 = vpop.f32.mrb[0].mxu0
        %v6573 = vadd.f32 %v6284, %v6572
        %v6574 = vpop.f32.mrb[0].mxu0
        %6575 = vmatprep.mubr.bf16.mxu0 0
        %6576 = vmatmul.mubr.bf16.gmra.mrb[0].mxu0 %v4421
        %v6577 = vpop.f32.mrb[0].mxu0
        %v6578 = vadd.f32 %v6289, %v6577
        %v6579 = vpop.f32.mrb[0].mxu0
        %v6580 = vpop.f32.mrb[0].mxu0
        %v6581 = vadd.f32 %v6292, %v6580
        %v6582 = vpop.f32.mrb[0].mxu0
        %6583 = vmatprep.mubr.bf16.mxu0 0
        %6584 = vmatmul.mubr.bf16.gmra.mrb[0].mxu0 %v4331
        %v6585 = vpop.f32.mrb[0].mxu0
        %v6586 = vadd.f32 %v6297, %v6585
        %v6587 = vpop.f32.mrb[0].mxu0
        %v6588 = vpop.f32.mrb[0].mxu0
        %v6589 = vadd.f32 %v6300, %v6588
        %v6590 = vpop.f32.mrb[0].mxu0
        %6591 = vmatprep.mubr.bf16.mxu0 0
        %6592 = vmatmul.mubr.bf16.gmra.mrb[0].mxu0 %v4422
        %v6593 = vpop.f32.mrb[0].mxu0
        %v6594 = vadd.f32 %v6305, %v6593
        %v6595 = vpop.f32.mrb[0].mxu0
        %v6596 = vpop.f32.mrb[0].mxu0
        %v6597 = vadd.f32 %v6308, %v6596
        %v6598 = vpop.f32.mrb[0].mxu0
        %6599 = vmatprep.mubr.bf16.mxu0 0
        %6600 = vmatmul.mubr.bf16.gmra.mrb[0].mxu0 %v4336
        %v6601 = vpop.f32.mrb[0].mxu0
        %v6602 = vadd.f32 %v6313, %v6601
        %v6603 = vpop.f32.mrb[0].mxu0
        %v6604 = vpop.f32.mrb[0].mxu0
        %v6605 = vadd.f32 %v6316, %v6604
        %v6606 = vpop.f32.mrb[0].mxu0
        %6607 = vmatprep.mubr.bf16.mxu0 0
        %6608 = vmatmul.mubr.bf16.gmra.mrb[0].mxu0 %v4423
        %v6609 = vpop.f32.mrb[0].mxu0
        %v6610 = vadd.f32 %v6321, %v6609
        %v6611 = vpop.f32.mrb[0].mxu0
        %v6612 = vpop.f32.mrb[0].mxu0
        %v6613 = vadd.f32 %v6324, %v6612
        %v6614 = vpop.f32.mrb[0].mxu0
        %6615 = vmatprep.mubr.bf16.mxu0 0
        %6616 = vmatmul.mubr.bf16.gmra.mrb[0].mxu0 %v4341
        %v6617 = vpop.f32.mrb[0].mxu0
        %v6618 = vadd.f32 %v6329, %v6617
        %v6619 = vpop.f32.mrb[0].mxu0
        %v6620 = vpop.f32.mrb[0].mxu0
        %v6621 = vadd.f32 %v6332, %v6620
        %v6622 = vpop.f32.mrb[0].mxu0
        %6623 = vmatprep.mubr.bf16.mxu0 0
        %6624 = vmatmul.mubr.bf16.gmra.mrb[0].mxu0 %v4424
        %v6625 = vpop.f32.mrb[0].mxu0
        %v6626 = vadd.f32 %v6337, %v6625
        %v6627 = vpop.f32.mrb[0].mxu0
        %v6628 = vpop.f32.mrb[0].mxu0
        %v6629 = vadd.f32 %v6340, %v6628
        %v6630 = vpop.f32.mrb[0].mxu0
        %6631 = vmatprep.mubr.bf16.mxu0 0
        %6632 = vmatmul.mubr.bf16.gmra.mrb[0].mxu0 %v4346
        %v6633 = vpop.f32.mrb[0].mxu0
        %v6634 = vadd.f32 %v6345, %v6633
        %v6635 = vpop.f32.mrb[0].mxu0
        %v6636 = vpop.f32.mrb[0].mxu0
        %v6637 = vadd.f32 %v6348, %v6636
        %v6638 = vpop.f32.mrb[0].mxu0
        %6639 = vmatprep.mubr.bf16.mxu0 0
        %6640 = vmatmul.mubr.bf16.gmra.mrb[0].mxu0 %v4425
        %v6641 = vpop.f32.mrb[0].mxu0
        %v6642 = vadd.f32 %v6353, %v6641
        %v6643 = vpop.f32.mrb[0].mxu0
        %v6644 = vpop.f32.mrb[0].mxu0
        %v6645 = vadd.f32 %v6356, %v6644
        %v6646 = vpop.f32.mrb[0].mxu0
        %6647 = vmatprep.mubr.bf16.mxu0 0
        %6648 = vmatmul.mubr.bf16.gmra.mrb[0].mxu0 %v4351
        %v6649 = vpop.f32.mrb[0].mxu0
        %v6650 = vadd.f32 %v6361, %v6649
        %v6651 = vpop.f32.mrb[0].mxu0
        %v6652 = vpop.f32.mrb[0].mxu0
        %v6653 = vadd.f32 %v6364, %v6652
        %v6654 = vpop.f32.mrb[0].mxu0
        %6655 = vmatprep.mubr.bf16.mxu0 0
        %6656 = vmatmul.mubr.bf16.gmra.mrb[0].mxu0 %v4426
        %v6657 = vpop.f32.mrb[0].mxu0
        %v6658 = vadd.f32 %v6369, %v6657
        %v6659 = vpop.f32.mrb[0].mxu0
        %v6660 = vpop.f32.mrb[0].mxu0
        %v6661 = vadd.f32 %v6372, %v6660
        %v6662 = vpop.f32.mrb[0].mxu0
        %6663 = vmatprep.mubr.bf16.mxu0 0
        %6664 = vmatmul.mubr.bf16.gmra.mrb[0].mxu0 %v4356
        %v6665 = vpop.f32.mrb[0].mxu0
        %v6666 = vadd.f32 %v6377, %v6665
        %v6667 = vpop.f32.mrb[0].mxu0
        %v6668 = vpop.f32.mrb[0].mxu0
        %v6669 = vadd.f32 %v6380, %v6668
        %v6670 = vpop.f32.mrb[0].mxu0
        %6671 = vmatprep.mubr.bf16.mxu0 0
        %6672 = vmatmul.mubr.bf16.gmra.mrb[0].mxu0 %v4427
        %v6673 = vpop.f32.mrb[0].mxu0
        %v6674 = vadd.f32 %v6385, %v6673
        %v6675 = vpop.f32.mrb[0].mxu0
        %v6676 = vpop.f32.mrb[0].mxu0
        %v6677 = vadd.f32 %v6388, %v6676
        %v6678 = vpop.f32.mrb[0].mxu0
        %6679 = vmatprep.mubr.bf16.mxu0 0
        %6680 = vmatmul.mubr.bf16.gmra.mrb[0].mxu0 %v4361
        %v6681 = vpop.f32.mrb[0].mxu0
        %v6682 = vadd.f32 %v6393, %v6681
        %v6683 = vpop.f32.mrb[0].mxu0
        %v6684 = vpop.f32.mrb[0].mxu0
        %v6685 = vadd.f32 %v6396, %v6684
        %v6686 = vpop.f32.mrb[0].mxu0
        %6687 = vmatprep.mubr.bf16.mxu0 0
        %6688 = vmatmul.mubr.bf16.gmra.mrb[0].mxu0 %v4428
        %v6689 = vpop.f32.mrb[0].mxu0
        %v6690 = vadd.f32 %v6401, %v6689
        %v6691 = vpop.f32.mrb[0].mxu0
        %v6692 = vpop.f32.mrb[0].mxu0
        %v6693 = vadd.f32 %v6404, %v6692
        %v6694 = vpop.f32.mrb[0].mxu0
        %6695 = vmatprep.mubr.bf16.mxu0 0
        %6696 = vmatmul.mubr.bf16.gmra.mrb[0].mxu0 %v4366
        %v6697 = vpop.f32.mrb[0].mxu0
        %v6698 = vadd.f32 %v6409, %v6697
        %v6699 = vpop.f32.mrb[0].mxu0
        %v6700 = vpop.f32.mrb[0].mxu0
        %v6701 = vadd.f32 %v6412, %v6700
        %v6702 = vpop.f32.mrb[0].mxu0
        %6703 = vmatprep.mubr.bf16.mxu0 0
        %6704 = vmatmul.mubr.bf16.gmra.mrb[0].mxu0 %v4429
        %v6705 = vpop.f32.mrb[0].mxu0
        %v6706 = vadd.f32 %v6417, %v6705
        %v6707 = vpop.f32.mrb[0].mxu0
        %v6708 = vpop.f32.mrb[0].mxu0
        %v6709 = vadd.f32 %v6420, %v6708
        %v6710 = vpop.f32.mrb[0].mxu0
        %6711 = vmatprep.mubr.bf16.mxu0 0
        %6712 = vmatmul.mubr.bf16.gmra.mrb[0].mxu0 %v4371
        %v6713 = vpop.f32.mrb[0].mxu0
        %v6714 = vadd.f32 %v6425, %v6713
        %v6715 = vpop.f32.mrb[0].mxu0
        %v6716 = vpop.f32.mrb[0].mxu0
        %v6717 = vadd.f32 %v6428, %v6716
        %v6718 = vpop.f32.mrb[0].mxu0
        %6719 = vmatprep.mubr.bf16.mxu0 0
        %6720 = vmatmul.mubr.bf16.gmra.mrb[0].mxu0 %v4430
        %v6721 = vpop.f32.mrb[0].mxu0
        %v6722 = vadd.f32 %v6433, %v6721
        %v6723 = vpop.f32.mrb[0].mxu0
        %v6724 = vpop.f32.mrb[0].mxu0
        %v6725 = vadd.f32 %v6436, %v6724
        %v6726 = vpop.f32.mrb[0].mxu0
        %6727 = vmatprep.mubr.bf16.mxu0 0
        %6728 = vmatmul.mubr.bf16.gmra.mrb[0].mxu0 %v4376
        %v6729 = vpop.f32.mrb[0].mxu0
        %v6730 = vadd.f32 %v6441, %v6729
        %v6731 = vpop.f32.mrb[0].mxu0
        %v6732 = vpop.f32.mrb[0].mxu0
        %v6733 = vadd.f32 %v6444, %v6732
        %v6734 = vpop.f32.mrb[0].mxu0
        %6735 = vmatprep.mubr.bf16.mxu0 0
        %6736 = vmatmul.mubr.bf16.gmra.mrb[0].mxu0 %v4431
        %v6737 = vpop.f32.mrb[0].mxu0
        %v6738 = vadd.f32 %v6449, %v6737
        %v6739 = vpop.f32.mrb[0].mxu0
        %v6740 = vpop.f32.mrb[0].mxu0
        %v6741 = vadd.f32 %v6452, %v6740
        %v6742 = vpop.f32.mrb[0].mxu0
        %6743 = vdwg.mxu0
        %v6744 = vadd.f32 %v5719, %v6490
        %v6745 = vadd.f32 %v5722, %v6493
        %v6746 = vadd.f32 %v5727, %v6498
        %v6747 = vadd.f32 %v5730, %v6501
        %v6748 = vadd.f32 %v5735, %v6506
        %v6749 = vadd.f32 %v5738, %v6509
        %v6750 = vadd.f32 %v5743, %v6514
        %v6751 = vadd.f32 %v5746, %v6517
        %v6752 = vadd.f32 %v5751, %v6522
        %v6753 = vadd.f32 %v5754, %v6525
        %v6754 = vadd.f32 %v5759, %v6530
        %v6755 = vadd.f32 %v5762, %v6533
        %v6756 = vadd.f32 %v5767, %v6538
        %v6757 = vadd.f32 %v5770, %v6541
        %v6758 = vadd.f32 %v5775, %v6546
        %v6759 = vadd.f32 %v5778, %v6549
        %v6760 = vadd.f32 %v5783, %v6554
        %v6761 = vadd.f32 %v5786, %v6557
        %v6762 = vadd.f32 %v5791, %v6562
        %v6763 = vadd.f32 %v5794, %v6565
        %v6764 = vadd.f32 %v5799, %v6570
        %v6765 = vadd.f32 %v5802, %v6573
        %v6766 = vadd.f32 %v5807, %v6578
        %v6767 = vadd.f32 %v5810, %v6581
        %v6768 = vadd.f32 %v5815, %v6586
        %v6769 = vadd.f32 %v5818, %v6589
        %v6770 = vadd.f32 %v5823, %v6594
        %v6771 = vadd.f32 %v5826, %v6597
        %v6772 = vadd.f32 %v5831, %v6602
        %v6773 = vadd.f32 %v5834, %v6605
        %v6774 = vadd.f32 %v5839, %v6610
        %v6775 = vadd.f32 %v5842, %v6613
        %v6776 = vadd.f32 %v5847, %v6618
        %v6777 = vadd.f32 %v5850, %v6621
        %v6778 = vadd.f32 %v5855, %v6626
        %v6779 = vadd.f32 %v5858, %v6629
        %v6780 = vadd.f32 %v5863, %v6634
        %v6781 = vadd.f32 %v5866, %v6637
        %v6782 = vadd.f32 %v5871, %v6642
        %v6783 = vadd.f32 %v5874, %v6645
        %v6784 = vadd.f32 %v5879, %v6650
        %v6785 = vadd.f32 %v5882, %v6653
        %v6786 = vadd.f32 %v5887, %v6658
        %v6787 = vadd.f32 %v5890, %v6661
        %v6788 = vadd.f32 %v5895, %v6666
        %v6789 = vadd.f32 %v5898, %v6669
        %v6790 = vadd.f32 %v5903, %v6674
        %v6791 = vadd.f32 %v5906, %v6677
        %v6792 = vadd.f32 %v5911, %v6682
        %v6793 = vadd.f32 %v5914, %v6685
        %v6794 = vadd.f32 %v5919, %v6690
        %v6795 = vadd.f32 %v5922, %v6693
        %v6796 = vadd.f32 %v5927, %v6698
        %v6797 = vadd.f32 %v5930, %v6701
        %v6798 = vadd.f32 %v5935, %v6706
        %v6799 = vadd.f32 %v5938, %v6709
        %v6800 = vadd.f32 %v5943, %v6714
        %v6801 = vadd.f32 %v5946, %v6717
        %v6802 = vadd.f32 %v5951, %v6722
        %v6803 = vadd.f32 %v5954, %v6725
        %v6804 = vadd.f32 %v5959, %v6730
        %v6805 = vadd.f32 %v5962, %v6733
        %v6806 = vadd.f32 %v5967, %v6738
        %v6807 = vadd.f32 %v5970, %v6741
        %v6808 = vld [vmem:[%s6] sm:$0x1]
        %v6810 = vlaneseq
        %v6811 = vshrl.u32 %v6810, 7
        %v6812 = vsub.s32 0, %v6811
        %v6813 = vrot.slane %v6808, %v6812
        %v6815 = vadd.f32 %v6744, %v6813
        %v6816 = vadd.f32 %v6745, %v6813
        %v6817 = vadd.f32 %v6746, %v6813
        %v6818 = vadd.f32 %v6747, %v6813
        %v6819 = vadd.f32 %v6748, %v6813
        %v6820 = vadd.f32 %v6749, %v6813
        %v6821 = vadd.f32 %v6750, %v6813
        %v6822 = vadd.f32 %v6751, %v6813
        %v6823 = vadd.f32 %v6752, %v6813
        %v6824 = vadd.f32 %v6753, %v6813
        %v6825 = vadd.f32 %v6754, %v6813
        %v6826 = vadd.f32 %v6755, %v6813
        %v6827 = vadd.f32 %v6756, %v6813
        %v6828 = vadd.f32 %v6757, %v6813
        %v6829 = vadd.f32 %v6758, %v6813
        %v6830 = vadd.f32 %v6759, %v6813
        %v6831 = vadd.f32 %v6760, %v6813
        %v6832 = vadd.f32 %v6761, %v6813
        %v6833 = vadd.f32 %v6762, %v6813
        %v6834 = vadd.f32 %v6763, %v6813
        %v6835 = vadd.f32 %v6764, %v6813
        %v6836 = vadd.f32 %v6765, %v6813
        %v6837 = vadd.f32 %v6766, %v6813
        %v6838 = vadd.f32 %v6767, %v6813
        %v6839 = vadd.f32 %v6768, %v6813
        %v6840 = vadd.f32 %v6769, %v6813
        %v6841 = vadd.f32 %v6770, %v6813
        %v6842 = vadd.f32 %v6771, %v6813
        %v6843 = vadd.f32 %v6772, %v6813
        %v6844 = vadd.f32 %v6773, %v6813
        %v6845 = vadd.f32 %v6774, %v6813
        %v6846 = vadd.f32 %v6775, %v6813
        %v6847 = vadd.f32 %v6776, %v6813
        %v6848 = vadd.f32 %v6777, %v6813
        %v6849 = vadd.f32 %v6778, %v6813
        %v6850 = vadd.f32 %v6779, %v6813
        %v6851 = vadd.f32 %v6780, %v6813
        %v6852 = vadd.f32 %v6781, %v6813
        %v6853 = vadd.f32 %v6782, %v6813
        %v6854 = vadd.f32 %v6783, %v6813
        %v6855 = vadd.f32 %v6784, %v6813
        %v6856 = vadd.f32 %v6785, %v6813
        %v6857 = vadd.f32 %v6786, %v6813
        %v6858 = vadd.f32 %v6787, %v6813
        %v6859 = vadd.f32 %v6788, %v6813
        %v6860 = vadd.f32 %v6789, %v6813
        %v6861 = vadd.f32 %v6790, %v6813
        %v6862 = vadd.f32 %v6791, %v6813
        %v6863 = vadd.f32 %v6792, %v6813
        %v6864 = vadd.f32 %v6793, %v6813
        %v6865 = vadd.f32 %v6794, %v6813
        %v6866 = vadd.f32 %v6795, %v6813
        %v6867 = vadd.f32 %v6796, %v6813
        %v6868 = vadd.f32 %v6797, %v6813
        %v6869 = vadd.f32 %v6798, %v6813
        %v6870 = vadd.f32 %v6799, %v6813
        %v6871 = vadd.f32 %v6800, %v6813
        %v6872 = vadd.f32 %v6801, %v6813
        %v6873 = vadd.f32 %v6802, %v6813
        %v6874 = vadd.f32 %v6803, %v6813
        %v6875 = vadd.f32 %v6804, %v6813
        %v6876 = vadd.f32 %v6805, %v6813
        %v6877 = vadd.f32 %v6806, %v6813
        %v6878 = vadd.f32 %v6807, %v6813
        %v6879 = vadd.f32 %v493, %v6815
        %v6880 = vadd.f32 %v494, %v6816
        %v6881 = vadd.f32 %v495, %v6817
        %v6882 = vadd.f32 %v496, %v6818
        %v6883 = vadd.f32 %v497, %v6819
        %v6884 = vadd.f32 %v498, %v6820
        %v6885 = vadd.f32 %v499, %v6821
        %v6886 = vadd.f32 %v500, %v6822
        %v6887 = vadd.f32 %v501, %v6823
        %v6888 = vadd.f32 %v502, %v6824
        %v6889 = vadd.f32 %v503, %v6825
        %v6890 = vadd.f32 %v504, %v6826
        %v6891 = vadd.f32 %v505, %v6827
        %v6892 = vadd.f32 %v506, %v6828
        %v6893 = vadd.f32 %v507, %v6829
        %v6894 = vadd.f32 %v508, %v6830
        %v6895 = vadd.f32 %v509, %v6831
        %v6896 = vadd.f32 %v510, %v6832
        %v6897 = vadd.f32 %v511, %v6833
        %v6898 = vadd.f32 %v512, %v6834
        %v6899 = vadd.f32 %v513, %v6835
        %v6900 = vadd.f32 %v514, %v6836
        %v6901 = vadd.f32 %v515, %v6837
        %v6902 = vadd.f32 %v516, %v6838
        %v6903 = vadd.f32 %v517, %v6839
        %v6904 = vadd.f32 %v518, %v6840
        %v6905 = vadd.f32 %v519, %v6841
        %v6906 = vadd.f32 %v520, %v6842
        %v6907 = vadd.f32 %v521, %v6843
        %v6908 = vadd.f32 %v522, %v6844
        %v6909 = vadd.f32 %v523, %v6845
        %v6910 = vadd.f32 %v524, %v6846
        %v6911 = vadd.f32 %v525, %v6847
        %v6912 = vadd.f32 %v526, %v6848
        %v6913 = vadd.f32 %v527, %v6849
        %v6914 = vadd.f32 %v528, %v6850
        %v6915 = vadd.f32 %v529, %v6851
        %v6916 = vadd.f32 %v530, %v6852
        %v6917 = vadd.f32 %v531, %v6853
        %v6918 = vadd.f32 %v532, %v6854
        %v6919 = vadd.f32 %v533, %v6855
        %v6920 = vadd.f32 %v534, %v6856
        %v6921 = vadd.f32 %v535, %v6857
        %v6922 = vadd.f32 %v536, %v6858
        %v6923 = vadd.f32 %v537, %v6859
        %v6924 = vadd.f32 %v538, %v6860
        %v6925 = vadd.f32 %v539, %v6861
        %v6926 = vadd.f32 %v540, %v6862
        %v6927 = vadd.f32 %v541, %v6863
        %v6928 = vadd.f32 %v542, %v6864
        %v6929 = vadd.f32 %v543, %v6865
        %v6930 = vadd.f32 %v544, %v6866
        %v6931 = vadd.f32 %v545, %v6867
        %v6932 = vadd.f32 %v546, %v6868
        %v6933 = vadd.f32 %v547, %v6869
        %v6934 = vadd.f32 %v548, %v6870
        %v6935 = vadd.f32 %v549, %v6871
        %v6936 = vadd.f32 %v550, %v6872
        %v6937 = vadd.f32 %v551, %v6873
        %v6938 = vadd.f32 %v552, %v6874
        %v6939 = vadd.f32 %v553, %v6875
        %v6940 = vadd.f32 %v554, %v6876
        %v6941 = vadd.f32 %v555, %v6877
        %v6942 = vadd.f32 %v556, %v6878
        %v6943 = vmax.f32 %v6879, 0.0
        %v6944 = vmax.f32 %v6880, 0.0
        %v6945 = vmax.f32 %v6881, 0.0
        %v6946 = vmax.f32 %v6882, 0.0
        %v6947 = vmax.f32 %v6883, 0.0
        %v6948 = vmax.f32 %v6884, 0.0
        %v6949 = vmax.f32 %v6885, 0.0
        %v6950 = vmax.f32 %v6886, 0.0
        %v6951 = vmax.f32 %v6887, 0.0
        %v6952 = vmax.f32 %v6888, 0.0
        %v6953 = vmax.f32 %v6889, 0.0
        %v6954 = vmax.f32 %v6890, 0.0
        %v6955 = vmax.f32 %v6891, 0.0
        %v6956 = vmax.f32 %v6892, 0.0
        %v6957 = vmax.f32 %v6893, 0.0
        %v6958 = vmax.f32 %v6894, 0.0
        %v6959 = vmax.f32 %v6895, 0.0
        %v6960 = vmax.f32 %v6896, 0.0
        %v6961 = vmax.f32 %v6897, 0.0
        %v6962 = vmax.f32 %v6898, 0.0
        %v6963 = vmax.f32 %v6899, 0.0
        %v6964 = vmax.f32 %v6900, 0.0
        %v6965 = vmax.f32 %v6901, 0.0
        %v6966 = vmax.f32 %v6902, 0.0
        %v6967 = vmax.f32 %v6903, 0.0
        %v6968 = vmax.f32 %v6904, 0.0
        %v6969 = vmax.f32 %v6905, 0.0
        %v6970 = vmax.f32 %v6906, 0.0
        %v6971 = vmax.f32 %v6907, 0.0
        %v6972 = vmax.f32 %v6908, 0.0
        %v6973 = vmax.f32 %v6909, 0.0
        %v6974 = vmax.f32 %v6910, 0.0
        %v6975 = vmax.f32 %v6911, 0.0
        %v6976 = vmax.f32 %v6912, 0.0
        %v6977 = vmax.f32 %v6913, 0.0
        %v6978 = vmax.f32 %v6914, 0.0
        %v6979 = vmax.f32 %v6915, 0.0
        %v6980 = vmax.f32 %v6916, 0.0
        %v6981 = vmax.f32 %v6917, 0.0
        %v6982 = vmax.f32 %v6918, 0.0
        %v6983 = vmax.f32 %v6919, 0.0
        %v6984 = vmax.f32 %v6920, 0.0
        %v6985 = vmax.f32 %v6921, 0.0
        %v6986 = vmax.f32 %v6922, 0.0
        %v6987 = vmax.f32 %v6923, 0.0
        %v6988 = vmax.f32 %v6924, 0.0
        %v6989 = vmax.f32 %v6925, 0.0
        %v6990 = vmax.f32 %v6926, 0.0
        %v6991 = vmax.f32 %v6927, 0.0
        %v6992 = vmax.f32 %v6928, 0.0
        %v6993 = vmax.f32 %v6929, 0.0
        %v6994 = vmax.f32 %v6930, 0.0
        %v6995 = vmax.f32 %v6931, 0.0
        %v6996 = vmax.f32 %v6932, 0.0
        %v6997 = vmax.f32 %v6933, 0.0
        %v6998 = vmax.f32 %v6934, 0.0
        %v6999 = vmax.f32 %v6935, 0.0
        %v7000 = vmax.f32 %v6936, 0.0
        %v7001 = vmax.f32 %v6937, 0.0
        %v7002 = vmax.f32 %v6938, 0.0
        %v7003 = vmax.f32 %v6939, 0.0
        %v7004 = vmax.f32 %v6940, 0.0
        %v7005 = vmax.f32 %v6941, 0.0
        %v7006 = vmax.f32 %v6942, 0.0
        %7007 = vst [vmem:[%s455] sm:$0xff] %v6943
        %7008 = vst [vmem:[%s455 + $0x8] sm:$0xff] %v6944
        %7009 = vst [vmem:[%s455 + $0x10] sm:$0xff] %v6945
        %7010 = vst [vmem:[%s455 + $0x18] sm:$0xff] %v6946
        %7011 = vst [vmem:[%s455 + $0x20] sm:$0xff] %v6947
        %7012 = vst [vmem:[%s455 + $0x28] sm:$0xff] %v6948
        %7013 = vst [vmem:[%s455 + $0x30] sm:$0xff] %v6949
        %7014 = vst [vmem:[%s455 + $0x38] sm:$0xff] %v6950
        %7015 = vst [vmem:[%s455 + $0x40] sm:$0xff] %v6951
        %7016 = vst [vmem:[%s455 + $0x48] sm:$0xff] %v6952
        %7017 = vst [vmem:[%s455 + $0x50] sm:$0xff] %v6953
        %7018 = vst [vmem:[%s455 + $0x58] sm:$0xff] %v6954
        %7019 = vst [vmem:[%s455 + $0x60] sm:$0xff] %v6955
        %7020 = vst [vmem:[%s455 + $0x68] sm:$0xff] %v6956
        %7021 = vst [vmem:[%s455 + $0x70] sm:$0xff] %v6957
        %7022 = vst [vmem:[%s455 + $0x78] sm:$0xff] %v6958
        %7023 = vst [vmem:[%s455 + $0x80] sm:$0xff] %v6959
        %7024 = vst [vmem:[%s455 + $0x88] sm:$0xff] %v6960
        %7025 = vst [vmem:[%s455 + $0x90] sm:$0xff] %v6961
        %7026 = vst [vmem:[%s455 + $0x98] sm:$0xff] %v6962
        %7027 = vst [vmem:[%s455 + $0xa0] sm:$0xff] %v6963
        %7028 = vst [vmem:[%s455 + $0xa8] sm:$0xff] %v6964
        %7029 = vst [vmem:[%s455 + $0xb0] sm:$0xff] %v6965
        %7030 = vst [vmem:[%s455 + $0xb8] sm:$0xff] %v6966
        %7031 = vst [vmem:[%s455 + $0xc0] sm:$0xff] %v6967
        %7032 = vst [vmem:[%s455 + $0xc8] sm:$0xff] %v6968
        %7033 = vst [vmem:[%s455 + $0xd0] sm:$0xff] %v6969
        %7034 = vst [vmem:[%s455 + $0xd8] sm:$0xff] %v6970
        %7035 = vst [vmem:[%s455 + $0xe0] sm:$0xff] %v6971
        %7036 = vst [vmem:[%s455 + $0xe8] sm:$0xff] %v6972
        %7037 = vst [vmem:[%s455 + $0xf0] sm:$0xff] %v6973
        %7038 = vst [vmem:[%s455 + $0xf8] sm:$0xff] %v6974
        %7039 = vst [vmem:[%s455 + $0x100] sm:$0xff] %v6975
        %7040 = vst [vmem:[%s455 + $0x108] sm:$0xff] %v6976
        %7041 = vst [vmem:[%s455 + $0x110] sm:$0xff] %v6977
        %7042 = vst [vmem:[%s455 + $0x118] sm:$0xff] %v6978
        %7043 = vst [vmem:[%s455 + $0x120] sm:$0xff] %v6979
        %7044 = vst [vmem:[%s455 + $0x128] sm:$0xff] %v6980
        %7045 = vst [vmem:[%s455 + $0x130] sm:$0xff] %v6981
        %7046 = vst [vmem:[%s455 + $0x138] sm:$0xff] %v6982
        %7047 = vst [vmem:[%s455 + $0x140] sm:$0xff] %v6983
        %7048 = vst [vmem:[%s455 + $0x148] sm:$0xff] %v6984
        %7049 = vst [vmem:[%s455 + $0x150] sm:$0xff] %v6985
        %7050 = vst [vmem:[%s455 + $0x158] sm:$0xff] %v6986
        %7051 = vst [vmem:[%s455 + $0x160] sm:$0xff] %v6987
        %7052 = vst [vmem:[%s455 + $0x168] sm:$0xff] %v6988
        %7053 = vst [vmem:[%s455 + $0x170] sm:$0xff] %v6989
        %7054 = vst [vmem:[%s455 + $0x178] sm:$0xff] %v6990
        %7055 = vst [vmem:[%s455 + $0x180] sm:$0xff] %v6991
        %7056 = vst [vmem:[%s455 + $0x188] sm:$0xff] %v6992
        %7057 = vst [vmem:[%s455 + $0x190] sm:$0xff] %v6993
        %7058 = vst [vmem:[%s455 + $0x198] sm:$0xff] %v6994
        %7059 = vst [vmem:[%s455 + $0x1a0] sm:$0xff] %v6995
        %7060 = vst [vmem:[%s455 + $0x1a8] sm:$0xff] %v6996
        %7061 = vst [vmem:[%s455 + $0x1b0] sm:$0xff] %v6997
        %7062 = vst [vmem:[%s455 + $0x1b8] sm:$0xff] %v6998
        %7063 = vst [vmem:[%s455 + $0x1c0] sm:$0xff] %v6999
        %7064 = vst [vmem:[%s455 + $0x1c8] sm:$0xff] %v7000
        %7065 = vst [vmem:[%s455 + $0x1d0] sm:$0xff] %v7001
        %7066 = vst [vmem:[%s455 + $0x1d8] sm:$0xff] %v7002
        %7067 = vst [vmem:[%s455 + $0x1e0] sm:$0xff] %v7003
        %7068 = vst [vmem:[%s455 + $0x1e8] sm:$0xff] %v7004
        %7069 = vst [vmem:[%s455 + $0x1f0] sm:$0xff] %v7005
        %7070 = vst [vmem:[%s455 + $0x1f8] sm:$0xff] %v7006
        %s7071 = sand.u32 %s234, 1
        %s7072 = scalar_lea.sflag [#allocation4], %s7071
        %s7073 = sand.u32 %s234, 1
        %s7074 = smul.addr %s7073, 512
        %s7075 = scalar_lea.vmem [#allocation11], %s7074
        // Predicated region
        $region69: #{tpu_custom_call.1} parent=47 // pred_check
          %p7076 = pneg %p244
        $region70: #{tpu_custom_call.1} parent=47 // pred_check_branch
          %7078 = sbr.rel (%p7076) target = $region72
        $region71: #{tpu_custom_call.1} parent=47 // pred_region
          %s7079 = smul.u32 16, %s33
          %s7081 = ssub.s32 8192, 8192
          %7082 = vsyncadd %s7072, %s7081
          %s7083 = smul.addr %s7079, 4
          %s7084 = smul.addr %s32, 128
          %s7085 = sadd.s32 %s7083, %s7084
          %s7086 = smul.addr %s7085, 128
          %s7087 = scalar_lea.hbm %s7, %s7086
          %s7088 = sshll.u32 %s7075, 4
          %s7089 = int_to_ptr.vmem [resolvable:$true] %s7088
          %7094 = dma.vmem_to_hbm [thread:$0]  %s7089, 8192, %s7087, %s7072, 128, 128, 8
        $region72: #{tpu_custom_call.1} parent=47 // pred_fallthru
          _
      $region48: #{tpu_custom_call.1} parent=5 // pred_fallthru
        _
      %p7095 = scmp.le.s32.totalorder 2, %s23
      // Predicated region
      $region73: #{tpu_custom_call.1} parent=5 // pred_check
        %p7096 = pneg %p7095
      $region74: #{tpu_custom_call.1} parent=5 // pred_check_branch
        %7098 = sbr.rel (%p7096) target = $region76
      $region75: #{tpu_custom_call.1} parent=5 // pred_region
        %s7099 = ssub.s32 %s23, 2
        // Predicated region
        $region77: #{tpu_custom_call.1} parent=75 // pred_check
          %p7100 = pneg %p250
        $region78: #{tpu_custom_call.1} parent=75 // pred_check_branch
          %7102 = sbr.rel (%p7100) target = $region80
        $region79: #{tpu_custom_call.1} parent=75 // pred_region
          %s7103 = sand.u32 %s235, 1
          %s7104 = scalar_lea.sflag [#allocation4], %s7103
          %s7105 = sand.u32 %s235, 1
          %s7106 = smul.addr %s7105, 512
          %s7107 = scalar_lea.vmem [#allocation11], %s7106
          %7108 = dma.done %s7104, 8192
        $region80: #{tpu_custom_call.1} parent=75 // pred_fallthru
          _
      $region76: #{tpu_custom_call.1} parent=5 // pred_fallthru
        _
    $region6: #{tpu_custom_call.1} parent=1 // loop_footer
      %s27 = sadd.s32 1, %s23
    $region7: #{tpu_custom_call.1} parent=1 // loop_footer_branch
      %22 = sbr.rel target = $region3
    $region8: #{tpu_custom_call.1} parent=1 // loop_exit
      _
    %7109 = vsyncpa [#allocation3], 1
    %s7110 = scalar_lea.sflag [#allocation3], 1
    %7111 = vsyncpa %s7110, 1
    %7112 = vsyncpa [#allocation6], 1
    %s7113 = scalar_lea.sflag [#allocation6], 1
    %7114 = vsyncpa %s7113, 1
    %7115 = vsyncpa [#allocation9], 1
    %7116 = vsyncpa [#allocation4], 1
    %s7117 = scalar_lea.sflag [#allocation4], 1
    %7118 = vsyncpa %s7117, 1

</llo_original>
